<compile_context>
chip_gen: v5e
topology: v5e:2x2
jax: 0.10.0
libtpu: 0.0.40
codegen_flags: <defaults>
</compile_context>

<pallas_src>
import math
import functools

import jax
import jax.numpy as jnp
from jax.experimental import pallas as pl
from jax.experimental.pallas import tpu as pltpu

F32 = jnp.float32
# Matmul-operand dtype.  Weights are STORED in this dtype, so bf16 halves the
# weight HBM traffic and weight VMEM; accumulation stays f32.  Set to
# jnp.float32 for bit-closer parity with the PyTorch reference.
MXU_DTYPE = jnp.bfloat16

_WEIGHT_VMEM_BUDGET = 8 * 1024 * 1024  # per-copy weight-tile budget (bytes)


def _default_vmem_limit():
    # Raise the scoped-VMEM limit modestly so full-weight-resident tiles fit;
    # stay well under physical capacity (v7x has only 64 MiB per TensorCore).
    try:
        cap = pltpu.get_tpu_info().vmem_capacity_bytes
        return min(cap // 2, 64 * 1024 * 1024)
    except Exception:
        return None


_VMEM_LIMIT = _default_vmem_limit()


def _cparams(*dimension_semantics):
    return pltpu.CompilerParams(dimension_semantics=dimension_semantics,
                                vmem_limit_bytes=_VMEM_LIMIT)


# ---------------------------------------------------------------------------
# Blocking helpers
# ---------------------------------------------------------------------------

def _round_up(x, m):
    return ((x + m - 1) // m) * m


def _row_block(M, block_m=512):
    """Row tile size + padded row count.  Aim for >=2 row tiles (v7x megacore)
    and pad rows in the wrapper instead of shrinking to odd divisors."""
    if M >= 2 * block_m:
        bm = block_m
    elif M > 8:
        bm = _round_up((M + 1) // 2, 8)
    else:
        bm = 8
    return bm, _round_up(M, bm)


def _col_block(K, N, itemsize):
    """Prefer keeping the full (K, N) weight resident; tile N (128-aligned)
    only when a single copy would blow the weight budget."""
    if K * N * itemsize <= _WEIGHT_VMEM_BUDGET or N % 128 != 0:
        return N
    bn = max(128, (_WEIGHT_VMEM_BUDGET // (K * itemsize)) // 128 * 128)
    while bn > 128 and N % bn != 0:
        bn -= 128
    return bn if N % bn == 0 else N


def _pick_batch_block(B, target=8):
    """Batch-chunk size for the attention kernels: amortize the ~0.35us/step
    grid overhead, but keep >=2 grid steps when possible (v7x megacore)."""
    best = 1
    for d in range(1, min(B, target) + 1):
        if B % d == 0:
            best = d
    if B // best < 2:
        for d in range(best - 1, 0, -1):
            if B % d == 0 and B // d >= 2:
                return d
    return best


# ---------------------------------------------------------------------------
# In-kernel helpers
# ---------------------------------------------------------------------------

def _layer_norm(x, g_ref, b_ref, eps):
    mu = jnp.mean(x, axis=-1, keepdims=True)
    var = jnp.mean((x - mu) ** 2, axis=-1, keepdims=True)
    y = (x - mu) * jax.lax.rsqrt(var + eps)
    return y * g_ref[...].astype(F32) + b_ref[...].astype(F32)


def _softmax_rows(s):
    s = s - jnp.max(s, axis=-1, keepdims=True)
    e = jnp.exp(s)
    # approx reciprocal runs on the EUP slot; use approx=False for bit-level
    # parity with torch.softmax if required.
    return e * pl.reciprocal(jnp.sum(e, axis=-1, keepdims=True), approx=True)


# ---------------------------------------------------------------------------
# Fused (LayerNorm ->) Linear (-> activation) (-> +residual)
# ---------------------------------------------------------------------------

def _make_linear_kernel(activation, eps, has_bias, has_ln, has_residual):
    def kernel(*refs):
        it = iter(refs)
        x_ref = next(it)
        w_ref = next(it)
        b_ref = next(it) if has_bias else None
        if has_ln:
            g_ref = next(it)
            bt_ref = next(it)
        r_ref = next(it) if has_residual else None
        o_ref = next(it)

        x = x_ref[...].astype(F32)
        if has_ln:  # LN prologue over the full (un-tiled) K dimension
            x = _layer_norm(x, g_ref, bt_ref, eps)

        y = jnp.dot(x.astype(MXU_DTYPE), w_ref[...], preferred_element_type=F32)
        if has_bias:
            y = y + b_ref[...].astype(F32)

        if activation == "quick_gelu":          # x * sigmoid(1.702 x)
            y = y * jax.nn.sigmoid(1.702 * y)
        elif activation == "relu":
            y = jnp.maximum(y, 0.0)
        elif activation == "sigmoid":
            y = jax.nn.sigmoid(y)

        if has_residual:                        # fused residual-add epilogue
            y = y + r_ref[...].astype(F32)
        o_ref[...] = y.astype(o_ref.dtype)
    return kernel


def fused_linear(x, w, b=None, *, activation="none", ln=None, residual=None,
                 eps=1e-5, block_m=512):
    """y = act( LN(x) @ w + b ) [+ residual];  x:(M,K), w:(K,N) stored MXU_DTYPE.

    Grid is (N-tiles, M-tiles) with the row axis innermost, so each weight
    block is DMA'd exactly once and stays VMEM-resident across the row sweep
    (usually bn == N -> the whole weight is resident).  Rows are padded to the
    tile size in the wrapper."""
    M, K = x.shape
    N = w.shape[1]
    has_bias = b is not None
    has_ln = ln is not None
    has_res = residual is not None

    bm, Mp = _row_block(M, block_m)
    bn = _col_block(K, N, w.dtype.itemsize)
    if Mp != M:
        x = jnp.pad(x, ((0, Mp - M), (0, 0)))
        if has_res:
            residual = jnp.pad(residual, ((0, Mp - M), (0, 0)))

    xmap = lambda n, m: (m, 0)
    wmap = lambda n, m: (0, n)
    omap = lambda n, m: (m, n)
    colmap = lambda n, m: (0, n)
    cst = lambda n, m: (0, 0)

    args = [x, w]
    in_specs = [pl.BlockSpec((bm, K), xmap), pl.BlockSpec((K, bn), wmap)]
    if has_bias:
        args.append(b.reshape(1, N))
        in_specs.append(pl.BlockSpec((1, bn), colmap))
    if has_ln:
        g, beta = ln
        args += [g.reshape(1, K), beta.reshape(1, K)]
        in_specs += [pl.BlockSpec((1, K), cst), pl.BlockSpec((1, K), cst)]
    if has_res:
        args.append(residual)
        in_specs.append(pl.BlockSpec((bm, bn), omap))

    # TODO(synk): constant-index operands (w/b/ln) still get the default double
    # buffer; pl.Buffered(1) would halve their VMEM footprint on v7x.
    out = pl.pallas_call(
        _make_linear_kernel(activation, eps, has_bias, has_ln, has_res),
        grid=(N // bn, Mp // bm),
        out_shape=jax.ShapeDtypeStruct((Mp, N), x.dtype),
        in_specs=in_specs,
        out_specs=pl.BlockSpec((bm, bn), omap),
        compiler_params=_cparams("arbitrary", "parallel"),
    )(*args)
    return out[:M] if Mp != M else out


# ---------------------------------------------------------------------------
# Fused cross-attention chain:
#   ln_1 -> q-proj -> multi-head attn vs head-major K/V -> out-proj -> +res
# ---------------------------------------------------------------------------

def _make_cross_chain_kernel(heads, dh, scale, eps, need_weights):
    def kernel(hoi_ref, k_ref, v_ref, g_ref, b_ref,
               wq_ref, bq_ref, wo_ref, bo_ref, *o_refs):
        out_ref = o_refs[0]
        bt, L, C = hoi_ref.shape
        G = k_ref.shape[2]
        hoi = hoi_ref[...].astype(F32)                    # (bt, L, C)
        res = hoi.reshape(bt * L, C)                      # residual (pre-LN)
        xn = _layer_norm(res, g_ref, b_ref, eps)
        # One full-width q projection (single MXU matmul); heads peeled below.
        q2d = jnp.dot(xn.astype(MXU_DTYPE), wq_ref[...],
                      preferred_element_type=F32) + bq_ref[...].astype(F32)
        q2d = q2d * scale
        acc = jnp.zeros((bt * L, C), F32)
        p_sum = jnp.zeros((bt, L, G), F32)
        for h in range(heads):                            # static unroll
            lo = h * dh
            qh = q2d[:, lo:lo + dh].reshape(bt, L, dh)
            kh = k_ref[h].astype(MXU_DTYPE)               # (bt, G, dh) head-major
            vh = v_ref[h].astype(MXU_DTYPE)               #   -> no lane slicing
            s = jnp.einsum("bld,bgd->blg", qh.astype(MXU_DTYPE), kh,
                           preferred_element_type=F32)
            pr = _softmax_rows(s)
            oh = jnp.einsum("blg,bgd->bld", pr.astype(MXU_DTYPE), vh,
                            preferred_element_type=F32)
            # Out-projection accumulated per head (row-slice of wo is a free
            # ref view) -> no (bt*L, C) concat of head outputs.
            acc = acc + jnp.dot(oh.reshape(bt * L, dh).astype(MXU_DTYPE),
                                wo_ref[lo:lo + dh, :],
                                preferred_element_type=F32)
            if need_weights:
                p_sum = p_sum + pr
        out = acc + bo_ref[...].astype(F32) + res
        out_ref[...] = out.reshape(bt, L, C).astype(out_ref.dtype)
        if need_weights:  # head-averaged map (torch MHA default)
            o_refs[1][...] = (p_sum * (1.0 / heads)).astype(o_refs[1].dtype)
    return kernel


def cross_attn_chain(hoi, k_heads, v_heads, blk, heads, need_weights, eps=1e-5):
    """hoi: (B, L, C); k/v_heads: (H, B, G, dh) head-major."""
    B, L, C = hoi.shape
    G = k_heads.shape[2]
    dh = C // heads
    scale = 1.0 / math.sqrt(dh)
    bt = _pick_batch_block(B)

    tok = lambda i: (i, 0, 0)
    hd = lambda i: (0, i, 0, 0)
    cst = lambda i: (0, 0)
    in_specs = [pl.BlockSpec((bt, L, C), tok),
                pl.BlockSpec((heads, bt, G, dh), hd),
                pl.BlockSpec((heads, bt, G, dh), hd),
                pl.BlockSpec((1, C), cst), pl.BlockSpec((1, C), cst),
                pl.BlockSpec((C, C), cst), pl.BlockSpec((1, C), cst),
                pl.BlockSpec((C, C), cst), pl.BlockSpec((1, C), cst)]
    if need_weights:
        out_shape = (jax.ShapeDtypeStruct((B, L, C), hoi.dtype),
                     jax.ShapeDtypeStruct((B, L, G), F32))
        out_specs = (pl.BlockSpec((bt, L, C), tok),
                     pl.BlockSpec((bt, L, G), tok))
    else:
        out_shape = jax.ShapeDtypeStruct((B, L, C), hoi.dtype)
        out_specs = pl.BlockSpec((bt, L, C), tok)

    res = pl.pallas_call(
        _make_cross_chain_kernel(heads, dh, scale, eps, need_weights),
        grid=(B // bt,),
        out_shape=out_shape,
        in_specs=in_specs,
        out_specs=out_specs,
        compiler_params=_cparams("parallel"),
    )(hoi, k_heads, v_heads,
      blk["ln_1"]["g"].reshape(1, C), blk["ln_1"]["b"].reshape(1, C),
      blk["ca_wq"], blk["ca_bq"].reshape(1, C),
      blk["ca_wo"], blk["ca_bo"].reshape(1, C))
    if need_weights:
        return res[0], res[1]
    return res, None


# ---------------------------------------------------------------------------
# Fused parse self-attention chain:
#   hoi_ln1 -> qkv-proj -> masked multi-head self-attn -> out-proj -> +res
# ---------------------------------------------------------------------------

def _make_parse_chain_kernel(heads, dh, scale, eps):
    def kernel(hoi_ref, m_ref, g_ref, b_ref, wqkv_ref, bqkv_ref,
               wo_ref, bo_ref, out_ref):
        bt, L, C = hoi_ref.shape
        hoi = hoi_ref[...].astype(F32)
        res = hoi.reshape(bt * L, C)
        xn = _layer_norm(res, g_ref, b_ref, eps)
        # One fused (C, 3C) projection (full MXU width); per-head slices below
        # act on tiny (bt*L, dh) operands only.
        qkv = jnp.dot(xn.astype(MXU_DTYPE), wqkv_ref[...],
                      preferred_element_type=F32) + bqkv_ref[...].astype(F32)
        mask = m_ref[...].astype(F32)                     # additive (L, L)
        acc = jnp.zeros((bt * L, C), F32)
        for h in range(heads):
            lo = h * dh
            qh = (qkv[:, lo:lo + dh] * scale).reshape(bt, L, dh)
            kh = qkv[:, C + lo:C + lo + dh].reshape(bt, L, dh)
            vh = qkv[:, 2 * C + lo:2 * C + lo + dh].reshape(bt, L, dh)
            s = jnp.einsum("bqd,bkd->bqk", qh.astype(MXU_DTYPE),
                           kh.astype(MXU_DTYPE),
                           preferred_element_type=F32) + mask
            pr = _softmax_rows(s)
            oh = jnp.einsum("bqk,bkd->bqd", pr.astype(MXU_DTYPE),
                            vh.astype(MXU_DTYPE), preferred_element_type=F32)
            acc = acc + jnp.dot(oh.reshape(bt * L, dh).astype(MXU_DTYPE),
                                wo_ref[lo:lo + dh, :],
                                preferred_element_type=F32)
        out = acc + bo_ref[...].astype(F32) + res
        out_ref[...] = out.reshape(bt, L, C).astype(out_ref.dtype)
    return kernel


def parse_attn_chain(hoi, mask, blk, heads, eps=1e-5):
    B, L, C = hoi.shape
    dh = C // heads
    scale = 1.0 / math.sqrt(dh)
    bt = _pick_batch_block(B)
    tok = lambda i: (i, 0, 0)
    cst = lambda i: (0, 0)
    return pl.pallas_call(
        _make_parse_chain_kernel(heads, dh, scale, eps),
        grid=(B // bt,),
        out_shape=jax.ShapeDtypeStruct((B, L, C), hoi.dtype),
        in_specs=[pl.BlockSpec((bt, L, C), tok),
                  pl.BlockSpec((L, L), cst),      # mask stays resident
                  pl.BlockSpec((1, C), cst), pl.BlockSpec((1, C), cst),
                  pl.BlockSpec((C, 3 * C), cst), pl.BlockSpec((1, 3 * C), cst),
                  pl.BlockSpec((C, C), cst), pl.BlockSpec((1, C), cst)],
        out_specs=pl.BlockSpec((bt, L, C), tok),
        compiler_params=_cparams("parallel"),
    )(hoi, mask,
      blk["hoi_ln1"]["g"].reshape(1, C), blk["hoi_ln1"]["b"].reshape(1, C),
      blk["pa_wqkv"], blk["pa_bqkv"].reshape(1, 3 * C),
      blk["pa_wo"], blk["pa_bo"].reshape(1, C))


# ---------------------------------------------------------------------------
# Fused epilogue heads: ln_post+proj, bbox_score (merged into bbox MLP layer 0),
# 3-layer bbox MLP + sigmoid -- one pallas_call.
# ---------------------------------------------------------------------------

def _epilogue_kernel(x_ref, g_ref, b_ref, proj_ref, w0s_ref, b0s_ref,
                     w1_ref, b1_ref, w2_ref, b2_ref,
                     feat_ref, box_ref, score_ref, *, eps):
    C = x_ref.shape[-1]
    x = x_ref[...].astype(F32)                          # pre-ln_post hoi tokens
    # hoi_features = ln_post(hoi) @ proj  (proj has no bias)
    xn = _layer_norm(x, g_ref, b_ref, eps)
    feat_ref[...] = jnp.dot(xn.astype(MXU_DTYPE), proj_ref[...],
                            preferred_element_type=F32).astype(feat_ref.dtype)
    # bbox_score merged into the first bbox_embed matmul (both use pre-norm x)
    h0 = jnp.dot(x.astype(MXU_DTYPE), w0s_ref[...],
                 preferred_element_type=F32) + b0s_ref[...].astype(F32)
    score_ref[...] = h0[:, C:C + 1].astype(score_ref.dtype)
    h = jnp.maximum(h0[:, :C], 0.0)
    h = jnp.maximum(jnp.dot(h.astype(MXU_DTYPE), w1_ref[...],
                            preferred_element_type=F32)
                    + b1_ref[...].astype(F32), 0.0)
    box = jax.nn.sigmoid(jnp.dot(h.astype(MXU_DTYPE), w2_ref[...],
                                 preferred_element_type=F32)
                         + b2_ref[...].astype(F32))
    box_ref[...] = box.astype(box_ref.dtype)


def epilogue_heads(x2d, p, eps=1e-5):
    M, C = x2d.shape
    Dout = p["proj"].shape[1]
    bm, Mp = _row_block(M, 256)
    xp = jnp.pad(x2d, ((0, Mp - M), (0, 0))) if Mp != M else x2d
    w0s = jnp.concatenate([p["bbox_embed"][0]["w"], p["bbox_score"]["w"]], axis=1)
    b0s = jnp.concatenate([p["bbox_embed"][0]["b"],
                           p["bbox_score"]["b"]]).reshape(1, C + 1)
    row = lambda m: (m, 0)
    cst = lambda m: (0, 0)
    feats, boxes, scores = pl.pallas_call(
        functools.partial(_epilogue_kernel, eps=eps),
        grid=(Mp // bm,),
        out_shape=(jax.ShapeDtypeStruct((Mp, Dout), x2d.dtype),
                   jax.ShapeDtypeStruct((Mp, 8), x2d.dtype),
                   jax.ShapeDtypeStruct((Mp, 1), x2d.dtype)),
        in_specs=[pl.BlockSpec((bm, C), row),
                  pl.BlockSpec((1, C), cst), pl.BlockSpec((1, C), cst),
                  pl.BlockSpec((C, Dout), cst),
                  pl.BlockSpec((C, C + 1), cst), pl.BlockSpec((1, C + 1), cst),
                  pl.BlockSpec((C, C), cst), pl.BlockSpec((1, C), cst),
                  pl.BlockSpec((C, 8), cst), pl.BlockSpec((1, 8), cst)],
        out_specs=(pl.BlockSpec((bm, Dout), row),
                   pl.BlockSpec((bm, 8), row),
                   pl.BlockSpec((bm, 1), row)),
        compiler_params=_cparams("parallel"),
    )(xp, p["ln_post"]["g"].reshape(1, C), p["ln_post"]["b"].reshape(1, C),
      p["proj"], w0s, b0s,
      p["bbox_embed"][1]["w"], p["bbox_embed"][1]["b"].reshape(1, C),
      p["bbox_embed"][2]["w"], p["bbox_embed"][2]["b"].reshape(1, 8))
    return feats[:M], boxes[:M], scores[:M]


# ---------------------------------------------------------------------------
# HOIResidualAttentionBlock / HOITransformer / HOIVisionTransformer forward
# ---------------------------------------------------------------------------

def hoi_resblock_forward(blk, img2d, hoi, parse_mask, heads, need_attn):
    bs, L, C = hoi.shape
    G = img2d.shape[0] // bs
    dh = C // heads

    # --- [HOI] x [PATCH] cross-attention ----------------------------------
    # K/V projection of ln_1(image) (tiled over rows, weight resident).
    # NB: the PyTorch block applies the *same* ln_1 to the hoi queries and to
    # the image keys/values.
    kv2d = fused_linear(img2d, blk["ca_wkv"], blk["ca_bkv"],
                        ln=(blk["ln_1"]["g"], blk["ln_1"]["b"]))
    # Head-major (H, B, G, dh) layout so the attention kernel never
    # lane-slices K/V activations (plain XLA reshape/transpose, no kernel).
    kv = kv2d.reshape(bs, G, 2, heads, dh).transpose(2, 3, 0, 1, 4)
    hoi, attn = cross_attn_chain(hoi, kv[0], kv[1], blk, heads, need_attn)

    # --- MLP: ln_2 -> c_fc -> QuickGELU -> c_proj -> +residual -------------
    hoi2d = hoi.reshape(bs * L, C)
    h = fused_linear(hoi2d, blk["mlp_c_fc"]["w"], blk["mlp_c_fc"]["b"],
                     ln=(blk["ln_2"]["g"], blk["ln_2"]["b"]),
                     activation="quick_gelu")
    hoi2d = fused_linear(h, blk["mlp_c_proj"]["w"], blk["mlp_c_proj"]["b"],
                         residual=hoi2d)
    hoi = hoi2d.reshape(bs, L, C)

    # --- HOI sequential-parsing self-attention (prompt_hint empty -> x==hoi)
    hoi = parse_attn_chain(hoi, parse_mask, blk, heads)

    # TODO(synk): region_prompts branch (region_prompt_dim > 0) not implemented.
    return hoi, attn


def hoi_vision_transformer_forward(p, image, *, heads, hoi_token_length,
                                   parse_attn_mask, eps=1e-5):
    bs, G, C = image.shape
    L = hoi_token_length

    # hoi prototype (identical across the batch): embed + pos -> ln_pre.
    # One-off (L, C) op -> plain jnp (XLA fuses it; no kernel launch).
    hoi0 = p["hoi_token_embed"] + p["hoi_pos_embed"]
    mu = jnp.mean(hoi0, axis=-1, keepdims=True)
    var = jnp.mean((hoi0 - mu) ** 2, axis=-1, keepdims=True)
    hoi0 = ((hoi0 - mu) * jax.lax.rsqrt(var + eps) * p["ln_pre"]["g"]
            + p["ln_pre"]["b"])
    hoi = jnp.broadcast_to(hoi0[None], (bs, L, C))

    # TODO(synk): semantic_query branch (TransformerDecoder) not implemented.
    # image = image + hoi_mlp(hoi_ln(image))   (LN prologue, residual epilogue)
    img2d = image.reshape(bs * G, C)
    h = fused_linear(img2d, p["hoi_mlp_fc1"]["w"], p["hoi_mlp_fc1"]["b"],
                     ln=(p["hoi_ln"]["g"], p["hoi_ln"]["b"]),
                     activation="quick_gelu")
    img2d = fused_linear(h, p["hoi_mlp_fc2"]["w"], p["hoi_mlp_fc2"]["b"],
                         residual=img2d)

    parse_mask = parse_attn_mask[1:, 1:].astype(F32)   # (L, L); prompt empty
    n_layers = len(p["resblocks"])
    attn_map = None
    for li, blk in enumerate(p["resblocks"]):
        need_attn = (li == n_layers - 1)   # only the last map is returned
        hoi, a = hoi_resblock_forward(blk, img2d, hoi, parse_mask, heads,
                                      need_attn)
        if a is not None:
            attn_map = a

    # Fused epilogue: hoi_features = ln_post(hoi) @ proj; box heads use
    # pre-norm hoi (matches the PyTorch module).
    # TODO(synk): enable_dec bbox_head (TransformerDecoder) not implemented.
    feats, boxes, scores = epilogue_heads(hoi.reshape(bs * L, C), p)
    return {"hoi_features": feats.reshape(bs, L, -1),
            "pred_boxes": boxes.reshape(bs, L, 8),
            "box_scores": scores.reshape(bs, L, 1),
            "attn_maps": attn_map}


# ---------------------------------------------------------------------------
# Deterministic parameter initialization (attention projections stored fused;
# matmul weights stored in MXU_DTYPE)
# ---------------------------------------------------------------------------

def init_params(key, width, layers, output_dim, hoi_token_length):
    keys = iter(jax.random.split(key, 1024))

    def nrm(shape, scale=0.02, dtype=F32):
        return (scale * jax.random.normal(next(keys), shape)).astype(dtype)

    def wmat(din, dout, scale=0.02):
        # matmul weights live in HBM in MXU_DTYPE (bf16 by default) ->
        # weight DMA bytes and resident-weight VMEM are halved.
        return nrm((din, dout), scale, MXU_DTYPE)

    def linear(din, dout):
        return {"w": wmat(din, dout), "b": jnp.zeros((dout,), F32)}

    def ln(d):
        return {"g": jnp.ones((d,), F32), "b": jnp.zeros((d,), F32)}

    scale = width ** (-0.5)
    E = width
    p = {
        "hoi_token_embed": nrm((hoi_token_length, width), scale),
        "hoi_pos_embed": nrm((hoi_token_length, width), scale),
        "ln_pre": ln(width), "ln_post": ln(width),
        "proj": wmat(width, output_dim, scale),
        "hoi_ln": ln(width),
        "hoi_mlp_fc1": linear(width, width * 2),
        "hoi_mlp_fc2": linear(width * 2, width),
        "bbox_score": linear(width, 1),
        "bbox_embed": [linear(width, width), linear(width, width),
                       linear(width, 8)],
        "resblocks": [],
    }
    for _ in range(layers):
        p["resblocks"].append({
            # cross-attention [HOI] x [PATCH]: q proj + fused K/V proj (E, 2E)
            "ca_wq": wmat(E, E), "ca_bq": jnp.zeros((E,), F32),
            "ca_wkv": wmat(E, 2 * E), "ca_bkv": jnp.zeros((2 * E,), F32),
            "ca_wo": wmat(E, E), "ca_bo": jnp.zeros((E,), F32),
            # parse self-attention: fused Q/K/V proj (E, 3E)
            "pa_wqkv": wmat(E, 3 * E), "pa_bqkv": jnp.zeros((3 * E,), F32),
            "pa_wo": wmat(E, E), "pa_bo": jnp.zeros((E,), F32),
            "ln_1": ln(E), "ln_2": ln(E), "hoi_ln1": ln(E),
            "mlp_c_fc": linear(E, 4 * E),
            "mlp_c_proj": linear(4 * E, E),
        })
    return p


if __name__ == "__main__":
    # Small config consistent with the module's forward
    width, heads, layers = 32, 4, 2
    output_dim = 16
    hoi_token_length = 5
    image_resolution, patch_size = 32, 8
    num_grids = (image_resolution // patch_size) ** 2   # 16 patch tokens
    bs = 2

    key = jax.random.PRNGKey(0)
    pkey, xkey = jax.random.split(key)
    params = init_params(pkey, width, layers, output_dim, hoi_token_length)

    # hoi_parser_attn_mask over [CLS]+[HOI] tokens; forward slices [1:, 1:]
    n_tok = hoi_token_length + 1
    causal = jnp.tril(jnp.ones((n_tok, n_tok), F32))
    parse_attn_mask = jnp.where(causal > 0, 0.0, -1e9).astype(F32)

    # patch-token features (batch, num_grids, width)
    image = jax.random.normal(xkey, (bs, num_grids, width), F32)

    fwd = jax.jit(functools.partial(
        hoi_vision_transformer_forward,
        heads=heads, hoi_token_length=hoi_token_length,
        parse_attn_mask=parse_attn_mask))

    out = fwd(params, image)
    jax.block_until_ready(out)

    assert out["hoi_features"].shape == (bs, hoi_token_length, output_dim)
    assert out["pred_boxes"].shape == (bs, hoi_token_length, 8)
    assert out["box_scores"].shape == (bs, hoi_token_length, 1)
    assert out["attn_maps"].shape == (bs, hoi_token_length, num_grids)
    print("KERNEL_OK")
</pallas_src>

<mosaic_0001>
module attributes {stable_mosaic.version = 11 : i64} {
  func.func @kernel(%arg0: i32, %arg1: i32, %arg2: memref<16x64xf32, #tpu.memory_space<vmem>>, %arg3: memref<64x32xbf16, #tpu.memory_space<vmem>>, %arg4: memref<1x32xf32, #tpu.memory_space<vmem>>, %arg5: memref<16x32xf32, #tpu.memory_space<vmem>>, %arg6: memref<16x32xf32, #tpu.memory_space<vmem>>) attributes {dimension_semantics = [#tpu.dimension_semantics<arbitrary>, #tpu.dimension_semantics<parallel>], iteration_bounds = array<i64: 1, 2>, scalar_prefetch = 0 : i64, scratch_operands = 0 : i64, tpu.core_type = #tpu.core_type<tc>, window_params = [{transform_indices = @transform_0, window_bounds = array<i64: 16, 64>}, {transform_indices = @transform_1, window_bounds = array<i64: 64, 32>}, {transform_indices = @transform_2, window_bounds = array<i64: 1, 32>}, {transform_indices = @transform_3, window_bounds = array<i64: 16, 32>}, {transform_indices = @transform_4, window_bounds = array<i64: 16, 32>}]} {
    %c0 = arith.constant 0 : index
    %c0_0 = arith.constant 0 : index
    %0 = vector.load %arg2[%c0, %c0_0] : memref<16x64xf32, #tpu.memory_space<vmem>>, vector<16x64xf32>
    %1 = arith.truncf %0 : vector<16x64xf32> to vector<16x64xbf16>
    %c0_1 = arith.constant 0 : index
    %c0_2 = arith.constant 0 : index
    %2 = vector.load %arg3[%c0_1, %c0_2] : memref<64x32xbf16, #tpu.memory_space<vmem>>, vector<64x32xbf16>
    %cst = arith.constant dense<0.000000e+00> : vector<16x32xf32>
    %3 = tpu.matmul %1, %2, %cst {dimension_numbers = #tpu.dot_dimension_numbers<[1], [0], [0], [1], [0, 0, 1, 1], [], []>} : vector<16x64xbf16>, vector<64x32xbf16>, vector<16x32xf32> -> vector<16x32xf32>
    %c0_3 = arith.constant 0 : index
    %c0_4 = arith.constant 0 : index
    %4 = vector.load %arg4[%c0_3, %c0_4] : memref<1x32xf32, #tpu.memory_space<vmem>>, vector<1x32xf32>
    %5 = vector.broadcast %4 : vector<1x32xf32> to vector<16x32xf32>
    %6 = arith.addf %3, %5 : vector<16x32xf32>
    %c0_5 = arith.constant 0 : index
    %c0_6 = arith.constant 0 : index
    %7 = vector.load %arg5[%c0_5, %c0_6] : memref<16x32xf32, #tpu.memory_space<vmem>>, vector<16x32xf32>
    %8 = arith.addf %6, %7 : vector<16x32xf32>
    %c0_7 = arith.constant 0 : index
    %c0_8 = arith.constant 0 : index
    %9 = vector.load %arg6[%c0_7, %c0_8] : memref<16x32xf32, #tpu.memory_space<vmem>>, vector<16x32xf32>
    tpu.vector_store %arg6[%c0_7, %c0_8], %8 {strides = array<i32>} : memref<16x32xf32, #tpu.memory_space<vmem>>, vector<16x32xf32>,
    return
  }
  func.func @transform_0(%arg0: i32, %arg1: i32) -> (i32, i32) {
    %c0_i32 = arith.constant 0 : i32
    %c0_i32_0 = arith.constant 0 : i32
    return %arg1, %c0_i32 : i32, i32
  }
  func.func @transform_1(%arg0: i32, %arg1: i32) -> (i32, i32) {
    %c0_i32 = arith.constant 0 : i32
    %c0_i32_0 = arith.constant 0 : i32
    return %c0_i32, %arg0 : i32, i32
  }
  func.func @transform_2(%arg0: i32, %arg1: i32) -> (i32, i32) {
    %c0_i32 = arith.constant 0 : i32
    %c0_i32_0 = arith.constant 0 : i32
    return %c0_i32, %arg0 : i32, i32
  }
  func.func @transform_3(%arg0: i32, %arg1: i32) -> (i32, i32) {
    %c0_i32 = arith.constant 0 : i32
    return %arg1, %arg0 : i32, i32
  }
  func.func @transform_4(%arg0: i32, %arg1: i32) -> (i32, i32) {
    %c0_i32 = arith.constant 0 : i32
    return %arg1, %arg0 : i32, i32
  }
}

module attributes {stable_mosaic.version = 11 : i64} {
  func.func @kernel(%arg0: i32, %arg1: i32, %arg2: memref<16x32xf32, #tpu.memory_space<vmem>>, %arg3: memref<32x64xbf16, #tpu.memory_space<vmem>>, %arg4: memref<1x64xf32, #tpu.memory_space<vmem>>, %arg5: memref<1x32xf32, #tpu.memory_space<vmem>>, %arg6: memref<1x32xf32, #tpu.memory_space<vmem>>, %arg7: memref<16x64xf32, #tpu.memory_space<vmem>>) attributes {dimension_semantics = [#tpu.dimension_semantics<arbitrary>, #tpu.dimension_semantics<parallel>], iteration_bounds = array<i64: 1, 2>, scalar_prefetch = 0 : i64, scratch_operands = 0 : i64, tpu.core_type = #tpu.core_type<tc>, window_params = [{transform_indices = @transform_0, window_bounds = array<i64: 16, 32>}, {transform_indices = @transform_1, window_bounds = array<i64: 32, 64>}, {transform_indices = @transform_2, window_bounds = array<i64: 1, 64>}, {pipeline_mode = #tpu.pipeline_mode<synchronous>, transform_indices = @transform_3, window_bounds = array<i64: 1, 32>}, {pipeline_mode = #tpu.pipeline_mode<synchronous>, transform_indices = @transform_4, window_bounds = array<i64: 1, 32>}, {transform_indices = @transform_5, window_bounds = array<i64: 16, 64>}]} {
    %c0 = arith.constant 0 : index
    %c0_0 = arith.constant 0 : index
    %0 = vector.load %arg2[%c0, %c0_0] : memref<16x32xf32, #tpu.memory_space<vmem>>, vector<16x32xf32>
    %cst = arith.constant dense<0.000000e+00> : vector<16xf32>
    %1 = vector.multi_reduction <add>, %0, %cst [1] : vector<16x32xf32> to vector<16xf32>
    %2 = vector.shape_cast %1 : vector<16xf32> to vector<16x1xf32>
    %cst_1 = arith.constant 3.200000e+01 : f32
    %3 = vector.broadcast %cst_1 : f32 to vector<16x1xf32>
    %4 = arith.divf %2, %3 : vector<16x1xf32>
    %5 = vector.broadcast %4 : vector<16x1xf32> to vector<16x32xf32>
    %6 = arith.subf %0, %5 : vector<16x32xf32>
    %7 = arith.mulf %6, %6 : vector<16x32xf32>
    %cst_2 = arith.constant dense<0.000000e+00> : vector<16xf32>
    %8 = vector.multi_reduction <add>, %7, %cst_2 [1] : vector<16x32xf32> to vector<16xf32>
    %9 = vector.shape_cast %8 : vector<16xf32> to vector<16x1xf32>
    %cst_3 = arith.constant 3.200000e+01 : f32
    %10 = vector.broadcast %cst_3 : f32 to vector<16x1xf32>
    %11 = arith.divf %9, %10 : vector<16x1xf32>
    %12 = vector.broadcast %4 : vector<16x1xf32> to vector<16x32xf32>
    %13 = arith.subf %0, %12 : vector<16x32xf32>
    %cst_4 = arith.constant 9.99999974E-6 : f32
    %14 = vector.broadcast %cst_4 : f32 to vector<16x1xf32>
    %15 = arith.addf %11, %14 : vector<16x1xf32>
    %16 = math.rsqrt %15 : vector<16x1xf32>
    %17 = vector.broadcast %16 : vector<16x1xf32> to vector<16x32xf32>
    %18 = arith.mulf %13, %17 : vector<16x32xf32>
    %c0_5 = arith.constant 0 : index
    %c0_6 = arith.constant 0 : index
    %19 = vector.load %arg5[%c0_5, %c0_6] : memref<1x32xf32, #tpu.memory_space<vmem>>, vector<1x32xf32>
    %20 = vector.broadcast %19 : vector<1x32xf32> to vector<16x32xf32>
    %21 = arith.mulf %18, %20 : vector<16x32xf32>
    %c0_7 = arith.constant 0 : index
    %c0_8 = arith.constant 0 : index
    %22 = vector.load %arg6[%c0_7, %c0_8] : memref<1x32xf32, #tpu.memory_space<vmem>>, vector<1x32xf32>
    %23 = vector.broadcast %22 : vector<1x32xf32> to vector<16x32xf32>
    %24 = arith.addf %21, %23 : vector<16x32xf32>
    %25 = arith.truncf %24 : vector<16x32xf32> to vector<16x32xbf16>
    %c0_9 = arith.constant 0 : index
    %c0_10 = arith.constant 0 : index
    %26 = vector.load %arg3[%c0_9, %c0_10] : memref<32x64xbf16, #tpu.memory_space<vmem>>, vector<32x64xbf16>
    %cst_11 = arith.constant dense<0.000000e+00> : vector<16x64xf32>
    %27 = tpu.matmul %25, %26, %cst_11 {dimension_numbers = #tpu.dot_dimension_numbers<[1], [0], [0], [1], [0, 0, 1, 1], [], []>} : vector<16x32xbf16>, vector<32x64xbf16>, vector<16x64xf32> -> vector<16x64xf32>
    %c0_12 = arith.constant 0 : index
    %c0_13 = arith.constant 0 : index
    %28 = vector.load %arg4[%c0_12, %c0_13] : memref<1x64xf32, #tpu.memory_space<vmem>>, vector<1x64xf32>
    %29 = vector.broadcast %28 : vector<1x64xf32> to vector<16x64xf32>
    %30 = arith.addf %27, %29 : vector<16x64xf32>
    %cst_14 = arith.constant 1.702000e+00 : f32
    %31 = vector.broadcast %cst_14 : f32 to vector<16x64xf32>
    %32 = arith.mulf %31, %30 : vector<16x64xf32>
    %33 = arith.negf %32 : vector<16x64xf32>
    %34 = math.exp %33 : vector<16x64xf32>
    %cst_15 = arith.constant 1.000000e+00 : f32
    %35 = vector.broadcast %cst_15 : f32 to vector<16x64xf32>
    %36 = arith.addf %35, %34 : vector<16x64xf32>
    %37 = arith.divf %35, %36 : vector<16x64xf32>
    %38 = arith.mulf %30, %37 : vector<16x64xf32>
    %c0_16 = arith.constant 0 : index
    %c0_17 = arith.constant 0 : index
    %39 = vector.load %arg7[%c0_16, %c0_17] : memref<16x64xf32, #tpu.memory_space<vmem>>, vector<16x64xf32>
    tpu.vector_store %arg7[%c0_16, %c0_17], %38 {strides = array<i32>} : memref<16x64xf32, #tpu.memory_space<vmem>>, vector<16x64xf32>,
    return
  }
  func.func @transform_0(%arg0: i32, %arg1: i32) -> (i32, i32) {
    %c0_i32 = arith.constant 0 : i32
    %c0_i32_0 = arith.constant 0 : i32
    return %arg1, %c0_i32 : i32, i32
  }
  func.func @transform_1(%arg0: i32, %arg1: i32) -> (i32, i32) {
    %c0_i32 = arith.constant 0 : i32
    %c0_i32_0 = arith.constant 0 : i32
    return %c0_i32, %arg0 : i32, i32
  }
  func.func @transform_2(%arg0: i32, %arg1: i32) -> (i32, i32) {
    %c0_i32 = arith.constant 0 : i32
    %c0_i32_0 = arith.constant 0 : i32
    return %c0_i32, %arg0 : i32, i32
  }
  func.func @transform_3(%arg0: i32, %arg1: i32) -> (i32, i32) {
    %c0_i32 = arith.constant 0 : i32
    %c0_i32_0 = arith.constant 0 : i32
    %c0_i32_1 = arith.constant 0 : i32
    return %c0_i32, %c0_i32_0 : i32, i32
  }
  func.func @transform_4(%arg0: i32, %arg1: i32) -> (i32, i32) {
    %c0_i32 = arith.constant 0 : i32
    %c0_i32_0 = arith.constant 0 : i32
    %c0_i32_1 = arith.constant 0 : i32
    return %c0_i32, %c0_i32_0 : i32, i32
  }
  func.func @transform_5(%arg0: i32, %arg1: i32) -> (i32, i32) {
    %c0_i32 = arith.constant 0 : i32
    return %arg1, %arg0 : i32, i32
  }
}

module attributes {stable_mosaic.version = 11 : i64} {
  func.func @kernel(%arg0: i32, %arg1: i32, %arg2: memref<16x32xf32, #tpu.memory_space<vmem>>, %arg3: memref<32x64xbf16, #tpu.memory_space<vmem>>, %arg4: memref<1x64xf32, #tpu.memory_space<vmem>>, %arg5: memref<1x32xf32, #tpu.memory_space<vmem>>, %arg6: memref<1x32xf32, #tpu.memory_space<vmem>>, %arg7: memref<16x64xf32, #tpu.memory_space<vmem>>) attributes {dimension_semantics = [#tpu.dimension_semantics<arbitrary>, #tpu.dimension_semantics<parallel>], iteration_bounds = array<i64: 1, 2>, scalar_prefetch = 0 : i64, scratch_operands = 0 : i64, tpu.core_type = #tpu.core_type<tc>, window_params = [{transform_indices = @transform_0, window_bounds = array<i64: 16, 32>}, {transform_indices = @transform_1, window_bounds = array<i64: 32, 64>}, {transform_indices = @transform_2, window_bounds = array<i64: 1, 64>}, {pipeline_mode = #tpu.pipeline_mode<synchronous>, transform_indices = @transform_3, window_bounds = array<i64: 1, 32>}, {pipeline_mode = #tpu.pipeline_mode<synchronous>, transform_indices = @transform_4, window_bounds = array<i64: 1, 32>}, {transform_indices = @transform_5, window_bounds = array<i64: 16, 64>}]} {
    %c0 = arith.constant 0 : index
    %c0_0 = arith.constant 0 : index
    %0 = vector.load %arg2[%c0, %c0_0] : memref<16x32xf32, #tpu.memory_space<vmem>>, vector<16x32xf32>
    %cst = arith.constant dense<0.000000e+00> : vector<16xf32>
    %1 = vector.multi_reduction <add>, %0, %cst [1] : vector<16x32xf32> to vector<16xf32>
    %2 = vector.shape_cast %1 : vector<16xf32> to vector<16x1xf32>
    %cst_1 = arith.constant 3.200000e+01 : f32
    %3 = vector.broadcast %cst_1 : f32 to vector<16x1xf32>
    %4 = arith.divf %2, %3 : vector<16x1xf32>
    %5 = vector.broadcast %4 : vector<16x1xf32> to vector<16x32xf32>
    %6 = arith.subf %0, %5 : vector<16x32xf32>
    %7 = arith.mulf %6, %6 : vector<16x32xf32>
    %cst_2 = arith.constant dense<0.000000e+00> : vector<16xf32>
    %8 = vector.multi_reduction <add>, %7, %cst_2 [1] : vector<16x32xf32> to vector<16xf32>
    %9 = vector.shape_cast %8 : vector<16xf32> to vector<16x1xf32>
    %cst_3 = arith.constant 3.200000e+01 : f32
    %10 = vector.broadcast %cst_3 : f32 to vector<16x1xf32>
    %11 = arith.divf %9, %10 : vector<16x1xf32>
    %12 = vector.broadcast %4 : vector<16x1xf32> to vector<16x32xf32>
    %13 = arith.subf %0, %12 : vector<16x32xf32>
    %cst_4 = arith.constant 9.99999974E-6 : f32
    %14 = vector.broadcast %cst_4 : f32 to vector<16x1xf32>
    %15 = arith.addf %11, %14 : vector<16x1xf32>
    %16 = math.rsqrt %15 : vector<16x1xf32>
    %17 = vector.broadcast %16 : vector<16x1xf32> to vector<16x32xf32>
    %18 = arith.mulf %13, %17 : vector<16x32xf32>
    %c0_5 = arith.constant 0 : index
    %c0_6 = arith.constant 0 : index
    %19 = vector.load %arg5[%c0_5, %c0_6] : memref<1x32xf32, #tpu.memory_space<vmem>>, vector<1x32xf32>
    %20 = vector.broadcast %19 : vector<1x32xf32> to vector<16x32xf32>
    %21 = arith.mulf %18, %20 : vector<16x32xf32>
    %c0_7 = arith.constant 0 : index
    %c0_8 = arith.constant 0 : index
    %22 = vector.load %arg6[%c0_7, %c0_8] : memref<1x32xf32, #tpu.memory_space<vmem>>, vector<1x32xf32>
    %23 = vector.broadcast %22 : vector<1x32xf32> to vector<16x32xf32>
    %24 = arith.addf %21, %23 : vector<16x32xf32>
    %25 = arith.truncf %24 : vector<16x32xf32> to vector<16x32xbf16>
    %c0_9 = arith.constant 0 : index
    %c0_10 = arith.constant 0 : index
    %26 = vector.load %arg3[%c0_9, %c0_10] : memref<32x64xbf16, #tpu.memory_space<vmem>>, vector<32x64xbf16>
    %cst_11 = arith.constant dense<0.000000e+00> : vector<16x64xf32>
    %27 = tpu.matmul %25, %26, %cst_11 {dimension_numbers = #tpu.dot_dimension_numbers<[1], [0], [0], [1], [0, 0, 1, 1], [], []>} : vector<16x32xbf16>, vector<32x64xbf16>, vector<16x64xf32> -> vector<16x64xf32>
    %c0_12 = arith.constant 0 : index
    %c0_13 = arith.constant 0 : index
    %28 = vector.load %arg4[%c0_12, %c0_13] : memref<1x64xf32, #tpu.memory_space<vmem>>, vector<1x64xf32>
    %29 = vector.broadcast %28 : vector<1x64xf32> to vector<16x64xf32>
    %30 = arith.addf %27, %29 : vector<16x64xf32>
    %c0_14 = arith.constant 0 : index
    %c0_15 = arith.constant 0 : index
    %31 = vector.load %arg7[%c0_14, %c0_15] : memref<16x64xf32, #tpu.memory_space<vmem>>, vector<16x64xf32>
    tpu.vector_store %arg7[%c0_14, %c0_15], %30 {strides = array<i32>} : memref<16x64xf32, #tpu.memory_space<vmem>>, vector<16x64xf32>,
    return
  }
  func.func @transform_0(%arg0: i32, %arg1: i32) -> (i32, i32) {
    %c0_i32 = arith.constant 0 : i32
    %c0_i32_0 = arith.constant 0 : i32
    return %arg1, %c0_i32 : i32, i32
  }
  func.func @transform_1(%arg0: i32, %arg1: i32) -> (i32, i32) {
    %c0_i32 = arith.constant 0 : i32
    %c0_i32_0 = arith.constant 0 : i32
    return %c0_i32, %arg0 : i32, i32
  }
  func.func @transform_2(%arg0: i32, %arg1: i32) -> (i32, i32) {
    %c0_i32 = arith.constant 0 : i32
    %c0_i32_0 = arith.constant 0 : i32
    return %c0_i32, %arg0 : i32, i32
  }
  func.func @transform_3(%arg0: i32, %arg1: i32) -> (i32, i32) {
    %c0_i32 = arith.constant 0 : i32
    %c0_i32_0 = arith.constant 0 : i32
    %c0_i32_1 = arith.constant 0 : i32
    return %c0_i32, %c0_i32_0 : i32, i32
  }
  func.func @transform_4(%arg0: i32, %arg1: i32) -> (i32, i32) {
    %c0_i32 = arith.constant 0 : i32
    %c0_i32_0 = arith.constant 0 : i32
    %c0_i32_1 = arith.constant 0 : i32
    return %c0_i32, %c0_i32_0 : i32, i32
  }
  func.func @transform_5(%arg0: i32, %arg1: i32) -> (i32, i32) {
    %c0_i32 = arith.constant 0 : i32
    return %arg1, %arg0 : i32, i32
  }
}

module attributes {stable_mosaic.version = 11 : i64} {
  func.func @kernel(%arg0: i32, %arg1: memref<1x5x32xf32, #tpu.memory_space<vmem>>, %arg2: memref<4x1x16x8xf32, #tpu.memory_space<vmem>>, %arg3: memref<4x1x16x8xf32, #tpu.memory_space<vmem>>, %arg4: memref<1x32xf32, #tpu.memory_space<vmem>>, %arg5: memref<1x32xf32, #tpu.memory_space<vmem>>, %arg6: memref<32x32xbf16, #tpu.memory_space<vmem>>, %arg7: memref<1x32xf32, #tpu.memory_space<vmem>>, %arg8: memref<32x32xbf16, #tpu.memory_space<vmem>>, %arg9: memref<1x32xf32, #tpu.memory_space<vmem>>, %arg10: memref<1x5x32xf32, #tpu.memory_space<vmem>>) attributes {dimension_semantics = [#tpu.dimension_semantics<parallel>], iteration_bounds = array<i64: 2>, scalar_prefetch = 0 : i64, scratch_operands = 0 : i64, tpu.core_type = #tpu.core_type<tc>, window_params = [{transform_indices = @transform_0, window_bounds = array<i64: 1, 5, 32>}, {transform_indices = @transform_1, window_bounds = array<i64: 4, 1, 16, 8>}, {transform_indices = @transform_2, window_bounds = array<i64: 4, 1, 16, 8>}, {pipeline_mode = #tpu.pipeline_mode<synchronous>, transform_indices = @transform_3, window_bounds = array<i64: 1, 32>}, {pipeline_mode = #tpu.pipeline_mode<synchronous>, transform_indices = @transform_4, window_bounds = array<i64: 1, 32>}, {pipeline_mode = #tpu.pipeline_mode<synchronous>, transform_indices = @transform_5, window_bounds = array<i64: 32, 32>}, {pipeline_mode = #tpu.pipeline_mode<synchronous>, transform_indices = @transform_6, window_bounds = array<i64: 1, 32>}, {pipeline_mode = #tpu.pipeline_mode<synchronous>, transform_indices = @transform_7, window_bounds = array<i64: 32, 32>}, {pipeline_mode = #tpu.pipeline_mode<synchronous>, transform_indices = @transform_8, window_bounds = array<i64: 1, 32>}, {transform_indices = @transform_9, window_bounds = array<i64: 1, 5, 32>}]} {
    %c0 = arith.constant 0 : index
    %c0_0 = arith.constant 0 : index
    %c0_1 = arith.constant 0 : index
    %0 = vector.load %arg1[%c0, %c0_0, %c0_1] : memref<1x5x32xf32, #tpu.memory_space<vmem>>, vector<1x5x32xf32>
    %1 = vector.shape_cast %0 : vector<1x5x32xf32> to vector<5x32xf32>
    %cst = arith.constant dense<0.000000e+00> : vector<5xf32>
    %2 = vector.multi_reduction <add>, %1, %cst [1] : vector<5x32xf32> to vector<5xf32>
    %3 = vector.shape_cast %2 : vector<5xf32> to vector<5x1xf32>
    %cst_2 = arith.constant 3.200000e+01 : f32
    %4 = vector.broadcast %cst_2 : f32 to vector<5x1xf32>
    %5 = arith.divf %3, %4 : vector<5x1xf32>
    %6 = vector.broadcast %5 : vector<5x1xf32> to vector<5x32xf32>
    %7 = arith.subf %1, %6 : vector<5x32xf32>
    %8 = arith.mulf %7, %7 : vector<5x32xf32>
    %cst_3 = arith.constant dense<0.000000e+00> : vector<5xf32>
    %9 = vector.multi_reduction <add>, %8, %cst_3 [1] : vector<5x32xf32> to vector<5xf32>
    %10 = vector.shape_cast %9 : vector<5xf32> to vector<5x1xf32>
    %cst_4 = arith.constant 3.200000e+01 : f32
    %11 = vector.broadcast %cst_4 : f32 to vector<5x1xf32>
    %12 = arith.divf %10, %11 : vector<5x1xf32>
    %13 = vector.broadcast %5 : vector<5x1xf32> to vector<5x32xf32>
    %14 = arith.subf %1, %13 : vector<5x32xf32>
    %cst_5 = arith.constant 9.99999974E-6 : f32
    %15 = vector.broadcast %cst_5 : f32 to vector<5x1xf32>
    %16 = arith.addf %12, %15 : vector<5x1xf32>
    %17 = math.rsqrt %16 : vector<5x1xf32>
    %18 = vector.broadcast %17 : vector<5x1xf32> to vector<5x32xf32>
    %19 = arith.mulf %14, %18 : vector<5x32xf32>
    %c0_6 = arith.constant 0 : index
    %c0_7 = arith.constant 0 : index
    %20 = vector.load %arg4[%c0_6, %c0_7] : memref<1x32xf32, #tpu.memory_space<vmem>>, vector<1x32xf32>
    %21 = vector.broadcast %20 : vector<1x32xf32> to vector<5x32xf32>
    %22 = arith.mulf %19, %21 : vector<5x32xf32>
    %c0_8 = arith.constant 0 : index
    %c0_9 = arith.constant 0 : index
    %23 = vector.load %arg5[%c0_8, %c0_9] : memref<1x32xf32, #tpu.memory_space<vmem>>, vector<1x32xf32>
    %24 = vector.broadcast %23 : vector<1x32xf32> to vector<5x32xf32>
    %25 = arith.addf %22, %24 : vector<5x32xf32>
    %26 = arith.truncf %25 : vector<5x32xf32> to vector<5x32xbf16>
    %c0_10 = arith.constant 0 : index
    %c0_11 = arith.constant 0 : index
    %27 = vector.load %arg6[%c0_10, %c0_11] : memref<32x32xbf16, #tpu.memory_space<vmem>>, vector<32x32xbf16>
    %cst_12 = arith.constant dense<0.000000e+00> : vector<5x32xf32>
    %28 = tpu.matmul %26, %27, %cst_12 {dimension_numbers = #tpu.dot_dimension_numbers<[1], [0], [0], [1], [0, 0, 1, 1], [], []>} : vector<5x32xbf16>, vector<32x32xbf16>, vector<5x32xf32> -> vector<5x32xf32>
    %c0_13 = arith.constant 0 : index
    %c0_14 = arith.constant 0 : index
    %29 = vector.load %arg7[%c0_13, %c0_14] : memref<1x32xf32, #tpu.memory_space<vmem>>, vector<1x32xf32>
    %30 = vector.broadcast %29 : vector<1x32xf32> to vector<5x32xf32>
    %31 = arith.addf %28, %30 : vector<5x32xf32>
    %cst_15 = arith.constant 0.353553385 : f32
    %32 = vector.broadcast %cst_15 : f32 to vector<5x32xf32>
    %33 = arith.mulf %31, %32 : vector<5x32xf32>
    %cst_16 = arith.constant 0.000000e+00 : f32
    %34 = vector.broadcast %cst_16 : f32 to vector<5x32xf32>
    %35 = vector.extract_strided_slice %33 {offsets = [0, 0], sizes = [5, 8], strides = [1, 1]} : vector<5x32xf32> to vector<5x8xf32>
    %36 = vector.shape_cast %35 : vector<5x8xf32> to vector<1x5x8xf32>
    %c0_17 = arith.constant 0 : index
    %c0_18 = arith.constant 0 : index
    %c0_19 = arith.constant 0 : index
    %c0_20 = arith.constant 0 : index
    %37 = vector.load %arg2[%c0_17, %c0_18, %c0_19, %c0_20] : memref<4x1x16x8xf32, #tpu.memory_space<vmem>>, vector<1x1x16x8xf32>
    %38 = vector.shape_cast %37 : vector<1x1x16x8xf32> to vector<1x16x8xf32>
    %39 = arith.truncf %38 : vector<1x16x8xf32> to vector<1x16x8xbf16>
    %c0_21 = arith.constant 0 : index
    %c0_22 = arith.constant 0 : index
    %c0_23 = arith.constant 0 : index
    %c0_24 = arith.constant 0 : index
    %40 = vector.load %arg3[%c0_21, %c0_22, %c0_23, %c0_24] : memref<4x1x16x8xf32, #tpu.memory_space<vmem>>, vector<1x1x16x8xf32>
    %41 = vector.shape_cast %40 : vector<1x1x16x8xf32> to vector<1x16x8xf32>
    %42 = arith.truncf %41 : vector<1x16x8xf32> to vector<1x16x8xbf16>
    %43 = arith.truncf %36 : vector<1x5x8xf32> to vector<1x5x8xbf16>
    "tpu.trace_start"() <{level = 10 : i32, message = "bld,bgd->blg"}> : () -> ()
    %cst_25 = arith.constant dense<0.000000e+00> : vector<1x5x16xf32>
    %44 = tpu.matmul %43, %39, %cst_25 {dimension_numbers = #tpu.dot_dimension_numbers<[2], [2], [1], [1], [0, 0, 0, 1, 1, 1], [0], [0]>} : vector<1x5x8xbf16>, vector<1x16x8xbf16>, vector<1x5x16xf32> -> vector<1x5x16xf32>
    "tpu.trace_stop"() : () -> ()
    %cst_26 = arith.constant dense<0xFF800000> : vector<1x5xf32>
    %45 = vector.multi_reduction <maximumf>, %44, %cst_26 [2] : vector<1x5x16xf32> to vector<1x5xf32>
    %46 = vector.shape_cast %45 : vector<1x5xf32> to vector<1x5x1xf32>
    %47 = vector.broadcast %46 : vector<1x5x1xf32> to vector<1x5x16xf32>
    %48 = arith.subf %44, %47 : vector<1x5x16xf32>
    %49 = math.exp %48 : vector<1x5x16xf32>
    %cst_27 = arith.constant dense<0.000000e+00> : vector<1x5xf32>
    %50 = vector.multi_reduction <add>, %49, %cst_27 [2] : vector<1x5x16xf32> to vector<1x5xf32>
    %51 = vector.shape_cast %50 : vector<1x5xf32> to vector<1x5x1xf32>
    %52 = tpu.reciprocal %51 {approx = true} : vector<1x5x1xf32> -> vector<1x5x1xf32>
    %53 = vector.broadcast %52 : vector<1x5x1xf32> to vector<1x5x16xf32>
    %54 = arith.mulf %49, %53 : vector<1x5x16xf32>
    %55 = arith.truncf %54 : vector<1x5x16xf32> to vector<1x5x16xbf16>
    "tpu.trace_start"() <{level = 10 : i32, message = "blg,bgd->bld"}> : () -> ()
    %cst_28 = arith.constant dense<0.000000e+00> : vector<1x5x8xf32>
    %56 = tpu.matmul %55, %42, %cst_28 {dimension_numbers = #tpu.dot_dimension_numbers<[2], [1], [1], [2], [0, 0, 0, 1, 1, 2], [0], [0]>} : vector<1x5x16xbf16>, vector<1x16x8xbf16>, vector<1x5x8xf32> -> vector<1x5x8xf32>
    "tpu.trace_stop"() : () -> ()
    %57 = vector.shape_cast %56 : vector<1x5x8xf32> to vector<5x8xf32>
    %58 = arith.truncf %57 : vector<5x8xf32> to vector<5x8xbf16>
    %c0_29 = arith.constant 0 : index
    %c0_30 = arith.constant 0 : index
    %59 = vector.load %arg8[%c0_29, %c0_30] : memref<32x32xbf16, #tpu.memory_space<vmem>>, vector<8x32xbf16>
    %cst_31 = arith.constant dense<0.000000e+00> : vector<5x32xf32>
    %60 = tpu.matmul %58, %59, %cst_31 {dimension_numbers = #tpu.dot_dimension_numbers<[1], [0], [0], [1], [0, 0, 1, 1], [], []>} : vector<5x8xbf16>, vector<8x32xbf16>, vector<5x32xf32> -> vector<5x32xf32>
    %61 = arith.addf %34, %60 : vector<5x32xf32>
    %62 = vector.extract_strided_slice %33 {offsets = [0, 8], sizes = [5, 8], strides = [1, 1]} : vector<5x32xf32> to vector<5x8xf32>
    %63 = vector.shape_cast %62 : vector<5x8xf32> to vector<1x5x8xf32>
    %c1 = arith.constant 1 : index
    %c0_32 = arith.constant 0 : index
    %c0_33 = arith.constant 0 : index
    %c0_34 = arith.constant 0 : index
    %64 = vector.load %arg2[%c1, %c0_32, %c0_33, %c0_34] : memref<4x1x16x8xf32, #tpu.memory_space<vmem>>, vector<1x1x16x8xf32>
    %65 = vector.shape_cast %64 : vector<1x1x16x8xf32> to vector<1x16x8xf32>
    %66 = arith.truncf %65 : vector<1x16x8xf32> to vector<1x16x8xbf16>
    %c1_35 = arith.constant 1 : index
    %c0_36 = arith.constant 0 : index
    %c0_37 = arith.constant 0 : index
    %c0_38 = arith.constant 0 : index
    %67 = vector.load %arg3[%c1_35, %c0_36, %c0_37, %c0_38] : memref<4x1x16x8xf32, #tpu.memory_space<vmem>>, vector<1x1x16x8xf32>
    %68 = vector.shape_cast %67 : vector<1x1x16x8xf32> to vector<1x16x8xf32>
    %69 = arith.truncf %68 : vector<1x16x8xf32> to vector<1x16x8xbf16>
    %70 = arith.truncf %63 : vector<1x5x8xf32> to vector<1x5x8xbf16>
    "tpu.trace_start"() <{level = 10 : i32, message = "bld,bgd->blg"}> : () -> ()
    %cst_39 = arith.constant dense<0.000000e+00> : vector<1x5x16xf32>
    %71 = tpu.matmul %70, %66, %cst_39 {dimension_numbers = #tpu.dot_dimension_numbers<[2], [2], [1], [1], [0, 0, 0, 1, 1, 1], [0], [0]>} : vector<1x5x8xbf16>, vector<1x16x8xbf16>, vector<1x5x16xf32> -> vector<1x5x16xf32>
    "tpu.trace_stop"() : () -> ()
    %cst_40 = arith.constant dense<0xFF800000> : vector<1x5xf32>
    %72 = vector.multi_reduction <maximumf>, %71, %cst_40 [2] : vector<1x5x16xf32> to vector<1x5xf32>
    %73 = vector.shape_cast %72 : vector<1x5xf32> to vector<1x5x1xf32>
    %74 = vector.broadcast %73 : vector<1x5x1xf32> to vector<1x5x16xf32>
    %75 = arith.subf %71, %74 : vector<1x5x16xf32>
    %76 = math.exp %75 : vector<1x5x16xf32>
    %cst_41 = arith.constant dense<0.000000e+00> : vector<1x5xf32>
    %77 = vector.multi_reduction <add>, %76, %cst_41 [2] : vector<1x5x16xf32> to vector<1x5xf32>
    %78 = vector.shape_cast %77 : vector<1x5xf32> to vector<1x5x1xf32>
    %79 = tpu.reciprocal %78 {approx = true} : vector<1x5x1xf32> -> vector<1x5x1xf32>
    %80 = vector.broadcast %79 : vector<1x5x1xf32> to vector<1x5x16xf32>
    %81 = arith.mulf %76, %80 : vector<1x5x16xf32>
    %82 = arith.truncf %81 : vector<1x5x16xf32> to vector<1x5x16xbf16>
    "tpu.trace_start"() <{level = 10 : i32, message = "blg,bgd->bld"}> : () -> ()
    %cst_42 = arith.constant dense<0.000000e+00> : vector<1x5x8xf32>
    %83 = tpu.matmul %82, %69, %cst_42 {dimension_numbers = #tpu.dot_dimension_numbers<[2], [1], [1], [2], [0, 0, 0, 1, 1, 2], [0], [0]>} : vector<1x5x16xbf16>, vector<1x16x8xbf16>, vector<1x5x8xf32> -> vector<1x5x8xf32>
    "tpu.trace_stop"() : () -> ()
    %84 = vector.shape_cast %83 : vector<1x5x8xf32> to vector<5x8xf32>
    %85 = arith.truncf %84 : vector<5x8xf32> to vector<5x8xbf16>
    %c8 = arith.constant 8 : index
    %c0_43 = arith.constant 0 : index
    %86 = vector.load %arg8[%c8, %c0_43] : memref<32x32xbf16, #tpu.memory_space<vmem>>, vector<8x32xbf16>
    %cst_44 = arith.constant dense<0.000000e+00> : vector<5x32xf32>
    %87 = tpu.matmul %85, %86, %cst_44 {dimension_numbers = #tpu.dot_dimension_numbers<[1], [0], [0], [1], [0, 0, 1, 1], [], []>} : vector<5x8xbf16>, vector<8x32xbf16>, vector<5x32xf32> -> vector<5x32xf32>
    %88 = arith.addf %61, %87 : vector<5x32xf32>
    %89 = vector.extract_strided_slice %33 {offsets = [0, 16], sizes = [5, 8], strides = [1, 1]} : vector<5x32xf32> to vector<5x8xf32>
    %90 = vector.shape_cast %89 : vector<5x8xf32> to vector<1x5x8xf32>
    %c2 = arith.constant 2 : index
    %c0_45 = arith.constant 0 : index
    %c0_46 = arith.constant 0 : index
    %c0_47 = arith.constant 0 : index
    %91 = vector.load %arg2[%c2, %c0_45, %c0_46, %c0_47] : memref<4x1x16x8xf32, #tpu.memory_space<vmem>>, vector<1x1x16x8xf32>
    %92 = vector.shape_cast %91 : vector<1x1x16x8xf32> to vector<1x16x8xf32>
    %93 = arith.truncf %92 : vector<1x16x8xf32> to vector<1x16x8xbf16>
    %c2_48 = arith.constant 2 : index
    %c0_49 = arith.constant 0 : index
    %c0_50 = arith.constant 0 : index
    %c0_51 = arith.constant 0 : index
    %94 = vector.load %arg3[%c2_48, %c0_49, %c0_50, %c0_51] : memref<4x1x16x8xf32, #tpu.memory_space<vmem>>, vector<1x1x16x8xf32>
    %95 = vector.shape_cast %94 : vector<1x1x16x8xf32> to vector<1x16x8xf32>
    %96 = arith.truncf %95 : vector<1x16x8xf32> to vector<1x16x8xbf16>
    %97 = arith.truncf %90 : vector<1x5x8xf32> to vector<1x5x8xbf16>
    "tpu.trace_start"() <{level = 10 : i32, message = "bld,bgd->blg"}> : () -> ()
    %cst_52 = arith.constant dense<0.000000e+00> : vector<1x5x16xf32>
    %98 = tpu.matmul %97, %93, %cst_52 {dimension_numbers = #tpu.dot_dimension_numbers<[2], [2], [1], [1], [0, 0, 0, 1, 1, 1], [0], [0]>} : vector<1x5x8xbf16>, vector<1x16x8xbf16>, vector<1x5x16xf32> -> vector<1x5x16xf32>
    "tpu.trace_stop"() : () -> ()
    %cst_53 = arith.constant dense<0xFF800000> : vector<1x5xf32>
    %99 = vector.multi_reduction <maximumf>, %98, %cst_53 [2] : vector<1x5x16xf32> to vector<1x5xf32>
    %100 = vector.shape_cast %99 : vector<1x5xf32> to vector<1x5x1xf32>
    %101 = vector.broadcast %100 : vector<1x5x1xf32> to vector<1x5x16xf32>
    %102 = arith.subf %98, %101 : vector<1x5x16xf32>
    %103 = math.exp %102 : vector<1x5x16xf32>
    %cst_54 = arith.constant dense<0.000000e+00> : vector<1x5xf32>
    %104 = vector.multi_reduction <add>, %103, %cst_54 [2] : vector<1x5x16xf32> to vector<1x5xf32>
    %105 = vector.shape_cast %104 : vector<1x5xf32> to vector<1x5x1xf32>
    %106 = tpu.reciprocal %105 {approx = true} : vector<1x5x1xf32> -> vector<1x5x1xf32>
    %107 = vector.broadcast %106 : vector<1x5x1xf32> to vector<1x5x16xf32>
    %108 = arith.mulf %103, %107 : vector<1x5x16xf32>
    %109 = arith.truncf %108 : vector<1x5x16xf32> to vector<1x5x16xbf16>
    "tpu.trace_start"() <{level = 10 : i32, message = "blg,bgd->bld"}> : () -> ()
    %cst_55 = arith.constant dense<0.000000e+00> : vector<1x5x8xf32>
    %110 = tpu.matmul %109, %96, %cst_55 {dimension_numbers = #tpu.dot_dimension_numbers<[2], [1], [1], [2], [0, 0, 0, 1, 1, 2], [0], [0]>} : vector<1x5x16xbf16>, vector<1x16x8xbf16>, vector<1x5x8xf32> -> vector<1x5x8xf32>
    "tpu.trace_stop"() : () -> ()
    %111 = vector.shape_cast %110 : vector<1x5x8xf32> to vector<5x8xf32>
    %112 = arith.truncf %111 : vector<5x8xf32> to vector<5x8xbf16>
    %c16 = arith.constant 16 : index
    %c0_56 = arith.constant 0 : index
    %113 = vector.load %arg8[%c16, %c0_56] : memref<32x32xbf16, #tpu.memory_space<vmem>>, vector<8x32xbf16>
    %cst_57 = arith.constant dense<0.000000e+00> : vector<5x32xf32>
    %114 = tpu.matmul %112, %113, %cst_57 {dimension_numbers = #tpu.dot_dimension_numbers<[1], [0], [0], [1], [0, 0, 1, 1], [], []>} : vector<5x8xbf16>, vector<8x32xbf16>, vector<5x32xf32> -> vector<5x32xf32>
    %115 = arith.addf %88, %114 : vector<5x32xf32>
    %116 = vector.extract_strided_slice %33 {offsets = [0, 24], sizes = [5, 8], strides = [1, 1]} : vector<5x32xf32> to vector<5x8xf32>
    %117 = vector.shape_cast %116 : vector<5x8xf32> to vector<1x5x8xf32>
    %c3 = arith.constant 3 : index
    %c0_58 = arith.constant 0 : index
    %c0_59 = arith.constant 0 : index
    %c0_60 = arith.constant 0 : index
    %118 = vector.load %arg2[%c3, %c0_58, %c0_59, %c0_60] : memref<4x1x16x8xf32, #tpu.memory_space<vmem>>, vector<1x1x16x8xf32>
    %119 = vector.shape_cast %118 : vector<1x1x16x8xf32> to vector<1x16x8xf32>
    %120 = arith.truncf %119 : vector<1x16x8xf32> to vector<1x16x8xbf16>
    %c3_61 = arith.constant 3 : index
    %c0_62 = arith.constant 0 : index
    %c0_63 = arith.constant 0 : index
    %c0_64 = arith.constant 0 : index
    %121 = vector.load %arg3[%c3_61, %c0_62, %c0_63, %c0_64] : memref<4x1x16x8xf32, #tpu.memory_space<vmem>>, vector<1x1x16x8xf32>
    %122 = vector.shape_cast %121 : vector<1x1x16x8xf32> to vector<1x16x8xf32>
    %123 = arith.truncf %122 : vector<1x16x8xf32> to vector<1x16x8xbf16>
    %124 = arith.truncf %117 : vector<1x5x8xf32> to vector<1x5x8xbf16>
    "tpu.trace_start"() <{level = 10 : i32, message = "bld,bgd->blg"}> : () -> ()
    %cst_65 = arith.constant dense<0.000000e+00> : vector<1x5x16xf32>
    %125 = tpu.matmul %124, %120, %cst_65 {dimension_numbers = #tpu.dot_dimension_numbers<[2], [2], [1], [1], [0, 0, 0, 1, 1, 1], [0], [0]>} : vector<1x5x8xbf16>, vector<1x16x8xbf16>, vector<1x5x16xf32> -> vector<1x5x16xf32>
    "tpu.trace_stop"() : () -> ()
    %cst_66 = arith.constant dense<0xFF800000> : vector<1x5xf32>
    %126 = vector.multi_reduction <maximumf>, %125, %cst_66 [2] : vector<1x5x16xf32> to vector<1x5xf32>
    %127 = vector.shape_cast %126 : vector<1x5xf32> to vector<1x5x1xf32>
    %128 = vector.broadcast %127 : vector<1x5x1xf32> to vector<1x5x16xf32>
    %129 = arith.subf %125, %128 : vector<1x5x16xf32>
    %130 = math.exp %129 : vector<1x5x16xf32>
    %cst_67 = arith.constant dense<0.000000e+00> : vector<1x5xf32>
    %131 = vector.multi_reduction <add>, %130, %cst_67 [2] : vector<1x5x16xf32> to vector<1x5xf32>
    %132 = vector.shape_cast %131 : vector<1x5xf32> to vector<1x5x1xf32>
    %133 = tpu.reciprocal %132 {approx = true} : vector<1x5x1xf32> -> vector<1x5x1xf32>
    %134 = vector.broadcast %133 : vector<1x5x1xf32> to vector<1x5x16xf32>
    %135 = arith.mulf %130, %134 : vector<1x5x16xf32>
    %136 = arith.truncf %135 : vector<1x5x16xf32> to vector<1x5x16xbf16>
    "tpu.trace_start"() <{level = 10 : i32, message = "blg,bgd->bld"}> : () -> ()
    %cst_68 = arith.constant dense<0.000000e+00> : vector<1x5x8xf32>
    %137 = tpu.matmul %136, %123, %cst_68 {dimension_numbers = #tpu.dot_dimension_numbers<[2], [1], [1], [2], [0, 0, 0, 1, 1, 2], [0], [0]>} : vector<1x5x16xbf16>, vector<1x16x8xbf16>, vector<1x5x8xf32> -> vector<1x5x8xf32>
    "tpu.trace_stop"() : () -> ()
    %138 = vector.shape_cast %137 : vector<1x5x8xf32> to vector<5x8xf32>
    %139 = arith.truncf %138 : vector<5x8xf32> to vector<5x8xbf16>
    %c24 = arith.constant 24 : index
    %c0_69 = arith.constant 0 : index
    %140 = vector.load %arg8[%c24, %c0_69] : memref<32x32xbf16, #tpu.memory_space<vmem>>, vector<8x32xbf16>
    %cst_70 = arith.constant dense<0.000000e+00> : vector<5x32xf32>
    %141 = tpu.matmul %139, %140, %cst_70 {dimension_numbers = #tpu.dot_dimension_numbers<[1], [0], [0], [1], [0, 0, 1, 1], [], []>} : vector<5x8xbf16>, vector<8x32xbf16>, vector<5x32xf32> -> vector<5x32xf32>
    %142 = arith.addf %115, %141 : vector<5x32xf32>
    %c0_71 = arith.constant 0 : index
    %c0_72 = arith.constant 0 : index
    %143 = vector.load %arg9[%c0_71, %c0_72] : memref<1x32xf32, #tpu.memory_space<vmem>>, vector<1x32xf32>
    %144 = vector.broadcast %143 : vector<1x32xf32> to vector<5x32xf32>
    %145 = arith.addf %142, %144 : vector<5x32xf32>
    %146 = arith.addf %145, %1 : vector<5x32xf32>
    %147 = vector.shape_cast %146 : vector<5x32xf32> to vector<1x5x32xf32>
    %c0_73 = arith.constant 0 : index
    %c0_74 = arith.constant 0 : index
    %c0_75 = arith.constant 0 : index
    %148 = vector.load %arg10[%c0_73, %c0_74, %c0_75] : memref<1x5x32xf32, #tpu.memory_space<vmem>>, vector<1x5x32xf32>
    tpu.vector_store %arg10[%c0_73, %c0_74, %c0_75], %147 {strides = array<i32>} : memref<1x5x32xf32, #tpu.memory_space<vmem>>, vector<1x5x32xf32>,
    return
  }
  func.func @transform_0(%arg0: i32) -> (i32, i32, i32) {
    %c0_i32 = arith.constant 0 : i32
    %c0_i32_0 = arith.constant 0 : i32
    %c0_i32_1 = arith.constant 0 : i32
    return %arg0, %c0_i32, %c0_i32_0 : i32, i32, i32
  }
  func.func @transform_1(%arg0: i32) -> (i32, i32, i32, i32) {
    %c0_i32 = arith.constant 0 : i32
    %c0_i32_0 = arith.constant 0 : i32
    %c0_i32_1 = arith.constant 0 : i32
    %c0_i32_2 = arith.constant 0 : i32
    return %c0_i32, %arg0, %c0_i32_0, %c0_i32_1 : i32, i32, i32, i32
  }
  func.func @transform_2(%arg0: i32) -> (i32, i32, i32, i32) {
    %c0_i32 = arith.constant 0 : i32
    %c0_i32_0 = arith.constant 0 : i32
    %c0_i32_1 = arith.constant 0 : i32
    %c0_i32_2 = arith.constant 0 : i32
    return %c0_i32, %arg0, %c0_i32_0, %c0_i32_1 : i32, i32, i32, i32
  }
  func.func @transform_3(%arg0: i32) -> (i32, i32) {
    %c0_i32 = arith.constant 0 : i32
    %c0_i32_0 = arith.constant 0 : i32
    %c0_i32_1 = arith.constant 0 : i32
    return %c0_i32, %c0_i32_0 : i32, i32
  }
  func.func @transform_4(%arg0: i32) -> (i32, i32) {
    %c0_i32 = arith.constant 0 : i32
    %c0_i32_0 = arith.constant 0 : i32
    %c0_i32_1 = arith.constant 0 : i32
    return %c0_i32, %c0_i32_0 : i32, i32
  }
  func.func @transform_5(%arg0: i32) -> (i32, i32) {
    %c0_i32 = arith.constant 0 : i32
    %c0_i32_0 = arith.constant 0 : i32
    %c0_i32_1 = arith.constant 0 : i32
    return %c0_i32, %c0_i32_0 : i32, i32
  }
  func.func @transform_6(%arg0: i32) -> (i32, i32) {
    %c0_i32 = arith.constant 0 : i32
    %c0_i32_0 = arith.constant 0 : i32
    %c0_i32_1 = arith.constant 0 : i32
    return %c0_i32, %c0_i32_0 : i32, i32
  }
  func.func @transform_7(%arg0: i32) -> (i32, i32) {
    %c0_i32 = arith.constant 0 : i32
    %c0_i32_0 = arith.constant 0 : i32
    %c0_i32_1 = arith.constant 0 : i32
    return %c0_i32, %c0_i32_0 : i32, i32
  }
  func.func @transform_8(%arg0: i32) -> (i32, i32) {
    %c0_i32 = arith.constant 0 : i32
    %c0_i32_0 = arith.constant 0 : i32
    %c0_i32_1 = arith.constant 0 : i32
    return %c0_i32, %c0_i32_0 : i32, i32
  }
  func.func @transform_9(%arg0: i32) -> (i32, i32, i32) {
    %c0_i32 = arith.constant 0 : i32
    %c0_i32_0 = arith.constant 0 : i32
    %c0_i32_1 = arith.constant 0 : i32
    return %arg0, %c0_i32, %c0_i32_0 : i32, i32, i32
  }
}

module attributes {stable_mosaic.version = 11 : i64} {
  func.func @kernel(%arg0: i32, %arg1: i32, %arg2: memref<8x32xf32, #tpu.memory_space<vmem>>, %arg3: memref<32x128xbf16, #tpu.memory_space<vmem>>, %arg4: memref<1x128xf32, #tpu.memory_space<vmem>>, %arg5: memref<1x32xf32, #tpu.memory_space<vmem>>, %arg6: memref<1x32xf32, #tpu.memory_space<vmem>>, %arg7: memref<8x128xf32, #tpu.memory_space<vmem>>) attributes {dimension_semantics = [#tpu.dimension_semantics<arbitrary>, #tpu.dimension_semantics<parallel>], iteration_bounds = array<i64: 1, 2>, scalar_prefetch = 0 : i64, scratch_operands = 0 : i64, tpu.core_type = #tpu.core_type<tc>, window_params = [{transform_indices = @transform_0, window_bounds = array<i64: 8, 32>}, {transform_indices = @transform_1, window_bounds = array<i64: 32, 128>}, {transform_indices = @transform_2, window_bounds = array<i64: 1, 128>}, {pipeline_mode = #tpu.pipeline_mode<synchronous>, transform_indices = @transform_3, window_bounds = array<i64: 1, 32>}, {pipeline_mode = #tpu.pipeline_mode<synchronous>, transform_indices = @transform_4, window_bounds = array<i64: 1, 32>}, {transform_indices = @transform_5, window_bounds = array<i64: 8, 128>}]} {
    %c0 = arith.constant 0 : index
    %c0_0 = arith.constant 0 : index
    %0 = vector.load %arg2[%c0, %c0_0] : memref<8x32xf32, #tpu.memory_space<vmem>>, vector<8x32xf32>
    %cst = arith.constant dense<0.000000e+00> : vector<8xf32>
    %1 = vector.multi_reduction <add>, %0, %cst [1] : vector<8x32xf32> to vector<8xf32>
    %2 = vector.shape_cast %1 : vector<8xf32> to vector<8x1xf32>
    %cst_1 = arith.constant 3.200000e+01 : f32
    %3 = vector.broadcast %cst_1 : f32 to vector<8x1xf32>
    %4 = arith.divf %2, %3 : vector<8x1xf32>
    %5 = vector.broadcast %4 : vector<8x1xf32> to vector<8x32xf32>
    %6 = arith.subf %0, %5 : vector<8x32xf32>
    %7 = arith.mulf %6, %6 : vector<8x32xf32>
    %cst_2 = arith.constant dense<0.000000e+00> : vector<8xf32>
    %8 = vector.multi_reduction <add>, %7, %cst_2 [1] : vector<8x32xf32> to vector<8xf32>
    %9 = vector.shape_cast %8 : vector<8xf32> to vector<8x1xf32>
    %cst_3 = arith.constant 3.200000e+01 : f32
    %10 = vector.broadcast %cst_3 : f32 to vector<8x1xf32>
    %11 = arith.divf %9, %10 : vector<8x1xf32>
    %12 = vector.broadcast %4 : vector<8x1xf32> to vector<8x32xf32>
    %13 = arith.subf %0, %12 : vector<8x32xf32>
    %cst_4 = arith.constant 9.99999974E-6 : f32
    %14 = vector.broadcast %cst_4 : f32 to vector<8x1xf32>
    %15 = arith.addf %11, %14 : vector<8x1xf32>
    %16 = math.rsqrt %15 : vector<8x1xf32>
    %17 = vector.broadcast %16 : vector<8x1xf32> to vector<8x32xf32>
    %18 = arith.mulf %13, %17 : vector<8x32xf32>
    %c0_5 = arith.constant 0 : index
    %c0_6 = arith.constant 0 : index
    %19 = vector.load %arg5[%c0_5, %c0_6] : memref<1x32xf32, #tpu.memory_space<vmem>>, vector<1x32xf32>
    %20 = vector.broadcast %19 : vector<1x32xf32> to vector<8x32xf32>
    %21 = arith.mulf %18, %20 : vector<8x32xf32>
    %c0_7 = arith.constant 0 : index
    %c0_8 = arith.constant 0 : index
    %22 = vector.load %arg6[%c0_7, %c0_8] : memref<1x32xf32, #tpu.memory_space<vmem>>, vector<1x32xf32>
    %23 = vector.broadcast %22 : vector<1x32xf32> to vector<8x32xf32>
    %24 = arith.addf %21, %23 : vector<8x32xf32>
    %25 = arith.truncf %24 : vector<8x32xf32> to vector<8x32xbf16>
    %c0_9 = arith.constant 0 : index
    %c0_10 = arith.constant 0 : index
    %26 = vector.load %arg3[%c0_9, %c0_10] : memref<32x128xbf16, #tpu.memory_space<vmem>>, vector<32x128xbf16>
    %cst_11 = arith.constant dense<0.000000e+00> : vector<8x128xf32>
    %27 = tpu.matmul %25, %26, %cst_11 {dimension_numbers = #tpu.dot_dimension_numbers<[1], [0], [0], [1], [0, 0, 1, 1], [], []>} : vector<8x32xbf16>, vector<32x128xbf16>, vector<8x128xf32> -> vector<8x128xf32>
    %c0_12 = arith.constant 0 : index
    %c0_13 = arith.constant 0 : index
    %28 = vector.load %arg4[%c0_12, %c0_13] : memref<1x128xf32, #tpu.memory_space<vmem>>, vector<1x128xf32>
    %29 = vector.broadcast %28 : vector<1x128xf32> to vector<8x128xf32>
    %30 = arith.addf %27, %29 : vector<8x128xf32>
    %cst_14 = arith.constant 1.702000e+00 : f32
    %31 = vector.broadcast %cst_14 : f32 to vector<8x128xf32>
    %32 = arith.mulf %31, %30 : vector<8x128xf32>
    %33 = arith.negf %32 : vector<8x128xf32>
    %34 = math.exp %33 : vector<8x128xf32>
    %cst_15 = arith.constant 1.000000e+00 : f32
    %35 = vector.broadcast %cst_15 : f32 to vector<8x128xf32>
    %36 = arith.addf %35, %34 : vector<8x128xf32>
    %37 = arith.divf %35, %36 : vector<8x128xf32>
    %38 = arith.mulf %30, %37 : vector<8x128xf32>
    %c0_16 = arith.constant 0 : index
    %c0_17 = arith.constant 0 : index
    %39 = vector.load %arg7[%c0_16, %c0_17] : memref<8x128xf32, #tpu.memory_space<vmem>>, vector<8x128xf32>
    tpu.vector_store %arg7[%c0_16, %c0_17], %38 {strides = array<i32>} : memref<8x128xf32, #tpu.memory_space<vmem>>, vector<8x128xf32>,
    return
  }
  func.func @transform_0(%arg0: i32, %arg1: i32) -> (i32, i32) {
    %c0_i32 = arith.constant 0 : i32
    %c0_i32_0 = arith.constant 0 : i32
    return %arg1, %c0_i32 : i32, i32
  }
  func.func @transform_1(%arg0: i32, %arg1: i32) -> (i32, i32) {
    %c0_i32 = arith.constant 0 : i32
    %c0_i32_0 = arith.constant 0 : i32
    return %c0_i32, %arg0 : i32, i32
  }
  func.func @transform_2(%arg0: i32, %arg1: i32) -> (i32, i32) {
    %c0_i32 = arith.constant 0 : i32
    %c0_i32_0 = arith.constant 0 : i32
    return %c0_i32, %arg0 : i32, i32
  }
  func.func @transform_3(%arg0: i32, %arg1: i32) -> (i32, i32) {
    %c0_i32 = arith.constant 0 : i32
    %c0_i32_0 = arith.constant 0 : i32
    %c0_i32_1 = arith.constant 0 : i32
    return %c0_i32, %c0_i32_0 : i32, i32
  }
  func.func @transform_4(%arg0: i32, %arg1: i32) -> (i32, i32) {
    %c0_i32 = arith.constant 0 : i32
    %c0_i32_0 = arith.constant 0 : i32
    %c0_i32_1 = arith.constant 0 : i32
    return %c0_i32, %c0_i32_0 : i32, i32
  }
  func.func @transform_5(%arg0: i32, %arg1: i32) -> (i32, i32) {
    %c0_i32 = arith.constant 0 : i32
    return %arg1, %arg0 : i32, i32
  }
}

module attributes {stable_mosaic.version = 11 : i64} {
  func.func @kernel(%arg0: i32, %arg1: i32, %arg2: memref<8x128xf32, #tpu.memory_space<vmem>>, %arg3: memref<128x32xbf16, #tpu.memory_space<vmem>>, %arg4: memref<1x32xf32, #tpu.memory_space<vmem>>, %arg5: memref<8x32xf32, #tpu.memory_space<vmem>>, %arg6: memref<8x32xf32, #tpu.memory_space<vmem>>) attributes {dimension_semantics = [#tpu.dimension_semantics<arbitrary>, #tpu.dimension_semantics<parallel>], iteration_bounds = array<i64: 1, 2>, scalar_prefetch = 0 : i64, scratch_operands = 0 : i64, tpu.core_type = #tpu.core_type<tc>, window_params = [{transform_indices = @transform_0, window_bounds = array<i64: 8, 128>}, {transform_indices = @transform_1, window_bounds = array<i64: 128, 32>}, {transform_indices = @transform_2, window_bounds = array<i64: 1, 32>}, {transform_indices = @transform_3, window_bounds = array<i64: 8, 32>}, {transform_indices = @transform_4, window_bounds = array<i64: 8, 32>}]} {
    %c0 = arith.constant 0 : index
    %c0_0 = arith.constant 0 : index
    %0 = vector.load %arg2[%c0, %c0_0] : memref<8x128xf32, #tpu.memory_space<vmem>>, vector<8x128xf32>
    %1 = arith.truncf %0 : vector<8x128xf32> to vector<8x128xbf16>
    %c0_1 = arith.constant 0 : index
    %c0_2 = arith.constant 0 : index
    %2 = vector.load %arg3[%c0_1, %c0_2] : memref<128x32xbf16, #tpu.memory_space<vmem>>, vector<128x32xbf16>
    %cst = arith.constant dense<0.000000e+00> : vector<8x32xf32>
    %3 = tpu.matmul %1, %2, %cst {dimension_numbers = #tpu.dot_dimension_numbers<[1], [0], [0], [1], [0, 0, 1, 1], [], []>} : vector<8x128xbf16>, vector<128x32xbf16>, vector<8x32xf32> -> vector<8x32xf32>
    %c0_3 = arith.constant 0 : index
    %c0_4 = arith.constant 0 : index
    %4 = vector.load %arg4[%c0_3, %c0_4] : memref<1x32xf32, #tpu.memory_space<vmem>>, vector<1x32xf32>
    %5 = vector.broadcast %4 : vector<1x32xf32> to vector<8x32xf32>
    %6 = arith.addf %3, %5 : vector<8x32xf32>
    %c0_5 = arith.constant 0 : index
    %c0_6 = arith.constant 0 : index
    %7 = vector.load %arg5[%c0_5, %c0_6] : memref<8x32xf32, #tpu.memory_space<vmem>>, vector<8x32xf32>
    %8 = arith.addf %6, %7 : vector<8x32xf32>
    %c0_7 = arith.constant 0 : index
    %c0_8 = arith.constant 0 : index
    %9 = vector.load %arg6[%c0_7, %c0_8] : memref<8x32xf32, #tpu.memory_space<vmem>>, vector<8x32xf32>
    tpu.vector_store %arg6[%c0_7, %c0_8], %8 {strides = array<i32>} : memref<8x32xf32, #tpu.memory_space<vmem>>, vector<8x32xf32>,
    return
  }
  func.func @transform_0(%arg0: i32, %arg1: i32) -> (i32, i32) {
    %c0_i32 = arith.constant 0 : i32
    %c0_i32_0 = arith.constant 0 : i32
    return %arg1, %c0_i32 : i32, i32
  }
  func.func @transform_1(%arg0: i32, %arg1: i32) -> (i32, i32) {
    %c0_i32 = arith.constant 0 : i32
    %c0_i32_0 = arith.constant 0 : i32
    return %c0_i32, %arg0 : i32, i32
  }
  func.func @transform_2(%arg0: i32, %arg1: i32) -> (i32, i32) {
    %c0_i32 = arith.constant 0 : i32
    %c0_i32_0 = arith.constant 0 : i32
    return %c0_i32, %arg0 : i32, i32
  }
  func.func @transform_3(%arg0: i32, %arg1: i32) -> (i32, i32) {
    %c0_i32 = arith.constant 0 : i32
    return %arg1, %arg0 : i32, i32
  }
  func.func @transform_4(%arg0: i32, %arg1: i32) -> (i32, i32) {
    %c0_i32 = arith.constant 0 : i32
    return %arg1, %arg0 : i32, i32
  }
}

module attributes {stable_mosaic.version = 11 : i64} {
  func.func @kernel(%arg0: i32, %arg1: memref<1x5x32xf32, #tpu.memory_space<vmem>>, %arg2: memref<5x5xf32, #tpu.memory_space<vmem>>, %arg3: memref<1x32xf32, #tpu.memory_space<vmem>>, %arg4: memref<1x32xf32, #tpu.memory_space<vmem>>, %arg5: memref<32x96xbf16, #tpu.memory_space<vmem>>, %arg6: memref<1x96xf32, #tpu.memory_space<vmem>>, %arg7: memref<32x32xbf16, #tpu.memory_space<vmem>>, %arg8: memref<1x32xf32, #tpu.memory_space<vmem>>, %arg9: memref<1x5x32xf32, #tpu.memory_space<vmem>>) attributes {dimension_semantics = [#tpu.dimension_semantics<parallel>], iteration_bounds = array<i64: 2>, scalar_prefetch = 0 : i64, scratch_operands = 0 : i64, tpu.core_type = #tpu.core_type<tc>, window_params = [{transform_indices = @transform_0, window_bounds = array<i64: 1, 5, 32>}, {pipeline_mode = #tpu.pipeline_mode<synchronous>, transform_indices = @transform_1, window_bounds = array<i64: 5, 5>}, {pipeline_mode = #tpu.pipeline_mode<synchronous>, transform_indices = @transform_2, window_bounds = array<i64: 1, 32>}, {pipeline_mode = #tpu.pipeline_mode<synchronous>, transform_indices = @transform_3, window_bounds = array<i64: 1, 32>}, {pipeline_mode = #tpu.pipeline_mode<synchronous>, transform_indices = @transform_4, window_bounds = array<i64: 32, 96>}, {pipeline_mode = #tpu.pipeline_mode<synchronous>, transform_indices = @transform_5, window_bounds = array<i64: 1, 96>}, {pipeline_mode = #tpu.pipeline_mode<synchronous>, transform_indices = @transform_6, window_bounds = array<i64: 32, 32>}, {pipeline_mode = #tpu.pipeline_mode<synchronous>, transform_indices = @transform_7, window_bounds = array<i64: 1, 32>}, {transform_indices = @transform_8, window_bounds = array<i64: 1, 5, 32>}]} {
    %c0 = arith.constant 0 : index
    %c0_0 = arith.constant 0 : index
    %c0_1 = arith.constant 0 : index
    %0 = vector.load %arg1[%c0, %c0_0, %c0_1] : memref<1x5x32xf32, #tpu.memory_space<vmem>>, vector<1x5x32xf32>
    %1 = vector.shape_cast %0 : vector<1x5x32xf32> to vector<5x32xf32>
    %cst = arith.constant dense<0.000000e+00> : vector<5xf32>
    %2 = vector.multi_reduction <add>, %1, %cst [1] : vector<5x32xf32> to vector<5xf32>
    %3 = vector.shape_cast %2 : vector<5xf32> to vector<5x1xf32>
    %cst_2 = arith.constant 3.200000e+01 : f32
    %4 = vector.broadcast %cst_2 : f32 to vector<5x1xf32>
    %5 = arith.divf %3, %4 : vector<5x1xf32>
    %6 = vector.broadcast %5 : vector<5x1xf32> to vector<5x32xf32>
    %7 = arith.subf %1, %6 : vector<5x32xf32>
    %8 = arith.mulf %7, %7 : vector<5x32xf32>
    %cst_3 = arith.constant dense<0.000000e+00> : vector<5xf32>
    %9 = vector.multi_reduction <add>, %8, %cst_3 [1] : vector<5x32xf32> to vector<5xf32>
    %10 = vector.shape_cast %9 : vector<5xf32> to vector<5x1xf32>
    %cst_4 = arith.constant 3.200000e+01 : f32
    %11 = vector.broadcast %cst_4 : f32 to vector<5x1xf32>
    %12 = arith.divf %10, %11 : vector<5x1xf32>
    %13 = vector.broadcast %5 : vector<5x1xf32> to vector<5x32xf32>
    %14 = arith.subf %1, %13 : vector<5x32xf32>
    %cst_5 = arith.constant 9.99999974E-6 : f32
    %15 = vector.broadcast %cst_5 : f32 to vector<5x1xf32>
    %16 = arith.addf %12, %15 : vector<5x1xf32>
    %17 = math.rsqrt %16 : vector<5x1xf32>
    %18 = vector.broadcast %17 : vector<5x1xf32> to vector<5x32xf32>
    %19 = arith.mulf %14, %18 : vector<5x32xf32>
    %c0_6 = arith.constant 0 : index
    %c0_7 = arith.constant 0 : index
    %20 = vector.load %arg3[%c0_6, %c0_7] : memref<1x32xf32, #tpu.memory_space<vmem>>, vector<1x32xf32>
    %21 = vector.broadcast %20 : vector<1x32xf32> to vector<5x32xf32>
    %22 = arith.mulf %19, %21 : vector<5x32xf32>
    %c0_8 = arith.constant 0 : index
    %c0_9 = arith.constant 0 : index
    %23 = vector.load %arg4[%c0_8, %c0_9] : memref<1x32xf32, #tpu.memory_space<vmem>>, vector<1x32xf32>
    %24 = vector.broadcast %23 : vector<1x32xf32> to vector<5x32xf32>
    %25 = arith.addf %22, %24 : vector<5x32xf32>
    %26 = arith.truncf %25 : vector<5x32xf32> to vector<5x32xbf16>
    %c0_10 = arith.constant 0 : index
    %c0_11 = arith.constant 0 : index
    %27 = vector.load %arg5[%c0_10, %c0_11] : memref<32x96xbf16, #tpu.memory_space<vmem>>, vector<32x96xbf16>
    %cst_12 = arith.constant dense<0.000000e+00> : vector<5x96xf32>
    %28 = tpu.matmul %26, %27, %cst_12 {dimension_numbers = #tpu.dot_dimension_numbers<[1], [0], [0], [1], [0, 0, 1, 1], [], []>} : vector<5x32xbf16>, vector<32x96xbf16>, vector<5x96xf32> -> vector<5x96xf32>
    %c0_13 = arith.constant 0 : index
    %c0_14 = arith.constant 0 : index
    %29 = vector.load %arg6[%c0_13, %c0_14] : memref<1x96xf32, #tpu.memory_space<vmem>>, vector<1x96xf32>
    %30 = vector.broadcast %29 : vector<1x96xf32> to vector<5x96xf32>
    %31 = arith.addf %28, %30 : vector<5x96xf32>
    %c0_15 = arith.constant 0 : index
    %c0_16 = arith.constant 0 : index
    %32 = vector.load %arg2[%c0_15, %c0_16] : memref<5x5xf32, #tpu.memory_space<vmem>>, vector<5x5xf32>
    %cst_17 = arith.constant 0.000000e+00 : f32
    %33 = vector.broadcast %cst_17 : f32 to vector<5x32xf32>
    %34 = vector.extract_strided_slice %31 {offsets = [0, 0], sizes = [5, 8], strides = [1, 1]} : vector<5x96xf32> to vector<5x8xf32>
    %cst_18 = arith.constant 0.353553385 : f32
    %35 = vector.broadcast %cst_18 : f32 to vector<5x8xf32>
    %36 = arith.mulf %34, %35 : vector<5x8xf32>
    %37 = vector.shape_cast %36 : vector<5x8xf32> to vector<1x5x8xf32>
    %38 = vector.extract_strided_slice %31 {offsets = [0, 32], sizes = [5, 8], strides = [1, 1]} : vector<5x96xf32> to vector<5x8xf32>
    %39 = vector.shape_cast %38 : vector<5x8xf32> to vector<1x5x8xf32>
    %40 = vector.extract_strided_slice %31 {offsets = [0, 64], sizes = [5, 8], strides = [1, 1]} : vector<5x96xf32> to vector<5x8xf32>
    %41 = vector.shape_cast %40 : vector<5x8xf32> to vector<1x5x8xf32>
    %42 = arith.truncf %37 : vector<1x5x8xf32> to vector<1x5x8xbf16>
    %43 = arith.truncf %39 : vector<1x5x8xf32> to vector<1x5x8xbf16>
    "tpu.trace_start"() <{level = 10 : i32, message = "bqd,bkd->bqk"}> : () -> ()
    %cst_19 = arith.constant dense<0.000000e+00> : vector<1x5x5xf32>
    %44 = tpu.matmul %42, %43, %cst_19 {dimension_numbers = #tpu.dot_dimension_numbers<[2], [2], [1], [1], [0, 0, 0, 1, 1, 1], [0], [0]>} : vector<1x5x8xbf16>, vector<1x5x8xbf16>, vector<1x5x5xf32> -> vector<1x5x5xf32>
    "tpu.trace_stop"() : () -> ()
    %45 = vector.shape_cast %32 : vector<5x5xf32> to vector<1x5x5xf32>
    %46 = arith.addf %44, %45 : vector<1x5x5xf32>
    %cst_20 = arith.constant dense<0xFF800000> : vector<1x5xf32>
    %47 = vector.multi_reduction <maximumf>, %46, %cst_20 [2] : vector<1x5x5xf32> to vector<1x5xf32>
    %48 = vector.shape_cast %47 : vector<1x5xf32> to vector<1x5x1xf32>
    %49 = vector.broadcast %48 : vector<1x5x1xf32> to vector<1x5x5xf32>
    %50 = arith.subf %46, %49 : vector<1x5x5xf32>
    %51 = math.exp %50 : vector<1x5x5xf32>
    %cst_21 = arith.constant dense<0.000000e+00> : vector<1x5xf32>
    %52 = vector.multi_reduction <add>, %51, %cst_21 [2] : vector<1x5x5xf32> to vector<1x5xf32>
    %53 = vector.shape_cast %52 : vector<1x5xf32> to vector<1x5x1xf32>
    %54 = tpu.reciprocal %53 {approx = true} : vector<1x5x1xf32> -> vector<1x5x1xf32>
    %55 = vector.broadcast %54 : vector<1x5x1xf32> to vector<1x5x5xf32>
    %56 = arith.mulf %51, %55 : vector<1x5x5xf32>
    %57 = arith.truncf %56 : vector<1x5x5xf32> to vector<1x5x5xbf16>
    %58 = arith.truncf %41 : vector<1x5x8xf32> to vector<1x5x8xbf16>
    "tpu.trace_start"() <{level = 10 : i32, message = "bqk,bkd->bqd"}> : () -> ()
    %cst_22 = arith.constant dense<0.000000e+00> : vector<1x5x8xf32>
    %59 = tpu.matmul %57, %58, %cst_22 {dimension_numbers = #tpu.dot_dimension_numbers<[2], [1], [1], [2], [0, 0, 0, 1, 1, 2], [0], [0]>} : vector<1x5x5xbf16>, vector<1x5x8xbf16>, vector<1x5x8xf32> -> vector<1x5x8xf32>
    "tpu.trace_stop"() : () -> ()
    %60 = vector.shape_cast %59 : vector<1x5x8xf32> to vector<5x8xf32>
    %61 = arith.truncf %60 : vector<5x8xf32> to vector<5x8xbf16>
    %c0_23 = arith.constant 0 : index
    %c0_24 = arith.constant 0 : index
    %62 = vector.load %arg7[%c0_23, %c0_24] : memref<32x32xbf16, #tpu.memory_space<vmem>>, vector<8x32xbf16>
    %cst_25 = arith.constant dense<0.000000e+00> : vector<5x32xf32>
    %63 = tpu.matmul %61, %62, %cst_25 {dimension_numbers = #tpu.dot_dimension_numbers<[1], [0], [0], [1], [0, 0, 1, 1], [], []>} : vector<5x8xbf16>, vector<8x32xbf16>, vector<5x32xf32> -> vector<5x32xf32>
    %64 = arith.addf %33, %63 : vector<5x32xf32>
    %65 = vector.extract_strided_slice %31 {offsets = [0, 8], sizes = [5, 8], strides = [1, 1]} : vector<5x96xf32> to vector<5x8xf32>
    %cst_26 = arith.constant 0.353553385 : f32
    %66 = vector.broadcast %cst_26 : f32 to vector<5x8xf32>
    %67 = arith.mulf %65, %66 : vector<5x8xf32>
    %68 = vector.shape_cast %67 : vector<5x8xf32> to vector<1x5x8xf32>
    %69 = vector.extract_strided_slice %31 {offsets = [0, 40], sizes = [5, 8], strides = [1, 1]} : vector<5x96xf32> to vector<5x8xf32>
    %70 = vector.shape_cast %69 : vector<5x8xf32> to vector<1x5x8xf32>
    %71 = vector.extract_strided_slice %31 {offsets = [0, 72], sizes = [5, 8], strides = [1, 1]} : vector<5x96xf32> to vector<5x8xf32>
    %72 = vector.shape_cast %71 : vector<5x8xf32> to vector<1x5x8xf32>
    %73 = arith.truncf %68 : vector<1x5x8xf32> to vector<1x5x8xbf16>
    %74 = arith.truncf %70 : vector<1x5x8xf32> to vector<1x5x8xbf16>
    "tpu.trace_start"() <{level = 10 : i32, message = "bqd,bkd->bqk"}> : () -> ()
    %cst_27 = arith.constant dense<0.000000e+00> : vector<1x5x5xf32>
    %75 = tpu.matmul %73, %74, %cst_27 {dimension_numbers = #tpu.dot_dimension_numbers<[2], [2], [1], [1], [0, 0, 0, 1, 1, 1], [0], [0]>} : vector<1x5x8xbf16>, vector<1x5x8xbf16>, vector<1x5x5xf32> -> vector<1x5x5xf32>
    "tpu.trace_stop"() : () -> ()
    %76 = vector.shape_cast %32 : vector<5x5xf32> to vector<1x5x5xf32>
    %77 = arith.addf %75, %76 : vector<1x5x5xf32>
    %cst_28 = arith.constant dense<0xFF800000> : vector<1x5xf32>
    %78 = vector.multi_reduction <maximumf>, %77, %cst_28 [2] : vector<1x5x5xf32> to vector<1x5xf32>
    %79 = vector.shape_cast %78 : vector<1x5xf32> to vector<1x5x1xf32>
    %80 = vector.broadcast %79 : vector<1x5x1xf32> to vector<1x5x5xf32>
    %81 = arith.subf %77, %80 : vector<1x5x5xf32>
    %82 = math.exp %81 : vector<1x5x5xf32>
    %cst_29 = arith.constant dense<0.000000e+00> : vector<1x5xf32>
    %83 = vector.multi_reduction <add>, %82, %cst_29 [2] : vector<1x5x5xf32> to vector<1x5xf32>
    %84 = vector.shape_cast %83 : vector<1x5xf32> to vector<1x5x1xf32>
    %85 = tpu.reciprocal %84 {approx = true} : vector<1x5x1xf32> -> vector<1x5x1xf32>
    %86 = vector.broadcast %85 : vector<1x5x1xf32> to vector<1x5x5xf32>
    %87 = arith.mulf %82, %86 : vector<1x5x5xf32>
    %88 = arith.truncf %87 : vector<1x5x5xf32> to vector<1x5x5xbf16>
    %89 = arith.truncf %72 : vector<1x5x8xf32> to vector<1x5x8xbf16>
    "tpu.trace_start"() <{level = 10 : i32, message = "bqk,bkd->bqd"}> : () -> ()
    %cst_30 = arith.constant dense<0.000000e+00> : vector<1x5x8xf32>
    %90 = tpu.matmul %88, %89, %cst_30 {dimension_numbers = #tpu.dot_dimension_numbers<[2], [1], [1], [2], [0, 0, 0, 1, 1, 2], [0], [0]>} : vector<1x5x5xbf16>, vector<1x5x8xbf16>, vector<1x5x8xf32> -> vector<1x5x8xf32>
    "tpu.trace_stop"() : () -> ()
    %91 = vector.shape_cast %90 : vector<1x5x8xf32> to vector<5x8xf32>
    %92 = arith.truncf %91 : vector<5x8xf32> to vector<5x8xbf16>
    %c8 = arith.constant 8 : index
    %c0_31 = arith.constant 0 : index
    %93 = vector.load %arg7[%c8, %c0_31] : memref<32x32xbf16, #tpu.memory_space<vmem>>, vector<8x32xbf16>
    %cst_32 = arith.constant dense<0.000000e+00> : vector<5x32xf32>
    %94 = tpu.matmul %92, %93, %cst_32 {dimension_numbers = #tpu.dot_dimension_numbers<[1], [0], [0], [1], [0, 0, 1, 1], [], []>} : vector<5x8xbf16>, vector<8x32xbf16>, vector<5x32xf32> -> vector<5x32xf32>
    %95 = arith.addf %64, %94 : vector<5x32xf32>
    %96 = vector.extract_strided_slice %31 {offsets = [0, 16], sizes = [5, 8], strides = [1, 1]} : vector<5x96xf32> to vector<5x8xf32>
    %cst_33 = arith.constant 0.353553385 : f32
    %97 = vector.broadcast %cst_33 : f32 to vector<5x8xf32>
    %98 = arith.mulf %96, %97 : vector<5x8xf32>
    %99 = vector.shape_cast %98 : vector<5x8xf32> to vector<1x5x8xf32>
    %100 = vector.extract_strided_slice %31 {offsets = [0, 48], sizes = [5, 8], strides = [1, 1]} : vector<5x96xf32> to vector<5x8xf32>
    %101 = vector.shape_cast %100 : vector<5x8xf32> to vector<1x5x8xf32>
    %102 = vector.extract_strided_slice %31 {offsets = [0, 80], sizes = [5, 8], strides = [1, 1]} : vector<5x96xf32> to vector<5x8xf32>
    %103 = vector.shape_cast %102 : vector<5x8xf32> to vector<1x5x8xf32>
    %104 = arith.truncf %99 : vector<1x5x8xf32> to vector<1x5x8xbf16>
    %105 = arith.truncf %101 : vector<1x5x8xf32> to vector<1x5x8xbf16>
    "tpu.trace_start"() <{level = 10 : i32, message = "bqd,bkd->bqk"}> : () -> ()
    %cst_34 = arith.constant dense<0.000000e+00> : vector<1x5x5xf32>
    %106 = tpu.matmul %104, %105, %cst_34 {dimension_numbers = #tpu.dot_dimension_numbers<[2], [2], [1], [1], [0, 0, 0, 1, 1, 1], [0], [0]>} : vector<1x5x8xbf16>, vector<1x5x8xbf16>, vector<1x5x5xf32> -> vector<1x5x5xf32>
    "tpu.trace_stop"() : () -> ()
    %107 = vector.shape_cast %32 : vector<5x5xf32> to vector<1x5x5xf32>
    %108 = arith.addf %106, %107 : vector<1x5x5xf32>
    %cst_35 = arith.constant dense<0xFF800000> : vector<1x5xf32>
    %109 = vector.multi_reduction <maximumf>, %108, %cst_35 [2] : vector<1x5x5xf32> to vector<1x5xf32>
    %110 = vector.shape_cast %109 : vector<1x5xf32> to vector<1x5x1xf32>
    %111 = vector.broadcast %110 : vector<1x5x1xf32> to vector<1x5x5xf32>
    %112 = arith.subf %108, %111 : vector<1x5x5xf32>
    %113 = math.exp %112 : vector<1x5x5xf32>
    %cst_36 = arith.constant dense<0.000000e+00> : vector<1x5xf32>
    %114 = vector.multi_reduction <add>, %113, %cst_36 [2] : vector<1x5x5xf32> to vector<1x5xf32>
    %115 = vector.shape_cast %114 : vector<1x5xf32> to vector<1x5x1xf32>
    %116 = tpu.reciprocal %115 {approx = true} : vector<1x5x1xf32> -> vector<1x5x1xf32>
    %117 = vector.broadcast %116 : vector<1x5x1xf32> to vector<1x5x5xf32>
    %118 = arith.mulf %113, %117 : vector<1x5x5xf32>
    %119 = arith.truncf %118 : vector<1x5x5xf32> to vector<1x5x5xbf16>
    %120 = arith.truncf %103 : vector<1x5x8xf32> to vector<1x5x8xbf16>
    "tpu.trace_start"() <{level = 10 : i32, message = "bqk,bkd->bqd"}> : () -> ()
    %cst_37 = arith.constant dense<0.000000e+00> : vector<1x5x8xf32>
    %121 = tpu.matmul %119, %120, %cst_37 {dimension_numbers = #tpu.dot_dimension_numbers<[2], [1], [1], [2], [0, 0, 0, 1, 1, 2], [0], [0]>} : vector<1x5x5xbf16>, vector<1x5x8xbf16>, vector<1x5x8xf32> -> vector<1x5x8xf32>
    "tpu.trace_stop"() : () -> ()
    %122 = vector.shape_cast %121 : vector<1x5x8xf32> to vector<5x8xf32>
    %123 = arith.truncf %122 : vector<5x8xf32> to vector<5x8xbf16>
    %c16 = arith.constant 16 : index
    %c0_38 = arith.constant 0 : index
    %124 = vector.load %arg7[%c16, %c0_38] : memref<32x32xbf16, #tpu.memory_space<vmem>>, vector<8x32xbf16>
    %cst_39 = arith.constant dense<0.000000e+00> : vector<5x32xf32>
    %125 = tpu.matmul %123, %124, %cst_39 {dimension_numbers = #tpu.dot_dimension_numbers<[1], [0], [0], [1], [0, 0, 1, 1], [], []>} : vector<5x8xbf16>, vector<8x32xbf16>, vector<5x32xf32> -> vector<5x32xf32>
    %126 = arith.addf %95, %125 : vector<5x32xf32>
    %127 = vector.extract_strided_slice %31 {offsets = [0, 24], sizes = [5, 8], strides = [1, 1]} : vector<5x96xf32> to vector<5x8xf32>
    %cst_40 = arith.constant 0.353553385 : f32
    %128 = vector.broadcast %cst_40 : f32 to vector<5x8xf32>
    %129 = arith.mulf %127, %128 : vector<5x8xf32>
    %130 = vector.shape_cast %129 : vector<5x8xf32> to vector<1x5x8xf32>
    %131 = vector.extract_strided_slice %31 {offsets = [0, 56], sizes = [5, 8], strides = [1, 1]} : vector<5x96xf32> to vector<5x8xf32>
    %132 = vector.shape_cast %131 : vector<5x8xf32> to vector<1x5x8xf32>
    %133 = vector.extract_strided_slice %31 {offsets = [0, 88], sizes = [5, 8], strides = [1, 1]} : vector<5x96xf32> to vector<5x8xf32>
    %134 = vector.shape_cast %133 : vector<5x8xf32> to vector<1x5x8xf32>
    %135 = arith.truncf %130 : vector<1x5x8xf32> to vector<1x5x8xbf16>
    %136 = arith.truncf %132 : vector<1x5x8xf32> to vector<1x5x8xbf16>
    "tpu.trace_start"() <{level = 10 : i32, message = "bqd,bkd->bqk"}> : () -> ()
    %cst_41 = arith.constant dense<0.000000e+00> : vector<1x5x5xf32>
    %137 = tpu.matmul %135, %136, %cst_41 {dimension_numbers = #tpu.dot_dimension_numbers<[2], [2], [1], [1], [0, 0, 0, 1, 1, 1], [0], [0]>} : vector<1x5x8xbf16>, vector<1x5x8xbf16>, vector<1x5x5xf32> -> vector<1x5x5xf32>
    "tpu.trace_stop"() : () -> ()
    %138 = vector.shape_cast %32 : vector<5x5xf32> to vector<1x5x5xf32>
    %139 = arith.addf %137, %138 : vector<1x5x5xf32>
    %cst_42 = arith.constant dense<0xFF800000> : vector<1x5xf32>
    %140 = vector.multi_reduction <maximumf>, %139, %cst_42 [2] : vector<1x5x5xf32> to vector<1x5xf32>
    %141 = vector.shape_cast %140 : vector<1x5xf32> to vector<1x5x1xf32>
    %142 = vector.broadcast %141 : vector<1x5x1xf32> to vector<1x5x5xf32>
    %143 = arith.subf %139, %142 : vector<1x5x5xf32>
    %144 = math.exp %143 : vector<1x5x5xf32>
    %cst_43 = arith.constant dense<0.000000e+00> : vector<1x5xf32>
    %145 = vector.multi_reduction <add>, %144, %cst_43 [2] : vector<1x5x5xf32> to vector<1x5xf32>
    %146 = vector.shape_cast %145 : vector<1x5xf32> to vector<1x5x1xf32>
    %147 = tpu.reciprocal %146 {approx = true} : vector<1x5x1xf32> -> vector<1x5x1xf32>
    %148 = vector.broadcast %147 : vector<1x5x1xf32> to vector<1x5x5xf32>
    %149 = arith.mulf %144, %148 : vector<1x5x5xf32>
    %150 = arith.truncf %149 : vector<1x5x5xf32> to vector<1x5x5xbf16>
    %151 = arith.truncf %134 : vector<1x5x8xf32> to vector<1x5x8xbf16>
    "tpu.trace_start"() <{level = 10 : i32, message = "bqk,bkd->bqd"}> : () -> ()
    %cst_44 = arith.constant dense<0.000000e+00> : vector<1x5x8xf32>
    %152 = tpu.matmul %150, %151, %cst_44 {dimension_numbers = #tpu.dot_dimension_numbers<[2], [1], [1], [2], [0, 0, 0, 1, 1, 2], [0], [0]>} : vector<1x5x5xbf16>, vector<1x5x8xbf16>, vector<1x5x8xf32> -> vector<1x5x8xf32>
    "tpu.trace_stop"() : () -> ()
    %153 = vector.shape_cast %152 : vector<1x5x8xf32> to vector<5x8xf32>
    %154 = arith.truncf %153 : vector<5x8xf32> to vector<5x8xbf16>
    %c24 = arith.constant 24 : index
    %c0_45 = arith.constant 0 : index
    %155 = vector.load %arg7[%c24, %c0_45] : memref<32x32xbf16, #tpu.memory_space<vmem>>, vector<8x32xbf16>
    %cst_46 = arith.constant dense<0.000000e+00> : vector<5x32xf32>
    %156 = tpu.matmul %154, %155, %cst_46 {dimension_numbers = #tpu.dot_dimension_numbers<[1], [0], [0], [1], [0, 0, 1, 1], [], []>} : vector<5x8xbf16>, vector<8x32xbf16>, vector<5x32xf32> -> vector<5x32xf32>
    %157 = arith.addf %126, %156 : vector<5x32xf32>
    %c0_47 = arith.constant 0 : index
    %c0_48 = arith.constant 0 : index
    %158 = vector.load %arg8[%c0_47, %c0_48] : memref<1x32xf32, #tpu.memory_space<vmem>>, vector<1x32xf32>
    %159 = vector.broadcast %158 : vector<1x32xf32> to vector<5x32xf32>
    %160 = arith.addf %157, %159 : vector<5x32xf32>
    %161 = arith.addf %160, %1 : vector<5x32xf32>
    %162 = vector.shape_cast %161 : vector<5x32xf32> to vector<1x5x32xf32>
    %c0_49 = arith.constant 0 : index
    %c0_50 = arith.constant 0 : index
    %c0_51 = arith.constant 0 : index
    %163 = vector.load %arg9[%c0_49, %c0_50, %c0_51] : memref<1x5x32xf32, #tpu.memory_space<vmem>>, vector<1x5x32xf32>
    tpu.vector_store %arg9[%c0_49, %c0_50, %c0_51], %162 {strides = array<i32>} : memref<1x5x32xf32, #tpu.memory_space<vmem>>, vector<1x5x32xf32>,
    return
  }
  func.func @transform_0(%arg0: i32) -> (i32, i32, i32) {
    %c0_i32 = arith.constant 0 : i32
    %c0_i32_0 = arith.constant 0 : i32
    %c0_i32_1 = arith.constant 0 : i32
    return %arg0, %c0_i32, %c0_i32_0 : i32, i32, i32
  }
  func.func @transform_1(%arg0: i32) -> (i32, i32) {
    %c0_i32 = arith.constant 0 : i32
    %c0_i32_0 = arith.constant 0 : i32
    %c0_i32_1 = arith.constant 0 : i32
    return %c0_i32, %c0_i32_0 : i32, i32
  }
  func.func @transform_2(%arg0: i32) -> (i32, i32) {
    %c0_i32 = arith.constant 0 : i32
    %c0_i32_0 = arith.constant 0 : i32
    %c0_i32_1 = arith.constant 0 : i32
    return %c0_i32, %c0_i32_0 : i32, i32
  }
  func.func @transform_3(%arg0: i32) -> (i32, i32) {
    %c0_i32 = arith.constant 0 : i32
    %c0_i32_0 = arith.constant 0 : i32
    %c0_i32_1 = arith.constant 0 : i32
    return %c0_i32, %c0_i32_0 : i32, i32
  }
  func.func @transform_4(%arg0: i32) -> (i32, i32) {
    %c0_i32 = arith.constant 0 : i32
    %c0_i32_0 = arith.constant 0 : i32
    %c0_i32_1 = arith.constant 0 : i32
    return %c0_i32, %c0_i32_0 : i32, i32
  }
  func.func @transform_5(%arg0: i32) -> (i32, i32) {
    %c0_i32 = arith.constant 0 : i32
    %c0_i32_0 = arith.constant 0 : i32
    %c0_i32_1 = arith.constant 0 : i32
    return %c0_i32, %c0_i32_0 : i32, i32
  }
  func.func @transform_6(%arg0: i32) -> (i32, i32) {
    %c0_i32 = arith.constant 0 : i32
    %c0_i32_0 = arith.constant 0 : i32
    %c0_i32_1 = arith.constant 0 : i32
    return %c0_i32, %c0_i32_0 : i32, i32
  }
  func.func @transform_7(%arg0: i32) -> (i32, i32) {
    %c0_i32 = arith.constant 0 : i32
    %c0_i32_0 = arith.constant 0 : i32
    %c0_i32_1 = arith.constant 0 : i32
    return %c0_i32, %c0_i32_0 : i32, i32
  }
  func.func @transform_8(%arg0: i32) -> (i32, i32, i32) {
    %c0_i32 = arith.constant 0 : i32
    %c0_i32_0 = arith.constant 0 : i32
    %c0_i32_1 = arith.constant 0 : i32
    return %arg0, %c0_i32, %c0_i32_0 : i32, i32, i32
  }
}

module attributes {stable_mosaic.version = 11 : i64} {
  func.func @kernel(%arg0: i32, %arg1: memref<1x5x32xf32, #tpu.memory_space<vmem>>, %arg2: memref<4x1x16x8xf32, #tpu.memory_space<vmem>>, %arg3: memref<4x1x16x8xf32, #tpu.memory_space<vmem>>, %arg4: memref<1x32xf32, #tpu.memory_space<vmem>>, %arg5: memref<1x32xf32, #tpu.memory_space<vmem>>, %arg6: memref<32x32xbf16, #tpu.memory_space<vmem>>, %arg7: memref<1x32xf32, #tpu.memory_space<vmem>>, %arg8: memref<32x32xbf16, #tpu.memory_space<vmem>>, %arg9: memref<1x32xf32, #tpu.memory_space<vmem>>, %arg10: memref<1x5x32xf32, #tpu.memory_space<vmem>>, %arg11: memref<1x5x16xf32, #tpu.memory_space<vmem>>) attributes {dimension_semantics = [#tpu.dimension_semantics<parallel>], iteration_bounds = array<i64: 2>, scalar_prefetch = 0 : i64, scratch_operands = 0 : i64, tpu.core_type = #tpu.core_type<tc>, window_params = [{transform_indices = @transform_0, window_bounds = array<i64: 1, 5, 32>}, {transform_indices = @transform_1, window_bounds = array<i64: 4, 1, 16, 8>}, {transform_indices = @transform_2, window_bounds = array<i64: 4, 1, 16, 8>}, {pipeline_mode = #tpu.pipeline_mode<synchronous>, transform_indices = @transform_3, window_bounds = array<i64: 1, 32>}, {pipeline_mode = #tpu.pipeline_mode<synchronous>, transform_indices = @transform_4, window_bounds = array<i64: 1, 32>}, {pipeline_mode = #tpu.pipeline_mode<synchronous>, transform_indices = @transform_5, window_bounds = array<i64: 32, 32>}, {pipeline_mode = #tpu.pipeline_mode<synchronous>, transform_indices = @transform_6, window_bounds = array<i64: 1, 32>}, {pipeline_mode = #tpu.pipeline_mode<synchronous>, transform_indices = @transform_7, window_bounds = array<i64: 32, 32>}, {pipeline_mode = #tpu.pipeline_mode<synchronous>, transform_indices = @transform_8, window_bounds = array<i64: 1, 32>}, {transform_indices = @transform_9, window_bounds = array<i64: 1, 5, 32>}, {transform_indices = @transform_10, window_bounds = array<i64: 1, 5, 16>}]} {
    %c0 = arith.constant 0 : index
    %c0_0 = arith.constant 0 : index
    %c0_1 = arith.constant 0 : index
    %0 = vector.load %arg1[%c0, %c0_0, %c0_1] : memref<1x5x32xf32, #tpu.memory_space<vmem>>, vector<1x5x32xf32>
    %1 = vector.shape_cast %0 : vector<1x5x32xf32> to vector<5x32xf32>
    %cst = arith.constant dense<0.000000e+00> : vector<5xf32>
    %2 = vector.multi_reduction <add>, %1, %cst [1] : vector<5x32xf32> to vector<5xf32>
    %3 = vector.shape_cast %2 : vector<5xf32> to vector<5x1xf32>
    %cst_2 = arith.constant 3.200000e+01 : f32
    %4 = vector.broadcast %cst_2 : f32 to vector<5x1xf32>
    %5 = arith.divf %3, %4 : vector<5x1xf32>
    %6 = vector.broadcast %5 : vector<5x1xf32> to vector<5x32xf32>
    %7 = arith.subf %1, %6 : vector<5x32xf32>
    %8 = arith.mulf %7, %7 : vector<5x32xf32>
    %cst_3 = arith.constant dense<0.000000e+00> : vector<5xf32>
    %9 = vector.multi_reduction <add>, %8, %cst_3 [1] : vector<5x32xf32> to vector<5xf32>
    %10 = vector.shape_cast %9 : vector<5xf32> to vector<5x1xf32>
    %cst_4 = arith.constant 3.200000e+01 : f32
    %11 = vector.broadcast %cst_4 : f32 to vector<5x1xf32>
    %12 = arith.divf %10, %11 : vector<5x1xf32>
    %13 = vector.broadcast %5 : vector<5x1xf32> to vector<5x32xf32>
    %14 = arith.subf %1, %13 : vector<5x32xf32>
    %cst_5 = arith.constant 9.99999974E-6 : f32
    %15 = vector.broadcast %cst_5 : f32 to vector<5x1xf32>
    %16 = arith.addf %12, %15 : vector<5x1xf32>
    %17 = math.rsqrt %16 : vector<5x1xf32>
    %18 = vector.broadcast %17 : vector<5x1xf32> to vector<5x32xf32>
    %19 = arith.mulf %14, %18 : vector<5x32xf32>
    %c0_6 = arith.constant 0 : index
    %c0_7 = arith.constant 0 : index
    %20 = vector.load %arg4[%c0_6, %c0_7] : memref<1x32xf32, #tpu.memory_space<vmem>>, vector<1x32xf32>
    %21 = vector.broadcast %20 : vector<1x32xf32> to vector<5x32xf32>
    %22 = arith.mulf %19, %21 : vector<5x32xf32>
    %c0_8 = arith.constant 0 : index
    %c0_9 = arith.constant 0 : index
    %23 = vector.load %arg5[%c0_8, %c0_9] : memref<1x32xf32, #tpu.memory_space<vmem>>, vector<1x32xf32>
    %24 = vector.broadcast %23 : vector<1x32xf32> to vector<5x32xf32>
    %25 = arith.addf %22, %24 : vector<5x32xf32>
    %26 = arith.truncf %25 : vector<5x32xf32> to vector<5x32xbf16>
    %c0_10 = arith.constant 0 : index
    %c0_11 = arith.constant 0 : index
    %27 = vector.load %arg6[%c0_10, %c0_11] : memref<32x32xbf16, #tpu.memory_space<vmem>>, vector<32x32xbf16>
    %cst_12 = arith.constant dense<0.000000e+00> : vector<5x32xf32>
    %28 = tpu.matmul %26, %27, %cst_12 {dimension_numbers = #tpu.dot_dimension_numbers<[1], [0], [0], [1], [0, 0, 1, 1], [], []>} : vector<5x32xbf16>, vector<32x32xbf16>, vector<5x32xf32> -> vector<5x32xf32>
    %c0_13 = arith.constant 0 : index
    %c0_14 = arith.constant 0 : index
    %29 = vector.load %arg7[%c0_13, %c0_14] : memref<1x32xf32, #tpu.memory_space<vmem>>, vector<1x32xf32>
    %30 = vector.broadcast %29 : vector<1x32xf32> to vector<5x32xf32>
    %31 = arith.addf %28, %30 : vector<5x32xf32>
    %cst_15 = arith.constant 0.353553385 : f32
    %32 = vector.broadcast %cst_15 : f32 to vector<5x32xf32>
    %33 = arith.mulf %31, %32 : vector<5x32xf32>
    %cst_16 = arith.constant 0.000000e+00 : f32
    %34 = vector.broadcast %cst_16 : f32 to vector<5x32xf32>
    %cst_17 = arith.constant 0.000000e+00 : f32
    %35 = vector.broadcast %cst_17 : f32 to vector<1x5x16xf32>
    %36 = vector.extract_strided_slice %33 {offsets = [0, 0], sizes = [5, 8], strides = [1, 1]} : vector<5x32xf32> to vector<5x8xf32>
    %37 = vector.shape_cast %36 : vector<5x8xf32> to vector<1x5x8xf32>
    %c0_18 = arith.constant 0 : index
    %c0_19 = arith.constant 0 : index
    %c0_20 = arith.constant 0 : index
    %c0_21 = arith.constant 0 : index
    %38 = vector.load %arg2[%c0_18, %c0_19, %c0_20, %c0_21] : memref<4x1x16x8xf32, #tpu.memory_space<vmem>>, vector<1x1x16x8xf32>
    %39 = vector.shape_cast %38 : vector<1x1x16x8xf32> to vector<1x16x8xf32>
    %40 = arith.truncf %39 : vector<1x16x8xf32> to vector<1x16x8xbf16>
    %c0_22 = arith.constant 0 : index
    %c0_23 = arith.constant 0 : index
    %c0_24 = arith.constant 0 : index
    %c0_25 = arith.constant 0 : index
    %41 = vector.load %arg3[%c0_22, %c0_23, %c0_24, %c0_25] : memref<4x1x16x8xf32, #tpu.memory_space<vmem>>, vector<1x1x16x8xf32>
    %42 = vector.shape_cast %41 : vector<1x1x16x8xf32> to vector<1x16x8xf32>
    %43 = arith.truncf %42 : vector<1x16x8xf32> to vector<1x16x8xbf16>
    %44 = arith.truncf %37 : vector<1x5x8xf32> to vector<1x5x8xbf16>
    "tpu.trace_start"() <{level = 10 : i32, message = "bld,bgd->blg"}> : () -> ()
    %cst_26 = arith.constant dense<0.000000e+00> : vector<1x5x16xf32>
    %45 = tpu.matmul %44, %40, %cst_26 {dimension_numbers = #tpu.dot_dimension_numbers<[2], [2], [1], [1], [0, 0, 0, 1, 1, 1], [0], [0]>} : vector<1x5x8xbf16>, vector<1x16x8xbf16>, vector<1x5x16xf32> -> vector<1x5x16xf32>
    "tpu.trace_stop"() : () -> ()
    %cst_27 = arith.constant dense<0xFF800000> : vector<1x5xf32>
    %46 = vector.multi_reduction <maximumf>, %45, %cst_27 [2] : vector<1x5x16xf32> to vector<1x5xf32>
    %47 = vector.shape_cast %46 : vector<1x5xf32> to vector<1x5x1xf32>
    %48 = vector.broadcast %47 : vector<1x5x1xf32> to vector<1x5x16xf32>
    %49 = arith.subf %45, %48 : vector<1x5x16xf32>
    %50 = math.exp %49 : vector<1x5x16xf32>
    %cst_28 = arith.constant dense<0.000000e+00> : vector<1x5xf32>
    %51 = vector.multi_reduction <add>, %50, %cst_28 [2] : vector<1x5x16xf32> to vector<1x5xf32>
    %52 = vector.shape_cast %51 : vector<1x5xf32> to vector<1x5x1xf32>
    %53 = tpu.reciprocal %52 {approx = true} : vector<1x5x1xf32> -> vector<1x5x1xf32>
    %54 = vector.broadcast %53 : vector<1x5x1xf32> to vector<1x5x16xf32>
    %55 = arith.mulf %50, %54 : vector<1x5x16xf32>
    %56 = arith.truncf %55 : vector<1x5x16xf32> to vector<1x5x16xbf16>
    "tpu.trace_start"() <{level = 10 : i32, message = "blg,bgd->bld"}> : () -> ()
    %cst_29 = arith.constant dense<0.000000e+00> : vector<1x5x8xf32>
    %57 = tpu.matmul %56, %43, %cst_29 {dimension_numbers = #tpu.dot_dimension_numbers<[2], [1], [1], [2], [0, 0, 0, 1, 1, 2], [0], [0]>} : vector<1x5x16xbf16>, vector<1x16x8xbf16>, vector<1x5x8xf32> -> vector<1x5x8xf32>
    "tpu.trace_stop"() : () -> ()
    %58 = vector.shape_cast %57 : vector<1x5x8xf32> to vector<5x8xf32>
    %59 = arith.truncf %58 : vector<5x8xf32> to vector<5x8xbf16>
    %c0_30 = arith.constant 0 : index
    %c0_31 = arith.constant 0 : index
    %60 = vector.load %arg8[%c0_30, %c0_31] : memref<32x32xbf16, #tpu.memory_space<vmem>>, vector<8x32xbf16>
    %cst_32 = arith.constant dense<0.000000e+00> : vector<5x32xf32>
    %61 = tpu.matmul %59, %60, %cst_32 {dimension_numbers = #tpu.dot_dimension_numbers<[1], [0], [0], [1], [0, 0, 1, 1], [], []>} : vector<5x8xbf16>, vector<8x32xbf16>, vector<5x32xf32> -> vector<5x32xf32>
    %62 = arith.addf %34, %61 : vector<5x32xf32>
    %63 = arith.addf %35, %55 : vector<1x5x16xf32>
    %64 = vector.extract_strided_slice %33 {offsets = [0, 8], sizes = [5, 8], strides = [1, 1]} : vector<5x32xf32> to vector<5x8xf32>
    %65 = vector.shape_cast %64 : vector<5x8xf32> to vector<1x5x8xf32>
    %c1 = arith.constant 1 : index
    %c0_33 = arith.constant 0 : index
    %c0_34 = arith.constant 0 : index
    %c0_35 = arith.constant 0 : index
    %66 = vector.load %arg2[%c1, %c0_33, %c0_34, %c0_35] : memref<4x1x16x8xf32, #tpu.memory_space<vmem>>, vector<1x1x16x8xf32>
    %67 = vector.shape_cast %66 : vector<1x1x16x8xf32> to vector<1x16x8xf32>
    %68 = arith.truncf %67 : vector<1x16x8xf32> to vector<1x16x8xbf16>
    %c1_36 = arith.constant 1 : index
    %c0_37 = arith.constant 0 : index
    %c0_38 = arith.constant 0 : index
    %c0_39 = arith.constant 0 : index
    %69 = vector.load %arg3[%c1_36, %c0_37, %c0_38, %c0_39] : memref<4x1x16x8xf32, #tpu.memory_space<vmem>>, vector<1x1x16x8xf32>
    %70 = vector.shape_cast %69 : vector<1x1x16x8xf32> to vector<1x16x8xf32>
    %71 = arith.truncf %70 : vector<1x16x8xf32> to vector<1x16x8xbf16>
    %72 = arith.truncf %65 : vector<1x5x8xf32> to vector<1x5x8xbf16>
    "tpu.trace_start"() <{level = 10 : i32, message = "bld,bgd->blg"}> : () -> ()
    %cst_40 = arith.constant dense<0.000000e+00> : vector<1x5x16xf32>
    %73 = tpu.matmul %72, %68, %cst_40 {dimension_numbers = #tpu.dot_dimension_numbers<[2], [2], [1], [1], [0, 0, 0, 1, 1, 1], [0], [0]>} : vector<1x5x8xbf16>, vector<1x16x8xbf16>, vector<1x5x16xf32> -> vector<1x5x16xf32>
    "tpu.trace_stop"() : () -> ()
    %cst_41 = arith.constant dense<0xFF800000> : vector<1x5xf32>
    %74 = vector.multi_reduction <maximumf>, %73, %cst_41 [2] : vector<1x5x16xf32> to vector<1x5xf32>
    %75 = vector.shape_cast %74 : vector<1x5xf32> to vector<1x5x1xf32>
    %76 = vector.broadcast %75 : vector<1x5x1xf32> to vector<1x5x16xf32>
    %77 = arith.subf %73, %76 : vector<1x5x16xf32>
    %78 = math.exp %77 : vector<1x5x16xf32>
    %cst_42 = arith.constant dense<0.000000e+00> : vector<1x5xf32>
    %79 = vector.multi_reduction <add>, %78, %cst_42 [2] : vector<1x5x16xf32> to vector<1x5xf32>
    %80 = vector.shape_cast %79 : vector<1x5xf32> to vector<1x5x1xf32>
    %81 = tpu.reciprocal %80 {approx = true} : vector<1x5x1xf32> -> vector<1x5x1xf32>
    %82 = vector.broadcast %81 : vector<1x5x1xf32> to vector<1x5x16xf32>
    %83 = arith.mulf %78, %82 : vector<1x5x16xf32>
    %84 = arith.truncf %83 : vector<1x5x16xf32> to vector<1x5x16xbf16>
    "tpu.trace_start"() <{level = 10 : i32, message = "blg,bgd->bld"}> : () -> ()
    %cst_43 = arith.constant dense<0.000000e+00> : vector<1x5x8xf32>
    %85 = tpu.matmul %84, %71, %cst_43 {dimension_numbers = #tpu.dot_dimension_numbers<[2], [1], [1], [2], [0, 0, 0, 1, 1, 2], [0], [0]>} : vector<1x5x16xbf16>, vector<1x16x8xbf16>, vector<1x5x8xf32> -> vector<1x5x8xf32>
    "tpu.trace_stop"() : () -> ()
    %86 = vector.shape_cast %85 : vector<1x5x8xf32> to vector<5x8xf32>
    %87 = arith.truncf %86 : vector<5x8xf32> to vector<5x8xbf16>
    %c8 = arith.constant 8 : index
    %c0_44 = arith.constant 0 : index
    %88 = vector.load %arg8[%c8, %c0_44] : memref<32x32xbf16, #tpu.memory_space<vmem>>, vector<8x32xbf16>
    %cst_45 = arith.constant dense<0.000000e+00> : vector<5x32xf32>
    %89 = tpu.matmul %87, %88, %cst_45 {dimension_numbers = #tpu.dot_dimension_numbers<[1], [0], [0], [1], [0, 0, 1, 1], [], []>} : vector<5x8xbf16>, vector<8x32xbf16>, vector<5x32xf32> -> vector<5x32xf32>
    %90 = arith.addf %62, %89 : vector<5x32xf32>
    %91 = arith.addf %63, %83 : vector<1x5x16xf32>
    %92 = vector.extract_strided_slice %33 {offsets = [0, 16], sizes = [5, 8], strides = [1, 1]} : vector<5x32xf32> to vector<5x8xf32>
    %93 = vector.shape_cast %92 : vector<5x8xf32> to vector<1x5x8xf32>
    %c2 = arith.constant 2 : index
    %c0_46 = arith.constant 0 : index
    %c0_47 = arith.constant 0 : index
    %c0_48 = arith.constant 0 : index
    %94 = vector.load %arg2[%c2, %c0_46, %c0_47, %c0_48] : memref<4x1x16x8xf32, #tpu.memory_space<vmem>>, vector<1x1x16x8xf32>
    %95 = vector.shape_cast %94 : vector<1x1x16x8xf32> to vector<1x16x8xf32>
    %96 = arith.truncf %95 : vector<1x16x8xf32> to vector<1x16x8xbf16>
    %c2_49 = arith.constant 2 : index
    %c0_50 = arith.constant 0 : index
    %c0_51 = arith.constant 0 : index
    %c0_52 = arith.constant 0 : index
    %97 = vector.load %arg3[%c2_49, %c0_50, %c0_51, %c0_52] : memref<4x1x16x8xf32, #tpu.memory_space<vmem>>, vector<1x1x16x8xf32>
    %98 = vector.shape_cast %97 : vector<1x1x16x8xf32> to vector<1x16x8xf32>
    %99 = arith.truncf %98 : vector<1x16x8xf32> to vector<1x16x8xbf16>
    %100 = arith.truncf %93 : vector<1x5x8xf32> to vector<1x5x8xbf16>
    "tpu.trace_start"() <{level = 10 : i32, message = "bld,bgd->blg"}> : () -> ()
    %cst_53 = arith.constant dense<0.000000e+00> : vector<1x5x16xf32>
    %101 = tpu.matmul %100, %96, %cst_53 {dimension_numbers = #tpu.dot_dimension_numbers<[2], [2], [1], [1], [0, 0, 0, 1, 1, 1], [0], [0]>} : vector<1x5x8xbf16>, vector<1x16x8xbf16>, vector<1x5x16xf32> -> vector<1x5x16xf32>
    "tpu.trace_stop"() : () -> ()
    %cst_54 = arith.constant dense<0xFF800000> : vector<1x5xf32>
    %102 = vector.multi_reduction <maximumf>, %101, %cst_54 [2] : vector<1x5x16xf32> to vector<1x5xf32>
    %103 = vector.shape_cast %102 : vector<1x5xf32> to vector<1x5x1xf32>
    %104 = vector.broadcast %103 : vector<1x5x1xf32> to vector<1x5x16xf32>
    %105 = arith.subf %101, %104 : vector<1x5x16xf32>
    %106 = math.exp %105 : vector<1x5x16xf32>
    %cst_55 = arith.constant dense<0.000000e+00> : vector<1x5xf32>
    %107 = vector.multi_reduction <add>, %106, %cst_55 [2] : vector<1x5x16xf32> to vector<1x5xf32>
    %108 = vector.shape_cast %107 : vector<1x5xf32> to vector<1x5x1xf32>
    %109 = tpu.reciprocal %108 {approx = true} : vector<1x5x1xf32> -> vector<1x5x1xf32>
    %110 = vector.broadcast %109 : vector<1x5x1xf32> to vector<1x5x16xf32>
    %111 = arith.mulf %106, %110 : vector<1x5x16xf32>
    %112 = arith.truncf %111 : vector<1x5x16xf32> to vector<1x5x16xbf16>
    "tpu.trace_start"() <{level = 10 : i32, message = "blg,bgd->bld"}> : () -> ()
    %cst_56 = arith.constant dense<0.000000e+00> : vector<1x5x8xf32>
    %113 = tpu.matmul %112, %99, %cst_56 {dimension_numbers = #tpu.dot_dimension_numbers<[2], [1], [1], [2], [0, 0, 0, 1, 1, 2], [0], [0]>} : vector<1x5x16xbf16>, vector<1x16x8xbf16>, vector<1x5x8xf32> -> vector<1x5x8xf32>
    "tpu.trace_stop"() : () -> ()
    %114 = vector.shape_cast %113 : vector<1x5x8xf32> to vector<5x8xf32>
    %115 = arith.truncf %114 : vector<5x8xf32> to vector<5x8xbf16>
    %c16 = arith.constant 16 : index
    %c0_57 = arith.constant 0 : index
    %116 = vector.load %arg8[%c16, %c0_57] : memref<32x32xbf16, #tpu.memory_space<vmem>>, vector<8x32xbf16>
    %cst_58 = arith.constant dense<0.000000e+00> : vector<5x32xf32>
    %117 = tpu.matmul %115, %116, %cst_58 {dimension_numbers = #tpu.dot_dimension_numbers<[1], [0], [0], [1], [0, 0, 1, 1], [], []>} : vector<5x8xbf16>, vector<8x32xbf16>, vector<5x32xf32> -> vector<5x32xf32>
    %118 = arith.addf %90, %117 : vector<5x32xf32>
    %119 = arith.addf %91, %111 : vector<1x5x16xf32>
    %120 = vector.extract_strided_slice %33 {offsets = [0, 24], sizes = [5, 8], strides = [1, 1]} : vector<5x32xf32> to vector<5x8xf32>
    %121 = vector.shape_cast %120 : vector<5x8xf32> to vector<1x5x8xf32>
    %c3 = arith.constant 3 : index
    %c0_59 = arith.constant 0 : index
    %c0_60 = arith.constant 0 : index
    %c0_61 = arith.constant 0 : index
    %122 = vector.load %arg2[%c3, %c0_59, %c0_60, %c0_61] : memref<4x1x16x8xf32, #tpu.memory_space<vmem>>, vector<1x1x16x8xf32>
    %123 = vector.shape_cast %122 : vector<1x1x16x8xf32> to vector<1x16x8xf32>
    %124 = arith.truncf %123 : vector<1x16x8xf32> to vector<1x16x8xbf16>
    %c3_62 = arith.constant 3 : index
    %c0_63 = arith.constant 0 : index
    %c0_64 = arith.constant 0 : index
    %c0_65 = arith.constant 0 : index
    %125 = vector.load %arg3[%c3_62, %c0_63, %c0_64, %c0_65] : memref<4x1x16x8xf32, #tpu.memory_space<vmem>>, vector<1x1x16x8xf32>
    %126 = vector.shape_cast %125 : vector<1x1x16x8xf32> to vector<1x16x8xf32>
    %127 = arith.truncf %126 : vector<1x16x8xf32> to vector<1x16x8xbf16>
    %128 = arith.truncf %121 : vector<1x5x8xf32> to vector<1x5x8xbf16>
    "tpu.trace_start"() <{level = 10 : i32, message = "bld,bgd->blg"}> : () -> ()
    %cst_66 = arith.constant dense<0.000000e+00> : vector<1x5x16xf32>
    %129 = tpu.matmul %128, %124, %cst_66 {dimension_numbers = #tpu.dot_dimension_numbers<[2], [2], [1], [1], [0, 0, 0, 1, 1, 1], [0], [0]>} : vector<1x5x8xbf16>, vector<1x16x8xbf16>, vector<1x5x16xf32> -> vector<1x5x16xf32>
    "tpu.trace_stop"() : () -> ()
    %cst_67 = arith.constant dense<0xFF800000> : vector<1x5xf32>
    %130 = vector.multi_reduction <maximumf>, %129, %cst_67 [2] : vector<1x5x16xf32> to vector<1x5xf32>
    %131 = vector.shape_cast %130 : vector<1x5xf32> to vector<1x5x1xf32>
    %132 = vector.broadcast %131 : vector<1x5x1xf32> to vector<1x5x16xf32>
    %133 = arith.subf %129, %132 : vector<1x5x16xf32>
    %134 = math.exp %133 : vector<1x5x16xf32>
    %cst_68 = arith.constant dense<0.000000e+00> : vector<1x5xf32>
    %135 = vector.multi_reduction <add>, %134, %cst_68 [2] : vector<1x5x16xf32> to vector<1x5xf32>
    %136 = vector.shape_cast %135 : vector<1x5xf32> to vector<1x5x1xf32>
    %137 = tpu.reciprocal %136 {approx = true} : vector<1x5x1xf32> -> vector<1x5x1xf32>
    %138 = vector.broadcast %137 : vector<1x5x1xf32> to vector<1x5x16xf32>
    %139 = arith.mulf %134, %138 : vector<1x5x16xf32>
    %140 = arith.truncf %139 : vector<1x5x16xf32> to vector<1x5x16xbf16>
    "tpu.trace_start"() <{level = 10 : i32, message = "blg,bgd->bld"}> : () -> ()
    %cst_69 = arith.constant dense<0.000000e+00> : vector<1x5x8xf32>
    %141 = tpu.matmul %140, %127, %cst_69 {dimension_numbers = #tpu.dot_dimension_numbers<[2], [1], [1], [2], [0, 0, 0, 1, 1, 2], [0], [0]>} : vector<1x5x16xbf16>, vector<1x16x8xbf16>, vector<1x5x8xf32> -> vector<1x5x8xf32>
    "tpu.trace_stop"() : () -> ()
    %142 = vector.shape_cast %141 : vector<1x5x8xf32> to vector<5x8xf32>
    %143 = arith.truncf %142 : vector<5x8xf32> to vector<5x8xbf16>
    %c24 = arith.constant 24 : index
    %c0_70 = arith.constant 0 : index
    %144 = vector.load %arg8[%c24, %c0_70] : memref<32x32xbf16, #tpu.memory_space<vmem>>, vector<8x32xbf16>
    %cst_71 = arith.constant dense<0.000000e+00> : vector<5x32xf32>
    %145 = tpu.matmul %143, %144, %cst_71 {dimension_numbers = #tpu.dot_dimension_numbers<[1], [0], [0], [1], [0, 0, 1, 1], [], []>} : vector<5x8xbf16>, vector<8x32xbf16>, vector<5x32xf32> -> vector<5x32xf32>
    %146 = arith.addf %118, %145 : vector<5x32xf32>
    %147 = arith.addf %119, %139 : vector<1x5x16xf32>
    %c0_72 = arith.constant 0 : index
    %c0_73 = arith.constant 0 : index
    %148 = vector.load %arg9[%c0_72, %c0_73] : memref<1x32xf32, #tpu.memory_space<vmem>>, vector<1x32xf32>
    %149 = vector.broadcast %148 : vector<1x32xf32> to vector<5x32xf32>
    %150 = arith.addf %146, %149 : vector<5x32xf32>
    %151 = arith.addf %150, %1 : vector<5x32xf32>
    %152 = vector.shape_cast %151 : vector<5x32xf32> to vector<1x5x32xf32>
    %c0_74 = arith.constant 0 : index
    %c0_75 = arith.constant 0 : index
    %c0_76 = arith.constant 0 : index
    %153 = vector.load %arg10[%c0_74, %c0_75, %c0_76] : memref<1x5x32xf32, #tpu.memory_space<vmem>>, vector<1x5x32xf32>
    tpu.vector_store %arg10[%c0_74, %c0_75, %c0_76], %152 {strides = array<i32>} : memref<1x5x32xf32, #tpu.memory_space<vmem>>, vector<1x5x32xf32>,
    %cst_77 = arith.constant 2.500000e-01 : f32
    %154 = vector.broadcast %cst_77 : f32 to vector<1x5x16xf32>
    %155 = arith.mulf %147, %154 : vector<1x5x16xf32>
    %c0_78 = arith.constant 0 : index
    %c0_79 = arith.constant 0 : index
    %c0_80 = arith.constant 0 : index
    %156 = vector.load %arg11[%c0_78, %c0_79, %c0_80] : memref<1x5x16xf32, #tpu.memory_space<vmem>>, vector<1x5x16xf32>
    tpu.vector_store %arg11[%c0_78, %c0_79, %c0_80], %155 {strides = array<i32>} : memref<1x5x16xf32, #tpu.memory_space<vmem>>, vector<1x5x16xf32>,
    return
  }
  func.func @transform_0(%arg0: i32) -> (i32, i32, i32) {
    %c0_i32 = arith.constant 0 : i32
    %c0_i32_0 = arith.constant 0 : i32
    %c0_i32_1 = arith.constant 0 : i32
    return %arg0, %c0_i32, %c0_i32_0 : i32, i32, i32
  }
  func.func @transform_1(%arg0: i32) -> (i32, i32, i32, i32) {
    %c0_i32 = arith.constant 0 : i32
    %c0_i32_0 = arith.constant 0 : i32
    %c0_i32_1 = arith.constant 0 : i32
    %c0_i32_2 = arith.constant 0 : i32
    return %c0_i32, %arg0, %c0_i32_0, %c0_i32_1 : i32, i32, i32, i32
  }
  func.func @transform_2(%arg0: i32) -> (i32, i32, i32, i32) {
    %c0_i32 = arith.constant 0 : i32
    %c0_i32_0 = arith.constant 0 : i32
    %c0_i32_1 = arith.constant 0 : i32
    %c0_i32_2 = arith.constant 0 : i32
    return %c0_i32, %arg0, %c0_i32_0, %c0_i32_1 : i32, i32, i32, i32
  }
  func.func @transform_3(%arg0: i32) -> (i32, i32) {
    %c0_i32 = arith.constant 0 : i32
    %c0_i32_0 = arith.constant 0 : i32
    %c0_i32_1 = arith.constant 0 : i32
    return %c0_i32, %c0_i32_0 : i32, i32
  }
  func.func @transform_4(%arg0: i32) -> (i32, i32) {
    %c0_i32 = arith.constant 0 : i32
    %c0_i32_0 = arith.constant 0 : i32
    %c0_i32_1 = arith.constant 0 : i32
    return %c0_i32, %c0_i32_0 : i32, i32
  }
  func.func @transform_5(%arg0: i32) -> (i32, i32) {
    %c0_i32 = arith.constant 0 : i32
    %c0_i32_0 = arith.constant 0 : i32
    %c0_i32_1 = arith.constant 0 : i32
    return %c0_i32, %c0_i32_0 : i32, i32
  }
  func.func @transform_6(%arg0: i32) -> (i32, i32) {
    %c0_i32 = arith.constant 0 : i32
    %c0_i32_0 = arith.constant 0 : i32
    %c0_i32_1 = arith.constant 0 : i32
    return %c0_i32, %c0_i32_0 : i32, i32
  }
  func.func @transform_7(%arg0: i32) -> (i32, i32) {
    %c0_i32 = arith.constant 0 : i32
    %c0_i32_0 = arith.constant 0 : i32
    %c0_i32_1 = arith.constant 0 : i32
    return %c0_i32, %c0_i32_0 : i32, i32
  }
  func.func @transform_8(%arg0: i32) -> (i32, i32) {
    %c0_i32 = arith.constant 0 : i32
    %c0_i32_0 = arith.constant 0 : i32
    %c0_i32_1 = arith.constant 0 : i32
    return %c0_i32, %c0_i32_0 : i32, i32
  }
  func.func @transform_9(%arg0: i32) -> (i32, i32, i32) {
    %c0_i32 = arith.constant 0 : i32
    %c0_i32_0 = arith.constant 0 : i32
    %c0_i32_1 = arith.constant 0 : i32
    return %arg0, %c0_i32, %c0_i32_0 : i32, i32, i32
  }
  func.func @transform_10(%arg0: i32) -> (i32, i32, i32) {
    %c0_i32 = arith.constant 0 : i32
    %c0_i32_0 = arith.constant 0 : i32
    %c0_i32_1 = arith.constant 0 : i32
    return %arg0, %c0_i32, %c0_i32_0 : i32, i32, i32
  }
}

module attributes {stable_mosaic.version = 11 : i64} {
  func.func @_epilogue_kernel(%arg0: i32, %arg1: memref<8x32xf32, #tpu.memory_space<vmem>>, %arg2: memref<1x32xf32, #tpu.memory_space<vmem>>, %arg3: memref<1x32xf32, #tpu.memory_space<vmem>>, %arg4: memref<32x16xbf16, #tpu.memory_space<vmem>>, %arg5: memref<32x33xbf16, #tpu.memory_space<vmem>>, %arg6: memref<1x33xf32, #tpu.memory_space<vmem>>, %arg7: memref<32x32xbf16, #tpu.memory_space<vmem>>, %arg8: memref<1x32xf32, #tpu.memory_space<vmem>>, %arg9: memref<32x8xbf16, #tpu.memory_space<vmem>>, %arg10: memref<1x8xf32, #tpu.memory_space<vmem>>, %arg11: memref<8x16xf32, #tpu.memory_space<vmem>>, %arg12: memref<8x8xf32, #tpu.memory_space<vmem>>, %arg13: memref<8x1xf32, #tpu.memory_space<vmem>>) attributes {dimension_semantics = [#tpu.dimension_semantics<parallel>], iteration_bounds = array<i64: 2>, scalar_prefetch = 0 : i64, scratch_operands = 0 : i64, tpu.core_type = #tpu.core_type<tc>, window_params = [{transform_indices = @transform_0, window_bounds = array<i64: 8, 32>}, {pipeline_mode = #tpu.pipeline_mode<synchronous>, transform_indices = @transform_1, window_bounds = array<i64: 1, 32>}, {pipeline_mode = #tpu.pipeline_mode<synchronous>, transform_indices = @transform_2, window_bounds = array<i64: 1, 32>}, {pipeline_mode = #tpu.pipeline_mode<synchronous>, transform_indices = @transform_3, window_bounds = array<i64: 32, 16>}, {pipeline_mode = #tpu.pipeline_mode<synchronous>, transform_indices = @transform_4, window_bounds = array<i64: 32, 33>}, {pipeline_mode = #tpu.pipeline_mode<synchronous>, transform_indices = @transform_5, window_bounds = array<i64: 1, 33>}, {pipeline_mode = #tpu.pipeline_mode<synchronous>, transform_indices = @transform_6, window_bounds = array<i64: 32, 32>}, {pipeline_mode = #tpu.pipeline_mode<synchronous>, transform_indices = @transform_7, window_bounds = array<i64: 1, 32>}, {pipeline_mode = #tpu.pipeline_mode<synchronous>, transform_indices = @transform_8, window_bounds = array<i64: 32, 8>}, {pipeline_mode = #tpu.pipeline_mode<synchronous>, transform_indices = @transform_9, window_bounds = array<i64: 1, 8>}, {transform_indices = @transform_10, window_bounds = array<i64: 8, 16>}, {transform_indices = @transform_11, window_bounds = array<i64: 8, 8>}, {transform_indices = @transform_12, window_bounds = array<i64: 8, 1>}]} {
    %c0 = arith.constant 0 : index
    %c0_0 = arith.constant 0 : index
    %0 = vector.load %arg1[%c0, %c0_0] : memref<8x32xf32, #tpu.memory_space<vmem>>, vector<8x32xf32>
    %cst = arith.constant dense<0.000000e+00> : vector<8xf32>
    %1 = vector.multi_reduction <add>, %0, %cst [1] : vector<8x32xf32> to vector<8xf32>
    %2 = vector.shape_cast %1 : vector<8xf32> to vector<8x1xf32>
    %cst_1 = arith.constant 3.200000e+01 : f32
    %3 = vector.broadcast %cst_1 : f32 to vector<8x1xf32>
    %4 = arith.divf %2, %3 : vector<8x1xf32>
    %5 = vector.broadcast %4 : vector<8x1xf32> to vector<8x32xf32>
    %6 = arith.subf %0, %5 : vector<8x32xf32>
    %7 = arith.mulf %6, %6 : vector<8x32xf32>
    %cst_2 = arith.constant dense<0.000000e+00> : vector<8xf32>
    %8 = vector.multi_reduction <add>, %7, %cst_2 [1] : vector<8x32xf32> to vector<8xf32>
    %9 = vector.shape_cast %8 : vector<8xf32> to vector<8x1xf32>
    %cst_3 = arith.constant 3.200000e+01 : f32
    %10 = vector.broadcast %cst_3 : f32 to vector<8x1xf32>
    %11 = arith.divf %9, %10 : vector<8x1xf32>
    %12 = vector.broadcast %4 : vector<8x1xf32> to vector<8x32xf32>
    %13 = arith.subf %0, %12 : vector<8x32xf32>
    %cst_4 = arith.constant 9.99999974E-6 : f32
    %14 = vector.broadcast %cst_4 : f32 to vector<8x1xf32>
    %15 = arith.addf %11, %14 : vector<8x1xf32>
    %16 = math.rsqrt %15 : vector<8x1xf32>
    %17 = vector.broadcast %16 : vector<8x1xf32> to vector<8x32xf32>
    %18 = arith.mulf %13, %17 : vector<8x32xf32>
    %c0_5 = arith.constant 0 : index
    %c0_6 = arith.constant 0 : index
    %19 = vector.load %arg2[%c0_5, %c0_6] : memref<1x32xf32, #tpu.memory_space<vmem>>, vector<1x32xf32>
    %20 = vector.broadcast %19 : vector<1x32xf32> to vector<8x32xf32>
    %21 = arith.mulf %18, %20 : vector<8x32xf32>
    %c0_7 = arith.constant 0 : index
    %c0_8 = arith.constant 0 : index
    %22 = vector.load %arg3[%c0_7, %c0_8] : memref<1x32xf32, #tpu.memory_space<vmem>>, vector<1x32xf32>
    %23 = vector.broadcast %22 : vector<1x32xf32> to vector<8x32xf32>
    %24 = arith.addf %21, %23 : vector<8x32xf32>
    %25 = arith.truncf %24 : vector<8x32xf32> to vector<8x32xbf16>
    %c0_9 = arith.constant 0 : index
    %c0_10 = arith.constant 0 : index
    %26 = vector.load %arg4[%c0_9, %c0_10] : memref<32x16xbf16, #tpu.memory_space<vmem>>, vector<32x16xbf16>
    %cst_11 = arith.constant dense<0.000000e+00> : vector<8x16xf32>
    %27 = tpu.matmul %25, %26, %cst_11 {dimension_numbers = #tpu.dot_dimension_numbers<[1], [0], [0], [1], [0, 0, 1, 1], [], []>} : vector<8x32xbf16>, vector<32x16xbf16>, vector<8x16xf32> -> vector<8x16xf32>
    %c0_12 = arith.constant 0 : index
    %c0_13 = arith.constant 0 : index
    %28 = vector.load %arg11[%c0_12, %c0_13] : memref<8x16xf32, #tpu.memory_space<vmem>>, vector<8x16xf32>
    tpu.vector_store %arg11[%c0_12, %c0_13], %27 {strides = array<i32>} : memref<8x16xf32, #tpu.memory_space<vmem>>, vector<8x16xf32>,
    %29 = arith.truncf %0 : vector<8x32xf32> to vector<8x32xbf16>
    %c0_14 = arith.constant 0 : index
    %c0_15 = arith.constant 0 : index
    %30 = vector.load %arg5[%c0_14, %c0_15] : memref<32x33xbf16, #tpu.memory_space<vmem>>, vector<32x33xbf16>
    %cst_16 = arith.constant dense<0.000000e+00> : vector<8x33xf32>
    %31 = tpu.matmul %29, %30, %cst_16 {dimension_numbers = #tpu.dot_dimension_numbers<[1], [0], [0], [1], [0, 0, 1, 1], [], []>} : vector<8x32xbf16>, vector<32x33xbf16>, vector<8x33xf32> -> vector<8x33xf32>
    %c0_17 = arith.constant 0 : index
    %c0_18 = arith.constant 0 : index
    %32 = vector.load %arg6[%c0_17, %c0_18] : memref<1x33xf32, #tpu.memory_space<vmem>>, vector<1x33xf32>
    %33 = vector.broadcast %32 : vector<1x33xf32> to vector<8x33xf32>
    %34 = arith.addf %31, %33 : vector<8x33xf32>
    %35 = vector.extract_strided_slice %34 {offsets = [0, 32], sizes = [8, 1], strides = [1, 1]} : vector<8x33xf32> to vector<8x1xf32>
    %c0_19 = arith.constant 0 : index
    %c0_20 = arith.constant 0 : index
    %36 = vector.load %arg13[%c0_19, %c0_20] : memref<8x1xf32, #tpu.memory_space<vmem>>, vector<8x1xf32>
    tpu.vector_store %arg13[%c0_19, %c0_20], %35 {strides = array<i32>} : memref<8x1xf32, #tpu.memory_space<vmem>>, vector<8x1xf32>,
    %37 = vector.extract_strided_slice %34 {offsets = [0, 0], sizes = [8, 32], strides = [1, 1]} : vector<8x33xf32> to vector<8x32xf32>
    %cst_21 = arith.constant 0.000000e+00 : f32
    %38 = vector.broadcast %cst_21 : f32 to vector<8x32xf32>
    %39 = arith.maximumf %37, %38 : vector<8x32xf32>
    %40 = arith.truncf %39 : vector<8x32xf32> to vector<8x32xbf16>
    %c0_22 = arith.constant 0 : index
    %c0_23 = arith.constant 0 : index
    %41 = vector.load %arg7[%c0_22, %c0_23] : memref<32x32xbf16, #tpu.memory_space<vmem>>, vector<32x32xbf16>
    %cst_24 = arith.constant dense<0.000000e+00> : vector<8x32xf32>
    %42 = tpu.matmul %40, %41, %cst_24 {dimension_numbers = #tpu.dot_dimension_numbers<[1], [0], [0], [1], [0, 0, 1, 1], [], []>} : vector<8x32xbf16>, vector<32x32xbf16>, vector<8x32xf32> -> vector<8x32xf32>
    %c0_25 = arith.constant 0 : index
    %c0_26 = arith.constant 0 : index
    %43 = vector.load %arg8[%c0_25, %c0_26] : memref<1x32xf32, #tpu.memory_space<vmem>>, vector<1x32xf32>
    %44 = vector.broadcast %43 : vector<1x32xf32> to vector<8x32xf32>
    %45 = arith.addf %42, %44 : vector<8x32xf32>
    %cst_27 = arith.constant 0.000000e+00 : f32
    %46 = vector.broadcast %cst_27 : f32 to vector<8x32xf32>
    %47 = arith.maximumf %45, %46 : vector<8x32xf32>
    %48 = arith.truncf %47 : vector<8x32xf32> to vector<8x32xbf16>
    %c0_28 = arith.constant 0 : index
    %c0_29 = arith.constant 0 : index
    %49 = vector.load %arg9[%c0_28, %c0_29] : memref<32x8xbf16, #tpu.memory_space<vmem>>, vector<32x8xbf16>
    %cst_30 = arith.constant dense<0.000000e+00> : vector<8x8xf32>
    %50 = tpu.matmul %48, %49, %cst_30 {dimension_numbers = #tpu.dot_dimension_numbers<[1], [0], [0], [1], [0, 0, 1, 1], [], []>} : vector<8x32xbf16>, vector<32x8xbf16>, vector<8x8xf32> -> vector<8x8xf32>
    %c0_31 = arith.constant 0 : index
    %c0_32 = arith.constant 0 : index
    %51 = vector.load %arg10[%c0_31, %c0_32] : memref<1x8xf32, #tpu.memory_space<vmem>>, vector<1x8xf32>
    %52 = vector.broadcast %51 : vector<1x8xf32> to vector<8x8xf32>
    %53 = arith.addf %50, %52 : vector<8x8xf32>
    %54 = arith.negf %53 : vector<8x8xf32>
    %55 = math.exp %54 : vector<8x8xf32>
    %cst_33 = arith.constant 1.000000e+00 : f32
    %56 = vector.broadcast %cst_33 : f32 to vector<8x8xf32>
    %57 = arith.addf %56, %55 : vector<8x8xf32>
    %58 = arith.divf %56, %57 : vector<8x8xf32>
    %c0_34 = arith.constant 0 : index
    %c0_35 = arith.constant 0 : index
    %59 = vector.load %arg12[%c0_34, %c0_35] : memref<8x8xf32, #tpu.memory_space<vmem>>, vector<8x8xf32>
    tpu.vector_store %arg12[%c0_34, %c0_35], %58 {strides = array<i32>} : memref<8x8xf32, #tpu.memory_space<vmem>>, vector<8x8xf32>,
    return
  }
  func.func @transform_0(%arg0: i32) -> (i32, i32) {
    %c0_i32 = arith.constant 0 : i32
    %c0_i32_0 = arith.constant 0 : i32
    return %arg0, %c0_i32 : i32, i32
  }
  func.func @transform_1(%arg0: i32) -> (i32, i32) {
    %c0_i32 = arith.constant 0 : i32
    %c0_i32_0 = arith.constant 0 : i32
    %c0_i32_1 = arith.constant 0 : i32
    return %c0_i32, %c0_i32_0 : i32, i32
  }
  func.func @transform_2(%arg0: i32) -> (i32, i32) {
    %c0_i32 = arith.constant 0 : i32
    %c0_i32_0 = arith.constant 0 : i32
    %c0_i32_1 = arith.constant 0 : i32
    return %c0_i32, %c0_i32_0 : i32, i32
  }
  func.func @transform_3(%arg0: i32) -> (i32, i32) {
    %c0_i32 = arith.constant 0 : i32
    %c0_i32_0 = arith.constant 0 : i32
    %c0_i32_1 = arith.constant 0 : i32
    return %c0_i32, %c0_i32_0 : i32, i32
  }
  func.func @transform_4(%arg0: i32) -> (i32, i32) {
    %c0_i32 = arith.constant 0 : i32
    %c0_i32_0 = arith.constant 0 : i32
    %c0_i32_1 = arith.constant 0 : i32
    return %c0_i32, %c0_i32_0 : i32, i32
  }
  func.func @transform_5(%arg0: i32) -> (i32, i32) {
    %c0_i32 = arith.constant 0 : i32
    %c0_i32_0 = arith.constant 0 : i32
    %c0_i32_1 = arith.constant 0 : i32
    return %c0_i32, %c0_i32_0 : i32, i32
  }
  func.func @transform_6(%arg0: i32) -> (i32, i32) {
    %c0_i32 = arith.constant 0 : i32
    %c0_i32_0 = arith.constant 0 : i32
    %c0_i32_1 = arith.constant 0 : i32
    return %c0_i32, %c0_i32_0 : i32, i32
  }
  func.func @transform_7(%arg0: i32) -> (i32, i32) {
    %c0_i32 = arith.constant 0 : i32
    %c0_i32_0 = arith.constant 0 : i32
    %c0_i32_1 = arith.constant 0 : i32
    return %c0_i32, %c0_i32_0 : i32, i32
  }
  func.func @transform_8(%arg0: i32) -> (i32, i32) {
    %c0_i32 = arith.constant 0 : i32
    %c0_i32_0 = arith.constant 0 : i32
    %c0_i32_1 = arith.constant 0 : i32
    return %c0_i32, %c0_i32_0 : i32, i32
  }
  func.func @transform_9(%arg0: i32) -> (i32, i32) {
    %c0_i32 = arith.constant 0 : i32
    %c0_i32_0 = arith.constant 0 : i32
    %c0_i32_1 = arith.constant 0 : i32
    return %c0_i32, %c0_i32_0 : i32, i32
  }
  func.func @transform_10(%arg0: i32) -> (i32, i32) {
    %c0_i32 = arith.constant 0 : i32
    %c0_i32_0 = arith.constant 0 : i32
    return %arg0, %c0_i32 : i32, i32
  }
  func.func @transform_11(%arg0: i32) -> (i32, i32) {
    %c0_i32 = arith.constant 0 : i32
    %c0_i32_0 = arith.constant 0 : i32
    return %arg0, %c0_i32 : i32, i32
  }
  func.func @transform_12(%arg0: i32) -> (i32, i32) {
    %c0_i32 = arith.constant 0 : i32
    %c0_i32_0 = arith.constant 0 : i32
    return %arg0, %c0_i32 : i32, i32
  }
}

</mosaic_0001>

<llo_original>
// kernel: hoi_vision_transformer_forward.14
$region0: #{hoi_vision_transformer_forward.14}
  #allocation0 [shape = 'u32[]', space=smem, size = 0x4, offset = 0x4, fixed_abs, tag = 'smem constant byte address 0x4 - core index']
  #allocation1 [shape = 'u32[72,128]{1,0:T(1,128)}', space=vmem, size = 0x9000, scoped, tag = 'internal scratch']
  %s0 = inlined_call_operand.vmem [shape: f32[32,64], index: 0, kind: input, shape index: {}]
  %s1 = inlined_call_operand.vmem [shape: bf16[64,32], index: 1, kind: input, shape index: {}]
  %s2 = inlined_call_operand.vmem [shape: f32[1,32], index: 2, kind: input, shape index: {}]
  %s3 = inlined_call_operand.vmem [shape: f32[32,32], index: 3, kind: input, shape index: {}]
  %s4 = inlined_call_operand.vmem [shape: f32[32,32], index: 4, kind: output, shape index: {}]
  %s5 = sld [smem:[#allocation0]]
  $region49: #{hoi_vision_transformer_forward.14} parent=0
    _
  %s7 = ssub.s32 1, %s5
  %s8 = scalar_select 0, %s7, %s5
  loop: start=0, step=1, limit=4
  $region2: #{hoi_vision_transformer_forward.14} parent=0 // loop_pre_header
    _
  $region3: #{hoi_vision_transformer_forward.14} parent=0 // loop_header
    %s10 = sphi 0, %s14
    %p11 = scmp.ge.s32.totalorder %s10, 4
    %s17 = sphi 0, %s29
    %s18 = sphi 0, %s25
    %s19 = sphi 0, %s17
    %s20 = sphi 0, %s18
    %s21 = sphi 0, %s19
    %s22 = sphi 0, %s20
    %s32 = sphi 0, %s34
    %s35 = sphi 0, %s32
    %s36 = sphi 0, %s35
    %s52 = sphi 0, %s36
    %s58 = sphi 0, %s60
    %s61 = sphi 0, %s58
    %s62 = sphi 0, %s61
    %s78 = sphi 0, %s62
    %s84 = sphi 0, %s86
    %s87 = sphi 0, %s84
    %s88 = sphi 0, %s87
    %s104 = sphi 0, %s88
    %s112 = sphi 0, %s114
    %s115 = sphi 0, %s112
    %s116 = sphi 0, %s115
    %s132 = sphi 0, %s116
    %s140 = sphi 0, %s142
    %s143 = sphi 0, %s140
    %s144 = sphi 0, %s143
    %s160 = sphi 0, %s144
  $region4: #{hoi_vision_transformer_forward.14} parent=0 // loop_header_branch
    %13 = sbr.rel (%p11) target = $region8
  $region5: #{hoi_vision_transformer_forward.14} parent=0 // loop_body
    %s15 = ssub.s32 %s10, 1
    %s16 = ssub.s32 %s10, 2
    %s23 = sadd.s32 1, %s18
    %p24 = scmp.ge.s32.totalorder %s23, 2
    %s25 = scalar_select %p24, 0, %s23
    %s26 = sadd.s32 1, %s17
    %s27 = scalar_select %p24, %s26, %s17
    %p28 = scmp.ge.s32.totalorder %s27, 1
    %s29 = scalar_select %p28, 0, %s27
    %s30 = ssub.s32 %s18, %s25
    %p31 = scmp.eq.s32.totalorder %s30, 0
    %s33 = sadd.s32 %s32, 1
    %s34 = scalar_select %p31, %s32, %s33
    %p37 = pneg %p31
    %p38 = scmp.eq.s32.totalorder %s10, 1
    %p39 = por %p37, %p38
    %p40 = scmp.ne.s32.totalorder %s32, %s35
    %p41 = scmp.eq.s32.totalorder %s10, 0
    %p42 = por %p40, %p41
    %p43 = scmp.ne.s32.totalorder %s32, %s35
    %p44 = scmp.eq.s32.totalorder %s15, 1
    %p45 = por %p43, %p44
    %p46 = scmp.ne.s32.totalorder %s35, %s36
    %p47 = scmp.eq.s32.totalorder %s15, 0
    %p48 = por %p46, %p47
    %p49 = scmp.ne.s32.totalorder %s35, %s36
    %p50 = scmp.eq.s32.totalorder %s16, 1
    %p51 = por %p49, %p50
    %p53 = scmp.ne.s32.totalorder %s36, %s52
    %p54 = scmp.eq.s32.totalorder %s16, 0
    %p55 = por %p53, %p54
    %s56 = ssub.s32 %s17, %s29
    %p57 = scmp.eq.s32.totalorder %s56, 0
    %s59 = sadd.s32 %s58, 1
    %s60 = scalar_select %p57, %s58, %s59
    %p63 = pneg %p57
    %p64 = scmp.eq.s32.totalorder %s10, 1
    %p65 = por %p63, %p64
    %p66 = scmp.ne.s32.totalorder %s58, %s61
    %p67 = scmp.eq.s32.totalorder %s10, 0
    %p68 = por %p66, %p67
    %p69 = scmp.ne.s32.totalorder %s58, %s61
    %p70 = scmp.eq.s32.totalorder %s15, 1
    %p71 = por %p69, %p70
    %p72 = scmp.ne.s32.totalorder %s61, %s62
    %p73 = scmp.eq.s32.totalorder %s15, 0
    %p74 = por %p72, %p73
    %p75 = scmp.ne.s32.totalorder %s61, %s62
    %p76 = scmp.eq.s32.totalorder %s16, 1
    %p77 = por %p75, %p76
    %p79 = scmp.ne.s32.totalorder %s62, %s78
    %p80 = scmp.eq.s32.totalorder %s16, 0
    %p81 = por %p79, %p80
    %s82 = ssub.s32 %s17, %s29
    %p83 = scmp.eq.s32.totalorder %s82, 0
    %s85 = sadd.s32 %s84, 1
    %s86 = scalar_select %p83, %s84, %s85
    %p89 = pneg %p83
    %p90 = scmp.eq.s32.totalorder %s10, 1
    %p91 = por %p89, %p90
    %p92 = scmp.ne.s32.totalorder %s84, %s87
    %p93 = scmp.eq.s32.totalorder %s10, 0
    %p94 = por %p92, %p93
    %p95 = scmp.ne.s32.totalorder %s84, %s87
    %p96 = scmp.eq.s32.totalorder %s15, 1
    %p97 = por %p95, %p96
    %p98 = scmp.ne.s32.totalorder %s87, %s88
    %p99 = scmp.eq.s32.totalorder %s15, 0
    %p100 = por %p98, %p99
    %p101 = scmp.ne.s32.totalorder %s87, %s88
    %p102 = scmp.eq.s32.totalorder %s16, 1
    %p103 = por %p101, %p102
    %p105 = scmp.ne.s32.totalorder %s88, %s104
    %p106 = scmp.eq.s32.totalorder %s16, 0
    %p107 = por %p105, %p106
    %s108 = ssub.s32 %s18, %s25
    %s109 = ssub.s32 %s17, %s29
    %s110 = sor.u32 %s108, %s109
    %p111 = scmp.eq.s32.totalorder %s110, 0
    %s113 = sadd.s32 %s112, 1
    %s114 = scalar_select %p111, %s112, %s113
    %p117 = pneg %p111
    %p118 = scmp.eq.s32.totalorder %s10, 1
    %p119 = por %p117, %p118
    %p120 = scmp.ne.s32.totalorder %s112, %s115
    %p121 = scmp.eq.s32.totalorder %s10, 0
    %p122 = por %p120, %p121
    %p123 = scmp.ne.s32.totalorder %s112, %s115
    %p124 = scmp.eq.s32.totalorder %s15, 1
    %p125 = por %p123, %p124
    %p126 = scmp.ne.s32.totalorder %s115, %s116
    %p127 = scmp.eq.s32.totalorder %s15, 0
    %p128 = por %p126, %p127
    %p129 = scmp.ne.s32.totalorder %s115, %s116
    %p130 = scmp.eq.s32.totalorder %s16, 1
    %p131 = por %p129, %p130
    %p133 = scmp.ne.s32.totalorder %s116, %s132
    %p134 = scmp.eq.s32.totalorder %s16, 0
    %p135 = por %p133, %p134
    %s136 = ssub.s32 %s18, %s25
    %s137 = ssub.s32 %s17, %s29
    %s138 = sor.u32 %s136, %s137
    %p139 = scmp.eq.s32.totalorder %s138, 0
    %s141 = sadd.s32 %s140, 1
    %s142 = scalar_select %p139, %s140, %s141
    %p145 = pneg %p139
    %p146 = scmp.eq.s32.totalorder %s10, 1
    %p147 = por %p145, %p146
    %p148 = scmp.ne.s32.totalorder %s140, %s143
    %p149 = scmp.eq.s32.totalorder %s10, 0
    %p150 = por %p148, %p149
    %p151 = scmp.ne.s32.totalorder %s140, %s143
    %p152 = scmp.eq.s32.totalorder %s15, 1
    %p153 = por %p151, %p152
    %p154 = scmp.ne.s32.totalorder %s143, %s144
    %p155 = scmp.eq.s32.totalorder %s15, 0
    %p156 = por %p154, %p155
    %p157 = scmp.ne.s32.totalorder %s143, %s144
    %p158 = scmp.eq.s32.totalorder %s16, 1
    %p159 = por %p157, %p158
    %p161 = scmp.ne.s32.totalorder %s144, %s160
    %p162 = scmp.eq.s32.totalorder %s16, 0
    %p163 = por %p161, %p162
    %p164 = scmp.le.s32.totalorder 1, %s10
    %p165 = scmp.lt.s32.totalorder %s10, 3
    %p166 = pnand %p164, %p165
    %p167 = pneg %p166
    // Predicated region
    $region9: #{hoi_vision_transformer_forward.14} parent=5 // pred_check
      _
    $region10: #{hoi_vision_transformer_forward.14} parent=5 // pred_check_branch
      %169 = sbr.rel (%p166) target = $region12
    $region11: #{hoi_vision_transformer_forward.14} parent=5 // pred_region
      %s170 = ssub.s32 %s10, 1
      // Predicated region
      $region13: #{hoi_vision_transformer_forward.14} parent=11 // pred_check
        %p171 = pneg %p74
      $region14: #{hoi_vision_transformer_forward.14} parent=11 // pred_check_branch
        %173 = sbr.rel (%p171) target = $region16
      $region15: #{hoi_vision_transformer_forward.14} parent=11 // pred_region
        %p174 = scmp.lt.s32.totalorder %s19, 0
        %s175 = scalar_select %p174, %s19, 0
        %s176 = smul.addr %s175, 4
        %s177 = scalar_lea.vmem %s1, %s176
      $region16: #{hoi_vision_transformer_forward.14} parent=11 // pred_fallthru
        _
      // Predicated region
      $region17: #{hoi_vision_transformer_forward.14} parent=11 // pred_check
        %p178 = pneg %p100
      $region18: #{hoi_vision_transformer_forward.14} parent=11 // pred_check_branch
        %180 = sbr.rel (%p178) target = $region20
      $region19: #{hoi_vision_transformer_forward.14} parent=11 // pred_region
        %p181 = scmp.lt.s32.totalorder %s19, 0
        %s182 = scalar_select %p181, %s19, 0
        %s183 = scalar_lea.vmem %s2, %s182
      $region20: #{hoi_vision_transformer_forward.14} parent=11 // pred_fallthru
        _
    $region12: #{hoi_vision_transformer_forward.14} parent=5 // pred_fallthru
      _
    %p184 = scmp.lt.s32.totalorder %s10, 2
    // Predicated region
    $region21: #{hoi_vision_transformer_forward.14} parent=5 // pred_check
      %p185 = pneg %p184
    $region22: #{hoi_vision_transformer_forward.14} parent=5 // pred_check_branch
      %187 = sbr.rel (%p185) target = $region24
    $region23: #{hoi_vision_transformer_forward.14} parent=5 // pred_region
      // Predicated region
      $region25: #{hoi_vision_transformer_forward.14} parent=23 // pred_check
        %p188 = pneg %p42
      $region26: #{hoi_vision_transformer_forward.14} parent=23 // pred_check_branch
        %190 = sbr.rel (%p188) target = $region28
      $region27: #{hoi_vision_transformer_forward.14} parent=23 // pred_region
        %s191 = smul.u32 2, %s18
        %p192 = scmp.lt.s32.totalorder %s191, 3
        %s193 = scalar_select %p192, %s191, 3
        %s194 = smul.addr %s193, 8
        %s195 = scalar_lea.vmem %s0, %s194
        %s196 = smul.u32 2, %s18
      $region28: #{hoi_vision_transformer_forward.14} parent=23 // pred_fallthru
        _
      // Predicated region
      $region29: #{hoi_vision_transformer_forward.14} parent=23 // pred_check
        %p197 = pneg %p122
      $region30: #{hoi_vision_transformer_forward.14} parent=23 // pred_check_branch
        %199 = sbr.rel (%p197) target = $region32
      $region31: #{hoi_vision_transformer_forward.14} parent=23 // pred_region
        %s200 = smul.u32 2, %s18
        %p201 = scmp.lt.s32.totalorder %s200, 3
        %s202 = scalar_select %p201, %s200, 3
        %p203 = scmp.lt.s32.totalorder %s17, 0
        %s204 = scalar_select %p203, %s17, 0
        %s205 = sadd.s32 %s204, %s202
        %s206 = smul.addr %s205, 8
        %s207 = scalar_lea.vmem %s3, %s206
        %s208 = smul.u32 2, %s18
      $region32: #{hoi_vision_transformer_forward.14} parent=23 // pred_fallthru
        _
    $region24: #{hoi_vision_transformer_forward.14} parent=5 // pred_fallthru
      _
    %p209 = scmp.le.s32.totalorder 1, %s10
    %p210 = scmp.lt.s32.totalorder %s10, 3
    %p211 = pnand %p209, %p210
    %p212 = pneg %p211
    // Predicated region
    $region33: #{hoi_vision_transformer_forward.14} parent=5 // pred_check
      _
    $region34: #{hoi_vision_transformer_forward.14} parent=5 // pred_check_branch
      %214 = sbr.rel (%p211) target = $region36
    $region35: #{hoi_vision_transformer_forward.14} parent=5 // pred_region
      %s215 = ssub.s32 %s10, 1
      %s216 = smul.u32 2, %s20
      %p217 = scmp.lt.s32.totalorder %s216, 3
      %s218 = scalar_select %p217, %s216, 3
      %s219 = smul.addr %s218, 8
      %s220 = scalar_lea.vmem %s0, %s219
      %p221 = pneg %p48
      %p222 = pneg %p45
      %p223 = scmp.lt.s32.totalorder %s19, 0
      %s224 = scalar_select %p223, %s19, 0
      %s225 = smul.addr %s224, 4
      %s226 = scalar_lea.vmem %s1, %s225
      %p227 = pneg %p74
      %p228 = pneg %p71
      %p229 = scmp.lt.s32.totalorder %s19, 0
      %s230 = scalar_select %p229, %s19, 0
      %s231 = scalar_lea.vmem %s2, %s230
      %p232 = pneg %p100
      %p233 = pneg %p97
      %s234 = smul.u32 2, %s20
      %p235 = scmp.lt.s32.totalorder %s234, 3
      %s236 = scalar_select %p235, %s234, 3
      %p237 = scmp.lt.s32.totalorder %s19, 0
      %s238 = scalar_select %p237, %s19, 0
      %s239 = sadd.s32 %s238, %s236
      %s240 = smul.addr %s239, 8
      %s241 = scalar_lea.vmem %s3, %s240
      %p242 = pneg %p128
      %p243 = pneg %p125
      %p244 = pneg %p156
      %p245 = pneg %p153
      %s246 = smul.u32 2, %s20
      %p247 = scmp.lt.s32.totalorder %s246, 3
      %s248 = scalar_select %p247, %s246, 3
      %p249 = scmp.lt.s32.totalorder %s19, 0
      %s250 = scalar_select %p249, %s19, 0
      %s251 = sadd.s32 %s250, %s248
      %s252 = smul.addr %s251, 8
      %s253 = scalar_lea.vmem %s4, %s252
      %s254 = smul.u32 2, %s20
      %p255 = scmp.lt.s32.totalorder %s254, 3
      %s256 = scalar_select %p255, %s254, 3
      %s257 = smul.addr %s256, 8
      %s258 = scalar_lea.vmem %s0, %s257
      %s259 = smul.u32 2, %s20
      %p260 = scmp.lt.s32.totalorder %s19, 0
      %s261 = scalar_select %p260, %s19, 0
      %s262 = smul.addr %s261, 4
      %s263 = scalar_lea.vmem %s1, %s262
      %p264 = scmp.lt.s32.totalorder %s19, 0
      %s265 = scalar_select %p264, %s19, 0
      %s266 = scalar_lea.vmem %s2, %s265
      %s267 = smul.u32 2, %s20
      %p268 = scmp.lt.s32.totalorder %s267, 3
      %s269 = scalar_select %p268, %s267, 3
      %p270 = scmp.lt.s32.totalorder %s19, 0
      %s271 = scalar_select %p270, %s19, 0
      %s272 = sadd.s32 %s271, %s269
      %s273 = smul.addr %s272, 8
      %s274 = scalar_lea.vmem %s3, %s273
      %s275 = smul.u32 2, %s20
      %s276 = smul.u32 2, %s20
      %p277 = scmp.lt.s32.totalorder %s276, 3
      %s278 = scalar_select %p277, %s276, 3
      %p279 = scmp.lt.s32.totalorder %s19, 0
      %s280 = scalar_select %p279, %s19, 0
      %s281 = sadd.s32 %s280, %s278
      %s282 = smul.addr %s281, 8
      %s283 = scalar_lea.vmem %s4, %s282
      %s284 = smul.u32 2, %s20
      %v286 = vld [vmem:[%s258] sm:$0xff]
      %v287 = vld [vmem:[%s258 + $0x8] sm:$0xff]
      %v288 = vpack.c.bf16 %v287, %v286
      %v289 = vld [vmem:[%s263] sm:$0xf]
      %v290 = vld [vmem:[%s263 + $0x4] sm:$0xf]
      %v291 = vld [vmem:[%s263 + $0x8] sm:$0xf]
      %v292 = vld [vmem:[%s263 + $0xc] sm:$0xf]
      %v293 = vld [vmem:[%s263 + $0x10] sm:$0xf]
      %v294 = vld [vmem:[%s263 + $0x14] sm:$0xf]
      %v295 = vld [vmem:[%s263 + $0x18] sm:$0xf]
      %v296 = vld [vmem:[%s263 + $0x1c] sm:$0xf]
      %v297 = vld [vmem:[%s266] sm:$0x1]
      %v299 = vperm.slane %v297, 0
      %v309 = vunpack.c.l.b16 %v289
      %v310 = vunpack.c.l.b16 %v290
      %v311 = vunpack.c.l.b16 %v291
      %v312 = vunpack.c.l.b16 %v292
      %v313 = vunpack.c.l.b16 %v293
      %v314 = vunpack.c.l.b16 %v294
      %v315 = vunpack.c.l.b16 %v295
      %v316 = vunpack.c.l.b16 %v296
      %v317 = vpack.c.b16 %v310, %v309
      %v318 = vpack.c.b16 %v312, %v311
      %v319 = vpack.c.b16 %v314, %v313
      %v320 = vpack.c.b16 %v316, %v315
      %vm325 = vcmask 523264
      %v327 = vsel %vm325, %v288, 0
      %329 = vmatpush.bf16.msra.mxu0 0
      %330 = vmatpush.bf16.msra.mxu0 0
      %331 = vmatpush.bf16.msra.mxu0 0
      %332 = vmatpush.bf16.msra.mxu0 0
      %333 = vmatpush.bf16.msra.mxu0 %v320
      %334 = vmatpush.bf16.msra.mxu0 %v319
      %335 = vmatpush.bf16.msra.mxu0 %v318
      %336 = vmatpush.bf16.msra.mxu0 %v317
      %337 = vmatmul.bf16.gmra.mxu0 %v327
      %v338 = vpop.f32.mrf.mxu0
      %v339 = vadd.f32 %v299, %v338
      %v340 = vpop.f32.mrf.mxu0
      %v341 = vadd.f32 %v299, %v340
      %342 = vdwg.mxu0
      %v343 = vld [vmem:[%s274] sm:$0xff]
      %v344 = vld [vmem:[%s274 + $0x8] sm:$0xff]
      %v345 = vadd.f32 %v339, %v343
      %v346 = vadd.f32 %v341, %v344
      %vm347 = vcmask 261120
      %348 = vst.msk [vmem:[%s283] sm:$0xff] %vm347, %v345
      %349 = vst.msk [vmem:[%s283 + $0x8] sm:$0xff] %vm347, %v346
      %s350 = smul.u32 2, %s20
      %p351 = scmp.lt.s32.totalorder %s350, 3
      %s352 = scalar_select %p351, %s350, 3
      %p353 = scmp.lt.s32.totalorder %s19, 0
      %s354 = scalar_select %p353, %s19, 0
      %s355 = sadd.s32 %s354, %s352
      %s356 = smul.addr %s355, 8
      %s357 = scalar_lea.vmem %s4, %s356
      // Predicated region
      $region37: #{hoi_vision_transformer_forward.14} parent=35 // pred_check
        %p358 = pneg %p153
      $region38: #{hoi_vision_transformer_forward.14} parent=35 // pred_check_branch
        %360 = sbr.rel (%p358) target = $region40
      $region39: #{hoi_vision_transformer_forward.14} parent=35 // pred_region
        %s361 = smul.u32 2, %s20
      $region40: #{hoi_vision_transformer_forward.14} parent=35 // pred_fallthru
        _
    $region36: #{hoi_vision_transformer_forward.14} parent=5 // pred_fallthru
      _
    %p362 = scmp.le.s32.totalorder 2, %s10
    // Predicated region
    $region41: #{hoi_vision_transformer_forward.14} parent=5 // pred_check
      %p363 = pneg %p362
    $region42: #{hoi_vision_transformer_forward.14} parent=5 // pred_check_branch
      %365 = sbr.rel (%p363) target = $region44
    $region43: #{hoi_vision_transformer_forward.14} parent=5 // pred_region
      %s366 = ssub.s32 %s10, 2
      // Predicated region
      $region45: #{hoi_vision_transformer_forward.14} parent=43 // pred_check
        %p367 = pneg %p159
      $region46: #{hoi_vision_transformer_forward.14} parent=43 // pred_check_branch
        %369 = sbr.rel (%p367) target = $region48
      $region47: #{hoi_vision_transformer_forward.14} parent=43 // pred_region
        %s370 = smul.u32 2, %s22
        %p371 = scmp.lt.s32.totalorder %s370, 3
        %s372 = scalar_select %p371, %s370, 3
        %p373 = scmp.lt.s32.totalorder %s21, 0
        %s374 = scalar_select %p373, %s21, 0
        %s375 = sadd.s32 %s374, %s372
        %s376 = smul.addr %s375, 8
        %s377 = scalar_lea.vmem %s4, %s376
      $region48: #{hoi_vision_transformer_forward.14} parent=43 // pred_fallthru
        _
    $region44: #{hoi_vision_transformer_forward.14} parent=5 // pred_fallthru
      _
  $region6: #{hoi_vision_transformer_forward.14} parent=0 // loop_footer
    %s14 = sadd.s32 1, %s10
  $region7: #{hoi_vision_transformer_forward.14} parent=0 // loop_footer_branch
    %9 = sbr.rel target = $region3
  $region8: #{hoi_vision_transformer_forward.14} parent=0 // loop_exit
    _

// kernel: hoi_vision_transformer_forward.13
$region0: #{hoi_vision_transformer_forward.13}
  #allocation0 [shape = 'u32[]', space=smem, size = 0x4, offset = 0x4, fixed_abs, tag = 'smem constant byte address 0x4 - core index']
  #allocation1 [shape = 'u32[72,128]{1,0:T(1,128)}', space=vmem, size = 0x9000, scoped, tag = 'internal scratch']
  %s0 = inlined_call_operand.vmem [shape: f32[32,32], index: 0, kind: input, shape index: {}]
  %s1 = inlined_call_operand.vmem [shape: bf16[32,64], index: 1, kind: input, shape index: {}]
  %s2 = inlined_call_operand.vmem [shape: f32[1,64], index: 2, kind: input, shape index: {}]
  %s3 = inlined_call_operand.vmem [shape: f32[1,32], index: 3, kind: input, shape index: {}]
  %s4 = inlined_call_operand.vmem [shape: f32[1,32], index: 4, kind: input, shape index: {}]
  %s5 = inlined_call_operand.vmem [shape: f32[32,64], index: 5, kind: output, shape index: {}]
  %s6 = sld [smem:[#allocation0]]
  $region53: #{hoi_vision_transformer_forward.13} parent=0
    _
  %s8 = ssub.s32 1, %s6
  %s9 = scalar_select 0, %s8, %s6
  loop: start=0, step=1, limit=4
  $region2: #{hoi_vision_transformer_forward.13} parent=0 // loop_pre_header
    _
  $region3: #{hoi_vision_transformer_forward.13} parent=0 // loop_header
    %s11 = sphi 0, %s15
    %p12 = scmp.ge.s32.totalorder %s11, 4
    %s18 = sphi 0, %s30
    %s19 = sphi 0, %s26
    %s20 = sphi 0, %s18
    %s21 = sphi 0, %s19
    %s22 = sphi 0, %s20
    %s23 = sphi 0, %s21
    %s33 = sphi 0, %s35
    %s36 = sphi 0, %s33
    %s37 = sphi 0, %s36
    %s53 = sphi 0, %s37
    %s59 = sphi 0, %s61
    %s62 = sphi 0, %s59
    %s63 = sphi 0, %s62
    %s79 = sphi 0, %s63
    %s85 = sphi 0, %s87
    %s88 = sphi 0, %s85
    %s89 = sphi 0, %s88
    %s105 = sphi 0, %s89
    %s109 = sphi 0, %s109
    %s111 = sphi 0, %s109
    %s112 = sphi 0, %s111
    %s126 = sphi 0, %s112
    %s130 = sphi 0, %s130
    %s132 = sphi 0, %s130
    %s133 = sphi 0, %s132
    %s147 = sphi 0, %s133
    %s155 = sphi 0, %s157
    %s158 = sphi 0, %s155
    %s159 = sphi 0, %s158
    %s175 = sphi 0, %s159
  $region4: #{hoi_vision_transformer_forward.13} parent=0 // loop_header_branch
    %14 = sbr.rel (%p12) target = $region8
  $region5: #{hoi_vision_transformer_forward.13} parent=0 // loop_body
    %s16 = ssub.s32 %s11, 1
    %s17 = ssub.s32 %s11, 2
    %s24 = sadd.s32 1, %s19
    %p25 = scmp.ge.s32.totalorder %s24, 2
    %s26 = scalar_select %p25, 0, %s24
    %s27 = sadd.s32 1, %s18
    %s28 = scalar_select %p25, %s27, %s18
    %p29 = scmp.ge.s32.totalorder %s28, 1
    %s30 = scalar_select %p29, 0, %s28
    %s31 = ssub.s32 %s19, %s26
    %p32 = scmp.eq.s32.totalorder %s31, 0
    %s34 = sadd.s32 %s33, 1
    %s35 = scalar_select %p32, %s33, %s34
    %p38 = pneg %p32
    %p39 = scmp.eq.s32.totalorder %s11, 1
    %p40 = por %p38, %p39
    %p41 = scmp.ne.s32.totalorder %s33, %s36
    %p42 = scmp.eq.s32.totalorder %s11, 0
    %p43 = por %p41, %p42
    %p44 = scmp.ne.s32.totalorder %s33, %s36
    %p45 = scmp.eq.s32.totalorder %s16, 1
    %p46 = por %p44, %p45
    %p47 = scmp.ne.s32.totalorder %s36, %s37
    %p48 = scmp.eq.s32.totalorder %s16, 0
    %p49 = por %p47, %p48
    %p50 = scmp.ne.s32.totalorder %s36, %s37
    %p51 = scmp.eq.s32.totalorder %s17, 1
    %p52 = por %p50, %p51
    %p54 = scmp.ne.s32.totalorder %s37, %s53
    %p55 = scmp.eq.s32.totalorder %s17, 0
    %p56 = por %p54, %p55
    %s57 = ssub.s32 %s18, %s30
    %p58 = scmp.eq.s32.totalorder %s57, 0
    %s60 = sadd.s32 %s59, 1
    %s61 = scalar_select %p58, %s59, %s60
    %p64 = pneg %p58
    %p65 = scmp.eq.s32.totalorder %s11, 1
    %p66 = por %p64, %p65
    %p67 = scmp.ne.s32.totalorder %s59, %s62
    %p68 = scmp.eq.s32.totalorder %s11, 0
    %p69 = por %p67, %p68
    %p70 = scmp.ne.s32.totalorder %s59, %s62
    %p71 = scmp.eq.s32.totalorder %s16, 1
    %p72 = por %p70, %p71
    %p73 = scmp.ne.s32.totalorder %s62, %s63
    %p74 = scmp.eq.s32.totalorder %s16, 0
    %p75 = por %p73, %p74
    %p76 = scmp.ne.s32.totalorder %s62, %s63
    %p77 = scmp.eq.s32.totalorder %s17, 1
    %p78 = por %p76, %p77
    %p80 = scmp.ne.s32.totalorder %s63, %s79
    %p81 = scmp.eq.s32.totalorder %s17, 0
    %p82 = por %p80, %p81
    %s83 = ssub.s32 %s18, %s30
    %p84 = scmp.eq.s32.totalorder %s83, 0
    %s86 = sadd.s32 %s85, 1
    %s87 = scalar_select %p84, %s85, %s86
    %p90 = pneg %p84
    %p91 = scmp.eq.s32.totalorder %s11, 1
    %p92 = por %p90, %p91
    %p93 = scmp.ne.s32.totalorder %s85, %s88
    %p94 = scmp.eq.s32.totalorder %s11, 0
    %p95 = por %p93, %p94
    %p96 = scmp.ne.s32.totalorder %s85, %s88
    %p97 = scmp.eq.s32.totalorder %s16, 1
    %p98 = por %p96, %p97
    %p99 = scmp.ne.s32.totalorder %s88, %s89
    %p100 = scmp.eq.s32.totalorder %s16, 0
    %p101 = por %p99, %p100
    %p102 = scmp.ne.s32.totalorder %s88, %s89
    %p103 = scmp.eq.s32.totalorder %s17, 1
    %p104 = por %p102, %p103
    %p106 = scmp.ne.s32.totalorder %s89, %s105
    %p107 = scmp.eq.s32.totalorder %s17, 0
    %p108 = por %p106, %p107
    %s110 = sadd.s32 %s109, 1
    %p113 = scmp.eq.s32.totalorder %s11, 1
    %p114 = scmp.ne.s32.totalorder %s109, %s111
    %p115 = scmp.eq.s32.totalorder %s11, 0
    %p116 = por %p114, %p115
    %p117 = scmp.ne.s32.totalorder %s109, %s111
    %p118 = scmp.eq.s32.totalorder %s16, 1
    %p119 = por %p117, %p118
    %p120 = scmp.ne.s32.totalorder %s111, %s112
    %p121 = scmp.eq.s32.totalorder %s16, 0
    %p122 = por %p120, %p121
    %p123 = scmp.ne.s32.totalorder %s111, %s112
    %p124 = scmp.eq.s32.totalorder %s17, 1
    %p125 = por %p123, %p124
    %p127 = scmp.ne.s32.totalorder %s112, %s126
    %p128 = scmp.eq.s32.totalorder %s17, 0
    %p129 = por %p127, %p128
    %s131 = sadd.s32 %s130, 1
    %p134 = scmp.eq.s32.totalorder %s11, 1
    %p135 = scmp.ne.s32.totalorder %s130, %s132
    %p136 = scmp.eq.s32.totalorder %s11, 0
    %p137 = por %p135, %p136
    %p138 = scmp.ne.s32.totalorder %s130, %s132
    %p139 = scmp.eq.s32.totalorder %s16, 1
    %p140 = por %p138, %p139
    %p141 = scmp.ne.s32.totalorder %s132, %s133
    %p142 = scmp.eq.s32.totalorder %s16, 0
    %p143 = por %p141, %p142
    %p144 = scmp.ne.s32.totalorder %s132, %s133
    %p145 = scmp.eq.s32.totalorder %s17, 1
    %p146 = por %p144, %p145
    %p148 = scmp.ne.s32.totalorder %s133, %s147
    %p149 = scmp.eq.s32.totalorder %s17, 0
    %p150 = por %p148, %p149
    %s151 = ssub.s32 %s19, %s26
    %s152 = ssub.s32 %s18, %s30
    %s153 = sor.u32 %s151, %s152
    %p154 = scmp.eq.s32.totalorder %s153, 0
    %s156 = sadd.s32 %s155, 1
    %s157 = scalar_select %p154, %s155, %s156
    %p160 = pneg %p154
    %p161 = scmp.eq.s32.totalorder %s11, 1
    %p162 = por %p160, %p161
    %p163 = scmp.ne.s32.totalorder %s155, %s158
    %p164 = scmp.eq.s32.totalorder %s11, 0
    %p165 = por %p163, %p164
    %p166 = scmp.ne.s32.totalorder %s155, %s158
    %p167 = scmp.eq.s32.totalorder %s16, 1
    %p168 = por %p166, %p167
    %p169 = scmp.ne.s32.totalorder %s158, %s159
    %p170 = scmp.eq.s32.totalorder %s16, 0
    %p171 = por %p169, %p170
    %p172 = scmp.ne.s32.totalorder %s158, %s159
    %p173 = scmp.eq.s32.totalorder %s17, 1
    %p174 = por %p172, %p173
    %p176 = scmp.ne.s32.totalorder %s159, %s175
    %p177 = scmp.eq.s32.totalorder %s17, 0
    %p178 = por %p176, %p177
    %p179 = scmp.le.s32.totalorder 1, %s11
    %p180 = scmp.lt.s32.totalorder %s11, 3
    %p181 = pnand %p179, %p180
    %p182 = pneg %p181
    // Predicated region
    $region9: #{hoi_vision_transformer_forward.13} parent=5 // pred_check
      _
    $region10: #{hoi_vision_transformer_forward.13} parent=5 // pred_check_branch
      %184 = sbr.rel (%p181) target = $region12
    $region11: #{hoi_vision_transformer_forward.13} parent=5 // pred_region
      %s185 = ssub.s32 %s11, 1
      // Predicated region
      $region13: #{hoi_vision_transformer_forward.13} parent=11 // pred_check
        %p186 = pneg %p75
      $region14: #{hoi_vision_transformer_forward.13} parent=11 // pred_check_branch
        %188 = sbr.rel (%p186) target = $region16
      $region15: #{hoi_vision_transformer_forward.13} parent=11 // pred_region
        %p189 = scmp.lt.s32.totalorder %s20, 0
        %s190 = scalar_select %p189, %s20, 0
        %s191 = smul.addr %s190, 4
        %s192 = scalar_lea.vmem %s1, %s191
      $region16: #{hoi_vision_transformer_forward.13} parent=11 // pred_fallthru
        _
      // Predicated region
      $region17: #{hoi_vision_transformer_forward.13} parent=11 // pred_check
        %p193 = pneg %p101
      $region18: #{hoi_vision_transformer_forward.13} parent=11 // pred_check_branch
        %195 = sbr.rel (%p193) target = $region20
      $region19: #{hoi_vision_transformer_forward.13} parent=11 // pred_region
        %p196 = scmp.lt.s32.totalorder %s20, 0
        %s197 = scalar_select %p196, %s20, 0
        %s198 = scalar_lea.vmem %s2, %s197
      $region20: #{hoi_vision_transformer_forward.13} parent=11 // pred_fallthru
        _
      // Predicated region
      $region21: #{hoi_vision_transformer_forward.13} parent=11 // pred_check
        %p199 = pneg %p122
      $region22: #{hoi_vision_transformer_forward.13} parent=11 // pred_check_branch
        %201 = sbr.rel (%p199) target = $region24
      $region23: #{hoi_vision_transformer_forward.13} parent=11 // pred_region
        _
      $region24: #{hoi_vision_transformer_forward.13} parent=11 // pred_fallthru
        _
      // Predicated region
      $region25: #{hoi_vision_transformer_forward.13} parent=11 // pred_check
        %p202 = pneg %p143
      $region26: #{hoi_vision_transformer_forward.13} parent=11 // pred_check_branch
        %204 = sbr.rel (%p202) target = $region28
      $region27: #{hoi_vision_transformer_forward.13} parent=11 // pred_region
        _
      $region28: #{hoi_vision_transformer_forward.13} parent=11 // pred_fallthru
        _
    $region12: #{hoi_vision_transformer_forward.13} parent=5 // pred_fallthru
      _
    %p205 = scmp.lt.s32.totalorder %s11, 2
    // Predicated region
    $region29: #{hoi_vision_transformer_forward.13} parent=5 // pred_check
      %p206 = pneg %p205
    $region30: #{hoi_vision_transformer_forward.13} parent=5 // pred_check_branch
      %208 = sbr.rel (%p206) target = $region32
    $region31: #{hoi_vision_transformer_forward.13} parent=5 // pred_region
      // Predicated region
      $region33: #{hoi_vision_transformer_forward.13} parent=31 // pred_check
        %p209 = pneg %p43
      $region34: #{hoi_vision_transformer_forward.13} parent=31 // pred_check_branch
        %211 = sbr.rel (%p209) target = $region36
      $region35: #{hoi_vision_transformer_forward.13} parent=31 // pred_region
        %s212 = smul.u32 2, %s19
        %p213 = scmp.lt.s32.totalorder %s212, 3
        %s214 = scalar_select %p213, %s212, 3
        %s215 = smul.addr %s214, 8
        %s216 = scalar_lea.vmem %s0, %s215
        %s217 = smul.u32 2, %s19
      $region36: #{hoi_vision_transformer_forward.13} parent=31 // pred_fallthru
        _
    $region32: #{hoi_vision_transformer_forward.13} parent=5 // pred_fallthru
      _
    %p218 = scmp.le.s32.totalorder 1, %s11
    %p219 = scmp.lt.s32.totalorder %s11, 3
    %p220 = pnand %p218, %p219
    %p221 = pneg %p220
    // Predicated region
    $region37: #{hoi_vision_transformer_forward.13} parent=5 // pred_check
      _
    $region38: #{hoi_vision_transformer_forward.13} parent=5 // pred_check_branch
      %223 = sbr.rel (%p220) target = $region40
    $region39: #{hoi_vision_transformer_forward.13} parent=5 // pred_region
      %s224 = ssub.s32 %s11, 1
      %s225 = smul.u32 2, %s21
      %p226 = scmp.lt.s32.totalorder %s225, 3
      %s227 = scalar_select %p226, %s225, 3
      %s228 = smul.addr %s227, 8
      %s229 = scalar_lea.vmem %s0, %s228
      %p230 = pneg %p49
      %p231 = pneg %p46
      %p232 = scmp.lt.s32.totalorder %s20, 0
      %s233 = scalar_select %p232, %s20, 0
      %s234 = smul.addr %s233, 4
      %s235 = scalar_lea.vmem %s1, %s234
      %p236 = pneg %p75
      %p237 = pneg %p72
      %p238 = scmp.lt.s32.totalorder %s20, 0
      %s239 = scalar_select %p238, %s20, 0
      %s240 = scalar_lea.vmem %s2, %s239
      %p241 = pneg %p101
      %p242 = pneg %p98
      %p243 = pneg %p122
      %p244 = pneg %p119
      %p245 = pneg %p143
      %p246 = pneg %p140
      %p247 = pneg %p171
      %p248 = pneg %p168
      %s249 = smul.u32 2, %s21
      %p250 = scmp.lt.s32.totalorder %s249, 3
      %s251 = scalar_select %p250, %s249, 3
      %p252 = scmp.lt.s32.totalorder %s20, 0
      %s253 = scalar_select %p252, %s20, 0
      %s254 = sadd.s32 %s253, %s251
      %s255 = smul.addr %s254, 8
      %s256 = scalar_lea.vmem %s5, %s255
      %s257 = smul.u32 2, %s21
      %p258 = scmp.lt.s32.totalorder %s257, 3
      %s259 = scalar_select %p258, %s257, 3
      %s260 = smul.addr %s259, 8
      %s261 = scalar_lea.vmem %s0, %s260
      %s262 = smul.u32 2, %s21
      %p263 = scmp.lt.s32.totalorder %s20, 0
      %s264 = scalar_select %p263, %s20, 0
      %s265 = smul.addr %s264, 4
      %s266 = scalar_lea.vmem %s1, %s265
      %p267 = scmp.lt.s32.totalorder %s20, 0
      %s268 = scalar_select %p267, %s20, 0
      %s269 = scalar_lea.vmem %s2, %s268
      %s270 = smul.u32 2, %s21
      %p271 = scmp.lt.s32.totalorder %s270, 3
      %s272 = scalar_select %p271, %s270, 3
      %p273 = scmp.lt.s32.totalorder %s20, 0
      %s274 = scalar_select %p273, %s20, 0
      %s275 = sadd.s32 %s274, %s272
      %s276 = smul.addr %s275, 8
      %s277 = scalar_lea.vmem %s5, %s276
      %s278 = smul.u32 2, %s21
      %v280 = vld [vmem:[%s261] sm:$0xff]
      %v281 = vld [vmem:[%s261 + $0x8] sm:$0xff]
      %vm282 = vcmask 261120
      %v283 = vsel %vm282, %v280, 0.0
      %284 = vadd.xlane.f32.xlu0 %v283
      %v285 = vpop.xlane.xlu0 %284
      %v286 = vsel %vm282, %v281, 0.0
      %287 = vadd.xlane.f32.xlu0 %v286
      %v288 = vpop.xlane.xlu0 %287
      %v289 = vrcp.pop 32.0
      %v290 = vmul.f32 32.0, %v289
      %v291 = vsub.f32 1.0, %v290
      %v292 = vmul.f32 %v289, %v291
      %v293 = vadd.f32 %v289, %v292
      %vm294 = vweird.f32 %v289
      %v295 = vsel %vm294, %v289, %v293
      %v296 = vmul.f32 %v285, %v295
      %v297 = vmul.f32 %v288, %v295
      %v298 = vsub.f32 %v280, %v296
      %v299 = vsub.f32 %v281, %v297
      %v300 = vmul.f32 %v298, %v298
      %v301 = vmul.f32 %v299, %v299
      %v302 = vsel %vm282, %v300, 0.0
      %303 = vadd.xlane.f32.xlu0 %v302
      %v304 = vpop.xlane.xlu0 %303
      %v305 = vsel %vm282, %v301, 0.0
      %306 = vadd.xlane.f32.xlu0 %v305
      %v307 = vpop.xlane.xlu0 %306
      %v308 = vmul.f32 %v304, %v295
      %v309 = vmul.f32 %v307, %v295
      %v310 = vadd.f32 %v308, 1e-05
      %v311 = vadd.f32 %v309, 1e-05
      %v312 = vrsqrt.pop %v310
      %v313 = vmul.f32 %v312, %v310
      %v314 = vmul.f32 %v313, %v312
      %v315 = vmul.f32 0.5, %v314
      %v316 = vsub.f32 1.5, %v315
      %v317 = vmul.f32 %v312, %v316
      %vm318 = vweird.f32 %v310
      %vm319 = vweird.f32 %v312
      %vm320 = vmor %vm318, %vm319
      %v321 = vsel %vm320, %v312, %v317
      %v322 = vrsqrt.pop %v311
      %v323 = vmul.f32 %v322, %v311
      %v324 = vmul.f32 %v323, %v322
      %v325 = vmul.f32 0.5, %v324
      %v326 = vsub.f32 1.5, %v325
      %v327 = vmul.f32 %v322, %v326
      %vm328 = vweird.f32 %v311
      %vm329 = vweird.f32 %v322
      %vm330 = vmor %vm328, %vm329
      %v331 = vsel %vm330, %v322, %v327
      %v332 = vmul.f32 %v298, %v321
      %v333 = vmul.f32 %v299, %v331
      %v334 = vld [vmem:[%s3] sm:$0x1]
      %v336 = vperm.slane %v334, 0
      %v338 = vmul.f32 %v332, %v336
      %v339 = vmul.f32 %v333, %v336
      %v340 = vld [vmem:[%s4] sm:$0x1]
      %v342 = vperm.slane %v340, 0
      %v344 = vadd.f32 %v338, %v342
      %v345 = vadd.f32 %v339, %v342
      %v346 = vpack.c.bf16 %v345, %v344
      %v347 = vld [vmem:[%s266] sm:$0xf]
      %v348 = vld [vmem:[%s266 + $0x4] sm:$0xf]
      %v349 = vld [vmem:[%s266 + $0x8] sm:$0xf]
      %v350 = vld [vmem:[%s266 + $0xc] sm:$0xf]
      %v351 = vld [vmem:[%s269] sm:$0x1]
      %v353 = vperm.slane %v351, 0
      %v359 = vunpack.c.l.b16 %v347
      %v360 = vunpack.c.l.b16 %v348
      %v361 = vunpack.c.l.b16 %v349
      %v362 = vunpack.c.l.b16 %v350
      %v363 = vpack.c.b16 %v360, %v359
      %v364 = vpack.c.b16 %v362, %v361
      %v368 = vsel %vm282, %v346, 0
      %370 = vmatpush.bf16.msra.mxu0 0
      %371 = vmatpush.bf16.msra.mxu0 0
      %372 = vmatpush.bf16.msra.mxu0 0
      %373 = vmatpush.bf16.msra.mxu0 0
      %374 = vmatpush.bf16.msra.mxu0 0
      %375 = vmatpush.bf16.msra.mxu0 0
      %376 = vmatpush.bf16.msra.mxu0 %v364
      %377 = vmatpush.bf16.msra.mxu0 %v363
      %378 = vmatmul.bf16.gmra.mxu0 %v368
      %v379 = vpop.f32.mrf.mxu0
      %v380 = vadd.f32 %v353, %v379
      %v381 = vpop.f32.mrf.mxu0
      %v382 = vadd.f32 %v353, %v381
      %383 = vdwg.mxu0
      %v384 = vmul.f32 %v380, 1.702
      %v385 = vmul.f32 %v382, 1.702
      %v386 = vxor.u32 %v384, 2147483648
      %v387 = vxor.u32 %v385, 2147483648
      %v388 = vmul.f32 %v386, 1.442695
      %v389 = vpow.pop %v388
      %v390 = vmul.f32 %v387, 1.442695
      %v391 = vpow.pop %v390
      %v392 = vadd.f32 %v389, 1.0
      %v393 = vadd.f32 %v391, 1.0
      %v394 = vrcp.pop %v392
      %v395 = vmul.f32 %v392, %v394
      %v396 = vsub.f32 1.0, %v395
      %v397 = vmul.f32 %v394, %v396
      %v398 = vadd.f32 %v394, %v397
      %vm399 = vweird.f32 %v392
      %vm400 = vweird.f32 %v394
      %vm401 = vmor %vm399, %vm400
      %v402 = vsel %vm401, %v394, %v398
      %v403 = vand.u32 2147483647, %v392
      %vm404 = vcmp.eq.f32.partialorder %v403, 8.507059e+37
      %v405 = vand.u32 %v392, 2147483648
      %v406 = vor.u32 1.1754944e-38, %v405
      %v407 = vsel %vm404, %v406, %v402
      %v408 = vmul.f32 1.0, %v407
      %v409 = vrcp.pop %v393
      %v410 = vmul.f32 %v393, %v409
      %v411 = vsub.f32 1.0, %v410
      %v412 = vmul.f32 %v409, %v411
      %v413 = vadd.f32 %v409, %v412
      %vm414 = vweird.f32 %v393
      %vm415 = vweird.f32 %v409
      %vm416 = vmor %vm414, %vm415
      %v417 = vsel %vm416, %v409, %v413
      %v418 = vand.u32 2147483647, %v393
      %vm419 = vcmp.eq.f32.partialorder %v418, 8.507059e+37
      %v420 = vand.u32 %v393, 2147483648
      %v421 = vor.u32 1.1754944e-38, %v420
      %v422 = vsel %vm419, %v421, %v417
      %v423 = vmul.f32 1.0, %v422
      %v424 = vmul.f32 %v380, %v408
      %v425 = vmul.f32 %v382, %v423
      %vm426 = vcmask 523264
      %427 = vst.msk [vmem:[%s277] sm:$0xff] %vm426, %v424
      %428 = vst.msk [vmem:[%s277 + $0x8] sm:$0xff] %vm426, %v425
      %s429 = smul.u32 2, %s21
      %p430 = scmp.lt.s32.totalorder %s429, 3
      %s431 = scalar_select %p430, %s429, 3
      %p432 = scmp.lt.s32.totalorder %s20, 0
      %s433 = scalar_select %p432, %s20, 0
      %s434 = sadd.s32 %s433, %s431
      %s435 = smul.addr %s434, 8
      %s436 = scalar_lea.vmem %s5, %s435
      // Predicated region
      $region41: #{hoi_vision_transformer_forward.13} parent=39 // pred_check
        %p437 = pneg %p168
      $region42: #{hoi_vision_transformer_forward.13} parent=39 // pred_check_branch
        %439 = sbr.rel (%p437) target = $region44
      $region43: #{hoi_vision_transformer_forward.13} parent=39 // pred_region
        %s440 = smul.u32 2, %s21
      $region44: #{hoi_vision_transformer_forward.13} parent=39 // pred_fallthru
        _
    $region40: #{hoi_vision_transformer_forward.13} parent=5 // pred_fallthru
      _
    %p441 = scmp.le.s32.totalorder 2, %s11
    // Predicated region
    $region45: #{hoi_vision_transformer_forward.13} parent=5 // pred_check
      %p442 = pneg %p441
    $region46: #{hoi_vision_transformer_forward.13} parent=5 // pred_check_branch
      %444 = sbr.rel (%p442) target = $region48
    $region47: #{hoi_vision_transformer_forward.13} parent=5 // pred_region
      %s445 = ssub.s32 %s11, 2
      // Predicated region
      $region49: #{hoi_vision_transformer_forward.13} parent=47 // pred_check
        %p446 = pneg %p174
      $region50: #{hoi_vision_transformer_forward.13} parent=47 // pred_check_branch
        %448 = sbr.rel (%p446) target = $region52
      $region51: #{hoi_vision_transformer_forward.13} parent=47 // pred_region
        %s449 = smul.u32 2, %s23
        %p450 = scmp.lt.s32.totalorder %s449, 3
        %s451 = scalar_select %p450, %s449, 3
        %p452 = scmp.lt.s32.totalorder %s22, 0
        %s453 = scalar_select %p452, %s22, 0
        %s454 = sadd.s32 %s453, %s451
        %s455 = smul.addr %s454, 8
        %s456 = scalar_lea.vmem %s5, %s455
      $region52: #{hoi_vision_transformer_forward.13} parent=47 // pred_fallthru
        _
    $region48: #{hoi_vision_transformer_forward.13} parent=5 // pred_fallthru
      _
  $region6: #{hoi_vision_transformer_forward.13} parent=0 // loop_footer
    %s15 = sadd.s32 1, %s11
  $region7: #{hoi_vision_transformer_forward.13} parent=0 // loop_footer_branch
    %10 = sbr.rel target = $region3
  $region8: #{hoi_vision_transformer_forward.13} parent=0 // loop_exit
    _

// kernel: hoi_vision_transformer_forward.15
$region0: #{hoi_vision_transformer_forward.15}
  #allocation0 [shape = 'u32[]', space=smem, size = 0x4, offset = 0x4, fixed_abs, tag = 'smem constant byte address 0x4 - core index']
  #allocation1 [shape = 'u32[72,128]{1,0:T(1,128)}', space=vmem, size = 0x9000, scoped, tag = 'internal scratch']
  %s0 = inlined_call_operand.vmem [shape: f32[32,32], index: 0, kind: input, shape index: {}]
  %s1 = inlined_call_operand.vmem [shape: bf16[32,64], index: 1, kind: input, shape index: {}]
  %s2 = inlined_call_operand.vmem [shape: f32[1,64], index: 2, kind: input, shape index: {}]
  %s3 = inlined_call_operand.vmem [shape: f32[1,32], index: 3, kind: input, shape index: {}]
  %s4 = inlined_call_operand.vmem [shape: f32[1,32], index: 4, kind: input, shape index: {}]
  %s5 = inlined_call_operand.vmem [shape: f32[32,64], index: 5, kind: output, shape index: {}]
  %s6 = sld [smem:[#allocation0]]
  $region53: #{hoi_vision_transformer_forward.15} parent=0
    _
  %s8 = ssub.s32 1, %s6
  %s9 = scalar_select 0, %s8, %s6
  loop: start=0, step=1, limit=4
  $region2: #{hoi_vision_transformer_forward.15} parent=0 // loop_pre_header
    _
  $region3: #{hoi_vision_transformer_forward.15} parent=0 // loop_header
    %s11 = sphi 0, %s15
    %p12 = scmp.ge.s32.totalorder %s11, 4
    %s18 = sphi 0, %s30
    %s19 = sphi 0, %s26
    %s20 = sphi 0, %s18
    %s21 = sphi 0, %s19
    %s22 = sphi 0, %s20
    %s23 = sphi 0, %s21
    %s33 = sphi 0, %s35
    %s36 = sphi 0, %s33
    %s37 = sphi 0, %s36
    %s53 = sphi 0, %s37
    %s59 = sphi 0, %s61
    %s62 = sphi 0, %s59
    %s63 = sphi 0, %s62
    %s79 = sphi 0, %s63
    %s85 = sphi 0, %s87
    %s88 = sphi 0, %s85
    %s89 = sphi 0, %s88
    %s105 = sphi 0, %s89
    %s109 = sphi 0, %s109
    %s111 = sphi 0, %s109
    %s112 = sphi 0, %s111
    %s126 = sphi 0, %s112
    %s130 = sphi 0, %s130
    %s132 = sphi 0, %s130
    %s133 = sphi 0, %s132
    %s147 = sphi 0, %s133
    %s155 = sphi 0, %s157
    %s158 = sphi 0, %s155
    %s159 = sphi 0, %s158
    %s175 = sphi 0, %s159
  $region4: #{hoi_vision_transformer_forward.15} parent=0 // loop_header_branch
    %14 = sbr.rel (%p12) target = $region8
  $region5: #{hoi_vision_transformer_forward.15} parent=0 // loop_body
    %s16 = ssub.s32 %s11, 1
    %s17 = ssub.s32 %s11, 2
    %s24 = sadd.s32 1, %s19
    %p25 = scmp.ge.s32.totalorder %s24, 2
    %s26 = scalar_select %p25, 0, %s24
    %s27 = sadd.s32 1, %s18
    %s28 = scalar_select %p25, %s27, %s18
    %p29 = scmp.ge.s32.totalorder %s28, 1
    %s30 = scalar_select %p29, 0, %s28
    %s31 = ssub.s32 %s19, %s26
    %p32 = scmp.eq.s32.totalorder %s31, 0
    %s34 = sadd.s32 %s33, 1
    %s35 = scalar_select %p32, %s33, %s34
    %p38 = pneg %p32
    %p39 = scmp.eq.s32.totalorder %s11, 1
    %p40 = por %p38, %p39
    %p41 = scmp.ne.s32.totalorder %s33, %s36
    %p42 = scmp.eq.s32.totalorder %s11, 0
    %p43 = por %p41, %p42
    %p44 = scmp.ne.s32.totalorder %s33, %s36
    %p45 = scmp.eq.s32.totalorder %s16, 1
    %p46 = por %p44, %p45
    %p47 = scmp.ne.s32.totalorder %s36, %s37
    %p48 = scmp.eq.s32.totalorder %s16, 0
    %p49 = por %p47, %p48
    %p50 = scmp.ne.s32.totalorder %s36, %s37
    %p51 = scmp.eq.s32.totalorder %s17, 1
    %p52 = por %p50, %p51
    %p54 = scmp.ne.s32.totalorder %s37, %s53
    %p55 = scmp.eq.s32.totalorder %s17, 0
    %p56 = por %p54, %p55
    %s57 = ssub.s32 %s18, %s30
    %p58 = scmp.eq.s32.totalorder %s57, 0
    %s60 = sadd.s32 %s59, 1
    %s61 = scalar_select %p58, %s59, %s60
    %p64 = pneg %p58
    %p65 = scmp.eq.s32.totalorder %s11, 1
    %p66 = por %p64, %p65
    %p67 = scmp.ne.s32.totalorder %s59, %s62
    %p68 = scmp.eq.s32.totalorder %s11, 0
    %p69 = por %p67, %p68
    %p70 = scmp.ne.s32.totalorder %s59, %s62
    %p71 = scmp.eq.s32.totalorder %s16, 1
    %p72 = por %p70, %p71
    %p73 = scmp.ne.s32.totalorder %s62, %s63
    %p74 = scmp.eq.s32.totalorder %s16, 0
    %p75 = por %p73, %p74
    %p76 = scmp.ne.s32.totalorder %s62, %s63
    %p77 = scmp.eq.s32.totalorder %s17, 1
    %p78 = por %p76, %p77
    %p80 = scmp.ne.s32.totalorder %s63, %s79
    %p81 = scmp.eq.s32.totalorder %s17, 0
    %p82 = por %p80, %p81
    %s83 = ssub.s32 %s18, %s30
    %p84 = scmp.eq.s32.totalorder %s83, 0
    %s86 = sadd.s32 %s85, 1
    %s87 = scalar_select %p84, %s85, %s86
    %p90 = pneg %p84
    %p91 = scmp.eq.s32.totalorder %s11, 1
    %p92 = por %p90, %p91
    %p93 = scmp.ne.s32.totalorder %s85, %s88
    %p94 = scmp.eq.s32.totalorder %s11, 0
    %p95 = por %p93, %p94
    %p96 = scmp.ne.s32.totalorder %s85, %s88
    %p97 = scmp.eq.s32.totalorder %s16, 1
    %p98 = por %p96, %p97
    %p99 = scmp.ne.s32.totalorder %s88, %s89
    %p100 = scmp.eq.s32.totalorder %s16, 0
    %p101 = por %p99, %p100
    %p102 = scmp.ne.s32.totalorder %s88, %s89
    %p103 = scmp.eq.s32.totalorder %s17, 1
    %p104 = por %p102, %p103
    %p106 = scmp.ne.s32.totalorder %s89, %s105
    %p107 = scmp.eq.s32.totalorder %s17, 0
    %p108 = por %p106, %p107
    %s110 = sadd.s32 %s109, 1
    %p113 = scmp.eq.s32.totalorder %s11, 1
    %p114 = scmp.ne.s32.totalorder %s109, %s111
    %p115 = scmp.eq.s32.totalorder %s11, 0
    %p116 = por %p114, %p115
    %p117 = scmp.ne.s32.totalorder %s109, %s111
    %p118 = scmp.eq.s32.totalorder %s16, 1
    %p119 = por %p117, %p118
    %p120 = scmp.ne.s32.totalorder %s111, %s112
    %p121 = scmp.eq.s32.totalorder %s16, 0
    %p122 = por %p120, %p121
    %p123 = scmp.ne.s32.totalorder %s111, %s112
    %p124 = scmp.eq.s32.totalorder %s17, 1
    %p125 = por %p123, %p124
    %p127 = scmp.ne.s32.totalorder %s112, %s126
    %p128 = scmp.eq.s32.totalorder %s17, 0
    %p129 = por %p127, %p128
    %s131 = sadd.s32 %s130, 1
    %p134 = scmp.eq.s32.totalorder %s11, 1
    %p135 = scmp.ne.s32.totalorder %s130, %s132
    %p136 = scmp.eq.s32.totalorder %s11, 0
    %p137 = por %p135, %p136
    %p138 = scmp.ne.s32.totalorder %s130, %s132
    %p139 = scmp.eq.s32.totalorder %s16, 1
    %p140 = por %p138, %p139
    %p141 = scmp.ne.s32.totalorder %s132, %s133
    %p142 = scmp.eq.s32.totalorder %s16, 0
    %p143 = por %p141, %p142
    %p144 = scmp.ne.s32.totalorder %s132, %s133
    %p145 = scmp.eq.s32.totalorder %s17, 1
    %p146 = por %p144, %p145
    %p148 = scmp.ne.s32.totalorder %s133, %s147
    %p149 = scmp.eq.s32.totalorder %s17, 0
    %p150 = por %p148, %p149
    %s151 = ssub.s32 %s19, %s26
    %s152 = ssub.s32 %s18, %s30
    %s153 = sor.u32 %s151, %s152
    %p154 = scmp.eq.s32.totalorder %s153, 0
    %s156 = sadd.s32 %s155, 1
    %s157 = scalar_select %p154, %s155, %s156
    %p160 = pneg %p154
    %p161 = scmp.eq.s32.totalorder %s11, 1
    %p162 = por %p160, %p161
    %p163 = scmp.ne.s32.totalorder %s155, %s158
    %p164 = scmp.eq.s32.totalorder %s11, 0
    %p165 = por %p163, %p164
    %p166 = scmp.ne.s32.totalorder %s155, %s158
    %p167 = scmp.eq.s32.totalorder %s16, 1
    %p168 = por %p166, %p167
    %p169 = scmp.ne.s32.totalorder %s158, %s159
    %p170 = scmp.eq.s32.totalorder %s16, 0
    %p171 = por %p169, %p170
    %p172 = scmp.ne.s32.totalorder %s158, %s159
    %p173 = scmp.eq.s32.totalorder %s17, 1
    %p174 = por %p172, %p173
    %p176 = scmp.ne.s32.totalorder %s159, %s175
    %p177 = scmp.eq.s32.totalorder %s17, 0
    %p178 = por %p176, %p177
    %p179 = scmp.le.s32.totalorder 1, %s11
    %p180 = scmp.lt.s32.totalorder %s11, 3
    %p181 = pnand %p179, %p180
    %p182 = pneg %p181
    // Predicated region
    $region9: #{hoi_vision_transformer_forward.15} parent=5 // pred_check
      _
    $region10: #{hoi_vision_transformer_forward.15} parent=5 // pred_check_branch
      %184 = sbr.rel (%p181) target = $region12
    $region11: #{hoi_vision_transformer_forward.15} parent=5 // pred_region
      %s185 = ssub.s32 %s11, 1
      // Predicated region
      $region13: #{hoi_vision_transformer_forward.15} parent=11 // pred_check
        %p186 = pneg %p75
      $region14: #{hoi_vision_transformer_forward.15} parent=11 // pred_check_branch
        %188 = sbr.rel (%p186) target = $region16
      $region15: #{hoi_vision_transformer_forward.15} parent=11 // pred_region
        %p189 = scmp.lt.s32.totalorder %s20, 0
        %s190 = scalar_select %p189, %s20, 0
        %s191 = smul.addr %s190, 4
        %s192 = scalar_lea.vmem %s1, %s191
      $region16: #{hoi_vision_transformer_forward.15} parent=11 // pred_fallthru
        _
      // Predicated region
      $region17: #{hoi_vision_transformer_forward.15} parent=11 // pred_check
        %p193 = pneg %p101
      $region18: #{hoi_vision_transformer_forward.15} parent=11 // pred_check_branch
        %195 = sbr.rel (%p193) target = $region20
      $region19: #{hoi_vision_transformer_forward.15} parent=11 // pred_region
        %p196 = scmp.lt.s32.totalorder %s20, 0
        %s197 = scalar_select %p196, %s20, 0
        %s198 = scalar_lea.vmem %s2, %s197
      $region20: #{hoi_vision_transformer_forward.15} parent=11 // pred_fallthru
        _
      // Predicated region
      $region21: #{hoi_vision_transformer_forward.15} parent=11 // pred_check
        %p199 = pneg %p122
      $region22: #{hoi_vision_transformer_forward.15} parent=11 // pred_check_branch
        %201 = sbr.rel (%p199) target = $region24
      $region23: #{hoi_vision_transformer_forward.15} parent=11 // pred_region
        _
      $region24: #{hoi_vision_transformer_forward.15} parent=11 // pred_fallthru
        _
      // Predicated region
      $region25: #{hoi_vision_transformer_forward.15} parent=11 // pred_check
        %p202 = pneg %p143
      $region26: #{hoi_vision_transformer_forward.15} parent=11 // pred_check_branch
        %204 = sbr.rel (%p202) target = $region28
      $region27: #{hoi_vision_transformer_forward.15} parent=11 // pred_region
        _
      $region28: #{hoi_vision_transformer_forward.15} parent=11 // pred_fallthru
        _
    $region12: #{hoi_vision_transformer_forward.15} parent=5 // pred_fallthru
      _
    %p205 = scmp.lt.s32.totalorder %s11, 2
    // Predicated region
    $region29: #{hoi_vision_transformer_forward.15} parent=5 // pred_check
      %p206 = pneg %p205
    $region30: #{hoi_vision_transformer_forward.15} parent=5 // pred_check_branch
      %208 = sbr.rel (%p206) target = $region32
    $region31: #{hoi_vision_transformer_forward.15} parent=5 // pred_region
      // Predicated region
      $region33: #{hoi_vision_transformer_forward.15} parent=31 // pred_check
        %p209 = pneg %p43
      $region34: #{hoi_vision_transformer_forward.15} parent=31 // pred_check_branch
        %211 = sbr.rel (%p209) target = $region36
      $region35: #{hoi_vision_transformer_forward.15} parent=31 // pred_region
        %s212 = smul.u32 2, %s19
        %p213 = scmp.lt.s32.totalorder %s212, 3
        %s214 = scalar_select %p213, %s212, 3
        %s215 = smul.addr %s214, 8
        %s216 = scalar_lea.vmem %s0, %s215
        %s217 = smul.u32 2, %s19
      $region36: #{hoi_vision_transformer_forward.15} parent=31 // pred_fallthru
        _
    $region32: #{hoi_vision_transformer_forward.15} parent=5 // pred_fallthru
      _
    %p218 = scmp.le.s32.totalorder 1, %s11
    %p219 = scmp.lt.s32.totalorder %s11, 3
    %p220 = pnand %p218, %p219
    %p221 = pneg %p220
    // Predicated region
    $region37: #{hoi_vision_transformer_forward.15} parent=5 // pred_check
      _
    $region38: #{hoi_vision_transformer_forward.15} parent=5 // pred_check_branch
      %223 = sbr.rel (%p220) target = $region40
    $region39: #{hoi_vision_transformer_forward.15} parent=5 // pred_region
      %s224 = ssub.s32 %s11, 1
      %s225 = smul.u32 2, %s21
      %p226 = scmp.lt.s32.totalorder %s225, 3
      %s227 = scalar_select %p226, %s225, 3
      %s228 = smul.addr %s227, 8
      %s229 = scalar_lea.vmem %s0, %s228
      %p230 = pneg %p49
      %p231 = pneg %p46
      %p232 = scmp.lt.s32.totalorder %s20, 0
      %s233 = scalar_select %p232, %s20, 0
      %s234 = smul.addr %s233, 4
      %s235 = scalar_lea.vmem %s1, %s234
      %p236 = pneg %p75
      %p237 = pneg %p72
      %p238 = scmp.lt.s32.totalorder %s20, 0
      %s239 = scalar_select %p238, %s20, 0
      %s240 = scalar_lea.vmem %s2, %s239
      %p241 = pneg %p101
      %p242 = pneg %p98
      %p243 = pneg %p122
      %p244 = pneg %p119
      %p245 = pneg %p143
      %p246 = pneg %p140
      %p247 = pneg %p171
      %p248 = pneg %p168
      %s249 = smul.u32 2, %s21
      %p250 = scmp.lt.s32.totalorder %s249, 3
      %s251 = scalar_select %p250, %s249, 3
      %p252 = scmp.lt.s32.totalorder %s20, 0
      %s253 = scalar_select %p252, %s20, 0
      %s254 = sadd.s32 %s253, %s251
      %s255 = smul.addr %s254, 8
      %s256 = scalar_lea.vmem %s5, %s255
      %s257 = smul.u32 2, %s21
      %p258 = scmp.lt.s32.totalorder %s257, 3
      %s259 = scalar_select %p258, %s257, 3
      %s260 = smul.addr %s259, 8
      %s261 = scalar_lea.vmem %s0, %s260
      %s262 = smul.u32 2, %s21
      %p263 = scmp.lt.s32.totalorder %s20, 0
      %s264 = scalar_select %p263, %s20, 0
      %s265 = smul.addr %s264, 4
      %s266 = scalar_lea.vmem %s1, %s265
      %p267 = scmp.lt.s32.totalorder %s20, 0
      %s268 = scalar_select %p267, %s20, 0
      %s269 = scalar_lea.vmem %s2, %s268
      %s270 = smul.u32 2, %s21
      %p271 = scmp.lt.s32.totalorder %s270, 3
      %s272 = scalar_select %p271, %s270, 3
      %p273 = scmp.lt.s32.totalorder %s20, 0
      %s274 = scalar_select %p273, %s20, 0
      %s275 = sadd.s32 %s274, %s272
      %s276 = smul.addr %s275, 8
      %s277 = scalar_lea.vmem %s5, %s276
      %s278 = smul.u32 2, %s21
      %v280 = vld [vmem:[%s261] sm:$0xff]
      %v281 = vld [vmem:[%s261 + $0x8] sm:$0xff]
      %vm282 = vcmask 261120
      %v283 = vsel %vm282, %v280, 0.0
      %284 = vadd.xlane.f32.xlu0 %v283
      %v285 = vpop.xlane.xlu0 %284
      %v286 = vsel %vm282, %v281, 0.0
      %287 = vadd.xlane.f32.xlu0 %v286
      %v288 = vpop.xlane.xlu0 %287
      %v289 = vrcp.pop 32.0
      %v290 = vmul.f32 32.0, %v289
      %v291 = vsub.f32 1.0, %v290
      %v292 = vmul.f32 %v289, %v291
      %v293 = vadd.f32 %v289, %v292
      %vm294 = vweird.f32 %v289
      %v295 = vsel %vm294, %v289, %v293
      %v296 = vmul.f32 %v285, %v295
      %v297 = vmul.f32 %v288, %v295
      %v298 = vsub.f32 %v280, %v296
      %v299 = vsub.f32 %v281, %v297
      %v300 = vmul.f32 %v298, %v298
      %v301 = vmul.f32 %v299, %v299
      %v302 = vsel %vm282, %v300, 0.0
      %303 = vadd.xlane.f32.xlu0 %v302
      %v304 = vpop.xlane.xlu0 %303
      %v305 = vsel %vm282, %v301, 0.0
      %306 = vadd.xlane.f32.xlu0 %v305
      %v307 = vpop.xlane.xlu0 %306
      %v308 = vmul.f32 %v304, %v295
      %v309 = vmul.f32 %v307, %v295
      %v310 = vadd.f32 %v308, 1e-05
      %v311 = vadd.f32 %v309, 1e-05
      %v312 = vrsqrt.pop %v310
      %v313 = vmul.f32 %v312, %v310
      %v314 = vmul.f32 %v313, %v312
      %v315 = vmul.f32 0.5, %v314
      %v316 = vsub.f32 1.5, %v315
      %v317 = vmul.f32 %v312, %v316
      %vm318 = vweird.f32 %v310
      %vm319 = vweird.f32 %v312
      %vm320 = vmor %vm318, %vm319
      %v321 = vsel %vm320, %v312, %v317
      %v322 = vrsqrt.pop %v311
      %v323 = vmul.f32 %v322, %v311
      %v324 = vmul.f32 %v323, %v322
      %v325 = vmul.f32 0.5, %v324
      %v326 = vsub.f32 1.5, %v325
      %v327 = vmul.f32 %v322, %v326
      %vm328 = vweird.f32 %v311
      %vm329 = vweird.f32 %v322
      %vm330 = vmor %vm328, %vm329
      %v331 = vsel %vm330, %v322, %v327
      %v332 = vmul.f32 %v298, %v321
      %v333 = vmul.f32 %v299, %v331
      %v334 = vld [vmem:[%s3] sm:$0x1]
      %v336 = vperm.slane %v334, 0
      %v338 = vmul.f32 %v332, %v336
      %v339 = vmul.f32 %v333, %v336
      %v340 = vld [vmem:[%s4] sm:$0x1]
      %v342 = vperm.slane %v340, 0
      %v344 = vadd.f32 %v338, %v342
      %v345 = vadd.f32 %v339, %v342
      %v346 = vpack.c.bf16 %v345, %v344
      %v347 = vld [vmem:[%s266] sm:$0xf]
      %v348 = vld [vmem:[%s266 + $0x4] sm:$0xf]
      %v349 = vld [vmem:[%s266 + $0x8] sm:$0xf]
      %v350 = vld [vmem:[%s266 + $0xc] sm:$0xf]
      %v351 = vld [vmem:[%s269] sm:$0x1]
      %v353 = vperm.slane %v351, 0
      %v359 = vunpack.c.l.b16 %v347
      %v360 = vunpack.c.l.b16 %v348
      %v361 = vunpack.c.l.b16 %v349
      %v362 = vunpack.c.l.b16 %v350
      %v363 = vpack.c.b16 %v360, %v359
      %v364 = vpack.c.b16 %v362, %v361
      %v368 = vsel %vm282, %v346, 0
      %370 = vmatpush.bf16.msra.mxu0 0
      %371 = vmatpush.bf16.msra.mxu0 0
      %372 = vmatpush.bf16.msra.mxu0 0
      %373 = vmatpush.bf16.msra.mxu0 0
      %374 = vmatpush.bf16.msra.mxu0 0
      %375 = vmatpush.bf16.msra.mxu0 0
      %376 = vmatpush.bf16.msra.mxu0 %v364
      %377 = vmatpush.bf16.msra.mxu0 %v363
      %378 = vmatmul.bf16.gmra.mxu0 %v368
      %v379 = vpop.f32.mrf.mxu0
      %v380 = vadd.f32 %v353, %v379
      %v381 = vpop.f32.mrf.mxu0
      %v382 = vadd.f32 %v353, %v381
      %383 = vdwg.mxu0
      %vm384 = vcmask 523264
      %385 = vst.msk [vmem:[%s277] sm:$0xff] %vm384, %v380
      %386 = vst.msk [vmem:[%s277 + $0x8] sm:$0xff] %vm384, %v382
      %s387 = smul.u32 2, %s21
      %p388 = scmp.lt.s32.totalorder %s387, 3
      %s389 = scalar_select %p388, %s387, 3
      %p390 = scmp.lt.s32.totalorder %s20, 0
      %s391 = scalar_select %p390, %s20, 0
      %s392 = sadd.s32 %s391, %s389
      %s393 = smul.addr %s392, 8
      %s394 = scalar_lea.vmem %s5, %s393
      // Predicated region
      $region41: #{hoi_vision_transformer_forward.15} parent=39 // pred_check
        %p395 = pneg %p168
      $region42: #{hoi_vision_transformer_forward.15} parent=39 // pred_check_branch
        %397 = sbr.rel (%p395) target = $region44
      $region43: #{hoi_vision_transformer_forward.15} parent=39 // pred_region
        %s398 = smul.u32 2, %s21
      $region44: #{hoi_vision_transformer_forward.15} parent=39 // pred_fallthru
        _
    $region40: #{hoi_vision_transformer_forward.15} parent=5 // pred_fallthru
      _
    %p399 = scmp.le.s32.totalorder 2, %s11
    // Predicated region
    $region45: #{hoi_vision_transformer_forward.15} parent=5 // pred_check
      %p400 = pneg %p399
    $region46: #{hoi_vision_transformer_forward.15} parent=5 // pred_check_branch
      %402 = sbr.rel (%p400) target = $region48
    $region47: #{hoi_vision_transformer_forward.15} parent=5 // pred_region
      %s403 = ssub.s32 %s11, 2
      // Predicated region
      $region49: #{hoi_vision_transformer_forward.15} parent=47 // pred_check
        %p404 = pneg %p174
      $region50: #{hoi_vision_transformer_forward.15} parent=47 // pred_check_branch
        %406 = sbr.rel (%p404) target = $region52
      $region51: #{hoi_vision_transformer_forward.15} parent=47 // pred_region
        %s407 = smul.u32 2, %s23
        %p408 = scmp.lt.s32.totalorder %s407, 3
        %s409 = scalar_select %p408, %s407, 3
        %p410 = scmp.lt.s32.totalorder %s22, 0
        %s411 = scalar_select %p410, %s22, 0
        %s412 = sadd.s32 %s411, %s409
        %s413 = smul.addr %s412, 8
        %s414 = scalar_lea.vmem %s5, %s413
      $region52: #{hoi_vision_transformer_forward.15} parent=47 // pred_fallthru
        _
    $region48: #{hoi_vision_transformer_forward.15} parent=5 // pred_fallthru
      _
  $region6: #{hoi_vision_transformer_forward.15} parent=0 // loop_footer
    %s15 = sadd.s32 1, %s11
  $region7: #{hoi_vision_transformer_forward.15} parent=0 // loop_footer_branch
    %10 = sbr.rel target = $region3
  $region8: #{hoi_vision_transformer_forward.15} parent=0 // loop_exit
    _

// kernel: hoi_vision_transformer_forward.17
$region0: #{hoi_vision_transformer_forward.17}
  #allocation0 [shape = 'u32[]', space=smem, size = 0x4, offset = 0x4, fixed_abs, tag = 'smem constant byte address 0x4 - core index']
  #allocation1 [shape = 'u32[72,128]{1,0:T(1,128)}', space=vmem, size = 0x9000, scoped, tag = 'internal scratch']
  %s0 = inlined_call_operand.vmem [shape: f32[16,32], index: 0, kind: input, shape index: {}]
  %s1 = inlined_call_operand.vmem [shape: bf16[32,128], index: 1, kind: input, shape index: {}]
  %s2 = inlined_call_operand.vmem [shape: f32[1,128], index: 2, kind: input, shape index: {}]
  %s3 = inlined_call_operand.vmem [shape: f32[1,32], index: 3, kind: input, shape index: {}]
  %s4 = inlined_call_operand.vmem [shape: f32[1,32], index: 4, kind: input, shape index: {}]
  %s5 = inlined_call_operand.vmem [shape: f32[16,128], index: 5, kind: output, shape index: {}]
  %s6 = sld [smem:[#allocation0]]
  $region53: #{hoi_vision_transformer_forward.17} parent=0
    _
  %s8 = ssub.s32 1, %s6
  %s9 = scalar_select 0, %s8, %s6
  loop: start=0, step=1, limit=4
  $region2: #{hoi_vision_transformer_forward.17} parent=0 // loop_pre_header
    _
  $region3: #{hoi_vision_transformer_forward.17} parent=0 // loop_header
    %s11 = sphi 0, %s15
    %p12 = scmp.ge.s32.totalorder %s11, 4
    %s18 = sphi 0, %s30
    %s19 = sphi 0, %s26
    %s20 = sphi 0, %s18
    %s21 = sphi 0, %s19
    %s22 = sphi 0, %s20
    %s23 = sphi 0, %s21
    %s33 = sphi 0, %s35
    %s36 = sphi 0, %s33
    %s37 = sphi 0, %s36
    %s53 = sphi 0, %s37
    %s59 = sphi 0, %s61
    %s62 = sphi 0, %s59
    %s63 = sphi 0, %s62
    %s79 = sphi 0, %s63
    %s85 = sphi 0, %s87
    %s88 = sphi 0, %s85
    %s89 = sphi 0, %s88
    %s105 = sphi 0, %s89
    %s109 = sphi 0, %s109
    %s111 = sphi 0, %s109
    %s112 = sphi 0, %s111
    %s126 = sphi 0, %s112
    %s130 = sphi 0, %s130
    %s132 = sphi 0, %s130
    %s133 = sphi 0, %s132
    %s147 = sphi 0, %s133
    %s155 = sphi 0, %s157
    %s158 = sphi 0, %s155
    %s159 = sphi 0, %s158
    %s175 = sphi 0, %s159
  $region4: #{hoi_vision_transformer_forward.17} parent=0 // loop_header_branch
    %14 = sbr.rel (%p12) target = $region8
  $region5: #{hoi_vision_transformer_forward.17} parent=0 // loop_body
    %s16 = ssub.s32 %s11, 1
    %s17 = ssub.s32 %s11, 2
    %s24 = sadd.s32 1, %s19
    %p25 = scmp.ge.s32.totalorder %s24, 2
    %s26 = scalar_select %p25, 0, %s24
    %s27 = sadd.s32 1, %s18
    %s28 = scalar_select %p25, %s27, %s18
    %p29 = scmp.ge.s32.totalorder %s28, 1
    %s30 = scalar_select %p29, 0, %s28
    %s31 = ssub.s32 %s19, %s26
    %p32 = scmp.eq.s32.totalorder %s31, 0
    %s34 = sadd.s32 %s33, 1
    %s35 = scalar_select %p32, %s33, %s34
    %p38 = pneg %p32
    %p39 = scmp.eq.s32.totalorder %s11, 1
    %p40 = por %p38, %p39
    %p41 = scmp.ne.s32.totalorder %s33, %s36
    %p42 = scmp.eq.s32.totalorder %s11, 0
    %p43 = por %p41, %p42
    %p44 = scmp.ne.s32.totalorder %s33, %s36
    %p45 = scmp.eq.s32.totalorder %s16, 1
    %p46 = por %p44, %p45
    %p47 = scmp.ne.s32.totalorder %s36, %s37
    %p48 = scmp.eq.s32.totalorder %s16, 0
    %p49 = por %p47, %p48
    %p50 = scmp.ne.s32.totalorder %s36, %s37
    %p51 = scmp.eq.s32.totalorder %s17, 1
    %p52 = por %p50, %p51
    %p54 = scmp.ne.s32.totalorder %s37, %s53
    %p55 = scmp.eq.s32.totalorder %s17, 0
    %p56 = por %p54, %p55
    %s57 = ssub.s32 %s18, %s30
    %p58 = scmp.eq.s32.totalorder %s57, 0
    %s60 = sadd.s32 %s59, 1
    %s61 = scalar_select %p58, %s59, %s60
    %p64 = pneg %p58
    %p65 = scmp.eq.s32.totalorder %s11, 1
    %p66 = por %p64, %p65
    %p67 = scmp.ne.s32.totalorder %s59, %s62
    %p68 = scmp.eq.s32.totalorder %s11, 0
    %p69 = por %p67, %p68
    %p70 = scmp.ne.s32.totalorder %s59, %s62
    %p71 = scmp.eq.s32.totalorder %s16, 1
    %p72 = por %p70, %p71
    %p73 = scmp.ne.s32.totalorder %s62, %s63
    %p74 = scmp.eq.s32.totalorder %s16, 0
    %p75 = por %p73, %p74
    %p76 = scmp.ne.s32.totalorder %s62, %s63
    %p77 = scmp.eq.s32.totalorder %s17, 1
    %p78 = por %p76, %p77
    %p80 = scmp.ne.s32.totalorder %s63, %s79
    %p81 = scmp.eq.s32.totalorder %s17, 0
    %p82 = por %p80, %p81
    %s83 = ssub.s32 %s18, %s30
    %p84 = scmp.eq.s32.totalorder %s83, 0
    %s86 = sadd.s32 %s85, 1
    %s87 = scalar_select %p84, %s85, %s86
    %p90 = pneg %p84
    %p91 = scmp.eq.s32.totalorder %s11, 1
    %p92 = por %p90, %p91
    %p93 = scmp.ne.s32.totalorder %s85, %s88
    %p94 = scmp.eq.s32.totalorder %s11, 0
    %p95 = por %p93, %p94
    %p96 = scmp.ne.s32.totalorder %s85, %s88
    %p97 = scmp.eq.s32.totalorder %s16, 1
    %p98 = por %p96, %p97
    %p99 = scmp.ne.s32.totalorder %s88, %s89
    %p100 = scmp.eq.s32.totalorder %s16, 0
    %p101 = por %p99, %p100
    %p102 = scmp.ne.s32.totalorder %s88, %s89
    %p103 = scmp.eq.s32.totalorder %s17, 1
    %p104 = por %p102, %p103
    %p106 = scmp.ne.s32.totalorder %s89, %s105
    %p107 = scmp.eq.s32.totalorder %s17, 0
    %p108 = por %p106, %p107
    %s110 = sadd.s32 %s109, 1
    %p113 = scmp.eq.s32.totalorder %s11, 1
    %p114 = scmp.ne.s32.totalorder %s109, %s111
    %p115 = scmp.eq.s32.totalorder %s11, 0
    %p116 = por %p114, %p115
    %p117 = scmp.ne.s32.totalorder %s109, %s111
    %p118 = scmp.eq.s32.totalorder %s16, 1
    %p119 = por %p117, %p118
    %p120 = scmp.ne.s32.totalorder %s111, %s112
    %p121 = scmp.eq.s32.totalorder %s16, 0
    %p122 = por %p120, %p121
    %p123 = scmp.ne.s32.totalorder %s111, %s112
    %p124 = scmp.eq.s32.totalorder %s17, 1
    %p125 = por %p123, %p124
    %p127 = scmp.ne.s32.totalorder %s112, %s126
    %p128 = scmp.eq.s32.totalorder %s17, 0
    %p129 = por %p127, %p128
    %s131 = sadd.s32 %s130, 1
    %p134 = scmp.eq.s32.totalorder %s11, 1
    %p135 = scmp.ne.s32.totalorder %s130, %s132
    %p136 = scmp.eq.s32.totalorder %s11, 0
    %p137 = por %p135, %p136
    %p138 = scmp.ne.s32.totalorder %s130, %s132
    %p139 = scmp.eq.s32.totalorder %s16, 1
    %p140 = por %p138, %p139
    %p141 = scmp.ne.s32.totalorder %s132, %s133
    %p142 = scmp.eq.s32.totalorder %s16, 0
    %p143 = por %p141, %p142
    %p144 = scmp.ne.s32.totalorder %s132, %s133
    %p145 = scmp.eq.s32.totalorder %s17, 1
    %p146 = por %p144, %p145
    %p148 = scmp.ne.s32.totalorder %s133, %s147
    %p149 = scmp.eq.s32.totalorder %s17, 0
    %p150 = por %p148, %p149
    %s151 = ssub.s32 %s19, %s26
    %s152 = ssub.s32 %s18, %s30
    %s153 = sor.u32 %s151, %s152
    %p154 = scmp.eq.s32.totalorder %s153, 0
    %s156 = sadd.s32 %s155, 1
    %s157 = scalar_select %p154, %s155, %s156
    %p160 = pneg %p154
    %p161 = scmp.eq.s32.totalorder %s11, 1
    %p162 = por %p160, %p161
    %p163 = scmp.ne.s32.totalorder %s155, %s158
    %p164 = scmp.eq.s32.totalorder %s11, 0
    %p165 = por %p163, %p164
    %p166 = scmp.ne.s32.totalorder %s155, %s158
    %p167 = scmp.eq.s32.totalorder %s16, 1
    %p168 = por %p166, %p167
    %p169 = scmp.ne.s32.totalorder %s158, %s159
    %p170 = scmp.eq.s32.totalorder %s16, 0
    %p171 = por %p169, %p170
    %p172 = scmp.ne.s32.totalorder %s158, %s159
    %p173 = scmp.eq.s32.totalorder %s17, 1
    %p174 = por %p172, %p173
    %p176 = scmp.ne.s32.totalorder %s159, %s175
    %p177 = scmp.eq.s32.totalorder %s17, 0
    %p178 = por %p176, %p177
    %p179 = scmp.le.s32.totalorder 1, %s11
    %p180 = scmp.lt.s32.totalorder %s11, 3
    %p181 = pnand %p179, %p180
    %p182 = pneg %p181
    // Predicated region
    $region9: #{hoi_vision_transformer_forward.17} parent=5 // pred_check
      _
    $region10: #{hoi_vision_transformer_forward.17} parent=5 // pred_check_branch
      %184 = sbr.rel (%p181) target = $region12
    $region11: #{hoi_vision_transformer_forward.17} parent=5 // pred_region
      %s185 = ssub.s32 %s11, 1
      // Predicated region
      $region13: #{hoi_vision_transformer_forward.17} parent=11 // pred_check
        %p186 = pneg %p75
      $region14: #{hoi_vision_transformer_forward.17} parent=11 // pred_check_branch
        %188 = sbr.rel (%p186) target = $region16
      $region15: #{hoi_vision_transformer_forward.17} parent=11 // pred_region
        %p189 = scmp.lt.s32.totalorder %s20, 0
        %s190 = scalar_select %p189, %s20, 0
        %s191 = smul.addr %s190, 4
        %s192 = scalar_lea.vmem %s1, %s191
      $region16: #{hoi_vision_transformer_forward.17} parent=11 // pred_fallthru
        _
      // Predicated region
      $region17: #{hoi_vision_transformer_forward.17} parent=11 // pred_check
        %p193 = pneg %p101
      $region18: #{hoi_vision_transformer_forward.17} parent=11 // pred_check_branch
        %195 = sbr.rel (%p193) target = $region20
      $region19: #{hoi_vision_transformer_forward.17} parent=11 // pred_region
        %p196 = scmp.lt.s32.totalorder %s20, 0
        %s197 = scalar_select %p196, %s20, 0
        %s198 = scalar_lea.vmem %s2, %s197
      $region20: #{hoi_vision_transformer_forward.17} parent=11 // pred_fallthru
        _
      // Predicated region
      $region21: #{hoi_vision_transformer_forward.17} parent=11 // pred_check
        %p199 = pneg %p122
      $region22: #{hoi_vision_transformer_forward.17} parent=11 // pred_check_branch
        %201 = sbr.rel (%p199) target = $region24
      $region23: #{hoi_vision_transformer_forward.17} parent=11 // pred_region
        _
      $region24: #{hoi_vision_transformer_forward.17} parent=11 // pred_fallthru
        _
      // Predicated region
      $region25: #{hoi_vision_transformer_forward.17} parent=11 // pred_check
        %p202 = pneg %p143
      $region26: #{hoi_vision_transformer_forward.17} parent=11 // pred_check_branch
        %204 = sbr.rel (%p202) target = $region28
      $region27: #{hoi_vision_transformer_forward.17} parent=11 // pred_region
        _
      $region28: #{hoi_vision_transformer_forward.17} parent=11 // pred_fallthru
        _
    $region12: #{hoi_vision_transformer_forward.17} parent=5 // pred_fallthru
      _
    %p205 = scmp.lt.s32.totalorder %s11, 2
    // Predicated region
    $region29: #{hoi_vision_transformer_forward.17} parent=5 // pred_check
      %p206 = pneg %p205
    $region30: #{hoi_vision_transformer_forward.17} parent=5 // pred_check_branch
      %208 = sbr.rel (%p206) target = $region32
    $region31: #{hoi_vision_transformer_forward.17} parent=5 // pred_region
      // Predicated region
      $region33: #{hoi_vision_transformer_forward.17} parent=31 // pred_check
        %p209 = pneg %p43
      $region34: #{hoi_vision_transformer_forward.17} parent=31 // pred_check_branch
        %211 = sbr.rel (%p209) target = $region36
      $region35: #{hoi_vision_transformer_forward.17} parent=31 // pred_region
        %p212 = scmp.lt.s32.totalorder %s19, 1
        %s213 = scalar_select %p212, %s19, 1
        %s214 = smul.addr %s213, 8
        %s215 = scalar_lea.vmem %s0, %s214
      $region36: #{hoi_vision_transformer_forward.17} parent=31 // pred_fallthru
        _
    $region32: #{hoi_vision_transformer_forward.17} parent=5 // pred_fallthru
      _
    %p216 = scmp.le.s32.totalorder 1, %s11
    %p217 = scmp.lt.s32.totalorder %s11, 3
    %p218 = pnand %p216, %p217
    %p219 = pneg %p218
    // Predicated region
    $region37: #{hoi_vision_transformer_forward.17} parent=5 // pred_check
      _
    $region38: #{hoi_vision_transformer_forward.17} parent=5 // pred_check_branch
      %221 = sbr.rel (%p218) target = $region40
    $region39: #{hoi_vision_transformer_forward.17} parent=5 // pred_region
      %s222 = ssub.s32 %s11, 1
      %p223 = scmp.lt.s32.totalorder %s21, 1
      %s224 = scalar_select %p223, %s21, 1
      %s225 = smul.addr %s224, 8
      %s226 = scalar_lea.vmem %s0, %s225
      %p227 = pneg %p49
      %p228 = pneg %p46
      %p229 = scmp.lt.s32.totalorder %s20, 0
      %s230 = scalar_select %p229, %s20, 0
      %s231 = smul.addr %s230, 4
      %s232 = scalar_lea.vmem %s1, %s231
      %p233 = pneg %p75
      %p234 = pneg %p72
      %p235 = scmp.lt.s32.totalorder %s20, 0
      %s236 = scalar_select %p235, %s20, 0
      %s237 = scalar_lea.vmem %s2, %s236
      %p238 = pneg %p101
      %p239 = pneg %p98
      %p240 = pneg %p122
      %p241 = pneg %p119
      %p242 = pneg %p143
      %p243 = pneg %p140
      %p244 = pneg %p171
      %p245 = pneg %p168
      %p246 = scmp.lt.s32.totalorder %s21, 1
      %s247 = scalar_select %p246, %s21, 1
      %p248 = scmp.lt.s32.totalorder %s20, 0
      %s249 = scalar_select %p248, %s20, 0
      %s250 = sadd.s32 %s249, %s247
      %s251 = smul.addr %s250, 8
      %s252 = scalar_lea.vmem %s5, %s251
      %p253 = scmp.lt.s32.totalorder %s21, 1
      %s254 = scalar_select %p253, %s21, 1
      %s255 = smul.addr %s254, 8
      %s256 = scalar_lea.vmem %s0, %s255
      %p257 = scmp.lt.s32.totalorder %s20, 0
      %s258 = scalar_select %p257, %s20, 0
      %s259 = smul.addr %s258, 4
      %s260 = scalar_lea.vmem %s1, %s259
      %p261 = scmp.lt.s32.totalorder %s20, 0
      %s262 = scalar_select %p261, %s20, 0
      %s263 = scalar_lea.vmem %s2, %s262
      %p264 = scmp.lt.s32.totalorder %s21, 1
      %s265 = scalar_select %p264, %s21, 1
      %p266 = scmp.lt.s32.totalorder %s20, 0
      %s267 = scalar_select %p266, %s20, 0
      %s268 = sadd.s32 %s267, %s265
      %s269 = smul.addr %s268, 8
      %s270 = scalar_lea.vmem %s5, %s269
      %v272 = vld [vmem:[%s256] sm:$0xff]
      %vm273 = vcmask 261120
      %v274 = vsel %vm273, %v272, 0.0
      %275 = vadd.xlane.f32.xlu0 %v274
      %v276 = vpop.xlane.xlu0 %275
      %v277 = vrcp.pop 32.0
      %v278 = vmul.f32 32.0, %v277
      %v279 = vsub.f32 1.0, %v278
      %v280 = vmul.f32 %v277, %v279
      %v281 = vadd.f32 %v277, %v280
      %vm282 = vweird.f32 %v277
      %v283 = vsel %vm282, %v277, %v281
      %v284 = vmul.f32 %v276, %v283
      %v285 = vsub.f32 %v272, %v284
      %v286 = vmul.f32 %v285, %v285
      %v287 = vsel %vm273, %v286, 0.0
      %288 = vadd.xlane.f32.xlu0 %v287
      %v289 = vpop.xlane.xlu0 %288
      %v290 = vmul.f32 %v289, %v283
      %v291 = vadd.f32 %v290, 1e-05
      %v292 = vrsqrt.pop %v291
      %v293 = vmul.f32 %v292, %v291
      %v294 = vmul.f32 %v293, %v292
      %v295 = vmul.f32 0.5, %v294
      %v296 = vsub.f32 1.5, %v295
      %v297 = vmul.f32 %v292, %v296
      %vm298 = vweird.f32 %v291
      %vm299 = vweird.f32 %v292
      %vm300 = vmor %vm298, %vm299
      %v301 = vsel %vm300, %v292, %v297
      %v302 = vmul.f32 %v285, %v301
      %v303 = vld [vmem:[%s3] sm:$0x1]
      %v305 = vperm.slane %v303, 0
      %v307 = vmul.f32 %v302, %v305
      %v308 = vld [vmem:[%s4] sm:$0x1]
      %v310 = vperm.slane %v308, 0
      %v312 = vadd.f32 %v307, %v310
      %v313 = vpack.c.bf16 %v312, %v312
      %v314 = vld [vmem:[%s260] sm:$0xf]
      %v315 = vld [vmem:[%s260 + $0x4] sm:$0xf]
      %v316 = vld [vmem:[%s260 + $0x8] sm:$0xf]
      %v317 = vld [vmem:[%s260 + $0xc] sm:$0xf]
      %v318 = vld [vmem:[%s263] sm:$0x1]
      %v320 = vperm.slane %v318, 0
      %v326 = vunpack.c.l.b16 %v314
      %v327 = vunpack.c.l.b16 %v315
      %v328 = vunpack.c.l.b16 %v316
      %v329 = vunpack.c.l.b16 %v317
      %v330 = vpack.c.b16 %v327, %v326
      %v331 = vpack.c.b16 %v329, %v328
      %v335 = vsel %vm273, %v313, 0
      %337 = vmatpush.bf16.msra.mxu0 0
      %338 = vmatpush.bf16.msra.mxu0 0
      %339 = vmatpush.bf16.msra.mxu0 0
      %340 = vmatpush.bf16.msra.mxu0 0
      %341 = vmatpush.bf16.msra.mxu0 0
      %342 = vmatpush.bf16.msra.mxu0 0
      %343 = vmatpush.bf16.msra.mxu0 %v331
      %344 = vmatpush.bf16.msra.mxu0 %v330
      %345 = vmatmul.bf16.gmra.mxu0 %v335
      %v346 = vpop.f32.mrf.mxu0
      %v347 = vadd.f32 %v320, %v346
      %v348 = vpop.f32.mrf.mxu0
      %349 = vdwg.mxu0
      %v350 = vmul.f32 %v347, 1.702
      %v351 = vxor.u32 %v350, 2147483648
      %v352 = vmul.f32 %v351, 1.442695
      %v353 = vpow.pop %v352
      %v354 = vadd.f32 %v353, 1.0
      %v355 = vrcp.pop %v354
      %v356 = vmul.f32 %v354, %v355
      %v357 = vsub.f32 1.0, %v356
      %v358 = vmul.f32 %v355, %v357
      %v359 = vadd.f32 %v355, %v358
      %vm360 = vweird.f32 %v354
      %vm361 = vweird.f32 %v355
      %vm362 = vmor %vm360, %vm361
      %v363 = vsel %vm362, %v355, %v359
      %v364 = vand.u32 2147483647, %v354
      %vm365 = vcmp.eq.f32.partialorder %v364, 8.507059e+37
      %v366 = vand.u32 %v354, 2147483648
      %v367 = vor.u32 1.1754944e-38, %v366
      %v368 = vsel %vm365, %v367, %v363
      %v369 = vmul.f32 1.0, %v368
      %v370 = vmul.f32 %v347, %v369
      %371 = vst [vmem:[%s270] sm:$0xff] %v370
      %p372 = scmp.lt.s32.totalorder %s21, 1
      %s373 = scalar_select %p372, %s21, 1
      %p374 = scmp.lt.s32.totalorder %s20, 0
      %s375 = scalar_select %p374, %s20, 0
      %s376 = sadd.s32 %s375, %s373
      %s377 = smul.addr %s376, 8
      %s378 = scalar_lea.vmem %s5, %s377
      // Predicated region
      $region41: #{hoi_vision_transformer_forward.17} parent=39 // pred_check
        %p379 = pneg %p168
      $region42: #{hoi_vision_transformer_forward.17} parent=39 // pred_check_branch
        %381 = sbr.rel (%p379) target = $region44
      $region43: #{hoi_vision_transformer_forward.17} parent=39 // pred_region
        _
      $region44: #{hoi_vision_transformer_forward.17} parent=39 // pred_fallthru
        _
    $region40: #{hoi_vision_transformer_forward.17} parent=5 // pred_fallthru
      _
    %p382 = scmp.le.s32.totalorder 2, %s11
    // Predicated region
    $region45: #{hoi_vision_transformer_forward.17} parent=5 // pred_check
      %p383 = pneg %p382
    $region46: #{hoi_vision_transformer_forward.17} parent=5 // pred_check_branch
      %385 = sbr.rel (%p383) target = $region48
    $region47: #{hoi_vision_transformer_forward.17} parent=5 // pred_region
      %s386 = ssub.s32 %s11, 2
      // Predicated region
      $region49: #{hoi_vision_transformer_forward.17} parent=47 // pred_check
        %p387 = pneg %p174
      $region50: #{hoi_vision_transformer_forward.17} parent=47 // pred_check_branch
        %389 = sbr.rel (%p387) target = $region52
      $region51: #{hoi_vision_transformer_forward.17} parent=47 // pred_region
        %p390 = scmp.lt.s32.totalorder %s23, 1
        %s391 = scalar_select %p390, %s23, 1
        %p392 = scmp.lt.s32.totalorder %s22, 0
        %s393 = scalar_select %p392, %s22, 0
        %s394 = sadd.s32 %s393, %s391
        %s395 = smul.addr %s394, 8
        %s396 = scalar_lea.vmem %s5, %s395
      $region52: #{hoi_vision_transformer_forward.17} parent=47 // pred_fallthru
        _
    $region48: #{hoi_vision_transformer_forward.17} parent=5 // pred_fallthru
      _
  $region6: #{hoi_vision_transformer_forward.17} parent=0 // loop_footer
    %s15 = sadd.s32 1, %s11
  $region7: #{hoi_vision_transformer_forward.17} parent=0 // loop_footer_branch
    %10 = sbr.rel target = $region3
  $region8: #{hoi_vision_transformer_forward.17} parent=0 // loop_exit
    _

// kernel: hoi_vision_transformer_forward.18
$region0: #{hoi_vision_transformer_forward.18}
  #allocation0 [shape = 'u32[]', space=smem, size = 0x4, offset = 0x4, fixed_abs, tag = 'smem constant byte address 0x4 - core index']
  #allocation1 [shape = 'u32[72,128]{1,0:T(1,128)}', space=vmem, size = 0x9000, scoped, tag = 'internal scratch']
  %s0 = inlined_call_operand.vmem [shape: f32[16,128], index: 0, kind: input, shape index: {}]
  %s1 = inlined_call_operand.vmem [shape: bf16[128,32], index: 1, kind: input, shape index: {}]
  %s2 = inlined_call_operand.vmem [shape: f32[1,32], index: 2, kind: input, shape index: {}]
  %s3 = inlined_call_operand.vmem [shape: f32[16,32], index: 3, kind: input, shape index: {}]
  %s4 = inlined_call_operand.vmem [shape: f32[16,32], index: 4, kind: output, shape index: {}]
  %s5 = sld [smem:[#allocation0]]
  $region49: #{hoi_vision_transformer_forward.18} parent=0
    _
  %s7 = ssub.s32 1, %s5
  %s8 = scalar_select 0, %s7, %s5
  loop: start=0, step=1, limit=4
  $region2: #{hoi_vision_transformer_forward.18} parent=0 // loop_pre_header
    _
  $region3: #{hoi_vision_transformer_forward.18} parent=0 // loop_header
    %s10 = sphi 0, %s14
    %p11 = scmp.ge.s32.totalorder %s10, 4
    %s17 = sphi 0, %s29
    %s18 = sphi 0, %s25
    %s19 = sphi 0, %s17
    %s20 = sphi 0, %s18
    %s21 = sphi 0, %s19
    %s22 = sphi 0, %s20
    %s32 = sphi 0, %s34
    %s35 = sphi 0, %s32
    %s36 = sphi 0, %s35
    %s52 = sphi 0, %s36
    %s58 = sphi 0, %s60
    %s61 = sphi 0, %s58
    %s62 = sphi 0, %s61
    %s78 = sphi 0, %s62
    %s84 = sphi 0, %s86
    %s87 = sphi 0, %s84
    %s88 = sphi 0, %s87
    %s104 = sphi 0, %s88
    %s112 = sphi 0, %s114
    %s115 = sphi 0, %s112
    %s116 = sphi 0, %s115
    %s132 = sphi 0, %s116
    %s140 = sphi 0, %s142
    %s143 = sphi 0, %s140
    %s144 = sphi 0, %s143
    %s160 = sphi 0, %s144
  $region4: #{hoi_vision_transformer_forward.18} parent=0 // loop_header_branch
    %13 = sbr.rel (%p11) target = $region8
  $region5: #{hoi_vision_transformer_forward.18} parent=0 // loop_body
    %s15 = ssub.s32 %s10, 1
    %s16 = ssub.s32 %s10, 2
    %s23 = sadd.s32 1, %s18
    %p24 = scmp.ge.s32.totalorder %s23, 2
    %s25 = scalar_select %p24, 0, %s23
    %s26 = sadd.s32 1, %s17
    %s27 = scalar_select %p24, %s26, %s17
    %p28 = scmp.ge.s32.totalorder %s27, 1
    %s29 = scalar_select %p28, 0, %s27
    %s30 = ssub.s32 %s18, %s25
    %p31 = scmp.eq.s32.totalorder %s30, 0
    %s33 = sadd.s32 %s32, 1
    %s34 = scalar_select %p31, %s32, %s33
    %p37 = pneg %p31
    %p38 = scmp.eq.s32.totalorder %s10, 1
    %p39 = por %p37, %p38
    %p40 = scmp.ne.s32.totalorder %s32, %s35
    %p41 = scmp.eq.s32.totalorder %s10, 0
    %p42 = por %p40, %p41
    %p43 = scmp.ne.s32.totalorder %s32, %s35
    %p44 = scmp.eq.s32.totalorder %s15, 1
    %p45 = por %p43, %p44
    %p46 = scmp.ne.s32.totalorder %s35, %s36
    %p47 = scmp.eq.s32.totalorder %s15, 0
    %p48 = por %p46, %p47
    %p49 = scmp.ne.s32.totalorder %s35, %s36
    %p50 = scmp.eq.s32.totalorder %s16, 1
    %p51 = por %p49, %p50
    %p53 = scmp.ne.s32.totalorder %s36, %s52
    %p54 = scmp.eq.s32.totalorder %s16, 0
    %p55 = por %p53, %p54
    %s56 = ssub.s32 %s17, %s29
    %p57 = scmp.eq.s32.totalorder %s56, 0
    %s59 = sadd.s32 %s58, 1
    %s60 = scalar_select %p57, %s58, %s59
    %p63 = pneg %p57
    %p64 = scmp.eq.s32.totalorder %s10, 1
    %p65 = por %p63, %p64
    %p66 = scmp.ne.s32.totalorder %s58, %s61
    %p67 = scmp.eq.s32.totalorder %s10, 0
    %p68 = por %p66, %p67
    %p69 = scmp.ne.s32.totalorder %s58, %s61
    %p70 = scmp.eq.s32.totalorder %s15, 1
    %p71 = por %p69, %p70
    %p72 = scmp.ne.s32.totalorder %s61, %s62
    %p73 = scmp.eq.s32.totalorder %s15, 0
    %p74 = por %p72, %p73
    %p75 = scmp.ne.s32.totalorder %s61, %s62
    %p76 = scmp.eq.s32.totalorder %s16, 1
    %p77 = por %p75, %p76
    %p79 = scmp.ne.s32.totalorder %s62, %s78
    %p80 = scmp.eq.s32.totalorder %s16, 0
    %p81 = por %p79, %p80
    %s82 = ssub.s32 %s17, %s29
    %p83 = scmp.eq.s32.totalorder %s82, 0
    %s85 = sadd.s32 %s84, 1
    %s86 = scalar_select %p83, %s84, %s85
    %p89 = pneg %p83
    %p90 = scmp.eq.s32.totalorder %s10, 1
    %p91 = por %p89, %p90
    %p92 = scmp.ne.s32.totalorder %s84, %s87
    %p93 = scmp.eq.s32.totalorder %s10, 0
    %p94 = por %p92, %p93
    %p95 = scmp.ne.s32.totalorder %s84, %s87
    %p96 = scmp.eq.s32.totalorder %s15, 1
    %p97 = por %p95, %p96
    %p98 = scmp.ne.s32.totalorder %s87, %s88
    %p99 = scmp.eq.s32.totalorder %s15, 0
    %p100 = por %p98, %p99
    %p101 = scmp.ne.s32.totalorder %s87, %s88
    %p102 = scmp.eq.s32.totalorder %s16, 1
    %p103 = por %p101, %p102
    %p105 = scmp.ne.s32.totalorder %s88, %s104
    %p106 = scmp.eq.s32.totalorder %s16, 0
    %p107 = por %p105, %p106
    %s108 = ssub.s32 %s18, %s25
    %s109 = ssub.s32 %s17, %s29
    %s110 = sor.u32 %s108, %s109
    %p111 = scmp.eq.s32.totalorder %s110, 0
    %s113 = sadd.s32 %s112, 1
    %s114 = scalar_select %p111, %s112, %s113
    %p117 = pneg %p111
    %p118 = scmp.eq.s32.totalorder %s10, 1
    %p119 = por %p117, %p118
    %p120 = scmp.ne.s32.totalorder %s112, %s115
    %p121 = scmp.eq.s32.totalorder %s10, 0
    %p122 = por %p120, %p121
    %p123 = scmp.ne.s32.totalorder %s112, %s115
    %p124 = scmp.eq.s32.totalorder %s15, 1
    %p125 = por %p123, %p124
    %p126 = scmp.ne.s32.totalorder %s115, %s116
    %p127 = scmp.eq.s32.totalorder %s15, 0
    %p128 = por %p126, %p127
    %p129 = scmp.ne.s32.totalorder %s115, %s116
    %p130 = scmp.eq.s32.totalorder %s16, 1
    %p131 = por %p129, %p130
    %p133 = scmp.ne.s32.totalorder %s116, %s132
    %p134 = scmp.eq.s32.totalorder %s16, 0
    %p135 = por %p133, %p134
    %s136 = ssub.s32 %s18, %s25
    %s137 = ssub.s32 %s17, %s29
    %s138 = sor.u32 %s136, %s137
    %p139 = scmp.eq.s32.totalorder %s138, 0
    %s141 = sadd.s32 %s140, 1
    %s142 = scalar_select %p139, %s140, %s141
    %p145 = pneg %p139
    %p146 = scmp.eq.s32.totalorder %s10, 1
    %p147 = por %p145, %p146
    %p148 = scmp.ne.s32.totalorder %s140, %s143
    %p149 = scmp.eq.s32.totalorder %s10, 0
    %p150 = por %p148, %p149
    %p151 = scmp.ne.s32.totalorder %s140, %s143
    %p152 = scmp.eq.s32.totalorder %s15, 1
    %p153 = por %p151, %p152
    %p154 = scmp.ne.s32.totalorder %s143, %s144
    %p155 = scmp.eq.s32.totalorder %s15, 0
    %p156 = por %p154, %p155
    %p157 = scmp.ne.s32.totalorder %s143, %s144
    %p158 = scmp.eq.s32.totalorder %s16, 1
    %p159 = por %p157, %p158
    %p161 = scmp.ne.s32.totalorder %s144, %s160
    %p162 = scmp.eq.s32.totalorder %s16, 0
    %p163 = por %p161, %p162
    %p164 = scmp.le.s32.totalorder 1, %s10
    %p165 = scmp.lt.s32.totalorder %s10, 3
    %p166 = pnand %p164, %p165
    %p167 = pneg %p166
    // Predicated region
    $region9: #{hoi_vision_transformer_forward.18} parent=5 // pred_check
      _
    $region10: #{hoi_vision_transformer_forward.18} parent=5 // pred_check_branch
      %169 = sbr.rel (%p166) target = $region12
    $region11: #{hoi_vision_transformer_forward.18} parent=5 // pred_region
      %s170 = ssub.s32 %s10, 1
      // Predicated region
      $region13: #{hoi_vision_transformer_forward.18} parent=11 // pred_check
        %p171 = pneg %p74
      $region14: #{hoi_vision_transformer_forward.18} parent=11 // pred_check_branch
        %173 = sbr.rel (%p171) target = $region16
      $region15: #{hoi_vision_transformer_forward.18} parent=11 // pred_region
        %p174 = scmp.lt.s32.totalorder %s19, 0
        %s175 = scalar_select %p174, %s19, 0
        %s176 = smul.addr %s175, 4
        %s177 = scalar_lea.vmem %s1, %s176
      $region16: #{hoi_vision_transformer_forward.18} parent=11 // pred_fallthru
        _
      // Predicated region
      $region17: #{hoi_vision_transformer_forward.18} parent=11 // pred_check
        %p178 = pneg %p100
      $region18: #{hoi_vision_transformer_forward.18} parent=11 // pred_check_branch
        %180 = sbr.rel (%p178) target = $region20
      $region19: #{hoi_vision_transformer_forward.18} parent=11 // pred_region
        %p181 = scmp.lt.s32.totalorder %s19, 0
        %s182 = scalar_select %p181, %s19, 0
        %s183 = scalar_lea.vmem %s2, %s182
      $region20: #{hoi_vision_transformer_forward.18} parent=11 // pred_fallthru
        _
    $region12: #{hoi_vision_transformer_forward.18} parent=5 // pred_fallthru
      _
    %p184 = scmp.lt.s32.totalorder %s10, 2
    // Predicated region
    $region21: #{hoi_vision_transformer_forward.18} parent=5 // pred_check
      %p185 = pneg %p184
    $region22: #{hoi_vision_transformer_forward.18} parent=5 // pred_check_branch
      %187 = sbr.rel (%p185) target = $region24
    $region23: #{hoi_vision_transformer_forward.18} parent=5 // pred_region
      // Predicated region
      $region25: #{hoi_vision_transformer_forward.18} parent=23 // pred_check
        %p188 = pneg %p42
      $region26: #{hoi_vision_transformer_forward.18} parent=23 // pred_check_branch
        %190 = sbr.rel (%p188) target = $region28
      $region27: #{hoi_vision_transformer_forward.18} parent=23 // pred_region
        %p191 = scmp.lt.s32.totalorder %s18, 1
        %s192 = scalar_select %p191, %s18, 1
        %s193 = smul.addr %s192, 8
        %s194 = scalar_lea.vmem %s0, %s193
      $region28: #{hoi_vision_transformer_forward.18} parent=23 // pred_fallthru
        _
      // Predicated region
      $region29: #{hoi_vision_transformer_forward.18} parent=23 // pred_check
        %p195 = pneg %p122
      $region30: #{hoi_vision_transformer_forward.18} parent=23 // pred_check_branch
        %197 = sbr.rel (%p195) target = $region32
      $region31: #{hoi_vision_transformer_forward.18} parent=23 // pred_region
        %p198 = scmp.lt.s32.totalorder %s18, 1
        %s199 = scalar_select %p198, %s18, 1
        %p200 = scmp.lt.s32.totalorder %s17, 0
        %s201 = scalar_select %p200, %s17, 0
        %s202 = sadd.s32 %s201, %s199
        %s203 = smul.addr %s202, 8
        %s204 = scalar_lea.vmem %s3, %s203
      $region32: #{hoi_vision_transformer_forward.18} parent=23 // pred_fallthru
        _
    $region24: #{hoi_vision_transformer_forward.18} parent=5 // pred_fallthru
      _
    %p205 = scmp.le.s32.totalorder 1, %s10
    %p206 = scmp.lt.s32.totalorder %s10, 3
    %p207 = pnand %p205, %p206
    %p208 = pneg %p207
    // Predicated region
    $region33: #{hoi_vision_transformer_forward.18} parent=5 // pred_check
      _
    $region34: #{hoi_vision_transformer_forward.18} parent=5 // pred_check_branch
      %210 = sbr.rel (%p207) target = $region36
    $region35: #{hoi_vision_transformer_forward.18} parent=5 // pred_region
      %s211 = ssub.s32 %s10, 1
      %p212 = scmp.lt.s32.totalorder %s20, 1
      %s213 = scalar_select %p212, %s20, 1
      %s214 = smul.addr %s213, 8
      %s215 = scalar_lea.vmem %s0, %s214
      %p216 = pneg %p48
      %p217 = pneg %p45
      %p218 = scmp.lt.s32.totalorder %s19, 0
      %s219 = scalar_select %p218, %s19, 0
      %s220 = smul.addr %s219, 4
      %s221 = scalar_lea.vmem %s1, %s220
      %p222 = pneg %p74
      %p223 = pneg %p71
      %p224 = scmp.lt.s32.totalorder %s19, 0
      %s225 = scalar_select %p224, %s19, 0
      %s226 = scalar_lea.vmem %s2, %s225
      %p227 = pneg %p100
      %p228 = pneg %p97
      %p229 = scmp.lt.s32.totalorder %s20, 1
      %s230 = scalar_select %p229, %s20, 1
      %p231 = scmp.lt.s32.totalorder %s19, 0
      %s232 = scalar_select %p231, %s19, 0
      %s233 = sadd.s32 %s232, %s230
      %s234 = smul.addr %s233, 8
      %s235 = scalar_lea.vmem %s3, %s234
      %p236 = pneg %p128
      %p237 = pneg %p125
      %p238 = pneg %p156
      %p239 = pneg %p153
      %p240 = scmp.lt.s32.totalorder %s20, 1
      %s241 = scalar_select %p240, %s20, 1
      %p242 = scmp.lt.s32.totalorder %s19, 0
      %s243 = scalar_select %p242, %s19, 0
      %s244 = sadd.s32 %s243, %s241
      %s245 = smul.addr %s244, 8
      %s246 = scalar_lea.vmem %s4, %s245
      %p247 = scmp.lt.s32.totalorder %s20, 1
      %s248 = scalar_select %p247, %s20, 1
      %s249 = smul.addr %s248, 8
      %s250 = scalar_lea.vmem %s0, %s249
      %p251 = scmp.lt.s32.totalorder %s19, 0
      %s252 = scalar_select %p251, %s19, 0
      %s253 = smul.addr %s252, 4
      %s254 = scalar_lea.vmem %s1, %s253
      %p255 = scmp.lt.s32.totalorder %s19, 0
      %s256 = scalar_select %p255, %s19, 0
      %s257 = scalar_lea.vmem %s2, %s256
      %p258 = scmp.lt.s32.totalorder %s20, 1
      %s259 = scalar_select %p258, %s20, 1
      %p260 = scmp.lt.s32.totalorder %s19, 0
      %s261 = scalar_select %p260, %s19, 0
      %s262 = sadd.s32 %s261, %s259
      %s263 = smul.addr %s262, 8
      %s264 = scalar_lea.vmem %s3, %s263
      %p265 = scmp.lt.s32.totalorder %s20, 1
      %s266 = scalar_select %p265, %s20, 1
      %p267 = scmp.lt.s32.totalorder %s19, 0
      %s268 = scalar_select %p267, %s19, 0
      %s269 = sadd.s32 %s268, %s266
      %s270 = smul.addr %s269, 8
      %s271 = scalar_lea.vmem %s4, %s270
      %v272 = vld [vmem:[%s250] sm:$0xff]
      %v273 = vpack.c.bf16 %v272, %v272
      %v274 = vld [vmem:[%s254] sm:$0xf]
      %v275 = vld [vmem:[%s254 + $0x4] sm:$0xf]
      %v276 = vld [vmem:[%s254 + $0x8] sm:$0xf]
      %v277 = vld [vmem:[%s254 + $0xc] sm:$0xf]
      %v278 = vld [vmem:[%s254 + $0x10] sm:$0xf]
      %v279 = vld [vmem:[%s254 + $0x14] sm:$0xf]
      %v280 = vld [vmem:[%s254 + $0x18] sm:$0xf]
      %v281 = vld [vmem:[%s254 + $0x1c] sm:$0xf]
      %v282 = vld [vmem:[%s254 + $0x20] sm:$0xf]
      %v283 = vld [vmem:[%s254 + $0x24] sm:$0xf]
      %v284 = vld [vmem:[%s254 + $0x28] sm:$0xf]
      %v285 = vld [vmem:[%s254 + $0x2c] sm:$0xf]
      %v286 = vld [vmem:[%s254 + $0x30] sm:$0xf]
      %v287 = vld [vmem:[%s254 + $0x34] sm:$0xf]
      %v288 = vld [vmem:[%s254 + $0x38] sm:$0xf]
      %v289 = vld [vmem:[%s254 + $0x3c] sm:$0xf]
      %v290 = vld [vmem:[%s257] sm:$0x1]
      %v292 = vperm.slane %v290, 0
      %v310 = vunpack.c.l.b16 %v274
      %v311 = vunpack.c.l.b16 %v275
      %v312 = vunpack.c.l.b16 %v276
      %v313 = vunpack.c.l.b16 %v277
      %v314 = vunpack.c.l.b16 %v278
      %v315 = vunpack.c.l.b16 %v279
      %v316 = vunpack.c.l.b16 %v280
      %v317 = vunpack.c.l.b16 %v281
      %v318 = vunpack.c.l.b16 %v282
      %v319 = vunpack.c.l.b16 %v283
      %v320 = vunpack.c.l.b16 %v284
      %v321 = vunpack.c.l.b16 %v285
      %v322 = vunpack.c.l.b16 %v286
      %v323 = vunpack.c.l.b16 %v287
      %v324 = vunpack.c.l.b16 %v288
      %v325 = vunpack.c.l.b16 %v289
      %v326 = vpack.c.b16 %v311, %v310
      %v327 = vpack.c.b16 %v313, %v312
      %v328 = vpack.c.b16 %v315, %v314
      %v329 = vpack.c.b16 %v317, %v316
      %v330 = vpack.c.b16 %v319, %v318
      %v331 = vpack.c.b16 %v321, %v320
      %v332 = vpack.c.b16 %v323, %v322
      %v333 = vpack.c.b16 %v325, %v324
      %342 = vmatpush.bf16.msra.mxu0 %v333
      %343 = vmatpush.bf16.msra.mxu0 %v332
      %344 = vmatpush.bf16.msra.mxu0 %v331
      %345 = vmatpush.bf16.msra.mxu0 %v330
      %346 = vmatpush.bf16.msra.mxu0 %v329
      %347 = vmatpush.bf16.msra.mxu0 %v328
      %348 = vmatpush.bf16.msra.mxu0 %v327
      %349 = vmatpush.bf16.msra.mxu0 %v326
      %350 = vmatmul.bf16.gmra.mxu0 %v273
      %v351 = vpop.f32.mrf.mxu0
      %v352 = vadd.f32 %v292, %v351
      %v353 = vpop.f32.mrf.mxu0
      %354 = vdwg.mxu0
      %v355 = vld [vmem:[%s264] sm:$0xff]
      %v356 = vadd.f32 %v352, %v355
      %vm357 = vcmask 261120
      %358 = vst.msk [vmem:[%s271] sm:$0xff] %vm357, %v356
      %p359 = scmp.lt.s32.totalorder %s20, 1
      %s360 = scalar_select %p359, %s20, 1
      %p361 = scmp.lt.s32.totalorder %s19, 0
      %s362 = scalar_select %p361, %s19, 0
      %s363 = sadd.s32 %s362, %s360
      %s364 = smul.addr %s363, 8
      %s365 = scalar_lea.vmem %s4, %s364
      // Predicated region
      $region37: #{hoi_vision_transformer_forward.18} parent=35 // pred_check
        %p366 = pneg %p153
      $region38: #{hoi_vision_transformer_forward.18} parent=35 // pred_check_branch
        %368 = sbr.rel (%p366) target = $region40
      $region39: #{hoi_vision_transformer_forward.18} parent=35 // pred_region
        _
      $region40: #{hoi_vision_transformer_forward.18} parent=35 // pred_fallthru
        _
    $region36: #{hoi_vision_transformer_forward.18} parent=5 // pred_fallthru
      _
    %p369 = scmp.le.s32.totalorder 2, %s10
    // Predicated region
    $region41: #{hoi_vision_transformer_forward.18} parent=5 // pred_check
      %p370 = pneg %p369
    $region42: #{hoi_vision_transformer_forward.18} parent=5 // pred_check_branch
      %372 = sbr.rel (%p370) target = $region44
    $region43: #{hoi_vision_transformer_forward.18} parent=5 // pred_region
      %s373 = ssub.s32 %s10, 2
      // Predicated region
      $region45: #{hoi_vision_transformer_forward.18} parent=43 // pred_check
        %p374 = pneg %p159
      $region46: #{hoi_vision_transformer_forward.18} parent=43 // pred_check_branch
        %376 = sbr.rel (%p374) target = $region48
      $region47: #{hoi_vision_transformer_forward.18} parent=43 // pred_region
        %p377 = scmp.lt.s32.totalorder %s22, 1
        %s378 = scalar_select %p377, %s22, 1
        %p379 = scmp.lt.s32.totalorder %s21, 0
        %s380 = scalar_select %p379, %s21, 0
        %s381 = sadd.s32 %s380, %s378
        %s382 = smul.addr %s381, 8
        %s383 = scalar_lea.vmem %s4, %s382
      $region48: #{hoi_vision_transformer_forward.18} parent=43 // pred_fallthru
        _
    $region44: #{hoi_vision_transformer_forward.18} parent=5 // pred_fallthru
      _
  $region6: #{hoi_vision_transformer_forward.18} parent=0 // loop_footer
    %s14 = sadd.s32 1, %s10
  $region7: #{hoi_vision_transformer_forward.18} parent=0 // loop_footer_branch
    %9 = sbr.rel target = $region3
  $region8: #{hoi_vision_transformer_forward.18} parent=0 // loop_exit
    _

// kernel: hoi_vision_transformer_forward.16
$region0: #{hoi_vision_transformer_forward.16}
  #allocation0 [shape = 'u32[]', space=smem, size = 0x4, offset = 0x4, fixed_abs, tag = 'smem constant byte address 0x4 - core index']
  #allocation1 [shape = 'u32[72,128]{1,0:T(1,128)}', space=vmem, size = 0x9000, scoped, tag = 'internal scratch']
  %s0 = inlined_call_operand.vmem [shape: f32[2,5,32], index: 0, kind: input, shape index: {}]
  %s1 = inlined_call_operand.vmem [shape: f32[4,2,16,8], index: 1, kind: input, shape index: {}]
  %s2 = inlined_call_operand.vmem [shape: f32[4,2,16,8], index: 2, kind: input, shape index: {}]
  %s3 = inlined_call_operand.vmem [shape: f32[1,32], index: 3, kind: input, shape index: {}]
  %s4 = inlined_call_operand.vmem [shape: f32[1,32], index: 4, kind: input, shape index: {}]
  %s5 = inlined_call_operand.vmem [shape: bf16[32,32], index: 5, kind: input, shape index: {}]
  %s6 = inlined_call_operand.vmem [shape: f32[1,32], index: 6, kind: input, shape index: {}]
  %s7 = inlined_call_operand.vmem [shape: bf16[32,32], index: 7, kind: input, shape index: {}]
  %s8 = inlined_call_operand.vmem [shape: f32[1,32], index: 8, kind: input, shape index: {}]
  %s9 = inlined_call_operand.vmem [shape: f32[2,5,32], index: 9, kind: output, shape index: {}]
  %s10 = sld [smem:[#allocation0]]
  $region145: #{hoi_vision_transformer_forward.16} parent=0
    _
  %s12 = ssub.s32 1, %s10
  %s13 = scalar_select 0, %s12, %s10
  $region1: #{hoi_vision_transformer_forward.16} parent=0
    #allocation2 [shape = 'u8[65536]{0}', space=vmem, size = 0x10000, scoped, tag = 'input window, operand 1']
    #allocation3 [shape = 'u8[65536]{0}', space=vmem, size = 0x10000, scoped, tag = 'input window, operand 2']
    loop: start=0, step=1, limit=4
    $region2: #{hoi_vision_transformer_forward.16} parent=1 // loop_pre_header
      _
    $region3: #{hoi_vision_transformer_forward.16} parent=1 // loop_header
      %s15 = sphi 0, %s19
      %p16 = scmp.ge.s32.totalorder %s15, 4
      %s25 = sphi 0, %s27
      %s28 = sphi 0, %s25
      %s29 = sphi 0, %s28
      %s45 = sphi 0, %s29
      %s51 = sphi 0, %s53
      %s54 = sphi 0, %s51
      %s55 = sphi 0, %s54
      %s71 = sphi 0, %s55
      %s77 = sphi 0, %s79
      %s80 = sphi 0, %s77
      %s81 = sphi 0, %s80
      %s97 = sphi 0, %s81
      %s101 = sphi 0, %s101
      %s103 = sphi 0, %s101
      %s104 = sphi 0, %s103
      %s118 = sphi 0, %s104
      %s122 = sphi 0, %s122
      %s124 = sphi 0, %s122
      %s125 = sphi 0, %s124
      %s139 = sphi 0, %s125
      %s143 = sphi 0, %s143
      %s145 = sphi 0, %s143
      %s146 = sphi 0, %s145
      %s160 = sphi 0, %s146
      %s164 = sphi 0, %s164
      %s166 = sphi 0, %s164
      %s167 = sphi 0, %s166
      %s181 = sphi 0, %s167
      %s185 = sphi 0, %s185
      %s187 = sphi 0, %s185
      %s188 = sphi 0, %s187
      %s202 = sphi 0, %s188
      %s206 = sphi 0, %s206
      %s208 = sphi 0, %s206
      %s209 = sphi 0, %s208
      %s223 = sphi 0, %s209
      %s229 = sphi 0, %s231
      %s232 = sphi 0, %s229
      %s233 = sphi 0, %s232
      %s249 = sphi 0, %s233
    $region4: #{hoi_vision_transformer_forward.16} parent=1 // loop_header_branch
      %18 = sbr.rel (%p16) target = $region8
    $region5: #{hoi_vision_transformer_forward.16} parent=1 // loop_body
      %s20 = ssub.s32 %s15, 1
      %s21 = ssub.s32 %s15, 2
      %s22 = sadd.s32 %s15, 1
      %s23 = ssub.s32 %s15, %s22
      %p24 = scmp.eq.s32.totalorder %s23, 0
      %s26 = sadd.s32 %s25, 1
      %s27 = scalar_select %p24, %s25, %s26
      %p30 = pneg %p24
      %p31 = scmp.eq.s32.totalorder %s15, 1
      %p32 = por %p30, %p31
      %p33 = scmp.ne.s32.totalorder %s25, %s28
      %p34 = scmp.eq.s32.totalorder %s15, 0
      %p35 = por %p33, %p34
      %p36 = scmp.ne.s32.totalorder %s25, %s28
      %p37 = scmp.eq.s32.totalorder %s20, 1
      %p38 = por %p36, %p37
      %p39 = scmp.ne.s32.totalorder %s28, %s29
      %p40 = scmp.eq.s32.totalorder %s20, 0
      %p41 = por %p39, %p40
      %p42 = scmp.ne.s32.totalorder %s28, %s29
      %p43 = scmp.eq.s32.totalorder %s21, 1
      %p44 = por %p42, %p43
      %p46 = scmp.ne.s32.totalorder %s29, %s45
      %p47 = scmp.eq.s32.totalorder %s21, 0
      %p48 = por %p46, %p47
      %s49 = ssub.s32 %s15, %s22
      %p50 = scmp.eq.s32.totalorder %s49, 0
      %s52 = sadd.s32 %s51, 1
      %s53 = scalar_select %p50, %s51, %s52
      %p56 = pneg %p50
      %p57 = scmp.eq.s32.totalorder %s15, 1
      %p58 = por %p56, %p57
      %p59 = scmp.ne.s32.totalorder %s51, %s54
      %p60 = scmp.eq.s32.totalorder %s15, 0
      %p61 = por %p59, %p60
      %p62 = scmp.ne.s32.totalorder %s51, %s54
      %p63 = scmp.eq.s32.totalorder %s20, 1
      %p64 = por %p62, %p63
      %p65 = scmp.ne.s32.totalorder %s54, %s55
      %p66 = scmp.eq.s32.totalorder %s20, 0
      %p67 = por %p65, %p66
      %p68 = scmp.ne.s32.totalorder %s54, %s55
      %p69 = scmp.eq.s32.totalorder %s21, 1
      %p70 = por %p68, %p69
      %p72 = scmp.ne.s32.totalorder %s55, %s71
      %p73 = scmp.eq.s32.totalorder %s21, 0
      %p74 = por %p72, %p73
      %s75 = ssub.s32 %s15, %s22
      %p76 = scmp.eq.s32.totalorder %s75, 0
      %s78 = sadd.s32 %s77, 1
      %s79 = scalar_select %p76, %s77, %s78
      %p82 = pneg %p76
      %p83 = scmp.eq.s32.totalorder %s15, 1
      %p84 = por %p82, %p83
      %p85 = scmp.ne.s32.totalorder %s77, %s80
      %p86 = scmp.eq.s32.totalorder %s15, 0
      %p87 = por %p85, %p86
      %p88 = scmp.ne.s32.totalorder %s77, %s80
      %p89 = scmp.eq.s32.totalorder %s20, 1
      %p90 = por %p88, %p89
      %p91 = scmp.ne.s32.totalorder %s80, %s81
      %p92 = scmp.eq.s32.totalorder %s20, 0
      %p93 = por %p91, %p92
      %p94 = scmp.ne.s32.totalorder %s80, %s81
      %p95 = scmp.eq.s32.totalorder %s21, 1
      %p96 = por %p94, %p95
      %p98 = scmp.ne.s32.totalorder %s81, %s97
      %p99 = scmp.eq.s32.totalorder %s21, 0
      %p100 = por %p98, %p99
      %s102 = sadd.s32 %s101, 1
      %p105 = scmp.eq.s32.totalorder %s15, 1
      %p106 = scmp.ne.s32.totalorder %s101, %s103
      %p107 = scmp.eq.s32.totalorder %s15, 0
      %p108 = por %p106, %p107
      %p109 = scmp.ne.s32.totalorder %s101, %s103
      %p110 = scmp.eq.s32.totalorder %s20, 1
      %p111 = por %p109, %p110
      %p112 = scmp.ne.s32.totalorder %s103, %s104
      %p113 = scmp.eq.s32.totalorder %s20, 0
      %p114 = por %p112, %p113
      %p115 = scmp.ne.s32.totalorder %s103, %s104
      %p116 = scmp.eq.s32.totalorder %s21, 1
      %p117 = por %p115, %p116
      %p119 = scmp.ne.s32.totalorder %s104, %s118
      %p120 = scmp.eq.s32.totalorder %s21, 0
      %p121 = por %p119, %p120
      %s123 = sadd.s32 %s122, 1
      %p126 = scmp.eq.s32.totalorder %s15, 1
      %p127 = scmp.ne.s32.totalorder %s122, %s124
      %p128 = scmp.eq.s32.totalorder %s15, 0
      %p129 = por %p127, %p128
      %p130 = scmp.ne.s32.totalorder %s122, %s124
      %p131 = scmp.eq.s32.totalorder %s20, 1
      %p132 = por %p130, %p131
      %p133 = scmp.ne.s32.totalorder %s124, %s125
      %p134 = scmp.eq.s32.totalorder %s20, 0
      %p135 = por %p133, %p134
      %p136 = scmp.ne.s32.totalorder %s124, %s125
      %p137 = scmp.eq.s32.totalorder %s21, 1
      %p138 = por %p136, %p137
      %p140 = scmp.ne.s32.totalorder %s125, %s139
      %p141 = scmp.eq.s32.totalorder %s21, 0
      %p142 = por %p140, %p141
      %s144 = sadd.s32 %s143, 1
      %p147 = scmp.eq.s32.totalorder %s15, 1
      %p148 = scmp.ne.s32.totalorder %s143, %s145
      %p149 = scmp.eq.s32.totalorder %s15, 0
      %p150 = por %p148, %p149
      %p151 = scmp.ne.s32.totalorder %s143, %s145
      %p152 = scmp.eq.s32.totalorder %s20, 1
      %p153 = por %p151, %p152
      %p154 = scmp.ne.s32.totalorder %s145, %s146
      %p155 = scmp.eq.s32.totalorder %s20, 0
      %p156 = por %p154, %p155
      %p157 = scmp.ne.s32.totalorder %s145, %s146
      %p158 = scmp.eq.s32.totalorder %s21, 1
      %p159 = por %p157, %p158
      %p161 = scmp.ne.s32.totalorder %s146, %s160
      %p162 = scmp.eq.s32.totalorder %s21, 0
      %p163 = por %p161, %p162
      %s165 = sadd.s32 %s164, 1
      %p168 = scmp.eq.s32.totalorder %s15, 1
      %p169 = scmp.ne.s32.totalorder %s164, %s166
      %p170 = scmp.eq.s32.totalorder %s15, 0
      %p171 = por %p169, %p170
      %p172 = scmp.ne.s32.totalorder %s164, %s166
      %p173 = scmp.eq.s32.totalorder %s20, 1
      %p174 = por %p172, %p173
      %p175 = scmp.ne.s32.totalorder %s166, %s167
      %p176 = scmp.eq.s32.totalorder %s20, 0
      %p177 = por %p175, %p176
      %p178 = scmp.ne.s32.totalorder %s166, %s167
      %p179 = scmp.eq.s32.totalorder %s21, 1
      %p180 = por %p178, %p179
      %p182 = scmp.ne.s32.totalorder %s167, %s181
      %p183 = scmp.eq.s32.totalorder %s21, 0
      %p184 = por %p182, %p183
      %s186 = sadd.s32 %s185, 1
      %p189 = scmp.eq.s32.totalorder %s15, 1
      %p190 = scmp.ne.s32.totalorder %s185, %s187
      %p191 = scmp.eq.s32.totalorder %s15, 0
      %p192 = por %p190, %p191
      %p193 = scmp.ne.s32.totalorder %s185, %s187
      %p194 = scmp.eq.s32.totalorder %s20, 1
      %p195 = por %p193, %p194
      %p196 = scmp.ne.s32.totalorder %s187, %s188
      %p197 = scmp.eq.s32.totalorder %s20, 0
      %p198 = por %p196, %p197
      %p199 = scmp.ne.s32.totalorder %s187, %s188
      %p200 = scmp.eq.s32.totalorder %s21, 1
      %p201 = por %p199, %p200
      %p203 = scmp.ne.s32.totalorder %s188, %s202
      %p204 = scmp.eq.s32.totalorder %s21, 0
      %p205 = por %p203, %p204
      %s207 = sadd.s32 %s206, 1
      %p210 = scmp.eq.s32.totalorder %s15, 1
      %p211 = scmp.ne.s32.totalorder %s206, %s208
      %p212 = scmp.eq.s32.totalorder %s15, 0
      %p213 = por %p211, %p212
      %p214 = scmp.ne.s32.totalorder %s206, %s208
      %p215 = scmp.eq.s32.totalorder %s20, 1
      %p216 = por %p214, %p215
      %p217 = scmp.ne.s32.totalorder %s208, %s209
      %p218 = scmp.eq.s32.totalorder %s20, 0
      %p219 = por %p217, %p218
      %p220 = scmp.ne.s32.totalorder %s208, %s209
      %p221 = scmp.eq.s32.totalorder %s21, 1
      %p222 = por %p220, %p221
      %p224 = scmp.ne.s32.totalorder %s209, %s223
      %p225 = scmp.eq.s32.totalorder %s21, 0
      %p226 = por %p224, %p225
      %s227 = ssub.s32 %s15, %s22
      %p228 = scmp.eq.s32.totalorder %s227, 0
      %s230 = sadd.s32 %s229, 1
      %s231 = scalar_select %p228, %s229, %s230
      %p234 = pneg %p228
      %p235 = scmp.eq.s32.totalorder %s15, 1
      %p236 = por %p234, %p235
      %p237 = scmp.ne.s32.totalorder %s229, %s232
      %p238 = scmp.eq.s32.totalorder %s15, 0
      %p239 = por %p237, %p238
      %p240 = scmp.ne.s32.totalorder %s229, %s232
      %p241 = scmp.eq.s32.totalorder %s20, 1
      %p242 = por %p240, %p241
      %p243 = scmp.ne.s32.totalorder %s232, %s233
      %p244 = scmp.eq.s32.totalorder %s20, 0
      %p245 = por %p243, %p244
      %p246 = scmp.ne.s32.totalorder %s232, %s233
      %p247 = scmp.eq.s32.totalorder %s21, 1
      %p248 = por %p246, %p247
      %p250 = scmp.ne.s32.totalorder %s233, %s249
      %p251 = scmp.eq.s32.totalorder %s21, 0
      %p252 = por %p250, %p251
      %p253 = scmp.le.s32.totalorder 1, %s15
      %p254 = scmp.lt.s32.totalorder %s15, 3
      %p255 = pnand %p253, %p254
      %p256 = pneg %p255
      // Predicated region
      $region9: #{hoi_vision_transformer_forward.16} parent=5 // pred_check
        _
      $region10: #{hoi_vision_transformer_forward.16} parent=5 // pred_check_branch
        %258 = sbr.rel (%p255) target = $region12
      $region11: #{hoi_vision_transformer_forward.16} parent=5 // pred_region
        %s259 = ssub.s32 %s15, 1
        // Predicated region
        $region13: #{hoi_vision_transformer_forward.16} parent=11 // pred_check
          %p260 = pneg %p114
        $region14: #{hoi_vision_transformer_forward.16} parent=11 // pred_check_branch
          %262 = sbr.rel (%p260) target = $region16
        $region15: #{hoi_vision_transformer_forward.16} parent=11 // pred_region
          _
        $region16: #{hoi_vision_transformer_forward.16} parent=11 // pred_fallthru
          _
        // Predicated region
        $region17: #{hoi_vision_transformer_forward.16} parent=11 // pred_check
          %p263 = pneg %p135
        $region18: #{hoi_vision_transformer_forward.16} parent=11 // pred_check_branch
          %265 = sbr.rel (%p263) target = $region20
        $region19: #{hoi_vision_transformer_forward.16} parent=11 // pred_region
          _
        $region20: #{hoi_vision_transformer_forward.16} parent=11 // pred_fallthru
          _
        // Predicated region
        $region21: #{hoi_vision_transformer_forward.16} parent=11 // pred_check
          %p266 = pneg %p156
        $region22: #{hoi_vision_transformer_forward.16} parent=11 // pred_check_branch
          %268 = sbr.rel (%p266) target = $region24
        $region23: #{hoi_vision_transformer_forward.16} parent=11 // pred_region
          _
        $region24: #{hoi_vision_transformer_forward.16} parent=11 // pred_fallthru
          _
        // Predicated region
        $region25: #{hoi_vision_transformer_forward.16} parent=11 // pred_check
          %p269 = pneg %p177
        $region26: #{hoi_vision_transformer_forward.16} parent=11 // pred_check_branch
          %271 = sbr.rel (%p269) target = $region28
        $region27: #{hoi_vision_transformer_forward.16} parent=11 // pred_region
          _
        $region28: #{hoi_vision_transformer_forward.16} parent=11 // pred_fallthru
          _
        // Predicated region
        $region29: #{hoi_vision_transformer_forward.16} parent=11 // pred_check
          %p272 = pneg %p198
        $region30: #{hoi_vision_transformer_forward.16} parent=11 // pred_check_branch
          %274 = sbr.rel (%p272) target = $region32
        $region31: #{hoi_vision_transformer_forward.16} parent=11 // pred_region
          _
        $region32: #{hoi_vision_transformer_forward.16} parent=11 // pred_fallthru
          _
        // Predicated region
        $region33: #{hoi_vision_transformer_forward.16} parent=11 // pred_check
          %p275 = pneg %p219
        $region34: #{hoi_vision_transformer_forward.16} parent=11 // pred_check_branch
          %277 = sbr.rel (%p275) target = $region36
        $region35: #{hoi_vision_transformer_forward.16} parent=11 // pred_region
          _
        $region36: #{hoi_vision_transformer_forward.16} parent=11 // pred_fallthru
          _
      $region12: #{hoi_vision_transformer_forward.16} parent=5 // pred_fallthru
        _
      %p278 = scmp.lt.s32.totalorder %s15, 2
      // Predicated region
      $region37: #{hoi_vision_transformer_forward.16} parent=5 // pred_check
        %p279 = pneg %p278
      $region38: #{hoi_vision_transformer_forward.16} parent=5 // pred_check_branch
        %281 = sbr.rel (%p279) target = $region40
      $region39: #{hoi_vision_transformer_forward.16} parent=5 // pred_region
        // Predicated region
        $region41: #{hoi_vision_transformer_forward.16} parent=39 // pred_check
          %p282 = pneg %p35
        $region42: #{hoi_vision_transformer_forward.16} parent=39 // pred_check_branch
          %284 = sbr.rel (%p282) target = $region44
        $region43: #{hoi_vision_transformer_forward.16} parent=39 // pred_region
          %p285 = scmp.lt.s32.totalorder %s15, 1
          %s286 = scalar_select %p285, %s15, 1
          %s287 = smul.addr %s286, 8
          %s288 = scalar_lea.vmem %s0, %s287
        $region44: #{hoi_vision_transformer_forward.16} parent=39 // pred_fallthru
          _
        // Predicated region
        $region45: #{hoi_vision_transformer_forward.16} parent=39 // pred_check
          %p289 = pneg %p61
        $region46: #{hoi_vision_transformer_forward.16} parent=39 // pred_check_branch
          %291 = sbr.rel (%p289) target = $region48
        $region47: #{hoi_vision_transformer_forward.16} parent=39 // pred_region
          %s292 = sand.u32 %s51, 1
          %s293 = sand.u32 %s51, 1
          %s294 = smul.addr %s293, 64
          %s295 = scalar_lea.vmem [#allocation2], %s294
          %s296 = smul.addr %s15, 2
          %s297 = smul.addr %s296, 8
          %s298 = scalar_lea.vmem %s1, %s297
          // Predicated region
          $region49: #{hoi_vision_transformer_forward.16} parent=47 // pred_check
            _
          $region50: #{hoi_vision_transformer_forward.16} parent=47 // pred_check_branch
            %300 = sbr.rel (0) target = $region52
          $region51: #{hoi_vision_transformer_forward.16} parent=47 // pred_region
            // Predicated region
            $region53: #{hoi_vision_transformer_forward.16} parent=51 // pred_check
              _
            $region54: #{hoi_vision_transformer_forward.16} parent=51 // pred_check_branch
              %302 = sbr.rel (0) target = $region56
            $region55: #{hoi_vision_transformer_forward.16} parent=51 // pred_region
              // Predicated region
              $region68: #{hoi_vision_transformer_forward.16} parent=55 // pred_check
                _
              $region69: #{hoi_vision_transformer_forward.16} parent=55 // pred_check_branch
                %332 = sbr.rel (0) target = $region71
              $region70: #{hoi_vision_transformer_forward.16} parent=55 // pred_region
                loop: start=0, step=1, limit=1
                $region72: #{hoi_vision_transformer_forward.16} parent=70 // loop_pre_header
                  _
                $region73: #{hoi_vision_transformer_forward.16} parent=70 // loop_header
                  %s334 = sphi 0, %s338
                  %p335 = scmp.ge.s32.totalorder %s334, 1
                  %s339 = sphi %s298, %s298
                  %s340 = sphi %s295, %s295
                $region74: #{hoi_vision_transformer_forward.16} parent=70 // loop_header_branch
                  %337 = sbr.rel (%p335) target = $region78
                $region75: #{hoi_vision_transformer_forward.16} parent=70 // loop_body
                  %v341 = vld [vmem:[%s339] sm:$0xff]
                  %342 = vst [vmem:[%s340] sm:$0xff] %v341
                  %v343 = vld [vmem:[%s339 + $0x8] sm:$0xff]
                  %344 = vst [vmem:[%s340 + $0x8] sm:$0xff] %v343
                  %v345 = vld [vmem:[%s339 + $0x20] sm:$0xff]
                  %346 = vst [vmem:[%s340 + $0x10] sm:$0xff] %v345
                  %v347 = vld [vmem:[%s339 + $0x28] sm:$0xff]
                  %348 = vst [vmem:[%s340 + $0x18] sm:$0xff] %v347
                  %v349 = vld [vmem:[%s339 + $0x40] sm:$0xff]
                  %350 = vst [vmem:[%s340 + $0x20] sm:$0xff] %v349
                  %v351 = vld [vmem:[%s339 + $0x48] sm:$0xff]
                  %352 = vst [vmem:[%s340 + $0x28] sm:$0xff] %v351
                  %v353 = vld [vmem:[%s339 + $0x60] sm:$0xff]
                  %354 = vst [vmem:[%s340 + $0x30] sm:$0xff] %v353
                  %v355 = vld [vmem:[%s339 + $0x68] sm:$0xff]
                  %356 = vst [vmem:[%s340 + $0x38] sm:$0xff] %v355
                $region76: #{hoi_vision_transformer_forward.16} parent=70 // loop_footer
                  %s338 = sadd.s32 1, %s334
                $region77: #{hoi_vision_transformer_forward.16} parent=70 // loop_footer_branch
                  %333 = sbr.rel target = $region73
                $region78: #{hoi_vision_transformer_forward.16} parent=70 // loop_exit
                  _
              $region71: #{hoi_vision_transformer_forward.16} parent=55 // pred_fallthru
                _
              // Predicated region
              $region79: #{hoi_vision_transformer_forward.16} parent=55 // pred_check
                _
              $region80: #{hoi_vision_transformer_forward.16} parent=55 // pred_check_branch
                %358 = sbr.rel target = $region82
              $region81: #{hoi_vision_transformer_forward.16} parent=55 // pred_region
                _
              $region82: #{hoi_vision_transformer_forward.16} parent=55 // pred_fallthru
                _
            $region56: #{hoi_vision_transformer_forward.16} parent=51 // pred_fallthru
              _
            // Predicated region
            $region57: #{hoi_vision_transformer_forward.16} parent=51 // pred_check
              _
            $region58: #{hoi_vision_transformer_forward.16} parent=51 // pred_check_branch
              %304 = sbr.rel target = $region60
            $region59: #{hoi_vision_transformer_forward.16} parent=51 // pred_region
              %s306 = ssub.s32 256, 1
              loop: start=0, step=1, limit=1
              $region61: #{hoi_vision_transformer_forward.16} parent=59 // loop_pre_header
                _
              $region62: #{hoi_vision_transformer_forward.16} parent=59 // loop_header
                %s308 = sphi 0, %s312
                %p309 = scmp.ge.s32.totalorder %s308, 1
                %s313 = sphi %s298, %s298
                %s314 = sphi %s295, %s295
              $region63: #{hoi_vision_transformer_forward.16} parent=59 // loop_header_branch
                %311 = sbr.rel (%p309) target = $region67
              $region64: #{hoi_vision_transformer_forward.16} parent=59 // loop_body
                %v315 = vld [vmem:[%s313] sm:%s306]
                %316 = vst [vmem:[%s314] sm:%s306] %v315
                %v317 = vld [vmem:[%s313 + $0x8] sm:%s306]
                %318 = vst [vmem:[%s314 + $0x8] sm:%s306] %v317
                %v319 = vld [vmem:[%s313 + $0x20] sm:%s306]
                %320 = vst [vmem:[%s314 + $0x10] sm:%s306] %v319
                %v321 = vld [vmem:[%s313 + $0x28] sm:%s306]
                %322 = vst [vmem:[%s314 + $0x18] sm:%s306] %v321
                %v323 = vld [vmem:[%s313 + $0x40] sm:%s306]
                %324 = vst [vmem:[%s314 + $0x20] sm:%s306] %v323
                %v325 = vld [vmem:[%s313 + $0x48] sm:%s306]
                %326 = vst [vmem:[%s314 + $0x28] sm:%s306] %v325
                %v327 = vld [vmem:[%s313 + $0x60] sm:%s306]
                %328 = vst [vmem:[%s314 + $0x30] sm:%s306] %v327
                %v329 = vld [vmem:[%s313 + $0x68] sm:%s306]
                %330 = vst [vmem:[%s314 + $0x38] sm:%s306] %v329
              $region65: #{hoi_vision_transformer_forward.16} parent=59 // loop_footer
                %s312 = sadd.s32 1, %s308
              $region66: #{hoi_vision_transformer_forward.16} parent=59 // loop_footer_branch
                %307 = sbr.rel target = $region62
              $region67: #{hoi_vision_transformer_forward.16} parent=59 // loop_exit
                _
            $region60: #{hoi_vision_transformer_forward.16} parent=51 // pred_fallthru
              _
          $region52: #{hoi_vision_transformer_forward.16} parent=47 // pred_fallthru
            _
          %359 = vnop
        $region48: #{hoi_vision_transformer_forward.16} parent=39 // pred_fallthru
          _
        // Predicated region
        $region83: #{hoi_vision_transformer_forward.16} parent=39 // pred_check
          %p360 = pneg %p87
        $region84: #{hoi_vision_transformer_forward.16} parent=39 // pred_check_branch
          %362 = sbr.rel (%p360) target = $region86
        $region85: #{hoi_vision_transformer_forward.16} parent=39 // pred_region
          %s363 = sand.u32 %s77, 1
          %s364 = sand.u32 %s77, 1
          %s365 = smul.addr %s364, 64
          %s366 = scalar_lea.vmem [#allocation3], %s365
          %s367 = smul.addr %s15, 2
          %s368 = smul.addr %s367, 8
          %s369 = scalar_lea.vmem %s2, %s368
          // Predicated region
          $region87: #{hoi_vision_transformer_forward.16} parent=85 // pred_check
            _
          $region88: #{hoi_vision_transformer_forward.16} parent=85 // pred_check_branch
            %371 = sbr.rel (0) target = $region90
          $region89: #{hoi_vision_transformer_forward.16} parent=85 // pred_region
            // Predicated region
            $region91: #{hoi_vision_transformer_forward.16} parent=89 // pred_check
              _
            $region92: #{hoi_vision_transformer_forward.16} parent=89 // pred_check_branch
              %373 = sbr.rel (0) target = $region94
            $region93: #{hoi_vision_transformer_forward.16} parent=89 // pred_region
              // Predicated region
              $region106: #{hoi_vision_transformer_forward.16} parent=93 // pred_check
                _
              $region107: #{hoi_vision_transformer_forward.16} parent=93 // pred_check_branch
                %403 = sbr.rel (0) target = $region109
              $region108: #{hoi_vision_transformer_forward.16} parent=93 // pred_region
                loop: start=0, step=1, limit=1
                $region110: #{hoi_vision_transformer_forward.16} parent=108 // loop_pre_header
                  _
                $region111: #{hoi_vision_transformer_forward.16} parent=108 // loop_header
                  %s405 = sphi 0, %s409
                  %p406 = scmp.ge.s32.totalorder %s405, 1
                  %s410 = sphi %s369, %s369
                  %s411 = sphi %s366, %s366
                $region112: #{hoi_vision_transformer_forward.16} parent=108 // loop_header_branch
                  %408 = sbr.rel (%p406) target = $region116
                $region113: #{hoi_vision_transformer_forward.16} parent=108 // loop_body
                  %v412 = vld [vmem:[%s410] sm:$0xff]
                  %413 = vst [vmem:[%s411] sm:$0xff] %v412
                  %v414 = vld [vmem:[%s410 + $0x8] sm:$0xff]
                  %415 = vst [vmem:[%s411 + $0x8] sm:$0xff] %v414
                  %v416 = vld [vmem:[%s410 + $0x20] sm:$0xff]
                  %417 = vst [vmem:[%s411 + $0x10] sm:$0xff] %v416
                  %v418 = vld [vmem:[%s410 + $0x28] sm:$0xff]
                  %419 = vst [vmem:[%s411 + $0x18] sm:$0xff] %v418
                  %v420 = vld [vmem:[%s410 + $0x40] sm:$0xff]
                  %421 = vst [vmem:[%s411 + $0x20] sm:$0xff] %v420
                  %v422 = vld [vmem:[%s410 + $0x48] sm:$0xff]
                  %423 = vst [vmem:[%s411 + $0x28] sm:$0xff] %v422
                  %v424 = vld [vmem:[%s410 + $0x60] sm:$0xff]
                  %425 = vst [vmem:[%s411 + $0x30] sm:$0xff] %v424
                  %v426 = vld [vmem:[%s410 + $0x68] sm:$0xff]
                  %427 = vst [vmem:[%s411 + $0x38] sm:$0xff] %v426
                $region114: #{hoi_vision_transformer_forward.16} parent=108 // loop_footer
                  %s409 = sadd.s32 1, %s405
                $region115: #{hoi_vision_transformer_forward.16} parent=108 // loop_footer_branch
                  %404 = sbr.rel target = $region111
                $region116: #{hoi_vision_transformer_forward.16} parent=108 // loop_exit
                  _
              $region109: #{hoi_vision_transformer_forward.16} parent=93 // pred_fallthru
                _
              // Predicated region
              $region117: #{hoi_vision_transformer_forward.16} parent=93 // pred_check
                _
              $region118: #{hoi_vision_transformer_forward.16} parent=93 // pred_check_branch
                %429 = sbr.rel target = $region120
              $region119: #{hoi_vision_transformer_forward.16} parent=93 // pred_region
                _
              $region120: #{hoi_vision_transformer_forward.16} parent=93 // pred_fallthru
                _
            $region94: #{hoi_vision_transformer_forward.16} parent=89 // pred_fallthru
              _
            // Predicated region
            $region95: #{hoi_vision_transformer_forward.16} parent=89 // pred_check
              _
            $region96: #{hoi_vision_transformer_forward.16} parent=89 // pred_check_branch
              %375 = sbr.rel target = $region98
            $region97: #{hoi_vision_transformer_forward.16} parent=89 // pred_region
              %s377 = ssub.s32 256, 1
              loop: start=0, step=1, limit=1
              $region99: #{hoi_vision_transformer_forward.16} parent=97 // loop_pre_header
                _
              $region100: #{hoi_vision_transformer_forward.16} parent=97 // loop_header
                %s379 = sphi 0, %s383
                %p380 = scmp.ge.s32.totalorder %s379, 1
                %s384 = sphi %s369, %s369
                %s385 = sphi %s366, %s366
              $region101: #{hoi_vision_transformer_forward.16} parent=97 // loop_header_branch
                %382 = sbr.rel (%p380) target = $region105
              $region102: #{hoi_vision_transformer_forward.16} parent=97 // loop_body
                %v386 = vld [vmem:[%s384] sm:%s377]
                %387 = vst [vmem:[%s385] sm:%s377] %v386
                %v388 = vld [vmem:[%s384 + $0x8] sm:%s377]
                %389 = vst [vmem:[%s385 + $0x8] sm:%s377] %v388
                %v390 = vld [vmem:[%s384 + $0x20] sm:%s377]
                %391 = vst [vmem:[%s385 + $0x10] sm:%s377] %v390
                %v392 = vld [vmem:[%s384 + $0x28] sm:%s377]
                %393 = vst [vmem:[%s385 + $0x18] sm:%s377] %v392
                %v394 = vld [vmem:[%s384 + $0x40] sm:%s377]
                %395 = vst [vmem:[%s385 + $0x20] sm:%s377] %v394
                %v396 = vld [vmem:[%s384 + $0x48] sm:%s377]
                %397 = vst [vmem:[%s385 + $0x28] sm:%s377] %v396
                %v398 = vld [vmem:[%s384 + $0x60] sm:%s377]
                %399 = vst [vmem:[%s385 + $0x30] sm:%s377] %v398
                %v400 = vld [vmem:[%s384 + $0x68] sm:%s377]
                %401 = vst [vmem:[%s385 + $0x38] sm:%s377] %v400
              $region103: #{hoi_vision_transformer_forward.16} parent=97 // loop_footer
                %s383 = sadd.s32 1, %s379
              $region104: #{hoi_vision_transformer_forward.16} parent=97 // loop_footer_branch
                %378 = sbr.rel target = $region100
              $region105: #{hoi_vision_transformer_forward.16} parent=97 // loop_exit
                _
            $region98: #{hoi_vision_transformer_forward.16} parent=89 // pred_fallthru
              _
          $region90: #{hoi_vision_transformer_forward.16} parent=85 // pred_fallthru
            _
          %430 = vnop
        $region86: #{hoi_vision_transformer_forward.16} parent=39 // pred_fallthru
          _
      $region40: #{hoi_vision_transformer_forward.16} parent=5 // pred_fallthru
        _
      %p431 = scmp.le.s32.totalorder 1, %s15
      %p432 = scmp.lt.s32.totalorder %s15, 3
      %p433 = pnand %p431, %p432
      %p434 = pneg %p433
      // Predicated region
      $region121: #{hoi_vision_transformer_forward.16} parent=5 // pred_check
        _
      $region122: #{hoi_vision_transformer_forward.16} parent=5 // pred_check_branch
        %436 = sbr.rel (%p433) target = $region124
      $region123: #{hoi_vision_transformer_forward.16} parent=5 // pred_region
        %s437 = ssub.s32 %s15, 1
        %s438 = sand.u32 %s54, 1
        %s439 = sand.u32 %s54, 1
        %s440 = smul.addr %s439, 64
        %s441 = scalar_lea.vmem [#allocation2], %s440
        // Predicated region
        $region125: #{hoi_vision_transformer_forward.16} parent=123 // pred_check
          %p442 = pneg %p67
        $region126: #{hoi_vision_transformer_forward.16} parent=123 // pred_check_branch
          %444 = sbr.rel (%p442) target = $region128
        $region127: #{hoi_vision_transformer_forward.16} parent=123 // pred_region
          _
        $region128: #{hoi_vision_transformer_forward.16} parent=123 // pred_fallthru
          _
        %s445 = sand.u32 %s80, 1
        %s446 = sand.u32 %s80, 1
        %s447 = smul.addr %s446, 64
        %s448 = scalar_lea.vmem [#allocation3], %s447
        // Predicated region
        $region129: #{hoi_vision_transformer_forward.16} parent=123 // pred_check
          %p449 = pneg %p93
        $region130: #{hoi_vision_transformer_forward.16} parent=123 // pred_check_branch
          %451 = sbr.rel (%p449) target = $region132
        $region131: #{hoi_vision_transformer_forward.16} parent=123 // pred_region
          _
        $region132: #{hoi_vision_transformer_forward.16} parent=123 // pred_fallthru
          _
        %p452 = scmp.lt.s32.totalorder %s20, 1
        %s453 = scalar_select %p452, %s20, 1
        %s454 = smul.addr %s453, 8
        %s455 = scalar_lea.vmem %s0, %s454
        %p456 = pneg %p41
        %p457 = pneg %p38
        %s458 = sand.u32 %s54, 1
        %s459 = sand.u32 %s54, 1
        %s460 = smul.addr %s459, 64
        %s461 = scalar_lea.vmem [#allocation2], %s460
        %p462 = pneg %p67
        %p463 = pneg %p64
        %s464 = sand.u32 %s80, 1
        %s465 = sand.u32 %s80, 1
        %s466 = smul.addr %s465, 64
        %s467 = scalar_lea.vmem [#allocation3], %s466
        %p468 = pneg %p93
        %p469 = pneg %p90
        %p470 = pneg %p114
        %p471 = pneg %p111
        %p472 = pneg %p135
        %p473 = pneg %p132
        %p474 = pneg %p156
        %p475 = pneg %p153
        %p476 = pneg %p177
        %p477 = pneg %p174
        %p478 = pneg %p198
        %p479 = pneg %p195
        %p480 = pneg %p219
        %p481 = pneg %p216
        %p482 = pneg %p245
        %p483 = pneg %p242
        %p484 = scmp.lt.s32.totalorder %s20, 1
        %s485 = scalar_select %p484, %s20, 1
        %s486 = smul.addr %s485, 8
        %s487 = scalar_lea.vmem %s9, %s486
        %p488 = scmp.lt.s32.totalorder %s20, 1
        %s489 = scalar_select %p488, %s20, 1
        %s490 = smul.addr %s489, 8
        %s491 = scalar_lea.vmem %s0, %s490
        %p492 = scmp.lt.s32.totalorder %s20, 1
        %s493 = scalar_select %p492, %s20, 1
        %s494 = smul.addr %s493, 8
        %s495 = scalar_lea.vmem %s9, %s494
        %v497 = vld [vmem:[%s491] sm:$0x1f]
        %vm498 = vcmask 258048
        %v499 = vsel %vm498, %v497, 0.0
        %500 = vadd.xlane.f32.xlu0 %v499
        %v501 = vpop.xlane.xlu0 %500
        %v502 = vrcp.pop 32.0
        %v503 = vmul.f32 32.0, %v502
        %v504 = vsub.f32 1.0, %v503
        %v505 = vmul.f32 %v502, %v504
        %v506 = vadd.f32 %v502, %v505
        %vm507 = vweird.f32 %v502
        %v508 = vsel %vm507, %v502, %v506
        %v509 = vmul.f32 %v501, %v508
        %v510 = vsub.f32 %v497, %v509
        %v511 = vmul.f32 %v510, %v510
        %v512 = vsel %vm498, %v511, 0.0
        %513 = vadd.xlane.f32.xlu0 %v512
        %v514 = vpop.xlane.xlu0 %513
        %v515 = vmul.f32 %v514, %v508
        %v516 = vadd.f32 %v515, 1e-05
        %v517 = vrsqrt.pop %v516
        %v518 = vmul.f32 %v517, %v516
        %v519 = vmul.f32 %v518, %v517
        %v520 = vmul.f32 0.5, %v519
        %v521 = vsub.f32 1.5, %v520
        %v522 = vmul.f32 %v517, %v521
        %vm523 = vweird.f32 %v516
        %vm524 = vweird.f32 %v517
        %vm525 = vmor %vm523, %vm524
        %v526 = vsel %vm525, %v517, %v522
        %v527 = vmul.f32 %v510, %v526
        %v528 = vld [vmem:[%s3] sm:$0x1]
        %v530 = vperm.slane %v528, 0
        %v532 = vmul.f32 %v527, %v530
        %v533 = vld [vmem:[%s4] sm:$0x1]
        %v535 = vperm.slane %v533, 0
        %v537 = vadd.f32 %v532, %v535
        %v538 = vpack.c.bf16 %v537, %v537
        %v539 = vld [vmem:[%s5] sm:$0xf]
        %v540 = vld [vmem:[%s5 + $0x4] sm:$0xf]
        %v541 = vld [vmem:[%s5 + $0x8] sm:$0xf]
        %v542 = vld [vmem:[%s5 + $0xc] sm:$0xf]
        %v543 = vld [vmem:[%s6] sm:$0x1]
        %v545 = vperm.slane %v543, 0
        %v551 = vunpack.c.l.b16 %v539
        %v552 = vunpack.c.l.b16 %v540
        %v553 = vunpack.c.l.b16 %v541
        %v554 = vunpack.c.l.b16 %v542
        %v555 = vpack.c.b16 %v552, %v551
        %v556 = vpack.c.b16 %v554, %v553
        %vm559 = vcmask 261120
        %v561 = vsel %vm559, %v538, 0
        %563 = vmatpush.bf16.msra.mxu0 0
        %564 = vmatpush.bf16.msra.mxu0 0
        %565 = vmatpush.bf16.msra.mxu0 0
        %566 = vmatpush.bf16.msra.mxu0 0
        %567 = vmatpush.bf16.msra.mxu0 0
        %568 = vmatpush.bf16.msra.mxu0 0
        %569 = vmatpush.bf16.msra.mxu0 %v556
        %570 = vmatpush.bf16.msra.mxu0 %v555
        %571 = vmatmul.bf16.gmra.mxu0 %v561
        %v572 = vpop.f32.mrf.mxu0
        %v573 = vadd.f32 %v545, %v572
        %v574 = vpop.f32.mrf.mxu0
        %575 = vdwg.mxu0
        %v576 = vmul.f32 %v573, 0.35355338
        %v577 = vld [vmem:[%s441] sm:$0xff]
        %v578 = vld [vmem:[%s441 + $0x8] sm:$0xff]
        %v579 = vpack.c.bf16 %v577, %v577
        %v580 = vpack.c.bf16 %v578, %v578
        %v581 = vld [vmem:[%s448] sm:$0xff]
        %v582 = vld [vmem:[%s448 + $0x8] sm:$0xff]
        %v583 = vpack.c.bf16 %v581, %v581
        %v584 = vpack.c.bf16 %v582, %v582
        %v585 = vpack.c.bf16 %v576, %v576
        %v588 = vunpack.c.l.b16 %v579
        %v589 = vunpack.c.l.b16 %v580
        %v590 = vpack.c.b16 %v589, %v588
        %vm591 = vcmask 64512
        %v593 = vsel %vm591, %v585, 0
        %v596 = vsel %vm591, %v590, 0
        %598 = vmatpush.bf16.xpose.msra.mxu0 0
        %599 = vmatpush.bf16.xpose.msra.mxu0 0
        %600 = vmatpush.bf16.xpose.msra.mxu0 0
        %601 = vmatpush.bf16.xpose.msra.mxu0 0
        %602 = vmatpush.bf16.xpose.msra.mxu0 0
        %603 = vmatpush.bf16.xpose.msra.mxu0 0
        %604 = vmatpush.bf16.xpose.msra.mxu0 0
        %605 = vmatpush.bf16.xpose.msra.mxu0 %v596
        %606 = vmatmul.bf16.gmra.mxu0 %v593
        %v607 = vpop.f32.mrf.mxu0
        %v608 = vadd.f32 0.0, %v607
        %v609 = vpop.f32.mrf.mxu0
        %610 = vdwg.mxu0
        %vm611 = vcmask 126976
        %v612 = vsel %vm611, %v608, -inf
        %613 = vmax.xlane.f32.xlu0 %v612
        %v614 = vpop.xlane.xlu0 %613
        %v615 = vsub.f32 %v608, %v614
        %v616 = vmul.f32 %v615, 1.442695
        %v617 = vpow.pop %v616
        %v618 = vsel %vm611, %v617, 0.0
        %619 = vadd.xlane.f32.xlu0 %v618
        %v620 = vpop.xlane.xlu0 %619
        %v621 = vrcp.pop %v620
        %v622 = vmul.f32 %v617, %v621
        %v623 = vpack.c.bf16 %v622, %v622
        %v626 = vunpack.c.l.b16 %v583
        %v627 = vunpack.c.l.b16 %v584
        %v628 = vpack.c.b16 %v627, %v626
        %vm630 = vcmask 130048
        %v632 = vsel %vm630, %v623, 0
        %634 = vmatpush.bf16.msra.mxu0 0
        %635 = vmatpush.bf16.msra.mxu0 0
        %636 = vmatpush.bf16.msra.mxu0 0
        %637 = vmatpush.bf16.msra.mxu0 0
        %638 = vmatpush.bf16.msra.mxu0 0
        %639 = vmatpush.bf16.msra.mxu0 0
        %640 = vmatpush.bf16.msra.mxu0 0
        %641 = vmatpush.bf16.msra.mxu0 %v628
        %642 = vmatmul.bf16.gmra.mxu0 %v632
        %v643 = vpop.f32.mrf.mxu0
        %v644 = vadd.f32 0.0, %v643
        %v645 = vpop.f32.mrf.mxu0
        %646 = vdwg.mxu0
        %v647 = vpack.c.bf16 %v644, %v644
        %v648 = vld [vmem:[%s7] sm:$0xf]
        %s649 = scalar_lea.vmem %s441, 16 [#allocation2]
        %v650 = vld [vmem:[%s649] sm:$0xff]
        %v651 = vld [vmem:[%s649 + $0x8] sm:$0xff]
        %v652 = vpack.c.bf16 %v650, %v650
        %v653 = vpack.c.bf16 %v651, %v651
        %s654 = scalar_lea.vmem %s448, 16 [#allocation3]
        %v655 = vld [vmem:[%s654] sm:$0xff]
        %v656 = vld [vmem:[%s654 + $0x8] sm:$0xff]
        %v657 = vpack.c.bf16 %v655, %v655
        %v658 = vpack.c.bf16 %v656, %v656
        %v660 = vunpack.c.l.b16 %v585
        %v661 = vpack.c.b16 %v660, %v660
        %662 = vrot.lane.b32.xlu0 %v661, 120
        %v663 = vpop.permute.xlu0 %662
        %v666 = vunpack.c.l.b16 %v652
        %v667 = vunpack.c.l.b16 %v653
        %v668 = vpack.c.b16 %v667, %v666
        %v670 = vsel %vm591, %v663, 0
        %v673 = vsel %vm591, %v668, 0
        %675 = vmatpush.bf16.xpose.msra.mxu0 0
        %676 = vmatpush.bf16.xpose.msra.mxu0 0
        %677 = vmatpush.bf16.xpose.msra.mxu0 0
        %678 = vmatpush.bf16.xpose.msra.mxu0 0
        %679 = vmatpush.bf16.xpose.msra.mxu0 0
        %680 = vmatpush.bf16.xpose.msra.mxu0 0
        %681 = vmatpush.bf16.xpose.msra.mxu0 0
        %682 = vmatpush.bf16.xpose.msra.mxu0 %v673
        %683 = vmatmul.bf16.gmra.mxu0 %v670
        %v684 = vpop.f32.mrf.mxu0
        %v685 = vadd.f32 0.0, %v684
        %v686 = vpop.f32.mrf.mxu0
        %687 = vdwg.mxu0
        %v688 = vsel %vm611, %v685, -inf
        %689 = vmax.xlane.f32.xlu0 %v688
        %v690 = vpop.xlane.xlu0 %689
        %v691 = vsub.f32 %v685, %v690
        %v692 = vmul.f32 %v691, 1.442695
        %v693 = vpow.pop %v692
        %v694 = vsel %vm611, %v693, 0.0
        %695 = vadd.xlane.f32.xlu0 %v694
        %v696 = vpop.xlane.xlu0 %695
        %v697 = vrcp.pop %v696
        %v698 = vmul.f32 %v693, %v697
        %v699 = vpack.c.bf16 %v698, %v698
        %v702 = vunpack.c.l.b16 %v657
        %v703 = vunpack.c.l.b16 %v658
        %v704 = vpack.c.b16 %v703, %v702
        %v707 = vsel %vm630, %v699, 0
        %709 = vmatpush.bf16.msra.mxu0 0
        %710 = vmatpush.bf16.msra.mxu0 0
        %711 = vmatpush.bf16.msra.mxu0 0
        %712 = vmatpush.bf16.msra.mxu0 0
        %713 = vmatpush.bf16.msra.mxu0 0
        %714 = vmatpush.bf16.msra.mxu0 0
        %715 = vmatpush.bf16.msra.mxu0 0
        %716 = vmatpush.bf16.msra.mxu0 %v704
        %717 = vmatmul.bf16.gmra.mxu0 %v707
        %v718 = vpop.f32.mrf.mxu0
        %v719 = vadd.f32 0.0, %v718
        %v720 = vpop.f32.mrf.mxu0
        %721 = vdwg.mxu0
        %v722 = vpack.c.bf16 %v719, %v719
        %v723 = vld [vmem:[%s7 + $0x4] sm:$0xf]
        %v725 = vsel %vm591, %v722, 0
        %vm727 = vcmask 1043456
        %v729 = vsel %vm727, %v723, 0
        %731 = vmatpush.bf16.msra.mxu0 0
        %732 = vmatpush.bf16.msra.mxu0 0
        %733 = vmatpush.bf16.msra.mxu0 0
        %734 = vmatpush.bf16.msra.mxu0 0
        %735 = vmatpush.bf16.msra.mxu0 0
        %736 = vmatpush.bf16.msra.mxu0 0
        %737 = vmatpush.bf16.msra.mxu0 0
        %738 = vmatpush.bf16.msra.mxu0 %v729
        %739 = vmatmul.bf16.gmra.mxu0 %v725
        %v740 = vpop.f32.mrf.mxu0
        %v741 = vadd.f32 0.0, %v740
        %v742 = vpop.f32.mrf.mxu0
        %743 = vdwg.mxu0
        %v745 = vsel %vm591, %v647, 0
        %v748 = vsel %vm727, %v648, 0
        %750 = vmatpush.bf16.msra.mxu0 0
        %751 = vmatpush.bf16.msra.mxu0 0
        %752 = vmatpush.bf16.msra.mxu0 0
        %753 = vmatpush.bf16.msra.mxu0 0
        %754 = vmatpush.bf16.msra.mxu0 0
        %755 = vmatpush.bf16.msra.mxu0 0
        %756 = vmatpush.bf16.msra.mxu0 0
        %757 = vmatpush.bf16.msra.mxu0 %v748
        %758 = vmatmul.bf16.gmra.mxu0 %v745
        %v759 = vpop.f32.mrf.mxu0
        %v760 = vadd.f32 %v741, %v759
        %v761 = vpop.f32.mrf.mxu0
        %762 = vdwg.mxu0
        %s763 = scalar_lea.vmem %s441, 32 [#allocation2]
        %v764 = vld [vmem:[%s763] sm:$0xff]
        %v765 = vld [vmem:[%s763 + $0x8] sm:$0xff]
        %v766 = vpack.c.bf16 %v764, %v764
        %v767 = vpack.c.bf16 %v765, %v765
        %s768 = scalar_lea.vmem %s448, 32 [#allocation3]
        %v769 = vld [vmem:[%s768] sm:$0xff]
        %v770 = vld [vmem:[%s768 + $0x8] sm:$0xff]
        %v771 = vpack.c.bf16 %v769, %v769
        %v772 = vpack.c.bf16 %v770, %v770
        %773 = vrot.lane.b32.xlu0 %v661, 112
        %v774 = vpop.permute.xlu0 %773
        %v777 = vunpack.c.l.b16 %v766
        %v778 = vunpack.c.l.b16 %v767
        %v779 = vpack.c.b16 %v778, %v777
        %v781 = vsel %vm591, %v774, 0
        %v784 = vsel %vm591, %v779, 0
        %786 = vmatpush.bf16.xpose.msra.mxu0 0
        %787 = vmatpush.bf16.xpose.msra.mxu0 0
        %788 = vmatpush.bf16.xpose.msra.mxu0 0
        %789 = vmatpush.bf16.xpose.msra.mxu0 0
        %790 = vmatpush.bf16.xpose.msra.mxu0 0
        %791 = vmatpush.bf16.xpose.msra.mxu0 0
        %792 = vmatpush.bf16.xpose.msra.mxu0 0
        %793 = vmatpush.bf16.xpose.msra.mxu0 %v784
        %794 = vmatmul.bf16.gmra.mxu0 %v781
        %v795 = vpop.f32.mrf.mxu0
        %v796 = vadd.f32 0.0, %v795
        %v797 = vpop.f32.mrf.mxu0
        %798 = vdwg.mxu0
        %v799 = vsel %vm611, %v796, -inf
        %800 = vmax.xlane.f32.xlu0 %v799
        %v801 = vpop.xlane.xlu0 %800
        %v802 = vsub.f32 %v796, %v801
        %v803 = vmul.f32 %v802, 1.442695
        %v804 = vpow.pop %v803
        %v805 = vsel %vm611, %v804, 0.0
        %806 = vadd.xlane.f32.xlu0 %v805
        %v807 = vpop.xlane.xlu0 %806
        %v808 = vrcp.pop %v807
        %v809 = vmul.f32 %v804, %v808
        %v810 = vpack.c.bf16 %v809, %v809
        %v813 = vunpack.c.l.b16 %v771
        %v814 = vunpack.c.l.b16 %v772
        %v815 = vpack.c.b16 %v814, %v813
        %v818 = vsel %vm630, %v810, 0
        %820 = vmatpush.bf16.msra.mxu0 0
        %821 = vmatpush.bf16.msra.mxu0 0
        %822 = vmatpush.bf16.msra.mxu0 0
        %823 = vmatpush.bf16.msra.mxu0 0
        %824 = vmatpush.bf16.msra.mxu0 0
        %825 = vmatpush.bf16.msra.mxu0 0
        %826 = vmatpush.bf16.msra.mxu0 0
        %827 = vmatpush.bf16.msra.mxu0 %v815
        %828 = vmatmul.bf16.gmra.mxu0 %v818
        %v829 = vpop.f32.mrf.mxu0
        %v830 = vadd.f32 0.0, %v829
        %v831 = vpop.f32.mrf.mxu0
        %832 = vdwg.mxu0
        %v833 = vpack.c.bf16 %v830, %v830
        %v834 = vld [vmem:[%s7 + $0x8] sm:$0xf]
        %v836 = vsel %vm591, %v833, 0
        %v839 = vsel %vm727, %v834, 0
        %841 = vmatpush.bf16.msra.mxu0 0
        %842 = vmatpush.bf16.msra.mxu0 0
        %843 = vmatpush.bf16.msra.mxu0 0
        %844 = vmatpush.bf16.msra.mxu0 0
        %845 = vmatpush.bf16.msra.mxu0 0
        %846 = vmatpush.bf16.msra.mxu0 0
        %847 = vmatpush.bf16.msra.mxu0 0
        %848 = vmatpush.bf16.msra.mxu0 %v839
        %849 = vmatmul.bf16.gmra.mxu0 %v836
        %v850 = vpop.f32.mrf.mxu0
        %v851 = vadd.f32 0.0, %v850
        %v852 = vpop.f32.mrf.mxu0
        %853 = vdwg.mxu0
        %v854 = vadd.f32 %v760, %v851
        %s855 = scalar_lea.vmem %s441, 48 [#allocation2]
        %v856 = vld [vmem:[%s855] sm:$0xff]
        %v857 = vld [vmem:[%s855 + $0x8] sm:$0xff]
        %v858 = vpack.c.bf16 %v856, %v856
        %v859 = vpack.c.bf16 %v857, %v857
        %s860 = scalar_lea.vmem %s448, 48 [#allocation3]
        %v861 = vld [vmem:[%s860] sm:$0xff]
        %v862 = vld [vmem:[%s860 + $0x8] sm:$0xff]
        %v863 = vpack.c.bf16 %v861, %v861
        %v864 = vpack.c.bf16 %v862, %v862
        %865 = vrot.lane.b32.xlu0 %v661, 104
        %v866 = vpop.permute.xlu0 %865
        %v869 = vunpack.c.l.b16 %v858
        %v870 = vunpack.c.l.b16 %v859
        %v871 = vpack.c.b16 %v870, %v869
        %v873 = vsel %vm591, %v866, 0
        %v876 = vsel %vm591, %v871, 0
        %878 = vmatpush.bf16.xpose.msra.mxu0 0
        %879 = vmatpush.bf16.xpose.msra.mxu0 0
        %880 = vmatpush.bf16.xpose.msra.mxu0 0
        %881 = vmatpush.bf16.xpose.msra.mxu0 0
        %882 = vmatpush.bf16.xpose.msra.mxu0 0
        %883 = vmatpush.bf16.xpose.msra.mxu0 0
        %884 = vmatpush.bf16.xpose.msra.mxu0 0
        %885 = vmatpush.bf16.xpose.msra.mxu0 %v876
        %886 = vmatmul.bf16.gmra.mxu0 %v873
        %v887 = vpop.f32.mrf.mxu0
        %v888 = vadd.f32 0.0, %v887
        %v889 = vpop.f32.mrf.mxu0
        %890 = vdwg.mxu0
        %v891 = vsel %vm611, %v888, -inf
        %892 = vmax.xlane.f32.xlu0 %v891
        %v893 = vpop.xlane.xlu0 %892
        %v894 = vsub.f32 %v888, %v893
        %v895 = vmul.f32 %v894, 1.442695
        %v896 = vpow.pop %v895
        %v897 = vsel %vm611, %v896, 0.0
        %898 = vadd.xlane.f32.xlu0 %v897
        %v899 = vpop.xlane.xlu0 %898
        %v900 = vrcp.pop %v899
        %v901 = vmul.f32 %v896, %v900
        %v902 = vpack.c.bf16 %v901, %v901
        %v905 = vunpack.c.l.b16 %v863
        %v906 = vunpack.c.l.b16 %v864
        %v907 = vpack.c.b16 %v906, %v905
        %v910 = vsel %vm630, %v902, 0
        %912 = vmatpush.bf16.msra.mxu0 0
        %913 = vmatpush.bf16.msra.mxu0 0
        %914 = vmatpush.bf16.msra.mxu0 0
        %915 = vmatpush.bf16.msra.mxu0 0
        %916 = vmatpush.bf16.msra.mxu0 0
        %917 = vmatpush.bf16.msra.mxu0 0
        %918 = vmatpush.bf16.msra.mxu0 0
        %919 = vmatpush.bf16.msra.mxu0 %v907
        %920 = vmatmul.bf16.gmra.mxu0 %v910
        %v921 = vpop.f32.mrf.mxu0
        %v922 = vadd.f32 0.0, %v921
        %v923 = vpop.f32.mrf.mxu0
        %924 = vdwg.mxu0
        %v925 = vpack.c.bf16 %v922, %v922
        %v926 = vld [vmem:[%s7 + $0xc] sm:$0xf]
        %v928 = vsel %vm591, %v925, 0
        %v931 = vsel %vm727, %v926, 0
        %933 = vmatpush.bf16.msra.mxu0 0
        %934 = vmatpush.bf16.msra.mxu0 0
        %935 = vmatpush.bf16.msra.mxu0 0
        %936 = vmatpush.bf16.msra.mxu0 0
        %937 = vmatpush.bf16.msra.mxu0 0
        %938 = vmatpush.bf16.msra.mxu0 0
        %939 = vmatpush.bf16.msra.mxu0 0
        %940 = vmatpush.bf16.msra.mxu0 %v931
        %941 = vmatmul.bf16.gmra.mxu0 %v928
        %v942 = vpop.f32.mrf.mxu0
        %v943 = vadd.f32 0.0, %v942
        %v944 = vpop.f32.mrf.mxu0
        %945 = vdwg.mxu0
        %v946 = vadd.f32 %v854, %v943
        %v947 = vld [vmem:[%s8] sm:$0x1]
        %v949 = vperm.slane %v947, 0
        %v951 = vadd.f32 %v946, %v949
        %v952 = vadd.f32 %v951, %v497
        %953 = vst.msk [vmem:[%s495] sm:$0x1f] %vm498, %v952
        %p954 = scmp.lt.s32.totalorder %s20, 1
        %s955 = scalar_select %p954, %s20, 1
        %s956 = smul.addr %s955, 8
        %s957 = scalar_lea.vmem %s9, %s956
        // Predicated region
        $region133: #{hoi_vision_transformer_forward.16} parent=123 // pred_check
          %p958 = pneg %p242
        $region134: #{hoi_vision_transformer_forward.16} parent=123 // pred_check_branch
          %960 = sbr.rel (%p958) target = $region136
        $region135: #{hoi_vision_transformer_forward.16} parent=123 // pred_region
          _
        $region136: #{hoi_vision_transformer_forward.16} parent=123 // pred_fallthru
          _
      $region124: #{hoi_vision_transformer_forward.16} parent=5 // pred_fallthru
        _
      %p961 = scmp.le.s32.totalorder 2, %s15
      // Predicated region
      $region137: #{hoi_vision_transformer_forward.16} parent=5 // pred_check
        %p962 = pneg %p961
      $region138: #{hoi_vision_transformer_forward.16} parent=5 // pred_check_branch
        %964 = sbr.rel (%p962) target = $region140
      $region139: #{hoi_vision_transformer_forward.16} parent=5 // pred_region
        %s965 = ssub.s32 %s15, 2
        // Predicated region
        $region141: #{hoi_vision_transformer_forward.16} parent=139 // pred_check
          %p966 = pneg %p248
        $region142: #{hoi_vision_transformer_forward.16} parent=139 // pred_check_branch
          %968 = sbr.rel (%p966) target = $region144
        $region143: #{hoi_vision_transformer_forward.16} parent=139 // pred_region
          %p969 = scmp.lt.s32.totalorder %s21, 1
          %s970 = scalar_select %p969, %s21, 1
          %s971 = smul.addr %s970, 8
          %s972 = scalar_lea.vmem %s9, %s971
        $region144: #{hoi_vision_transformer_forward.16} parent=139 // pred_fallthru
          _
      $region140: #{hoi_vision_transformer_forward.16} parent=5 // pred_fallthru
        _
    $region6: #{hoi_vision_transformer_forward.16} parent=1 // loop_footer
      %s19 = sadd.s32 1, %s15
    $region7: #{hoi_vision_transformer_forward.16} parent=1 // loop_footer_branch
      %14 = sbr.rel target = $region3
    $region8: #{hoi_vision_transformer_forward.16} parent=1 // loop_exit
      _

// kernel: hoi_vision_transformer_forward.19
$region0: #{hoi_vision_transformer_forward.19}
  #allocation0 [shape = 'u32[]', space=smem, size = 0x4, offset = 0x4, fixed_abs, tag = 'smem constant byte address 0x4 - core index']
  #allocation1 [shape = 'u32[72,128]{1,0:T(1,128)}', space=vmem, size = 0x9000, scoped, tag = 'internal scratch']
  %s0 = inlined_call_operand.vmem [shape: f32[2,5,32], index: 0, kind: input, shape index: {}]
  %s1 = inlined_call_operand.vmem [shape: f32[5,5], index: 1, kind: input, shape index: {}]
  %s2 = inlined_call_operand.vmem [shape: f32[1,32], index: 2, kind: input, shape index: {}]
  %s3 = inlined_call_operand.vmem [shape: f32[1,32], index: 3, kind: input, shape index: {}]
  %s4 = inlined_call_operand.vmem [shape: bf16[32,96], index: 4, kind: input, shape index: {}]
  %s5 = inlined_call_operand.vmem [shape: f32[1,96], index: 5, kind: input, shape index: {}]
  %s6 = inlined_call_operand.vmem [shape: bf16[32,32], index: 6, kind: input, shape index: {}]
  %s7 = inlined_call_operand.vmem [shape: f32[1,32], index: 7, kind: input, shape index: {}]
  %s8 = inlined_call_operand.vmem [shape: f32[2,5,32], index: 8, kind: output, shape index: {}]
  %s9 = sld [smem:[#allocation0]]
  $region65: #{hoi_vision_transformer_forward.19} parent=0
    _
  %s11 = ssub.s32 1, %s9
  %s12 = scalar_select 0, %s11, %s9
  loop: start=0, step=1, limit=4
  $region2: #{hoi_vision_transformer_forward.19} parent=0 // loop_pre_header
    _
  $region3: #{hoi_vision_transformer_forward.19} parent=0 // loop_header
    %s14 = sphi 0, %s18
    %p15 = scmp.ge.s32.totalorder %s14, 4
    %s24 = sphi 0, %s26
    %s27 = sphi 0, %s24
    %s28 = sphi 0, %s27
    %s44 = sphi 0, %s28
    %s48 = sphi 0, %s48
    %s50 = sphi 0, %s48
    %s51 = sphi 0, %s50
    %s65 = sphi 0, %s51
    %s69 = sphi 0, %s69
    %s71 = sphi 0, %s69
    %s72 = sphi 0, %s71
    %s86 = sphi 0, %s72
    %s90 = sphi 0, %s90
    %s92 = sphi 0, %s90
    %s93 = sphi 0, %s92
    %s107 = sphi 0, %s93
    %s111 = sphi 0, %s111
    %s113 = sphi 0, %s111
    %s114 = sphi 0, %s113
    %s128 = sphi 0, %s114
    %s132 = sphi 0, %s132
    %s134 = sphi 0, %s132
    %s135 = sphi 0, %s134
    %s149 = sphi 0, %s135
    %s153 = sphi 0, %s153
    %s155 = sphi 0, %s153
    %s156 = sphi 0, %s155
    %s170 = sphi 0, %s156
    %s174 = sphi 0, %s174
    %s176 = sphi 0, %s174
    %s177 = sphi 0, %s176
    %s191 = sphi 0, %s177
    %s197 = sphi 0, %s199
    %s200 = sphi 0, %s197
    %s201 = sphi 0, %s200
    %s217 = sphi 0, %s201
  $region4: #{hoi_vision_transformer_forward.19} parent=0 // loop_header_branch
    %17 = sbr.rel (%p15) target = $region8
  $region5: #{hoi_vision_transformer_forward.19} parent=0 // loop_body
    %s19 = ssub.s32 %s14, 1
    %s20 = ssub.s32 %s14, 2
    %s21 = sadd.s32 %s14, 1
    %s22 = ssub.s32 %s14, %s21
    %p23 = scmp.eq.s32.totalorder %s22, 0
    %s25 = sadd.s32 %s24, 1
    %s26 = scalar_select %p23, %s24, %s25
    %p29 = pneg %p23
    %p30 = scmp.eq.s32.totalorder %s14, 1
    %p31 = por %p29, %p30
    %p32 = scmp.ne.s32.totalorder %s24, %s27
    %p33 = scmp.eq.s32.totalorder %s14, 0
    %p34 = por %p32, %p33
    %p35 = scmp.ne.s32.totalorder %s24, %s27
    %p36 = scmp.eq.s32.totalorder %s19, 1
    %p37 = por %p35, %p36
    %p38 = scmp.ne.s32.totalorder %s27, %s28
    %p39 = scmp.eq.s32.totalorder %s19, 0
    %p40 = por %p38, %p39
    %p41 = scmp.ne.s32.totalorder %s27, %s28
    %p42 = scmp.eq.s32.totalorder %s20, 1
    %p43 = por %p41, %p42
    %p45 = scmp.ne.s32.totalorder %s28, %s44
    %p46 = scmp.eq.s32.totalorder %s20, 0
    %p47 = por %p45, %p46
    %s49 = sadd.s32 %s48, 1
    %p52 = scmp.eq.s32.totalorder %s14, 1
    %p53 = scmp.ne.s32.totalorder %s48, %s50
    %p54 = scmp.eq.s32.totalorder %s14, 0
    %p55 = por %p53, %p54
    %p56 = scmp.ne.s32.totalorder %s48, %s50
    %p57 = scmp.eq.s32.totalorder %s19, 1
    %p58 = por %p56, %p57
    %p59 = scmp.ne.s32.totalorder %s50, %s51
    %p60 = scmp.eq.s32.totalorder %s19, 0
    %p61 = por %p59, %p60
    %p62 = scmp.ne.s32.totalorder %s50, %s51
    %p63 = scmp.eq.s32.totalorder %s20, 1
    %p64 = por %p62, %p63
    %p66 = scmp.ne.s32.totalorder %s51, %s65
    %p67 = scmp.eq.s32.totalorder %s20, 0
    %p68 = por %p66, %p67
    %s70 = sadd.s32 %s69, 1
    %p73 = scmp.eq.s32.totalorder %s14, 1
    %p74 = scmp.ne.s32.totalorder %s69, %s71
    %p75 = scmp.eq.s32.totalorder %s14, 0
    %p76 = por %p74, %p75
    %p77 = scmp.ne.s32.totalorder %s69, %s71
    %p78 = scmp.eq.s32.totalorder %s19, 1
    %p79 = por %p77, %p78
    %p80 = scmp.ne.s32.totalorder %s71, %s72
    %p81 = scmp.eq.s32.totalorder %s19, 0
    %p82 = por %p80, %p81
    %p83 = scmp.ne.s32.totalorder %s71, %s72
    %p84 = scmp.eq.s32.totalorder %s20, 1
    %p85 = por %p83, %p84
    %p87 = scmp.ne.s32.totalorder %s72, %s86
    %p88 = scmp.eq.s32.totalorder %s20, 0
    %p89 = por %p87, %p88
    %s91 = sadd.s32 %s90, 1
    %p94 = scmp.eq.s32.totalorder %s14, 1
    %p95 = scmp.ne.s32.totalorder %s90, %s92
    %p96 = scmp.eq.s32.totalorder %s14, 0
    %p97 = por %p95, %p96
    %p98 = scmp.ne.s32.totalorder %s90, %s92
    %p99 = scmp.eq.s32.totalorder %s19, 1
    %p100 = por %p98, %p99
    %p101 = scmp.ne.s32.totalorder %s92, %s93
    %p102 = scmp.eq.s32.totalorder %s19, 0
    %p103 = por %p101, %p102
    %p104 = scmp.ne.s32.totalorder %s92, %s93
    %p105 = scmp.eq.s32.totalorder %s20, 1
    %p106 = por %p104, %p105
    %p108 = scmp.ne.s32.totalorder %s93, %s107
    %p109 = scmp.eq.s32.totalorder %s20, 0
    %p110 = por %p108, %p109
    %s112 = sadd.s32 %s111, 1
    %p115 = scmp.eq.s32.totalorder %s14, 1
    %p116 = scmp.ne.s32.totalorder %s111, %s113
    %p117 = scmp.eq.s32.totalorder %s14, 0
    %p118 = por %p116, %p117
    %p119 = scmp.ne.s32.totalorder %s111, %s113
    %p120 = scmp.eq.s32.totalorder %s19, 1
    %p121 = por %p119, %p120
    %p122 = scmp.ne.s32.totalorder %s113, %s114
    %p123 = scmp.eq.s32.totalorder %s19, 0
    %p124 = por %p122, %p123
    %p125 = scmp.ne.s32.totalorder %s113, %s114
    %p126 = scmp.eq.s32.totalorder %s20, 1
    %p127 = por %p125, %p126
    %p129 = scmp.ne.s32.totalorder %s114, %s128
    %p130 = scmp.eq.s32.totalorder %s20, 0
    %p131 = por %p129, %p130
    %s133 = sadd.s32 %s132, 1
    %p136 = scmp.eq.s32.totalorder %s14, 1
    %p137 = scmp.ne.s32.totalorder %s132, %s134
    %p138 = scmp.eq.s32.totalorder %s14, 0
    %p139 = por %p137, %p138
    %p140 = scmp.ne.s32.totalorder %s132, %s134
    %p141 = scmp.eq.s32.totalorder %s19, 1
    %p142 = por %p140, %p141
    %p143 = scmp.ne.s32.totalorder %s134, %s135
    %p144 = scmp.eq.s32.totalorder %s19, 0
    %p145 = por %p143, %p144
    %p146 = scmp.ne.s32.totalorder %s134, %s135
    %p147 = scmp.eq.s32.totalorder %s20, 1
    %p148 = por %p146, %p147
    %p150 = scmp.ne.s32.totalorder %s135, %s149
    %p151 = scmp.eq.s32.totalorder %s20, 0
    %p152 = por %p150, %p151
    %s154 = sadd.s32 %s153, 1
    %p157 = scmp.eq.s32.totalorder %s14, 1
    %p158 = scmp.ne.s32.totalorder %s153, %s155
    %p159 = scmp.eq.s32.totalorder %s14, 0
    %p160 = por %p158, %p159
    %p161 = scmp.ne.s32.totalorder %s153, %s155
    %p162 = scmp.eq.s32.totalorder %s19, 1
    %p163 = por %p161, %p162
    %p164 = scmp.ne.s32.totalorder %s155, %s156
    %p165 = scmp.eq.s32.totalorder %s19, 0
    %p166 = por %p164, %p165
    %p167 = scmp.ne.s32.totalorder %s155, %s156
    %p168 = scmp.eq.s32.totalorder %s20, 1
    %p169 = por %p167, %p168
    %p171 = scmp.ne.s32.totalorder %s156, %s170
    %p172 = scmp.eq.s32.totalorder %s20, 0
    %p173 = por %p171, %p172
    %s175 = sadd.s32 %s174, 1
    %p178 = scmp.eq.s32.totalorder %s14, 1
    %p179 = scmp.ne.s32.totalorder %s174, %s176
    %p180 = scmp.eq.s32.totalorder %s14, 0
    %p181 = por %p179, %p180
    %p182 = scmp.ne.s32.totalorder %s174, %s176
    %p183 = scmp.eq.s32.totalorder %s19, 1
    %p184 = por %p182, %p183
    %p185 = scmp.ne.s32.totalorder %s176, %s177
    %p186 = scmp.eq.s32.totalorder %s19, 0
    %p187 = por %p185, %p186
    %p188 = scmp.ne.s32.totalorder %s176, %s177
    %p189 = scmp.eq.s32.totalorder %s20, 1
    %p190 = por %p188, %p189
    %p192 = scmp.ne.s32.totalorder %s177, %s191
    %p193 = scmp.eq.s32.totalorder %s20, 0
    %p194 = por %p192, %p193
    %s195 = ssub.s32 %s14, %s21
    %p196 = scmp.eq.s32.totalorder %s195, 0
    %s198 = sadd.s32 %s197, 1
    %s199 = scalar_select %p196, %s197, %s198
    %p202 = pneg %p196
    %p203 = scmp.eq.s32.totalorder %s14, 1
    %p204 = por %p202, %p203
    %p205 = scmp.ne.s32.totalorder %s197, %s200
    %p206 = scmp.eq.s32.totalorder %s14, 0
    %p207 = por %p205, %p206
    %p208 = scmp.ne.s32.totalorder %s197, %s200
    %p209 = scmp.eq.s32.totalorder %s19, 1
    %p210 = por %p208, %p209
    %p211 = scmp.ne.s32.totalorder %s200, %s201
    %p212 = scmp.eq.s32.totalorder %s19, 0
    %p213 = por %p211, %p212
    %p214 = scmp.ne.s32.totalorder %s200, %s201
    %p215 = scmp.eq.s32.totalorder %s20, 1
    %p216 = por %p214, %p215
    %p218 = scmp.ne.s32.totalorder %s201, %s217
    %p219 = scmp.eq.s32.totalorder %s20, 0
    %p220 = por %p218, %p219
    %p221 = scmp.le.s32.totalorder 1, %s14
    %p222 = scmp.lt.s32.totalorder %s14, 3
    %p223 = pnand %p221, %p222
    %p224 = pneg %p223
    // Predicated region
    $region9: #{hoi_vision_transformer_forward.19} parent=5 // pred_check
      _
    $region10: #{hoi_vision_transformer_forward.19} parent=5 // pred_check_branch
      %226 = sbr.rel (%p223) target = $region12
    $region11: #{hoi_vision_transformer_forward.19} parent=5 // pred_region
      %s227 = ssub.s32 %s14, 1
      // Predicated region
      $region13: #{hoi_vision_transformer_forward.19} parent=11 // pred_check
        %p228 = pneg %p61
      $region14: #{hoi_vision_transformer_forward.19} parent=11 // pred_check_branch
        %230 = sbr.rel (%p228) target = $region16
      $region15: #{hoi_vision_transformer_forward.19} parent=11 // pred_region
        _
      $region16: #{hoi_vision_transformer_forward.19} parent=11 // pred_fallthru
        _
      // Predicated region
      $region17: #{hoi_vision_transformer_forward.19} parent=11 // pred_check
        %p231 = pneg %p82
      $region18: #{hoi_vision_transformer_forward.19} parent=11 // pred_check_branch
        %233 = sbr.rel (%p231) target = $region20
      $region19: #{hoi_vision_transformer_forward.19} parent=11 // pred_region
        _
      $region20: #{hoi_vision_transformer_forward.19} parent=11 // pred_fallthru
        _
      // Predicated region
      $region21: #{hoi_vision_transformer_forward.19} parent=11 // pred_check
        %p234 = pneg %p103
      $region22: #{hoi_vision_transformer_forward.19} parent=11 // pred_check_branch
        %236 = sbr.rel (%p234) target = $region24
      $region23: #{hoi_vision_transformer_forward.19} parent=11 // pred_region
        _
      $region24: #{hoi_vision_transformer_forward.19} parent=11 // pred_fallthru
        _
      // Predicated region
      $region25: #{hoi_vision_transformer_forward.19} parent=11 // pred_check
        %p237 = pneg %p124
      $region26: #{hoi_vision_transformer_forward.19} parent=11 // pred_check_branch
        %239 = sbr.rel (%p237) target = $region28
      $region27: #{hoi_vision_transformer_forward.19} parent=11 // pred_region
        _
      $region28: #{hoi_vision_transformer_forward.19} parent=11 // pred_fallthru
        _
      // Predicated region
      $region29: #{hoi_vision_transformer_forward.19} parent=11 // pred_check
        %p240 = pneg %p145
      $region30: #{hoi_vision_transformer_forward.19} parent=11 // pred_check_branch
        %242 = sbr.rel (%p240) target = $region32
      $region31: #{hoi_vision_transformer_forward.19} parent=11 // pred_region
        _
      $region32: #{hoi_vision_transformer_forward.19} parent=11 // pred_fallthru
        _
      // Predicated region
      $region33: #{hoi_vision_transformer_forward.19} parent=11 // pred_check
        %p243 = pneg %p166
      $region34: #{hoi_vision_transformer_forward.19} parent=11 // pred_check_branch
        %245 = sbr.rel (%p243) target = $region36
      $region35: #{hoi_vision_transformer_forward.19} parent=11 // pred_region
        _
      $region36: #{hoi_vision_transformer_forward.19} parent=11 // pred_fallthru
        _
      // Predicated region
      $region37: #{hoi_vision_transformer_forward.19} parent=11 // pred_check
        %p246 = pneg %p187
      $region38: #{hoi_vision_transformer_forward.19} parent=11 // pred_check_branch
        %248 = sbr.rel (%p246) target = $region40
      $region39: #{hoi_vision_transformer_forward.19} parent=11 // pred_region
        _
      $region40: #{hoi_vision_transformer_forward.19} parent=11 // pred_fallthru
        _
    $region12: #{hoi_vision_transformer_forward.19} parent=5 // pred_fallthru
      _
    %p249 = scmp.lt.s32.totalorder %s14, 2
    // Predicated region
    $region41: #{hoi_vision_transformer_forward.19} parent=5 // pred_check
      %p250 = pneg %p249
    $region42: #{hoi_vision_transformer_forward.19} parent=5 // pred_check_branch
      %252 = sbr.rel (%p250) target = $region44
    $region43: #{hoi_vision_transformer_forward.19} parent=5 // pred_region
      // Predicated region
      $region45: #{hoi_vision_transformer_forward.19} parent=43 // pred_check
        %p253 = pneg %p34
      $region46: #{hoi_vision_transformer_forward.19} parent=43 // pred_check_branch
        %255 = sbr.rel (%p253) target = $region48
      $region47: #{hoi_vision_transformer_forward.19} parent=43 // pred_region
        %p256 = scmp.lt.s32.totalorder %s14, 1
        %s257 = scalar_select %p256, %s14, 1
        %s258 = smul.addr %s257, 8
        %s259 = scalar_lea.vmem %s0, %s258
      $region48: #{hoi_vision_transformer_forward.19} parent=43 // pred_fallthru
        _
    $region44: #{hoi_vision_transformer_forward.19} parent=5 // pred_fallthru
      _
    %p260 = scmp.le.s32.totalorder 1, %s14
    %p261 = scmp.lt.s32.totalorder %s14, 3
    %p262 = pnand %p260, %p261
    %p263 = pneg %p262
    // Predicated region
    $region49: #{hoi_vision_transformer_forward.19} parent=5 // pred_check
      _
    $region50: #{hoi_vision_transformer_forward.19} parent=5 // pred_check_branch
      %265 = sbr.rel (%p262) target = $region52
    $region51: #{hoi_vision_transformer_forward.19} parent=5 // pred_region
      %s266 = ssub.s32 %s14, 1
      %p267 = scmp.lt.s32.totalorder %s19, 1
      %s268 = scalar_select %p267, %s19, 1
      %s269 = smul.addr %s268, 8
      %s270 = scalar_lea.vmem %s0, %s269
      %p271 = pneg %p40
      %p272 = pneg %p37
      %p273 = pneg %p61
      %p274 = pneg %p58
      %p275 = pneg %p82
      %p276 = pneg %p79
      %p277 = pneg %p103
      %p278 = pneg %p100
      %p279 = pneg %p124
      %p280 = pneg %p121
      %p281 = pneg %p145
      %p282 = pneg %p142
      %p283 = pneg %p166
      %p284 = pneg %p163
      %p285 = pneg %p187
      %p286 = pneg %p184
      %p287 = pneg %p213
      %p288 = pneg %p210
      %p289 = scmp.lt.s32.totalorder %s19, 1
      %s290 = scalar_select %p289, %s19, 1
      %s291 = smul.addr %s290, 8
      %s292 = scalar_lea.vmem %s8, %s291
      %p293 = scmp.lt.s32.totalorder %s19, 1
      %s294 = scalar_select %p293, %s19, 1
      %s295 = smul.addr %s294, 8
      %s296 = scalar_lea.vmem %s0, %s295
      %p297 = scmp.lt.s32.totalorder %s19, 1
      %s298 = scalar_select %p297, %s19, 1
      %s299 = smul.addr %s298, 8
      %s300 = scalar_lea.vmem %s8, %s299
      %v302 = vld [vmem:[%s296] sm:$0x1f]
      %vm303 = vcmask 258048
      %v304 = vsel %vm303, %v302, 0.0
      %305 = vadd.xlane.f32.xlu0 %v304
      %v306 = vpop.xlane.xlu0 %305
      %v307 = vrcp.pop 32.0
      %v308 = vmul.f32 32.0, %v307
      %v309 = vsub.f32 1.0, %v308
      %v310 = vmul.f32 %v307, %v309
      %v311 = vadd.f32 %v307, %v310
      %vm312 = vweird.f32 %v307
      %v313 = vsel %vm312, %v307, %v311
      %v314 = vmul.f32 %v306, %v313
      %v315 = vsub.f32 %v302, %v314
      %v316 = vmul.f32 %v315, %v315
      %v317 = vsel %vm303, %v316, 0.0
      %318 = vadd.xlane.f32.xlu0 %v317
      %v319 = vpop.xlane.xlu0 %318
      %v320 = vmul.f32 %v319, %v313
      %v321 = vadd.f32 %v320, 1e-05
      %v322 = vrsqrt.pop %v321
      %v323 = vmul.f32 %v322, %v321
      %v324 = vmul.f32 %v323, %v322
      %v325 = vmul.f32 0.5, %v324
      %v326 = vsub.f32 1.5, %v325
      %v327 = vmul.f32 %v322, %v326
      %vm328 = vweird.f32 %v321
      %vm329 = vweird.f32 %v322
      %vm330 = vmor %vm328, %vm329
      %v331 = vsel %vm330, %v322, %v327
      %v332 = vmul.f32 %v315, %v331
      %v333 = vld [vmem:[%s2] sm:$0x1]
      %v335 = vperm.slane %v333, 0
      %v337 = vmul.f32 %v332, %v335
      %v338 = vld [vmem:[%s3] sm:$0x1]
      %v340 = vperm.slane %v338, 0
      %v342 = vadd.f32 %v337, %v340
      %v343 = vpack.c.bf16 %v342, %v342
      %v344 = vld [vmem:[%s4] sm:$0xf]
      %v345 = vld [vmem:[%s4 + $0x4] sm:$0xf]
      %v346 = vld [vmem:[%s4 + $0x8] sm:$0xf]
      %v347 = vld [vmem:[%s4 + $0xc] sm:$0xf]
      %v348 = vld [vmem:[%s5] sm:$0x1]
      %v350 = vperm.slane %v348, 0
      %v356 = vunpack.c.l.b16 %v344
      %v357 = vunpack.c.l.b16 %v345
      %v358 = vunpack.c.l.b16 %v346
      %v359 = vunpack.c.l.b16 %v347
      %v360 = vpack.c.b16 %v357, %v356
      %v361 = vpack.c.b16 %v359, %v358
      %vm364 = vcmask 261120
      %v366 = vsel %vm364, %v343, 0
      %368 = vmatpush.bf16.msra.mxu0 0
      %369 = vmatpush.bf16.msra.mxu0 0
      %370 = vmatpush.bf16.msra.mxu0 0
      %371 = vmatpush.bf16.msra.mxu0 0
      %372 = vmatpush.bf16.msra.mxu0 0
      %373 = vmatpush.bf16.msra.mxu0 0
      %374 = vmatpush.bf16.msra.mxu0 %v361
      %375 = vmatpush.bf16.msra.mxu0 %v360
      %376 = vmatmul.bf16.gmra.mxu0 %v366
      %v377 = vpop.f32.mrf.mxu0
      %v378 = vadd.f32 %v350, %v377
      %v379 = vpop.f32.mrf.mxu0
      %380 = vdwg.mxu0
      %v381 = vld [vmem:[%s1] sm:$0x1f]
      %v382 = vmul.f32 %v378, 0.35355338
      %v383 = vpack.c.bf16 %v382, %v382
      %v384 = vpack.c.bf16 %v378, %v378
      %v386 = vunpack.c.l.b16 %v384
      %v387 = vpack.c.b16 %v386, %v386
      %388 = vrot.lane.b32.xlu0 %v387, 96
      %v389 = vpop.permute.xlu0 %388
      %vm390 = vcmask 64512
      %v392 = vsel %vm390, %v383, 0
      %v395 = vsel %vm390, %v389, 0
      %397 = vmatpush.bf16.xpose.msra.mxu0 0
      %398 = vmatpush.bf16.xpose.msra.mxu0 0
      %399 = vmatpush.bf16.xpose.msra.mxu0 0
      %400 = vmatpush.bf16.xpose.msra.mxu0 0
      %401 = vmatpush.bf16.xpose.msra.mxu0 0
      %402 = vmatpush.bf16.xpose.msra.mxu0 0
      %403 = vmatpush.bf16.xpose.msra.mxu0 0
      %404 = vmatpush.bf16.xpose.msra.mxu0 %v395
      %405 = vmatmul.bf16.gmra.mxu0 %v392
      %v406 = vpop.f32.mrf.mxu0
      %v407 = vadd.f32 %v381, %v406
      %v408 = vpop.f32.mrf.mxu0
      %409 = vdwg.mxu0
      %vm410 = vcmask 36864
      %v411 = vsel %vm410, %v407, -inf
      %412 = vmax.xlane.f32.xlu0 %v411
      %v413 = vpop.xlane.xlu0 %412
      %v414 = vsub.f32 %v407, %v413
      %v415 = vmul.f32 %v414, 1.442695
      %v416 = vpow.pop %v415
      %v417 = vsel %vm410, %v416, 0.0
      %418 = vadd.xlane.f32.xlu0 %v417
      %v419 = vpop.xlane.xlu0 %418
      %v420 = vrcp.pop %v419
      %v421 = vmul.f32 %v416, %v420
      %v422 = vpack.c.bf16 %v421, %v421
      %423 = vrot.lane.b32.xlu0 %v387, 64
      %v424 = vpop.permute.xlu0 %423
      %vm425 = vcmask 39936
      %v427 = vsel %vm425, %v422, 0
      %vm429 = vcmask 1041408
      %vm430 = vcmask 1042432
      %v431 = vsel %vm429, 4294967295, 65535
      %v432 = vsel %vm430, %v431, 0
      %v434 = vand.u32 %v424, %v432
      %436 = vmatpush.bf16.msra.mxu0 0
      %437 = vmatpush.bf16.msra.mxu0 0
      %438 = vmatpush.bf16.msra.mxu0 0
      %439 = vmatpush.bf16.msra.mxu0 0
      %440 = vmatpush.bf16.msra.mxu0 0
      %441 = vmatpush.bf16.msra.mxu0 0
      %442 = vmatpush.bf16.msra.mxu0 0
      %443 = vmatpush.bf16.msra.mxu0 %v434
      %444 = vmatmul.bf16.gmra.mxu0 %v427
      %v445 = vpop.f32.mrf.mxu0
      %v446 = vadd.f32 0.0, %v445
      %v447 = vpop.f32.mrf.mxu0
      %448 = vdwg.mxu0
      %v449 = vpack.c.bf16 %v446, %v446
      %v450 = vld [vmem:[%s6] sm:$0xf]
      %v452 = vunpack.c.l.b16 %v383
      %v453 = vpack.c.b16 %v452, %v452
      %454 = vrot.lane.b32.xlu0 %v453, 120
      %v455 = vpop.permute.xlu0 %454
      %456 = vrot.lane.b32.xlu0 %v387, 88
      %v457 = vpop.permute.xlu0 %456
      %v459 = vsel %vm390, %v455, 0
      %v462 = vsel %vm390, %v457, 0
      %464 = vmatpush.bf16.xpose.msra.mxu0 0
      %465 = vmatpush.bf16.xpose.msra.mxu0 0
      %466 = vmatpush.bf16.xpose.msra.mxu0 0
      %467 = vmatpush.bf16.xpose.msra.mxu0 0
      %468 = vmatpush.bf16.xpose.msra.mxu0 0
      %469 = vmatpush.bf16.xpose.msra.mxu0 0
      %470 = vmatpush.bf16.xpose.msra.mxu0 0
      %471 = vmatpush.bf16.xpose.msra.mxu0 %v462
      %472 = vmatmul.bf16.gmra.mxu0 %v459
      %v473 = vpop.f32.mrf.mxu0
      %v474 = vadd.f32 %v381, %v473
      %v475 = vpop.f32.mrf.mxu0
      %476 = vdwg.mxu0
      %v477 = vsel %vm410, %v474, -inf
      %478 = vmax.xlane.f32.xlu0 %v477
      %v479 = vpop.xlane.xlu0 %478
      %v480 = vsub.f32 %v474, %v479
      %v481 = vmul.f32 %v480, 1.442695
      %v482 = vpow.pop %v481
      %v483 = vsel %vm410, %v482, 0.0
      %484 = vadd.xlane.f32.xlu0 %v483
      %v485 = vpop.xlane.xlu0 %484
      %v486 = vrcp.pop %v485
      %v487 = vmul.f32 %v482, %v486
      %v488 = vpack.c.bf16 %v487, %v487
      %489 = vrot.lane.b32.xlu0 %v387, 56
      %v490 = vpop.permute.xlu0 %489
      %v492 = vsel %vm425, %v488, 0
      %v495 = vand.u32 %v490, %v432
      %497 = vmatpush.bf16.msra.mxu0 0
      %498 = vmatpush.bf16.msra.mxu0 0
      %499 = vmatpush.bf16.msra.mxu0 0
      %500 = vmatpush.bf16.msra.mxu0 0
      %501 = vmatpush.bf16.msra.mxu0 0
      %502 = vmatpush.bf16.msra.mxu0 0
      %503 = vmatpush.bf16.msra.mxu0 0
      %504 = vmatpush.bf16.msra.mxu0 %v495
      %505 = vmatmul.bf16.gmra.mxu0 %v492
      %v506 = vpop.f32.mrf.mxu0
      %v507 = vadd.f32 0.0, %v506
      %v508 = vpop.f32.mrf.mxu0
      %509 = vdwg.mxu0
      %v510 = vpack.c.bf16 %v507, %v507
      %v511 = vld [vmem:[%s6 + $0x4] sm:$0xf]
      %v513 = vsel %vm390, %v510, 0
      %vm515 = vcmask 1043456
      %v517 = vsel %vm515, %v511, 0
      %519 = vmatpush.bf16.msra.mxu0 0
      %520 = vmatpush.bf16.msra.mxu0 0
      %521 = vmatpush.bf16.msra.mxu0 0
      %522 = vmatpush.bf16.msra.mxu0 0
      %523 = vmatpush.bf16.msra.mxu0 0
      %524 = vmatpush.bf16.msra.mxu0 0
      %525 = vmatpush.bf16.msra.mxu0 0
      %526 = vmatpush.bf16.msra.mxu0 %v517
      %527 = vmatmul.bf16.gmra.mxu0 %v513
      %v528 = vpop.f32.mrf.mxu0
      %v529 = vadd.f32 0.0, %v528
      %v530 = vpop.f32.mrf.mxu0
      %531 = vdwg.mxu0
      %v533 = vsel %vm390, %v449, 0
      %v536 = vsel %vm515, %v450, 0
      %538 = vmatpush.bf16.msra.mxu0 0
      %539 = vmatpush.bf16.msra.mxu0 0
      %540 = vmatpush.bf16.msra.mxu0 0
      %541 = vmatpush.bf16.msra.mxu0 0
      %542 = vmatpush.bf16.msra.mxu0 0
      %543 = vmatpush.bf16.msra.mxu0 0
      %544 = vmatpush.bf16.msra.mxu0 0
      %545 = vmatpush.bf16.msra.mxu0 %v536
      %546 = vmatmul.bf16.gmra.mxu0 %v533
      %v547 = vpop.f32.mrf.mxu0
      %v548 = vadd.f32 %v529, %v547
      %v549 = vpop.f32.mrf.mxu0
      %550 = vdwg.mxu0
      %551 = vrot.lane.b32.xlu0 %v453, 112
      %v552 = vpop.permute.xlu0 %551
      %553 = vrot.lane.b32.xlu0 %v387, 80
      %v554 = vpop.permute.xlu0 %553
      %v556 = vsel %vm390, %v552, 0
      %v559 = vsel %vm390, %v554, 0
      %561 = vmatpush.bf16.xpose.msra.mxu0 0
      %562 = vmatpush.bf16.xpose.msra.mxu0 0
      %563 = vmatpush.bf16.xpose.msra.mxu0 0
      %564 = vmatpush.bf16.xpose.msra.mxu0 0
      %565 = vmatpush.bf16.xpose.msra.mxu0 0
      %566 = vmatpush.bf16.xpose.msra.mxu0 0
      %567 = vmatpush.bf16.xpose.msra.mxu0 0
      %568 = vmatpush.bf16.xpose.msra.mxu0 %v559
      %569 = vmatmul.bf16.gmra.mxu0 %v556
      %v570 = vpop.f32.mrf.mxu0
      %v571 = vadd.f32 %v381, %v570
      %v572 = vpop.f32.mrf.mxu0
      %573 = vdwg.mxu0
      %v574 = vsel %vm410, %v571, -inf
      %575 = vmax.xlane.f32.xlu0 %v574
      %v576 = vpop.xlane.xlu0 %575
      %v577 = vsub.f32 %v571, %v576
      %v578 = vmul.f32 %v577, 1.442695
      %v579 = vpow.pop %v578
      %v580 = vsel %vm410, %v579, 0.0
      %581 = vadd.xlane.f32.xlu0 %v580
      %v582 = vpop.xlane.xlu0 %581
      %v583 = vrcp.pop %v582
      %v584 = vmul.f32 %v579, %v583
      %v585 = vpack.c.bf16 %v584, %v584
      %586 = vrot.lane.b32.xlu0 %v387, 48
      %v587 = vpop.permute.xlu0 %586
      %v589 = vsel %vm425, %v585, 0
      %v592 = vand.u32 %v587, %v432
      %594 = vmatpush.bf16.msra.mxu0 0
      %595 = vmatpush.bf16.msra.mxu0 0
      %596 = vmatpush.bf16.msra.mxu0 0
      %597 = vmatpush.bf16.msra.mxu0 0
      %598 = vmatpush.bf16.msra.mxu0 0
      %599 = vmatpush.bf16.msra.mxu0 0
      %600 = vmatpush.bf16.msra.mxu0 0
      %601 = vmatpush.bf16.msra.mxu0 %v592
      %602 = vmatmul.bf16.gmra.mxu0 %v589
      %v603 = vpop.f32.mrf.mxu0
      %v604 = vadd.f32 0.0, %v603
      %v605 = vpop.f32.mrf.mxu0
      %606 = vdwg.mxu0
      %v607 = vpack.c.bf16 %v604, %v604
      %v608 = vld [vmem:[%s6 + $0x8] sm:$0xf]
      %v610 = vsel %vm390, %v607, 0
      %v613 = vsel %vm515, %v608, 0
      %615 = vmatpush.bf16.msra.mxu0 0
      %616 = vmatpush.bf16.msra.mxu0 0
      %617 = vmatpush.bf16.msra.mxu0 0
      %618 = vmatpush.bf16.msra.mxu0 0
      %619 = vmatpush.bf16.msra.mxu0 0
      %620 = vmatpush.bf16.msra.mxu0 0
      %621 = vmatpush.bf16.msra.mxu0 0
      %622 = vmatpush.bf16.msra.mxu0 %v613
      %623 = vmatmul.bf16.gmra.mxu0 %v610
      %v624 = vpop.f32.mrf.mxu0
      %v625 = vadd.f32 0.0, %v624
      %v626 = vpop.f32.mrf.mxu0
      %627 = vdwg.mxu0
      %v628 = vadd.f32 %v548, %v625
      %629 = vrot.lane.b32.xlu0 %v453, 104
      %v630 = vpop.permute.xlu0 %629
      %631 = vrot.lane.b32.xlu0 %v387, 72
      %v632 = vpop.permute.xlu0 %631
      %v634 = vsel %vm390, %v630, 0
      %v637 = vsel %vm390, %v632, 0
      %639 = vmatpush.bf16.xpose.msra.mxu0 0
      %640 = vmatpush.bf16.xpose.msra.mxu0 0
      %641 = vmatpush.bf16.xpose.msra.mxu0 0
      %642 = vmatpush.bf16.xpose.msra.mxu0 0
      %643 = vmatpush.bf16.xpose.msra.mxu0 0
      %644 = vmatpush.bf16.xpose.msra.mxu0 0
      %645 = vmatpush.bf16.xpose.msra.mxu0 0
      %646 = vmatpush.bf16.xpose.msra.mxu0 %v637
      %647 = vmatmul.bf16.gmra.mxu0 %v634
      %v648 = vpop.f32.mrf.mxu0
      %v649 = vadd.f32 %v381, %v648
      %v650 = vpop.f32.mrf.mxu0
      %651 = vdwg.mxu0
      %v652 = vsel %vm410, %v649, -inf
      %653 = vmax.xlane.f32.xlu0 %v652
      %v654 = vpop.xlane.xlu0 %653
      %v655 = vsub.f32 %v649, %v654
      %v656 = vmul.f32 %v655, 1.442695
      %v657 = vpow.pop %v656
      %v658 = vsel %vm410, %v657, 0.0
      %659 = vadd.xlane.f32.xlu0 %v658
      %v660 = vpop.xlane.xlu0 %659
      %v661 = vrcp.pop %v660
      %v662 = vmul.f32 %v657, %v661
      %v663 = vpack.c.bf16 %v662, %v662
      %664 = vrot.lane.b32.xlu0 %v387, 40
      %v665 = vpop.permute.xlu0 %664
      %v667 = vsel %vm425, %v663, 0
      %v670 = vand.u32 %v665, %v432
      %672 = vmatpush.bf16.msra.mxu0 0
      %673 = vmatpush.bf16.msra.mxu0 0
      %674 = vmatpush.bf16.msra.mxu0 0
      %675 = vmatpush.bf16.msra.mxu0 0
      %676 = vmatpush.bf16.msra.mxu0 0
      %677 = vmatpush.bf16.msra.mxu0 0
      %678 = vmatpush.bf16.msra.mxu0 0
      %679 = vmatpush.bf16.msra.mxu0 %v670
      %680 = vmatmul.bf16.gmra.mxu0 %v667
      %v681 = vpop.f32.mrf.mxu0
      %v682 = vadd.f32 0.0, %v681
      %v683 = vpop.f32.mrf.mxu0
      %684 = vdwg.mxu0
      %v685 = vpack.c.bf16 %v682, %v682
      %v686 = vld [vmem:[%s6 + $0xc] sm:$0xf]
      %v688 = vsel %vm390, %v685, 0
      %v691 = vsel %vm515, %v686, 0
      %693 = vmatpush.bf16.msra.mxu0 0
      %694 = vmatpush.bf16.msra.mxu0 0
      %695 = vmatpush.bf16.msra.mxu0 0
      %696 = vmatpush.bf16.msra.mxu0 0
      %697 = vmatpush.bf16.msra.mxu0 0
      %698 = vmatpush.bf16.msra.mxu0 0
      %699 = vmatpush.bf16.msra.mxu0 0
      %700 = vmatpush.bf16.msra.mxu0 %v691
      %701 = vmatmul.bf16.gmra.mxu0 %v688
      %v702 = vpop.f32.mrf.mxu0
      %v703 = vadd.f32 0.0, %v702
      %v704 = vpop.f32.mrf.mxu0
      %705 = vdwg.mxu0
      %v706 = vadd.f32 %v628, %v703
      %v707 = vld [vmem:[%s7] sm:$0x1]
      %v709 = vperm.slane %v707, 0
      %v711 = vadd.f32 %v706, %v709
      %v712 = vadd.f32 %v711, %v302
      %713 = vst.msk [vmem:[%s300] sm:$0x1f] %vm303, %v712
      %p714 = scmp.lt.s32.totalorder %s19, 1
      %s715 = scalar_select %p714, %s19, 1
      %s716 = smul.addr %s715, 8
      %s717 = scalar_lea.vmem %s8, %s716
      // Predicated region
      $region53: #{hoi_vision_transformer_forward.19} parent=51 // pred_check
        %p718 = pneg %p210
      $region54: #{hoi_vision_transformer_forward.19} parent=51 // pred_check_branch
        %720 = sbr.rel (%p718) target = $region56
      $region55: #{hoi_vision_transformer_forward.19} parent=51 // pred_region
        _
      $region56: #{hoi_vision_transformer_forward.19} parent=51 // pred_fallthru
        _
    $region52: #{hoi_vision_transformer_forward.19} parent=5 // pred_fallthru
      _
    %p721 = scmp.le.s32.totalorder 2, %s14
    // Predicated region
    $region57: #{hoi_vision_transformer_forward.19} parent=5 // pred_check
      %p722 = pneg %p721
    $region58: #{hoi_vision_transformer_forward.19} parent=5 // pred_check_branch
      %724 = sbr.rel (%p722) target = $region60
    $region59: #{hoi_vision_transformer_forward.19} parent=5 // pred_region
      %s725 = ssub.s32 %s14, 2
      // Predicated region
      $region61: #{hoi_vision_transformer_forward.19} parent=59 // pred_check
        %p726 = pneg %p216
      $region62: #{hoi_vision_transformer_forward.19} parent=59 // pred_check_branch
        %728 = sbr.rel (%p726) target = $region64
      $region63: #{hoi_vision_transformer_forward.19} parent=59 // pred_region
        %p729 = scmp.lt.s32.totalorder %s20, 1
        %s730 = scalar_select %p729, %s20, 1
        %s731 = smul.addr %s730, 8
        %s732 = scalar_lea.vmem %s8, %s731
      $region64: #{hoi_vision_transformer_forward.19} parent=59 // pred_fallthru
        _
    $region60: #{hoi_vision_transformer_forward.19} parent=5 // pred_fallthru
      _
  $region6: #{hoi_vision_transformer_forward.19} parent=0 // loop_footer
    %s18 = sadd.s32 1, %s14
  $region7: #{hoi_vision_transformer_forward.19} parent=0 // loop_footer_branch
    %13 = sbr.rel target = $region3
  $region8: #{hoi_vision_transformer_forward.19} parent=0 // loop_exit
    _

// kernel: hoi_vision_transformer_forward.25
$region0: #{hoi_vision_transformer_forward.25}
  #allocation0 [shape = 'u32[]', space=smem, size = 0x4, offset = 0x4, fixed_abs, tag = 'smem constant byte address 0x4 - core index']
  #allocation1 [shape = 'u32[72,128]{1,0:T(1,128)}', space=vmem, size = 0x9000, scoped, tag = 'internal scratch']
  %s0 = inlined_call_operand.vmem [shape: f32[16,32], index: 0, kind: input, shape index: {}]
  %s1 = inlined_call_operand.vmem [shape: f32[1,32], index: 1, kind: input, shape index: {}]
  %s2 = inlined_call_operand.vmem [shape: f32[1,32], index: 2, kind: input, shape index: {}]
  %s3 = inlined_call_operand.vmem [shape: bf16[32,16], index: 3, kind: input, shape index: {}]
  %s4 = inlined_call_operand.vmem [shape: bf16[32,33], index: 4, kind: input, shape index: {}]
  %s5 = inlined_call_operand.vmem [shape: f32[1,33], index: 5, kind: input, shape index: {}]
  %s6 = inlined_call_operand.vmem [shape: bf16[32,32], index: 6, kind: input, shape index: {}]
  %s7 = inlined_call_operand.vmem [shape: f32[1,32], index: 7, kind: input, shape index: {}]
  %s8 = inlined_call_operand.vmem [shape: bf16[32,8], index: 8, kind: input, shape index: {}]
  %s9 = inlined_call_operand.vmem [shape: f32[1,8], index: 9, kind: input, shape index: {}]
  %s10 = inlined_call_operand.vmem [shape: f32[16,16], index: 10, kind: output, shape index: {0}]
  %s11 = inlined_call_operand.vmem [shape: f32[16,8], index: 11, kind: output, shape index: {1}]
  %s12 = inlined_call_operand.vmem [shape: f32[16,1], index: 12, kind: output, shape index: {2}]
  %13 = xla_tuple %s10, %s11, %s12
  %s14 = sld [smem:[#allocation0]]
  $region89: #{hoi_vision_transformer_forward.25} parent=0
    _
  %s16 = ssub.s32 1, %s14
  %s17 = scalar_select 0, %s16, %s14
  loop: start=0, step=1, limit=4
  $region2: #{hoi_vision_transformer_forward.25} parent=0 // loop_pre_header
    _
  $region3: #{hoi_vision_transformer_forward.25} parent=0 // loop_header
    %s19 = sphi 0, %s23
    %p20 = scmp.ge.s32.totalorder %s19, 4
    %s29 = sphi 0, %s31
    %s32 = sphi 0, %s29
    %s33 = sphi 0, %s32
    %s49 = sphi 0, %s33
    %s53 = sphi 0, %s53
    %s55 = sphi 0, %s53
    %s56 = sphi 0, %s55
    %s70 = sphi 0, %s56
    %s74 = sphi 0, %s74
    %s76 = sphi 0, %s74
    %s77 = sphi 0, %s76
    %s91 = sphi 0, %s77
    %s95 = sphi 0, %s95
    %s97 = sphi 0, %s95
    %s98 = sphi 0, %s97
    %s112 = sphi 0, %s98
    %s116 = sphi 0, %s116
    %s118 = sphi 0, %s116
    %s119 = sphi 0, %s118
    %s133 = sphi 0, %s119
    %s137 = sphi 0, %s137
    %s139 = sphi 0, %s137
    %s140 = sphi 0, %s139
    %s154 = sphi 0, %s140
    %s158 = sphi 0, %s158
    %s160 = sphi 0, %s158
    %s161 = sphi 0, %s160
    %s175 = sphi 0, %s161
    %s179 = sphi 0, %s179
    %s181 = sphi 0, %s179
    %s182 = sphi 0, %s181
    %s196 = sphi 0, %s182
    %s200 = sphi 0, %s200
    %s202 = sphi 0, %s200
    %s203 = sphi 0, %s202
    %s217 = sphi 0, %s203
    %s221 = sphi 0, %s221
    %s223 = sphi 0, %s221
    %s224 = sphi 0, %s223
    %s238 = sphi 0, %s224
    %s244 = sphi 0, %s246
    %s247 = sphi 0, %s244
    %s248 = sphi 0, %s247
    %s264 = sphi 0, %s248
    %s270 = sphi 0, %s272
    %s273 = sphi 0, %s270
    %s274 = sphi 0, %s273
    %s290 = sphi 0, %s274
    %s296 = sphi 0, %s298
    %s299 = sphi 0, %s296
    %s300 = sphi 0, %s299
    %s316 = sphi 0, %s300
  $region4: #{hoi_vision_transformer_forward.25} parent=0 // loop_header_branch
    %22 = sbr.rel (%p20) target = $region8
  $region5: #{hoi_vision_transformer_forward.25} parent=0 // loop_body
    %s24 = ssub.s32 %s19, 1
    %s25 = ssub.s32 %s19, 2
    %s26 = sadd.s32 %s19, 1
    %s27 = ssub.s32 %s19, %s26
    %p28 = scmp.eq.s32.totalorder %s27, 0
    %s30 = sadd.s32 %s29, 1
    %s31 = scalar_select %p28, %s29, %s30
    %p34 = pneg %p28
    %p35 = scmp.eq.s32.totalorder %s19, 1
    %p36 = por %p34, %p35
    %p37 = scmp.ne.s32.totalorder %s29, %s32
    %p38 = scmp.eq.s32.totalorder %s19, 0
    %p39 = por %p37, %p38
    %p40 = scmp.ne.s32.totalorder %s29, %s32
    %p41 = scmp.eq.s32.totalorder %s24, 1
    %p42 = por %p40, %p41
    %p43 = scmp.ne.s32.totalorder %s32, %s33
    %p44 = scmp.eq.s32.totalorder %s24, 0
    %p45 = por %p43, %p44
    %p46 = scmp.ne.s32.totalorder %s32, %s33
    %p47 = scmp.eq.s32.totalorder %s25, 1
    %p48 = por %p46, %p47
    %p50 = scmp.ne.s32.totalorder %s33, %s49
    %p51 = scmp.eq.s32.totalorder %s25, 0
    %p52 = por %p50, %p51
    %s54 = sadd.s32 %s53, 1
    %p57 = scmp.eq.s32.totalorder %s19, 1
    %p58 = scmp.ne.s32.totalorder %s53, %s55
    %p59 = scmp.eq.s32.totalorder %s19, 0
    %p60 = por %p58, %p59
    %p61 = scmp.ne.s32.totalorder %s53, %s55
    %p62 = scmp.eq.s32.totalorder %s24, 1
    %p63 = por %p61, %p62
    %p64 = scmp.ne.s32.totalorder %s55, %s56
    %p65 = scmp.eq.s32.totalorder %s24, 0
    %p66 = por %p64, %p65
    %p67 = scmp.ne.s32.totalorder %s55, %s56
    %p68 = scmp.eq.s32.totalorder %s25, 1
    %p69 = por %p67, %p68
    %p71 = scmp.ne.s32.totalorder %s56, %s70
    %p72 = scmp.eq.s32.totalorder %s25, 0
    %p73 = por %p71, %p72
    %s75 = sadd.s32 %s74, 1
    %p78 = scmp.eq.s32.totalorder %s19, 1
    %p79 = scmp.ne.s32.totalorder %s74, %s76
    %p80 = scmp.eq.s32.totalorder %s19, 0
    %p81 = por %p79, %p80
    %p82 = scmp.ne.s32.totalorder %s74, %s76
    %p83 = scmp.eq.s32.totalorder %s24, 1
    %p84 = por %p82, %p83
    %p85 = scmp.ne.s32.totalorder %s76, %s77
    %p86 = scmp.eq.s32.totalorder %s24, 0
    %p87 = por %p85, %p86
    %p88 = scmp.ne.s32.totalorder %s76, %s77
    %p89 = scmp.eq.s32.totalorder %s25, 1
    %p90 = por %p88, %p89
    %p92 = scmp.ne.s32.totalorder %s77, %s91
    %p93 = scmp.eq.s32.totalorder %s25, 0
    %p94 = por %p92, %p93
    %s96 = sadd.s32 %s95, 1
    %p99 = scmp.eq.s32.totalorder %s19, 1
    %p100 = scmp.ne.s32.totalorder %s95, %s97
    %p101 = scmp.eq.s32.totalorder %s19, 0
    %p102 = por %p100, %p101
    %p103 = scmp.ne.s32.totalorder %s95, %s97
    %p104 = scmp.eq.s32.totalorder %s24, 1
    %p105 = por %p103, %p104
    %p106 = scmp.ne.s32.totalorder %s97, %s98
    %p107 = scmp.eq.s32.totalorder %s24, 0
    %p108 = por %p106, %p107
    %p109 = scmp.ne.s32.totalorder %s97, %s98
    %p110 = scmp.eq.s32.totalorder %s25, 1
    %p111 = por %p109, %p110
    %p113 = scmp.ne.s32.totalorder %s98, %s112
    %p114 = scmp.eq.s32.totalorder %s25, 0
    %p115 = por %p113, %p114
    %s117 = sadd.s32 %s116, 1
    %p120 = scmp.eq.s32.totalorder %s19, 1
    %p121 = scmp.ne.s32.totalorder %s116, %s118
    %p122 = scmp.eq.s32.totalorder %s19, 0
    %p123 = por %p121, %p122
    %p124 = scmp.ne.s32.totalorder %s116, %s118
    %p125 = scmp.eq.s32.totalorder %s24, 1
    %p126 = por %p124, %p125
    %p127 = scmp.ne.s32.totalorder %s118, %s119
    %p128 = scmp.eq.s32.totalorder %s24, 0
    %p129 = por %p127, %p128
    %p130 = scmp.ne.s32.totalorder %s118, %s119
    %p131 = scmp.eq.s32.totalorder %s25, 1
    %p132 = por %p130, %p131
    %p134 = scmp.ne.s32.totalorder %s119, %s133
    %p135 = scmp.eq.s32.totalorder %s25, 0
    %p136 = por %p134, %p135
    %s138 = sadd.s32 %s137, 1
    %p141 = scmp.eq.s32.totalorder %s19, 1
    %p142 = scmp.ne.s32.totalorder %s137, %s139
    %p143 = scmp.eq.s32.totalorder %s19, 0
    %p144 = por %p142, %p143
    %p145 = scmp.ne.s32.totalorder %s137, %s139
    %p146 = scmp.eq.s32.totalorder %s24, 1
    %p147 = por %p145, %p146
    %p148 = scmp.ne.s32.totalorder %s139, %s140
    %p149 = scmp.eq.s32.totalorder %s24, 0
    %p150 = por %p148, %p149
    %p151 = scmp.ne.s32.totalorder %s139, %s140
    %p152 = scmp.eq.s32.totalorder %s25, 1
    %p153 = por %p151, %p152
    %p155 = scmp.ne.s32.totalorder %s140, %s154
    %p156 = scmp.eq.s32.totalorder %s25, 0
    %p157 = por %p155, %p156
    %s159 = sadd.s32 %s158, 1
    %p162 = scmp.eq.s32.totalorder %s19, 1
    %p163 = scmp.ne.s32.totalorder %s158, %s160
    %p164 = scmp.eq.s32.totalorder %s19, 0
    %p165 = por %p163, %p164
    %p166 = scmp.ne.s32.totalorder %s158, %s160
    %p167 = scmp.eq.s32.totalorder %s24, 1
    %p168 = por %p166, %p167
    %p169 = scmp.ne.s32.totalorder %s160, %s161
    %p170 = scmp.eq.s32.totalorder %s24, 0
    %p171 = por %p169, %p170
    %p172 = scmp.ne.s32.totalorder %s160, %s161
    %p173 = scmp.eq.s32.totalorder %s25, 1
    %p174 = por %p172, %p173
    %p176 = scmp.ne.s32.totalorder %s161, %s175
    %p177 = scmp.eq.s32.totalorder %s25, 0
    %p178 = por %p176, %p177
    %s180 = sadd.s32 %s179, 1
    %p183 = scmp.eq.s32.totalorder %s19, 1
    %p184 = scmp.ne.s32.totalorder %s179, %s181
    %p185 = scmp.eq.s32.totalorder %s19, 0
    %p186 = por %p184, %p185
    %p187 = scmp.ne.s32.totalorder %s179, %s181
    %p188 = scmp.eq.s32.totalorder %s24, 1
    %p189 = por %p187, %p188
    %p190 = scmp.ne.s32.totalorder %s181, %s182
    %p191 = scmp.eq.s32.totalorder %s24, 0
    %p192 = por %p190, %p191
    %p193 = scmp.ne.s32.totalorder %s181, %s182
    %p194 = scmp.eq.s32.totalorder %s25, 1
    %p195 = por %p193, %p194
    %p197 = scmp.ne.s32.totalorder %s182, %s196
    %p198 = scmp.eq.s32.totalorder %s25, 0
    %p199 = por %p197, %p198
    %s201 = sadd.s32 %s200, 1
    %p204 = scmp.eq.s32.totalorder %s19, 1
    %p205 = scmp.ne.s32.totalorder %s200, %s202
    %p206 = scmp.eq.s32.totalorder %s19, 0
    %p207 = por %p205, %p206
    %p208 = scmp.ne.s32.totalorder %s200, %s202
    %p209 = scmp.eq.s32.totalorder %s24, 1
    %p210 = por %p208, %p209
    %p211 = scmp.ne.s32.totalorder %s202, %s203
    %p212 = scmp.eq.s32.totalorder %s24, 0
    %p213 = por %p211, %p212
    %p214 = scmp.ne.s32.totalorder %s202, %s203
    %p215 = scmp.eq.s32.totalorder %s25, 1
    %p216 = por %p214, %p215
    %p218 = scmp.ne.s32.totalorder %s203, %s217
    %p219 = scmp.eq.s32.totalorder %s25, 0
    %p220 = por %p218, %p219
    %s222 = sadd.s32 %s221, 1
    %p225 = scmp.eq.s32.totalorder %s19, 1
    %p226 = scmp.ne.s32.totalorder %s221, %s223
    %p227 = scmp.eq.s32.totalorder %s19, 0
    %p228 = por %p226, %p227
    %p229 = scmp.ne.s32.totalorder %s221, %s223
    %p230 = scmp.eq.s32.totalorder %s24, 1
    %p231 = por %p229, %p230
    %p232 = scmp.ne.s32.totalorder %s223, %s224
    %p233 = scmp.eq.s32.totalorder %s24, 0
    %p234 = por %p232, %p233
    %p235 = scmp.ne.s32.totalorder %s223, %s224
    %p236 = scmp.eq.s32.totalorder %s25, 1
    %p237 = por %p235, %p236
    %p239 = scmp.ne.s32.totalorder %s224, %s238
    %p240 = scmp.eq.s32.totalorder %s25, 0
    %p241 = por %p239, %p240
    %s242 = ssub.s32 %s19, %s26
    %p243 = scmp.eq.s32.totalorder %s242, 0
    %s245 = sadd.s32 %s244, 1
    %s246 = scalar_select %p243, %s244, %s245
    %p249 = pneg %p243
    %p250 = scmp.eq.s32.totalorder %s19, 1
    %p251 = por %p249, %p250
    %p252 = scmp.ne.s32.totalorder %s244, %s247
    %p253 = scmp.eq.s32.totalorder %s19, 0
    %p254 = por %p252, %p253
    %p255 = scmp.ne.s32.totalorder %s244, %s247
    %p256 = scmp.eq.s32.totalorder %s24, 1
    %p257 = por %p255, %p256
    %p258 = scmp.ne.s32.totalorder %s247, %s248
    %p259 = scmp.eq.s32.totalorder %s24, 0
    %p260 = por %p258, %p259
    %p261 = scmp.ne.s32.totalorder %s247, %s248
    %p262 = scmp.eq.s32.totalorder %s25, 1
    %p263 = por %p261, %p262
    %p265 = scmp.ne.s32.totalorder %s248, %s264
    %p266 = scmp.eq.s32.totalorder %s25, 0
    %p267 = por %p265, %p266
    %s268 = ssub.s32 %s19, %s26
    %p269 = scmp.eq.s32.totalorder %s268, 0
    %s271 = sadd.s32 %s270, 1
    %s272 = scalar_select %p269, %s270, %s271
    %p275 = pneg %p269
    %p276 = scmp.eq.s32.totalorder %s19, 1
    %p277 = por %p275, %p276
    %p278 = scmp.ne.s32.totalorder %s270, %s273
    %p279 = scmp.eq.s32.totalorder %s19, 0
    %p280 = por %p278, %p279
    %p281 = scmp.ne.s32.totalorder %s270, %s273
    %p282 = scmp.eq.s32.totalorder %s24, 1
    %p283 = por %p281, %p282
    %p284 = scmp.ne.s32.totalorder %s273, %s274
    %p285 = scmp.eq.s32.totalorder %s24, 0
    %p286 = por %p284, %p285
    %p287 = scmp.ne.s32.totalorder %s273, %s274
    %p288 = scmp.eq.s32.totalorder %s25, 1
    %p289 = por %p287, %p288
    %p291 = scmp.ne.s32.totalorder %s274, %s290
    %p292 = scmp.eq.s32.totalorder %s25, 0
    %p293 = por %p291, %p292
    %s294 = ssub.s32 %s19, %s26
    %p295 = scmp.eq.s32.totalorder %s294, 0
    %s297 = sadd.s32 %s296, 1
    %s298 = scalar_select %p295, %s296, %s297
    %p301 = pneg %p295
    %p302 = scmp.eq.s32.totalorder %s19, 1
    %p303 = por %p301, %p302
    %p304 = scmp.ne.s32.totalorder %s296, %s299
    %p305 = scmp.eq.s32.totalorder %s19, 0
    %p306 = por %p304, %p305
    %p307 = scmp.ne.s32.totalorder %s296, %s299
    %p308 = scmp.eq.s32.totalorder %s24, 1
    %p309 = por %p307, %p308
    %p310 = scmp.ne.s32.totalorder %s299, %s300
    %p311 = scmp.eq.s32.totalorder %s24, 0
    %p312 = por %p310, %p311
    %p313 = scmp.ne.s32.totalorder %s299, %s300
    %p314 = scmp.eq.s32.totalorder %s25, 1
    %p315 = por %p313, %p314
    %p317 = scmp.ne.s32.totalorder %s300, %s316
    %p318 = scmp.eq.s32.totalorder %s25, 0
    %p319 = por %p317, %p318
    %p320 = scmp.le.s32.totalorder 1, %s19
    %p321 = scmp.lt.s32.totalorder %s19, 3
    %p322 = pnand %p320, %p321
    %p323 = pneg %p322
    // Predicated region
    $region9: #{hoi_vision_transformer_forward.25} parent=5 // pred_check
      _
    $region10: #{hoi_vision_transformer_forward.25} parent=5 // pred_check_branch
      %325 = sbr.rel (%p322) target = $region12
    $region11: #{hoi_vision_transformer_forward.25} parent=5 // pred_region
      %s326 = ssub.s32 %s19, 1
      // Predicated region
      $region13: #{hoi_vision_transformer_forward.25} parent=11 // pred_check
        %p327 = pneg %p66
      $region14: #{hoi_vision_transformer_forward.25} parent=11 // pred_check_branch
        %329 = sbr.rel (%p327) target = $region16
      $region15: #{hoi_vision_transformer_forward.25} parent=11 // pred_region
        _
      $region16: #{hoi_vision_transformer_forward.25} parent=11 // pred_fallthru
        _
      // Predicated region
      $region17: #{hoi_vision_transformer_forward.25} parent=11 // pred_check
        %p330 = pneg %p87
      $region18: #{hoi_vision_transformer_forward.25} parent=11 // pred_check_branch
        %332 = sbr.rel (%p330) target = $region20
      $region19: #{hoi_vision_transformer_forward.25} parent=11 // pred_region
        _
      $region20: #{hoi_vision_transformer_forward.25} parent=11 // pred_fallthru
        _
      // Predicated region
      $region21: #{hoi_vision_transformer_forward.25} parent=11 // pred_check
        %p333 = pneg %p108
      $region22: #{hoi_vision_transformer_forward.25} parent=11 // pred_check_branch
        %335 = sbr.rel (%p333) target = $region24
      $region23: #{hoi_vision_transformer_forward.25} parent=11 // pred_region
        _
      $region24: #{hoi_vision_transformer_forward.25} parent=11 // pred_fallthru
        _
      // Predicated region
      $region25: #{hoi_vision_transformer_forward.25} parent=11 // pred_check
        %p336 = pneg %p129
      $region26: #{hoi_vision_transformer_forward.25} parent=11 // pred_check_branch
        %338 = sbr.rel (%p336) target = $region28
      $region27: #{hoi_vision_transformer_forward.25} parent=11 // pred_region
        _
      $region28: #{hoi_vision_transformer_forward.25} parent=11 // pred_fallthru
        _
      // Predicated region
      $region29: #{hoi_vision_transformer_forward.25} parent=11 // pred_check
        %p339 = pneg %p150
      $region30: #{hoi_vision_transformer_forward.25} parent=11 // pred_check_branch
        %341 = sbr.rel (%p339) target = $region32
      $region31: #{hoi_vision_transformer_forward.25} parent=11 // pred_region
        _
      $region32: #{hoi_vision_transformer_forward.25} parent=11 // pred_fallthru
        _
      // Predicated region
      $region33: #{hoi_vision_transformer_forward.25} parent=11 // pred_check
        %p342 = pneg %p171
      $region34: #{hoi_vision_transformer_forward.25} parent=11 // pred_check_branch
        %344 = sbr.rel (%p342) target = $region36
      $region35: #{hoi_vision_transformer_forward.25} parent=11 // pred_region
        _
      $region36: #{hoi_vision_transformer_forward.25} parent=11 // pred_fallthru
        _
      // Predicated region
      $region37: #{hoi_vision_transformer_forward.25} parent=11 // pred_check
        %p345 = pneg %p192
      $region38: #{hoi_vision_transformer_forward.25} parent=11 // pred_check_branch
        %347 = sbr.rel (%p345) target = $region40
      $region39: #{hoi_vision_transformer_forward.25} parent=11 // pred_region
        _
      $region40: #{hoi_vision_transformer_forward.25} parent=11 // pred_fallthru
        _
      // Predicated region
      $region41: #{hoi_vision_transformer_forward.25} parent=11 // pred_check
        %p348 = pneg %p213
      $region42: #{hoi_vision_transformer_forward.25} parent=11 // pred_check_branch
        %350 = sbr.rel (%p348) target = $region44
      $region43: #{hoi_vision_transformer_forward.25} parent=11 // pred_region
        _
      $region44: #{hoi_vision_transformer_forward.25} parent=11 // pred_fallthru
        _
      // Predicated region
      $region45: #{hoi_vision_transformer_forward.25} parent=11 // pred_check
        %p351 = pneg %p234
      $region46: #{hoi_vision_transformer_forward.25} parent=11 // pred_check_branch
        %353 = sbr.rel (%p351) target = $region48
      $region47: #{hoi_vision_transformer_forward.25} parent=11 // pred_region
        _
      $region48: #{hoi_vision_transformer_forward.25} parent=11 // pred_fallthru
        _
    $region12: #{hoi_vision_transformer_forward.25} parent=5 // pred_fallthru
      _
    %p354 = scmp.lt.s32.totalorder %s19, 2
    // Predicated region
    $region49: #{hoi_vision_transformer_forward.25} parent=5 // pred_check
      %p355 = pneg %p354
    $region50: #{hoi_vision_transformer_forward.25} parent=5 // pred_check_branch
      %357 = sbr.rel (%p355) target = $region52
    $region51: #{hoi_vision_transformer_forward.25} parent=5 // pred_region
      // Predicated region
      $region53: #{hoi_vision_transformer_forward.25} parent=51 // pred_check
        %p358 = pneg %p39
      $region54: #{hoi_vision_transformer_forward.25} parent=51 // pred_check_branch
        %360 = sbr.rel (%p358) target = $region56
      $region55: #{hoi_vision_transformer_forward.25} parent=51 // pred_region
        %p361 = scmp.lt.s32.totalorder %s19, 1
        %s362 = scalar_select %p361, %s19, 1
        %s363 = smul.addr %s362, 8
        %s364 = scalar_lea.vmem %s0, %s363
      $region56: #{hoi_vision_transformer_forward.25} parent=51 // pred_fallthru
        _
    $region52: #{hoi_vision_transformer_forward.25} parent=5 // pred_fallthru
      _
    %p365 = scmp.le.s32.totalorder 1, %s19
    %p366 = scmp.lt.s32.totalorder %s19, 3
    %p367 = pnand %p365, %p366
    %p368 = pneg %p367
    // Predicated region
    $region57: #{hoi_vision_transformer_forward.25} parent=5 // pred_check
      _
    $region58: #{hoi_vision_transformer_forward.25} parent=5 // pred_check_branch
      %370 = sbr.rel (%p367) target = $region60
    $region59: #{hoi_vision_transformer_forward.25} parent=5 // pred_region
      %s371 = ssub.s32 %s19, 1
      %p372 = scmp.lt.s32.totalorder %s24, 1
      %s373 = scalar_select %p372, %s24, 1
      %s374 = smul.addr %s373, 8
      %s375 = scalar_lea.vmem %s0, %s374
      %p376 = pneg %p45
      %p377 = pneg %p42
      %p378 = pneg %p66
      %p379 = pneg %p63
      %p380 = pneg %p87
      %p381 = pneg %p84
      %p382 = pneg %p108
      %p383 = pneg %p105
      %p384 = pneg %p129
      %p385 = pneg %p126
      %p386 = pneg %p150
      %p387 = pneg %p147
      %p388 = pneg %p171
      %p389 = pneg %p168
      %p390 = pneg %p192
      %p391 = pneg %p189
      %p392 = pneg %p213
      %p393 = pneg %p210
      %p394 = pneg %p234
      %p395 = pneg %p231
      %p396 = pneg %p260
      %p397 = pneg %p257
      %p398 = scmp.lt.s32.totalorder %s24, 1
      %s399 = scalar_select %p398, %s24, 1
      %s400 = smul.addr %s399, 8
      %s401 = scalar_lea.vmem %s10, %s400
      %p402 = pneg %p286
      %p403 = pneg %p283
      %p404 = scmp.lt.s32.totalorder %s24, 1
      %s405 = scalar_select %p404, %s24, 1
      %s406 = smul.addr %s405, 8
      %s407 = scalar_lea.vmem %s11, %s406
      %p408 = pneg %p312
      %p409 = pneg %p309
      %p410 = scmp.lt.s32.totalorder %s24, 1
      %s411 = scalar_select %p410, %s24, 1
      %s412 = smul.addr %s411, 8
      %s413 = scalar_lea.vmem %s12, %s412
      %p414 = scmp.lt.s32.totalorder %s24, 1
      %s415 = scalar_select %p414, %s24, 1
      %s416 = smul.addr %s415, 8
      %s417 = scalar_lea.vmem %s0, %s416
      %p418 = scmp.lt.s32.totalorder %s24, 1
      %s419 = scalar_select %p418, %s24, 1
      %s420 = smul.addr %s419, 8
      %s421 = scalar_lea.vmem %s10, %s420
      %p422 = scmp.lt.s32.totalorder %s24, 1
      %s423 = scalar_select %p422, %s24, 1
      %s424 = smul.addr %s423, 8
      %s425 = scalar_lea.vmem %s11, %s424
      %p426 = scmp.lt.s32.totalorder %s24, 1
      %s427 = scalar_select %p426, %s24, 1
      %s428 = smul.addr %s427, 8
      %s429 = scalar_lea.vmem %s12, %s428
      %v431 = vld [vmem:[%s417] sm:$0xff]
      %vm432 = vcmask 261120
      %v433 = vsel %vm432, %v431, 0.0
      %434 = vadd.xlane.f32.xlu0 %v433
      %v435 = vpop.xlane.xlu0 %434
      %v436 = vrcp.pop 32.0
      %v437 = vmul.f32 32.0, %v436
      %v438 = vsub.f32 1.0, %v437
      %v439 = vmul.f32 %v436, %v438
      %v440 = vadd.f32 %v436, %v439
      %vm441 = vweird.f32 %v436
      %v442 = vsel %vm441, %v436, %v440
      %v443 = vmul.f32 %v435, %v442
      %v444 = vsub.f32 %v431, %v443
      %v445 = vmul.f32 %v444, %v444
      %v446 = vsel %vm432, %v445, 0.0
      %447 = vadd.xlane.f32.xlu0 %v446
      %v448 = vpop.xlane.xlu0 %447
      %v449 = vmul.f32 %v448, %v442
      %v450 = vadd.f32 %v449, 1e-05
      %v451 = vrsqrt.pop %v450
      %v452 = vmul.f32 %v451, %v450
      %v453 = vmul.f32 %v452, %v451
      %v454 = vmul.f32 0.5, %v453
      %v455 = vsub.f32 1.5, %v454
      %v456 = vmul.f32 %v451, %v455
      %vm457 = vweird.f32 %v450
      %vm458 = vweird.f32 %v451
      %vm459 = vmor %vm457, %vm458
      %v460 = vsel %vm459, %v451, %v456
      %v461 = vmul.f32 %v444, %v460
      %v462 = vld [vmem:[%s1] sm:$0x1]
      %v464 = vperm.slane %v462, 0
      %v466 = vmul.f32 %v461, %v464
      %v467 = vld [vmem:[%s2] sm:$0x1]
      %v469 = vperm.slane %v467, 0
      %v471 = vadd.f32 %v466, %v469
      %v472 = vpack.c.bf16 %v471, %v471
      %v473 = vld [vmem:[%s3] sm:$0xf]
      %v474 = vld [vmem:[%s3 + $0x4] sm:$0xf]
      %v475 = vld [vmem:[%s3 + $0x8] sm:$0xf]
      %v476 = vld [vmem:[%s3 + $0xc] sm:$0xf]
      %v481 = vunpack.c.l.b16 %v473
      %v482 = vunpack.c.l.b16 %v474
      %v483 = vunpack.c.l.b16 %v475
      %v484 = vunpack.c.l.b16 %v476
      %v485 = vpack.c.b16 %v482, %v481
      %v486 = vpack.c.b16 %v484, %v483
      %v490 = vsel %vm432, %v472, 0
      %492 = vmatpush.bf16.msra.mxu0 0
      %493 = vmatpush.bf16.msra.mxu0 0
      %494 = vmatpush.bf16.msra.mxu0 0
      %495 = vmatpush.bf16.msra.mxu0 0
      %496 = vmatpush.bf16.msra.mxu0 0
      %497 = vmatpush.bf16.msra.mxu0 0
      %498 = vmatpush.bf16.msra.mxu0 %v486
      %499 = vmatpush.bf16.msra.mxu0 %v485
      %500 = vmatmul.bf16.gmra.mxu0 %v490
      %v501 = vpop.f32.mrf.mxu0
      %v502 = vadd.f32 0.0, %v501
      %v503 = vpop.f32.mrf.mxu0
      %504 = vdwg.mxu0
      %vm505 = vcmask 130048
      %506 = vst.msk [vmem:[%s421] sm:$0xff] %vm505, %v502
      %v507 = vpack.c.bf16 %v431, %v431
      %v508 = vld [vmem:[%s4] sm:$0xf]
      %v509 = vld [vmem:[%s4 + $0x4] sm:$0xf]
      %v510 = vld [vmem:[%s4 + $0x8] sm:$0xf]
      %v511 = vld [vmem:[%s4 + $0xc] sm:$0xf]
      %v512 = vld [vmem:[%s5] sm:$0x1]
      %v514 = vperm.slane %v512, 0
      %v520 = vunpack.c.l.b16 %v508
      %v521 = vunpack.c.l.b16 %v509
      %v522 = vunpack.c.l.b16 %v510
      %v523 = vunpack.c.l.b16 %v511
      %v524 = vpack.c.b16 %v521, %v520
      %v525 = vpack.c.b16 %v523, %v522
      %v529 = vsel %vm432, %v507, 0
      %531 = vmatpush.bf16.msra.mxu0 0
      %532 = vmatpush.bf16.msra.mxu0 0
      %533 = vmatpush.bf16.msra.mxu0 0
      %534 = vmatpush.bf16.msra.mxu0 0
      %535 = vmatpush.bf16.msra.mxu0 0
      %536 = vmatpush.bf16.msra.mxu0 0
      %537 = vmatpush.bf16.msra.mxu0 %v525
      %538 = vmatpush.bf16.msra.mxu0 %v524
      %539 = vmatmul.bf16.gmra.mxu0 %v529
      %v540 = vpop.f32.mrf.mxu0
      %v541 = vadd.f32 %v514, %v540
      %v542 = vpop.f32.mrf.mxu0
      %543 = vdwg.mxu0
      %545 = vrot.lane.b32.xlu0 %v541, 96
      %v546 = vpop.permute.xlu0 %545
      %vm548 = vcmask 7168
      %549 = vst.msk [vmem:[%s429] sm:$0xff] %vm548, %v546
      %v550 = vmax.f32 %v541, 0.0
      %v551 = vpack.c.bf16 %v550, %v550
      %v552 = vld [vmem:[%s6] sm:$0xf]
      %v553 = vld [vmem:[%s6 + $0x4] sm:$0xf]
      %v554 = vld [vmem:[%s6 + $0x8] sm:$0xf]
      %v555 = vld [vmem:[%s6 + $0xc] sm:$0xf]
      %v556 = vld [vmem:[%s7] sm:$0x1]
      %v558 = vperm.slane %v556, 0
      %v564 = vunpack.c.l.b16 %v552
      %v565 = vunpack.c.l.b16 %v553
      %v566 = vunpack.c.l.b16 %v554
      %v567 = vunpack.c.l.b16 %v555
      %v568 = vpack.c.b16 %v565, %v564
      %v569 = vpack.c.b16 %v567, %v566
      %v573 = vsel %vm432, %v551, 0
      %575 = vmatpush.bf16.msra.mxu0 0
      %576 = vmatpush.bf16.msra.mxu0 0
      %577 = vmatpush.bf16.msra.mxu0 0
      %578 = vmatpush.bf16.msra.mxu0 0
      %579 = vmatpush.bf16.msra.mxu0 0
      %580 = vmatpush.bf16.msra.mxu0 0
      %581 = vmatpush.bf16.msra.mxu0 %v569
      %582 = vmatpush.bf16.msra.mxu0 %v568
      %583 = vmatmul.bf16.gmra.mxu0 %v573
      %v584 = vpop.f32.mrf.mxu0
      %v585 = vadd.f32 %v558, %v584
      %v586 = vpop.f32.mrf.mxu0
      %587 = vdwg.mxu0
      %v588 = vmax.f32 %v585, 0.0
      %v589 = vpack.c.bf16 %v588, %v588
      %v590 = vld [vmem:[%s8] sm:$0xf]
      %v591 = vld [vmem:[%s8 + $0x4] sm:$0xf]
      %v592 = vld [vmem:[%s8 + $0x8] sm:$0xf]
      %v593 = vld [vmem:[%s8 + $0xc] sm:$0xf]
      %v594 = vld [vmem:[%s9] sm:$0x1]
      %v596 = vperm.slane %v594, 0
      %v602 = vunpack.c.l.b16 %v590
      %v603 = vunpack.c.l.b16 %v591
      %v604 = vunpack.c.l.b16 %v592
      %v605 = vunpack.c.l.b16 %v593
      %v606 = vpack.c.b16 %v603, %v602
      %v607 = vpack.c.b16 %v605, %v604
      %v611 = vsel %vm432, %v589, 0
      %613 = vmatpush.bf16.msra.mxu0 0
      %614 = vmatpush.bf16.msra.mxu0 0
      %615 = vmatpush.bf16.msra.mxu0 0
      %616 = vmatpush.bf16.msra.mxu0 0
      %617 = vmatpush.bf16.msra.mxu0 0
      %618 = vmatpush.bf16.msra.mxu0 0
      %619 = vmatpush.bf16.msra.mxu0 %v607
      %620 = vmatpush.bf16.msra.mxu0 %v606
      %621 = vmatmul.bf16.gmra.mxu0 %v611
      %v622 = vpop.f32.mrf.mxu0
      %v623 = vadd.f32 %v596, %v622
      %v624 = vpop.f32.mrf.mxu0
      %625 = vdwg.mxu0
      %v626 = vxor.u32 %v623, 2147483648
      %v627 = vmul.f32 %v626, 1.442695
      %v628 = vpow.pop %v627
      %v629 = vadd.f32 %v628, 1.0
      %v630 = vrcp.pop %v629
      %v631 = vmul.f32 %v629, %v630
      %v632 = vsub.f32 1.0, %v631
      %v633 = vmul.f32 %v630, %v632
      %v634 = vadd.f32 %v630, %v633
      %vm635 = vweird.f32 %v629
      %vm636 = vweird.f32 %v630
      %vm637 = vmor %vm635, %vm636
      %v638 = vsel %vm637, %v630, %v634
      %v639 = vand.u32 2147483647, %v629
      %vm640 = vcmp.eq.f32.partialorder %v639, 8.507059e+37
      %v641 = vand.u32 %v629, 2147483648
      %v642 = vor.u32 1.1754944e-38, %v641
      %v643 = vsel %vm640, %v642, %v638
      %v644 = vmul.f32 1.0, %v643
      %vm645 = vcmask 64512
      %646 = vst.msk [vmem:[%s425] sm:$0xff] %vm645, %v644
      %p647 = scmp.lt.s32.totalorder %s24, 1
      %s648 = scalar_select %p647, %s24, 1
      %s649 = smul.addr %s648, 8
      %s650 = scalar_lea.vmem %s10, %s649
      %p651 = scmp.lt.s32.totalorder %s24, 1
      %s652 = scalar_select %p651, %s24, 1
      %s653 = smul.addr %s652, 8
      %s654 = scalar_lea.vmem %s11, %s653
      %p655 = scmp.lt.s32.totalorder %s24, 1
      %s656 = scalar_select %p655, %s24, 1
      %s657 = smul.addr %s656, 8
      %s658 = scalar_lea.vmem %s12, %s657
      // Predicated region
      $region61: #{hoi_vision_transformer_forward.25} parent=59 // pred_check
        %p659 = pneg %p257
      $region62: #{hoi_vision_transformer_forward.25} parent=59 // pred_check_branch
        %661 = sbr.rel (%p659) target = $region64
      $region63: #{hoi_vision_transformer_forward.25} parent=59 // pred_region
        _
      $region64: #{hoi_vision_transformer_forward.25} parent=59 // pred_fallthru
        _
      // Predicated region
      $region65: #{hoi_vision_transformer_forward.25} parent=59 // pred_check
        %p662 = pneg %p283
      $region66: #{hoi_vision_transformer_forward.25} parent=59 // pred_check_branch
        %664 = sbr.rel (%p662) target = $region68
      $region67: #{hoi_vision_transformer_forward.25} parent=59 // pred_region
        _
      $region68: #{hoi_vision_transformer_forward.25} parent=59 // pred_fallthru
        _
      // Predicated region
      $region69: #{hoi_vision_transformer_forward.25} parent=59 // pred_check
        %p665 = pneg %p309
      $region70: #{hoi_vision_transformer_forward.25} parent=59 // pred_check_branch
        %667 = sbr.rel (%p665) target = $region72
      $region71: #{hoi_vision_transformer_forward.25} parent=59 // pred_region
        _
      $region72: #{hoi_vision_transformer_forward.25} parent=59 // pred_fallthru
        _
    $region60: #{hoi_vision_transformer_forward.25} parent=5 // pred_fallthru
      _
    %p668 = scmp.le.s32.totalorder 2, %s19
    // Predicated region
    $region73: #{hoi_vision_transformer_forward.25} parent=5 // pred_check
      %p669 = pneg %p668
    $region74: #{hoi_vision_transformer_forward.25} parent=5 // pred_check_branch
      %671 = sbr.rel (%p669) target = $region76
    $region75: #{hoi_vision_transformer_forward.25} parent=5 // pred_region
      %s672 = ssub.s32 %s19, 2
      // Predicated region
      $region77: #{hoi_vision_transformer_forward.25} parent=75 // pred_check
        %p673 = pneg %p263
      $region78: #{hoi_vision_transformer_forward.25} parent=75 // pred_check_branch
        %675 = sbr.rel (%p673) target = $region80
      $region79: #{hoi_vision_transformer_forward.25} parent=75 // pred_region
        %p676 = scmp.lt.s32.totalorder %s25, 1
        %s677 = scalar_select %p676, %s25, 1
        %s678 = smul.addr %s677, 8
        %s679 = scalar_lea.vmem %s10, %s678
      $region80: #{hoi_vision_transformer_forward.25} parent=75 // pred_fallthru
        _
      // Predicated region
      $region81: #{hoi_vision_transformer_forward.25} parent=75 // pred_check
        %p680 = pneg %p289
      $region82: #{hoi_vision_transformer_forward.25} parent=75 // pred_check_branch
        %682 = sbr.rel (%p680) target = $region84
      $region83: #{hoi_vision_transformer_forward.25} parent=75 // pred_region
        %p683 = scmp.lt.s32.totalorder %s25, 1
        %s684 = scalar_select %p683, %s25, 1
        %s685 = smul.addr %s684, 8
        %s686 = scalar_lea.vmem %s11, %s685
      $region84: #{hoi_vision_transformer_forward.25} parent=75 // pred_fallthru
        _
      // Predicated region
      $region85: #{hoi_vision_transformer_forward.25} parent=75 // pred_check
        %p687 = pneg %p315
      $region86: #{hoi_vision_transformer_forward.25} parent=75 // pred_check_branch
        %689 = sbr.rel (%p687) target = $region88
      $region87: #{hoi_vision_transformer_forward.25} parent=75 // pred_region
        %p690 = scmp.lt.s32.totalorder %s25, 1
        %s691 = scalar_select %p690, %s25, 1
        %s692 = smul.addr %s691, 8
        %s693 = scalar_lea.vmem %s12, %s692
      $region88: #{hoi_vision_transformer_forward.25} parent=75 // pred_fallthru
        _
    $region76: #{hoi_vision_transformer_forward.25} parent=5 // pred_fallthru
      _
  $region6: #{hoi_vision_transformer_forward.25} parent=0 // loop_footer
    %s23 = sadd.s32 1, %s19
  $region7: #{hoi_vision_transformer_forward.25} parent=0 // loop_footer_branch
    %18 = sbr.rel target = $region3
  $region8: #{hoi_vision_transformer_forward.25} parent=0 // loop_exit
    _

// kernel: hoi_vision_transformer_forward.21
$region0: #{hoi_vision_transformer_forward.21}
  #allocation0 [shape = 'u32[]', space=smem, size = 0x4, offset = 0x4, fixed_abs, tag = 'smem constant byte address 0x4 - core index']
  #allocation1 [shape = 'u32[72,128]{1,0:T(1,128)}', space=vmem, size = 0x9000, scoped, tag = 'internal scratch']
  %s0 = inlined_call_operand.vmem [shape: f32[2,5,32], index: 0, kind: input, shape index: {}]
  %s1 = inlined_call_operand.vmem [shape: f32[4,2,16,8], index: 1, kind: input, shape index: {}]
  %s2 = inlined_call_operand.vmem [shape: f32[4,2,16,8], index: 2, kind: input, shape index: {}]
  %s3 = inlined_call_operand.vmem [shape: f32[1,32], index: 3, kind: input, shape index: {}]
  %s4 = inlined_call_operand.vmem [shape: f32[1,32], index: 4, kind: input, shape index: {}]
  %s5 = inlined_call_operand.vmem [shape: bf16[32,32], index: 5, kind: input, shape index: {}]
  %s6 = inlined_call_operand.vmem [shape: f32[1,32], index: 6, kind: input, shape index: {}]
  %s7 = inlined_call_operand.vmem [shape: bf16[32,32], index: 7, kind: input, shape index: {}]
  %s8 = inlined_call_operand.vmem [shape: f32[1,32], index: 8, kind: input, shape index: {}]
  %s9 = inlined_call_operand.vmem [shape: f32[2,5,32], index: 9, kind: output, shape index: {0}]
  %s10 = inlined_call_operand.vmem [shape: f32[2,5,16], index: 10, kind: output, shape index: {1}]
  %11 = xla_tuple %s9, %s10
  %s12 = sld [smem:[#allocation0]]
  $region153: #{hoi_vision_transformer_forward.21} parent=0
    _
  %s14 = ssub.s32 1, %s12
  %s15 = scalar_select 0, %s14, %s12
  $region1: #{hoi_vision_transformer_forward.21} parent=0
    #allocation2 [shape = 'u8[65536]{0}', space=vmem, size = 0x10000, scoped, tag = 'input window, operand 1']
    #allocation3 [shape = 'u8[65536]{0}', space=vmem, size = 0x10000, scoped, tag = 'input window, operand 2']
    loop: start=0, step=1, limit=4
    $region2: #{hoi_vision_transformer_forward.21} parent=1 // loop_pre_header
      _
    $region3: #{hoi_vision_transformer_forward.21} parent=1 // loop_header
      %s17 = sphi 0, %s21
      %p18 = scmp.ge.s32.totalorder %s17, 4
      %s27 = sphi 0, %s29
      %s30 = sphi 0, %s27
      %s31 = sphi 0, %s30
      %s47 = sphi 0, %s31
      %s53 = sphi 0, %s55
      %s56 = sphi 0, %s53
      %s57 = sphi 0, %s56
      %s73 = sphi 0, %s57
      %s79 = sphi 0, %s81
      %s82 = sphi 0, %s79
      %s83 = sphi 0, %s82
      %s99 = sphi 0, %s83
      %s103 = sphi 0, %s103
      %s105 = sphi 0, %s103
      %s106 = sphi 0, %s105
      %s120 = sphi 0, %s106
      %s124 = sphi 0, %s124
      %s126 = sphi 0, %s124
      %s127 = sphi 0, %s126
      %s141 = sphi 0, %s127
      %s145 = sphi 0, %s145
      %s147 = sphi 0, %s145
      %s148 = sphi 0, %s147
      %s162 = sphi 0, %s148
      %s166 = sphi 0, %s166
      %s168 = sphi 0, %s166
      %s169 = sphi 0, %s168
      %s183 = sphi 0, %s169
      %s187 = sphi 0, %s187
      %s189 = sphi 0, %s187
      %s190 = sphi 0, %s189
      %s204 = sphi 0, %s190
      %s208 = sphi 0, %s208
      %s210 = sphi 0, %s208
      %s211 = sphi 0, %s210
      %s225 = sphi 0, %s211
      %s231 = sphi 0, %s233
      %s234 = sphi 0, %s231
      %s235 = sphi 0, %s234
      %s251 = sphi 0, %s235
      %s257 = sphi 0, %s259
      %s260 = sphi 0, %s257
      %s261 = sphi 0, %s260
      %s277 = sphi 0, %s261
    $region4: #{hoi_vision_transformer_forward.21} parent=1 // loop_header_branch
      %20 = sbr.rel (%p18) target = $region8
    $region5: #{hoi_vision_transformer_forward.21} parent=1 // loop_body
      %s22 = ssub.s32 %s17, 1
      %s23 = ssub.s32 %s17, 2
      %s24 = sadd.s32 %s17, 1
      %s25 = ssub.s32 %s17, %s24
      %p26 = scmp.eq.s32.totalorder %s25, 0
      %s28 = sadd.s32 %s27, 1
      %s29 = scalar_select %p26, %s27, %s28
      %p32 = pneg %p26
      %p33 = scmp.eq.s32.totalorder %s17, 1
      %p34 = por %p32, %p33
      %p35 = scmp.ne.s32.totalorder %s27, %s30
      %p36 = scmp.eq.s32.totalorder %s17, 0
      %p37 = por %p35, %p36
      %p38 = scmp.ne.s32.totalorder %s27, %s30
      %p39 = scmp.eq.s32.totalorder %s22, 1
      %p40 = por %p38, %p39
      %p41 = scmp.ne.s32.totalorder %s30, %s31
      %p42 = scmp.eq.s32.totalorder %s22, 0
      %p43 = por %p41, %p42
      %p44 = scmp.ne.s32.totalorder %s30, %s31
      %p45 = scmp.eq.s32.totalorder %s23, 1
      %p46 = por %p44, %p45
      %p48 = scmp.ne.s32.totalorder %s31, %s47
      %p49 = scmp.eq.s32.totalorder %s23, 0
      %p50 = por %p48, %p49
      %s51 = ssub.s32 %s17, %s24
      %p52 = scmp.eq.s32.totalorder %s51, 0
      %s54 = sadd.s32 %s53, 1
      %s55 = scalar_select %p52, %s53, %s54
      %p58 = pneg %p52
      %p59 = scmp.eq.s32.totalorder %s17, 1
      %p60 = por %p58, %p59
      %p61 = scmp.ne.s32.totalorder %s53, %s56
      %p62 = scmp.eq.s32.totalorder %s17, 0
      %p63 = por %p61, %p62
      %p64 = scmp.ne.s32.totalorder %s53, %s56
      %p65 = scmp.eq.s32.totalorder %s22, 1
      %p66 = por %p64, %p65
      %p67 = scmp.ne.s32.totalorder %s56, %s57
      %p68 = scmp.eq.s32.totalorder %s22, 0
      %p69 = por %p67, %p68
      %p70 = scmp.ne.s32.totalorder %s56, %s57
      %p71 = scmp.eq.s32.totalorder %s23, 1
      %p72 = por %p70, %p71
      %p74 = scmp.ne.s32.totalorder %s57, %s73
      %p75 = scmp.eq.s32.totalorder %s23, 0
      %p76 = por %p74, %p75
      %s77 = ssub.s32 %s17, %s24
      %p78 = scmp.eq.s32.totalorder %s77, 0
      %s80 = sadd.s32 %s79, 1
      %s81 = scalar_select %p78, %s79, %s80
      %p84 = pneg %p78
      %p85 = scmp.eq.s32.totalorder %s17, 1
      %p86 = por %p84, %p85
      %p87 = scmp.ne.s32.totalorder %s79, %s82
      %p88 = scmp.eq.s32.totalorder %s17, 0
      %p89 = por %p87, %p88
      %p90 = scmp.ne.s32.totalorder %s79, %s82
      %p91 = scmp.eq.s32.totalorder %s22, 1
      %p92 = por %p90, %p91
      %p93 = scmp.ne.s32.totalorder %s82, %s83
      %p94 = scmp.eq.s32.totalorder %s22, 0
      %p95 = por %p93, %p94
      %p96 = scmp.ne.s32.totalorder %s82, %s83
      %p97 = scmp.eq.s32.totalorder %s23, 1
      %p98 = por %p96, %p97
      %p100 = scmp.ne.s32.totalorder %s83, %s99
      %p101 = scmp.eq.s32.totalorder %s23, 0
      %p102 = por %p100, %p101
      %s104 = sadd.s32 %s103, 1
      %p107 = scmp.eq.s32.totalorder %s17, 1
      %p108 = scmp.ne.s32.totalorder %s103, %s105
      %p109 = scmp.eq.s32.totalorder %s17, 0
      %p110 = por %p108, %p109
      %p111 = scmp.ne.s32.totalorder %s103, %s105
      %p112 = scmp.eq.s32.totalorder %s22, 1
      %p113 = por %p111, %p112
      %p114 = scmp.ne.s32.totalorder %s105, %s106
      %p115 = scmp.eq.s32.totalorder %s22, 0
      %p116 = por %p114, %p115
      %p117 = scmp.ne.s32.totalorder %s105, %s106
      %p118 = scmp.eq.s32.totalorder %s23, 1
      %p119 = por %p117, %p118
      %p121 = scmp.ne.s32.totalorder %s106, %s120
      %p122 = scmp.eq.s32.totalorder %s23, 0
      %p123 = por %p121, %p122
      %s125 = sadd.s32 %s124, 1
      %p128 = scmp.eq.s32.totalorder %s17, 1
      %p129 = scmp.ne.s32.totalorder %s124, %s126
      %p130 = scmp.eq.s32.totalorder %s17, 0
      %p131 = por %p129, %p130
      %p132 = scmp.ne.s32.totalorder %s124, %s126
      %p133 = scmp.eq.s32.totalorder %s22, 1
      %p134 = por %p132, %p133
      %p135 = scmp.ne.s32.totalorder %s126, %s127
      %p136 = scmp.eq.s32.totalorder %s22, 0
      %p137 = por %p135, %p136
      %p138 = scmp.ne.s32.totalorder %s126, %s127
      %p139 = scmp.eq.s32.totalorder %s23, 1
      %p140 = por %p138, %p139
      %p142 = scmp.ne.s32.totalorder %s127, %s141
      %p143 = scmp.eq.s32.totalorder %s23, 0
      %p144 = por %p142, %p143
      %s146 = sadd.s32 %s145, 1
      %p149 = scmp.eq.s32.totalorder %s17, 1
      %p150 = scmp.ne.s32.totalorder %s145, %s147
      %p151 = scmp.eq.s32.totalorder %s17, 0
      %p152 = por %p150, %p151
      %p153 = scmp.ne.s32.totalorder %s145, %s147
      %p154 = scmp.eq.s32.totalorder %s22, 1
      %p155 = por %p153, %p154
      %p156 = scmp.ne.s32.totalorder %s147, %s148
      %p157 = scmp.eq.s32.totalorder %s22, 0
      %p158 = por %p156, %p157
      %p159 = scmp.ne.s32.totalorder %s147, %s148
      %p160 = scmp.eq.s32.totalorder %s23, 1
      %p161 = por %p159, %p160
      %p163 = scmp.ne.s32.totalorder %s148, %s162
      %p164 = scmp.eq.s32.totalorder %s23, 0
      %p165 = por %p163, %p164
      %s167 = sadd.s32 %s166, 1
      %p170 = scmp.eq.s32.totalorder %s17, 1
      %p171 = scmp.ne.s32.totalorder %s166, %s168
      %p172 = scmp.eq.s32.totalorder %s17, 0
      %p173 = por %p171, %p172
      %p174 = scmp.ne.s32.totalorder %s166, %s168
      %p175 = scmp.eq.s32.totalorder %s22, 1
      %p176 = por %p174, %p175
      %p177 = scmp.ne.s32.totalorder %s168, %s169
      %p178 = scmp.eq.s32.totalorder %s22, 0
      %p179 = por %p177, %p178
      %p180 = scmp.ne.s32.totalorder %s168, %s169
      %p181 = scmp.eq.s32.totalorder %s23, 1
      %p182 = por %p180, %p181
      %p184 = scmp.ne.s32.totalorder %s169, %s183
      %p185 = scmp.eq.s32.totalorder %s23, 0
      %p186 = por %p184, %p185
      %s188 = sadd.s32 %s187, 1
      %p191 = scmp.eq.s32.totalorder %s17, 1
      %p192 = scmp.ne.s32.totalorder %s187, %s189
      %p193 = scmp.eq.s32.totalorder %s17, 0
      %p194 = por %p192, %p193
      %p195 = scmp.ne.s32.totalorder %s187, %s189
      %p196 = scmp.eq.s32.totalorder %s22, 1
      %p197 = por %p195, %p196
      %p198 = scmp.ne.s32.totalorder %s189, %s190
      %p199 = scmp.eq.s32.totalorder %s22, 0
      %p200 = por %p198, %p199
      %p201 = scmp.ne.s32.totalorder %s189, %s190
      %p202 = scmp.eq.s32.totalorder %s23, 1
      %p203 = por %p201, %p202
      %p205 = scmp.ne.s32.totalorder %s190, %s204
      %p206 = scmp.eq.s32.totalorder %s23, 0
      %p207 = por %p205, %p206
      %s209 = sadd.s32 %s208, 1
      %p212 = scmp.eq.s32.totalorder %s17, 1
      %p213 = scmp.ne.s32.totalorder %s208, %s210
      %p214 = scmp.eq.s32.totalorder %s17, 0
      %p215 = por %p213, %p214
      %p216 = scmp.ne.s32.totalorder %s208, %s210
      %p217 = scmp.eq.s32.totalorder %s22, 1
      %p218 = por %p216, %p217
      %p219 = scmp.ne.s32.totalorder %s210, %s211
      %p220 = scmp.eq.s32.totalorder %s22, 0
      %p221 = por %p219, %p220
      %p222 = scmp.ne.s32.totalorder %s210, %s211
      %p223 = scmp.eq.s32.totalorder %s23, 1
      %p224 = por %p222, %p223
      %p226 = scmp.ne.s32.totalorder %s211, %s225
      %p227 = scmp.eq.s32.totalorder %s23, 0
      %p228 = por %p226, %p227
      %s229 = ssub.s32 %s17, %s24
      %p230 = scmp.eq.s32.totalorder %s229, 0
      %s232 = sadd.s32 %s231, 1
      %s233 = scalar_select %p230, %s231, %s232
      %p236 = pneg %p230
      %p237 = scmp.eq.s32.totalorder %s17, 1
      %p238 = por %p236, %p237
      %p239 = scmp.ne.s32.totalorder %s231, %s234
      %p240 = scmp.eq.s32.totalorder %s17, 0
      %p241 = por %p239, %p240
      %p242 = scmp.ne.s32.totalorder %s231, %s234
      %p243 = scmp.eq.s32.totalorder %s22, 1
      %p244 = por %p242, %p243
      %p245 = scmp.ne.s32.totalorder %s234, %s235
      %p246 = scmp.eq.s32.totalorder %s22, 0
      %p247 = por %p245, %p246
      %p248 = scmp.ne.s32.totalorder %s234, %s235
      %p249 = scmp.eq.s32.totalorder %s23, 1
      %p250 = por %p248, %p249
      %p252 = scmp.ne.s32.totalorder %s235, %s251
      %p253 = scmp.eq.s32.totalorder %s23, 0
      %p254 = por %p252, %p253
      %s255 = ssub.s32 %s17, %s24
      %p256 = scmp.eq.s32.totalorder %s255, 0
      %s258 = sadd.s32 %s257, 1
      %s259 = scalar_select %p256, %s257, %s258
      %p262 = pneg %p256
      %p263 = scmp.eq.s32.totalorder %s17, 1
      %p264 = por %p262, %p263
      %p265 = scmp.ne.s32.totalorder %s257, %s260
      %p266 = scmp.eq.s32.totalorder %s17, 0
      %p267 = por %p265, %p266
      %p268 = scmp.ne.s32.totalorder %s257, %s260
      %p269 = scmp.eq.s32.totalorder %s22, 1
      %p270 = por %p268, %p269
      %p271 = scmp.ne.s32.totalorder %s260, %s261
      %p272 = scmp.eq.s32.totalorder %s22, 0
      %p273 = por %p271, %p272
      %p274 = scmp.ne.s32.totalorder %s260, %s261
      %p275 = scmp.eq.s32.totalorder %s23, 1
      %p276 = por %p274, %p275
      %p278 = scmp.ne.s32.totalorder %s261, %s277
      %p279 = scmp.eq.s32.totalorder %s23, 0
      %p280 = por %p278, %p279
      %p281 = scmp.le.s32.totalorder 1, %s17
      %p282 = scmp.lt.s32.totalorder %s17, 3
      %p283 = pnand %p281, %p282
      %p284 = pneg %p283
      // Predicated region
      $region9: #{hoi_vision_transformer_forward.21} parent=5 // pred_check
        _
      $region10: #{hoi_vision_transformer_forward.21} parent=5 // pred_check_branch
        %286 = sbr.rel (%p283) target = $region12
      $region11: #{hoi_vision_transformer_forward.21} parent=5 // pred_region
        %s287 = ssub.s32 %s17, 1
        // Predicated region
        $region13: #{hoi_vision_transformer_forward.21} parent=11 // pred_check
          %p288 = pneg %p116
        $region14: #{hoi_vision_transformer_forward.21} parent=11 // pred_check_branch
          %290 = sbr.rel (%p288) target = $region16
        $region15: #{hoi_vision_transformer_forward.21} parent=11 // pred_region
          _
        $region16: #{hoi_vision_transformer_forward.21} parent=11 // pred_fallthru
          _
        // Predicated region
        $region17: #{hoi_vision_transformer_forward.21} parent=11 // pred_check
          %p291 = pneg %p137
        $region18: #{hoi_vision_transformer_forward.21} parent=11 // pred_check_branch
          %293 = sbr.rel (%p291) target = $region20
        $region19: #{hoi_vision_transformer_forward.21} parent=11 // pred_region
          _
        $region20: #{hoi_vision_transformer_forward.21} parent=11 // pred_fallthru
          _
        // Predicated region
        $region21: #{hoi_vision_transformer_forward.21} parent=11 // pred_check
          %p294 = pneg %p158
        $region22: #{hoi_vision_transformer_forward.21} parent=11 // pred_check_branch
          %296 = sbr.rel (%p294) target = $region24
        $region23: #{hoi_vision_transformer_forward.21} parent=11 // pred_region
          _
        $region24: #{hoi_vision_transformer_forward.21} parent=11 // pred_fallthru
          _
        // Predicated region
        $region25: #{hoi_vision_transformer_forward.21} parent=11 // pred_check
          %p297 = pneg %p179
        $region26: #{hoi_vision_transformer_forward.21} parent=11 // pred_check_branch
          %299 = sbr.rel (%p297) target = $region28
        $region27: #{hoi_vision_transformer_forward.21} parent=11 // pred_region
          _
        $region28: #{hoi_vision_transformer_forward.21} parent=11 // pred_fallthru
          _
        // Predicated region
        $region29: #{hoi_vision_transformer_forward.21} parent=11 // pred_check
          %p300 = pneg %p200
        $region30: #{hoi_vision_transformer_forward.21} parent=11 // pred_check_branch
          %302 = sbr.rel (%p300) target = $region32
        $region31: #{hoi_vision_transformer_forward.21} parent=11 // pred_region
          _
        $region32: #{hoi_vision_transformer_forward.21} parent=11 // pred_fallthru
          _
        // Predicated region
        $region33: #{hoi_vision_transformer_forward.21} parent=11 // pred_check
          %p303 = pneg %p221
        $region34: #{hoi_vision_transformer_forward.21} parent=11 // pred_check_branch
          %305 = sbr.rel (%p303) target = $region36
        $region35: #{hoi_vision_transformer_forward.21} parent=11 // pred_region
          _
        $region36: #{hoi_vision_transformer_forward.21} parent=11 // pred_fallthru
          _
      $region12: #{hoi_vision_transformer_forward.21} parent=5 // pred_fallthru
        _
      %p306 = scmp.lt.s32.totalorder %s17, 2
      // Predicated region
      $region37: #{hoi_vision_transformer_forward.21} parent=5 // pred_check
        %p307 = pneg %p306
      $region38: #{hoi_vision_transformer_forward.21} parent=5 // pred_check_branch
        %309 = sbr.rel (%p307) target = $region40
      $region39: #{hoi_vision_transformer_forward.21} parent=5 // pred_region
        // Predicated region
        $region41: #{hoi_vision_transformer_forward.21} parent=39 // pred_check
          %p310 = pneg %p37
        $region42: #{hoi_vision_transformer_forward.21} parent=39 // pred_check_branch
          %312 = sbr.rel (%p310) target = $region44
        $region43: #{hoi_vision_transformer_forward.21} parent=39 // pred_region
          %p313 = scmp.lt.s32.totalorder %s17, 1
          %s314 = scalar_select %p313, %s17, 1
          %s315 = smul.addr %s314, 8
          %s316 = scalar_lea.vmem %s0, %s315
        $region44: #{hoi_vision_transformer_forward.21} parent=39 // pred_fallthru
          _
        // Predicated region
        $region45: #{hoi_vision_transformer_forward.21} parent=39 // pred_check
          %p317 = pneg %p63
        $region46: #{hoi_vision_transformer_forward.21} parent=39 // pred_check_branch
          %319 = sbr.rel (%p317) target = $region48
        $region47: #{hoi_vision_transformer_forward.21} parent=39 // pred_region
          %s320 = sand.u32 %s53, 1
          %s321 = sand.u32 %s53, 1
          %s322 = smul.addr %s321, 64
          %s323 = scalar_lea.vmem [#allocation2], %s322
          %s324 = smul.addr %s17, 2
          %s325 = smul.addr %s324, 8
          %s326 = scalar_lea.vmem %s1, %s325
          // Predicated region
          $region49: #{hoi_vision_transformer_forward.21} parent=47 // pred_check
            _
          $region50: #{hoi_vision_transformer_forward.21} parent=47 // pred_check_branch
            %328 = sbr.rel (0) target = $region52
          $region51: #{hoi_vision_transformer_forward.21} parent=47 // pred_region
            // Predicated region
            $region53: #{hoi_vision_transformer_forward.21} parent=51 // pred_check
              _
            $region54: #{hoi_vision_transformer_forward.21} parent=51 // pred_check_branch
              %330 = sbr.rel (0) target = $region56
            $region55: #{hoi_vision_transformer_forward.21} parent=51 // pred_region
              // Predicated region
              $region68: #{hoi_vision_transformer_forward.21} parent=55 // pred_check
                _
              $region69: #{hoi_vision_transformer_forward.21} parent=55 // pred_check_branch
                %360 = sbr.rel (0) target = $region71
              $region70: #{hoi_vision_transformer_forward.21} parent=55 // pred_region
                loop: start=0, step=1, limit=1
                $region72: #{hoi_vision_transformer_forward.21} parent=70 // loop_pre_header
                  _
                $region73: #{hoi_vision_transformer_forward.21} parent=70 // loop_header
                  %s362 = sphi 0, %s366
                  %p363 = scmp.ge.s32.totalorder %s362, 1
                  %s367 = sphi %s326, %s326
                  %s368 = sphi %s323, %s323
                $region74: #{hoi_vision_transformer_forward.21} parent=70 // loop_header_branch
                  %365 = sbr.rel (%p363) target = $region78
                $region75: #{hoi_vision_transformer_forward.21} parent=70 // loop_body
                  %v369 = vld [vmem:[%s367] sm:$0xff]
                  %370 = vst [vmem:[%s368] sm:$0xff] %v369
                  %v371 = vld [vmem:[%s367 + $0x8] sm:$0xff]
                  %372 = vst [vmem:[%s368 + $0x8] sm:$0xff] %v371
                  %v373 = vld [vmem:[%s367 + $0x20] sm:$0xff]
                  %374 = vst [vmem:[%s368 + $0x10] sm:$0xff] %v373
                  %v375 = vld [vmem:[%s367 + $0x28] sm:$0xff]
                  %376 = vst [vmem:[%s368 + $0x18] sm:$0xff] %v375
                  %v377 = vld [vmem:[%s367 + $0x40] sm:$0xff]
                  %378 = vst [vmem:[%s368 + $0x20] sm:$0xff] %v377
                  %v379 = vld [vmem:[%s367 + $0x48] sm:$0xff]
                  %380 = vst [vmem:[%s368 + $0x28] sm:$0xff] %v379
                  %v381 = vld [vmem:[%s367 + $0x60] sm:$0xff]
                  %382 = vst [vmem:[%s368 + $0x30] sm:$0xff] %v381
                  %v383 = vld [vmem:[%s367 + $0x68] sm:$0xff]
                  %384 = vst [vmem:[%s368 + $0x38] sm:$0xff] %v383
                $region76: #{hoi_vision_transformer_forward.21} parent=70 // loop_footer
                  %s366 = sadd.s32 1, %s362
                $region77: #{hoi_vision_transformer_forward.21} parent=70 // loop_footer_branch
                  %361 = sbr.rel target = $region73
                $region78: #{hoi_vision_transformer_forward.21} parent=70 // loop_exit
                  _
              $region71: #{hoi_vision_transformer_forward.21} parent=55 // pred_fallthru
                _
              // Predicated region
              $region79: #{hoi_vision_transformer_forward.21} parent=55 // pred_check
                _
              $region80: #{hoi_vision_transformer_forward.21} parent=55 // pred_check_branch
                %386 = sbr.rel target = $region82
              $region81: #{hoi_vision_transformer_forward.21} parent=55 // pred_region
                _
              $region82: #{hoi_vision_transformer_forward.21} parent=55 // pred_fallthru
                _
            $region56: #{hoi_vision_transformer_forward.21} parent=51 // pred_fallthru
              _
            // Predicated region
            $region57: #{hoi_vision_transformer_forward.21} parent=51 // pred_check
              _
            $region58: #{hoi_vision_transformer_forward.21} parent=51 // pred_check_branch
              %332 = sbr.rel target = $region60
            $region59: #{hoi_vision_transformer_forward.21} parent=51 // pred_region
              %s334 = ssub.s32 256, 1
              loop: start=0, step=1, limit=1
              $region61: #{hoi_vision_transformer_forward.21} parent=59 // loop_pre_header
                _
              $region62: #{hoi_vision_transformer_forward.21} parent=59 // loop_header
                %s336 = sphi 0, %s340
                %p337 = scmp.ge.s32.totalorder %s336, 1
                %s341 = sphi %s326, %s326
                %s342 = sphi %s323, %s323
              $region63: #{hoi_vision_transformer_forward.21} parent=59 // loop_header_branch
                %339 = sbr.rel (%p337) target = $region67
              $region64: #{hoi_vision_transformer_forward.21} parent=59 // loop_body
                %v343 = vld [vmem:[%s341] sm:%s334]
                %344 = vst [vmem:[%s342] sm:%s334] %v343
                %v345 = vld [vmem:[%s341 + $0x8] sm:%s334]
                %346 = vst [vmem:[%s342 + $0x8] sm:%s334] %v345
                %v347 = vld [vmem:[%s341 + $0x20] sm:%s334]
                %348 = vst [vmem:[%s342 + $0x10] sm:%s334] %v347
                %v349 = vld [vmem:[%s341 + $0x28] sm:%s334]
                %350 = vst [vmem:[%s342 + $0x18] sm:%s334] %v349
                %v351 = vld [vmem:[%s341 + $0x40] sm:%s334]
                %352 = vst [vmem:[%s342 + $0x20] sm:%s334] %v351
                %v353 = vld [vmem:[%s341 + $0x48] sm:%s334]
                %354 = vst [vmem:[%s342 + $0x28] sm:%s334] %v353
                %v355 = vld [vmem:[%s341 + $0x60] sm:%s334]
                %356 = vst [vmem:[%s342 + $0x30] sm:%s334] %v355
                %v357 = vld [vmem:[%s341 + $0x68] sm:%s334]
                %358 = vst [vmem:[%s342 + $0x38] sm:%s334] %v357
              $region65: #{hoi_vision_transformer_forward.21} parent=59 // loop_footer
                %s340 = sadd.s32 1, %s336
              $region66: #{hoi_vision_transformer_forward.21} parent=59 // loop_footer_branch
                %335 = sbr.rel target = $region62
              $region67: #{hoi_vision_transformer_forward.21} parent=59 // loop_exit
                _
            $region60: #{hoi_vision_transformer_forward.21} parent=51 // pred_fallthru
              _
          $region52: #{hoi_vision_transformer_forward.21} parent=47 // pred_fallthru
            _
          %387 = vnop
        $region48: #{hoi_vision_transformer_forward.21} parent=39 // pred_fallthru
          _
        // Predicated region
        $region83: #{hoi_vision_transformer_forward.21} parent=39 // pred_check
          %p388 = pneg %p89
        $region84: #{hoi_vision_transformer_forward.21} parent=39 // pred_check_branch
          %390 = sbr.rel (%p388) target = $region86
        $region85: #{hoi_vision_transformer_forward.21} parent=39 // pred_region
          %s391 = sand.u32 %s79, 1
          %s392 = sand.u32 %s79, 1
          %s393 = smul.addr %s392, 64
          %s394 = scalar_lea.vmem [#allocation3], %s393
          %s395 = smul.addr %s17, 2
          %s396 = smul.addr %s395, 8
          %s397 = scalar_lea.vmem %s2, %s396
          // Predicated region
          $region87: #{hoi_vision_transformer_forward.21} parent=85 // pred_check
            _
          $region88: #{hoi_vision_transformer_forward.21} parent=85 // pred_check_branch
            %399 = sbr.rel (0) target = $region90
          $region89: #{hoi_vision_transformer_forward.21} parent=85 // pred_region
            // Predicated region
            $region91: #{hoi_vision_transformer_forward.21} parent=89 // pred_check
              _
            $region92: #{hoi_vision_transformer_forward.21} parent=89 // pred_check_branch
              %401 = sbr.rel (0) target = $region94
            $region93: #{hoi_vision_transformer_forward.21} parent=89 // pred_region
              // Predicated region
              $region106: #{hoi_vision_transformer_forward.21} parent=93 // pred_check
                _
              $region107: #{hoi_vision_transformer_forward.21} parent=93 // pred_check_branch
                %431 = sbr.rel (0) target = $region109
              $region108: #{hoi_vision_transformer_forward.21} parent=93 // pred_region
                loop: start=0, step=1, limit=1
                $region110: #{hoi_vision_transformer_forward.21} parent=108 // loop_pre_header
                  _
                $region111: #{hoi_vision_transformer_forward.21} parent=108 // loop_header
                  %s433 = sphi 0, %s437
                  %p434 = scmp.ge.s32.totalorder %s433, 1
                  %s438 = sphi %s397, %s397
                  %s439 = sphi %s394, %s394
                $region112: #{hoi_vision_transformer_forward.21} parent=108 // loop_header_branch
                  %436 = sbr.rel (%p434) target = $region116
                $region113: #{hoi_vision_transformer_forward.21} parent=108 // loop_body
                  %v440 = vld [vmem:[%s438] sm:$0xff]
                  %441 = vst [vmem:[%s439] sm:$0xff] %v440
                  %v442 = vld [vmem:[%s438 + $0x8] sm:$0xff]
                  %443 = vst [vmem:[%s439 + $0x8] sm:$0xff] %v442
                  %v444 = vld [vmem:[%s438 + $0x20] sm:$0xff]
                  %445 = vst [vmem:[%s439 + $0x10] sm:$0xff] %v444
                  %v446 = vld [vmem:[%s438 + $0x28] sm:$0xff]
                  %447 = vst [vmem:[%s439 + $0x18] sm:$0xff] %v446
                  %v448 = vld [vmem:[%s438 + $0x40] sm:$0xff]
                  %449 = vst [vmem:[%s439 + $0x20] sm:$0xff] %v448
                  %v450 = vld [vmem:[%s438 + $0x48] sm:$0xff]
                  %451 = vst [vmem:[%s439 + $0x28] sm:$0xff] %v450
                  %v452 = vld [vmem:[%s438 + $0x60] sm:$0xff]
                  %453 = vst [vmem:[%s439 + $0x30] sm:$0xff] %v452
                  %v454 = vld [vmem:[%s438 + $0x68] sm:$0xff]
                  %455 = vst [vmem:[%s439 + $0x38] sm:$0xff] %v454
                $region114: #{hoi_vision_transformer_forward.21} parent=108 // loop_footer
                  %s437 = sadd.s32 1, %s433
                $region115: #{hoi_vision_transformer_forward.21} parent=108 // loop_footer_branch
                  %432 = sbr.rel target = $region111
                $region116: #{hoi_vision_transformer_forward.21} parent=108 // loop_exit
                  _
              $region109: #{hoi_vision_transformer_forward.21} parent=93 // pred_fallthru
                _
              // Predicated region
              $region117: #{hoi_vision_transformer_forward.21} parent=93 // pred_check
                _
              $region118: #{hoi_vision_transformer_forward.21} parent=93 // pred_check_branch
                %457 = sbr.rel target = $region120
              $region119: #{hoi_vision_transformer_forward.21} parent=93 // pred_region
                _
              $region120: #{hoi_vision_transformer_forward.21} parent=93 // pred_fallthru
                _
            $region94: #{hoi_vision_transformer_forward.21} parent=89 // pred_fallthru
              _
            // Predicated region
            $region95: #{hoi_vision_transformer_forward.21} parent=89 // pred_check
              _
            $region96: #{hoi_vision_transformer_forward.21} parent=89 // pred_check_branch
              %403 = sbr.rel target = $region98
            $region97: #{hoi_vision_transformer_forward.21} parent=89 // pred_region
              %s405 = ssub.s32 256, 1
              loop: start=0, step=1, limit=1
              $region99: #{hoi_vision_transformer_forward.21} parent=97 // loop_pre_header
                _
              $region100: #{hoi_vision_transformer_forward.21} parent=97 // loop_header
                %s407 = sphi 0, %s411
                %p408 = scmp.ge.s32.totalorder %s407, 1
                %s412 = sphi %s397, %s397
                %s413 = sphi %s394, %s394
              $region101: #{hoi_vision_transformer_forward.21} parent=97 // loop_header_branch
                %410 = sbr.rel (%p408) target = $region105
              $region102: #{hoi_vision_transformer_forward.21} parent=97 // loop_body
                %v414 = vld [vmem:[%s412] sm:%s405]
                %415 = vst [vmem:[%s413] sm:%s405] %v414
                %v416 = vld [vmem:[%s412 + $0x8] sm:%s405]
                %417 = vst [vmem:[%s413 + $0x8] sm:%s405] %v416
                %v418 = vld [vmem:[%s412 + $0x20] sm:%s405]
                %419 = vst [vmem:[%s413 + $0x10] sm:%s405] %v418
                %v420 = vld [vmem:[%s412 + $0x28] sm:%s405]
                %421 = vst [vmem:[%s413 + $0x18] sm:%s405] %v420
                %v422 = vld [vmem:[%s412 + $0x40] sm:%s405]
                %423 = vst [vmem:[%s413 + $0x20] sm:%s405] %v422
                %v424 = vld [vmem:[%s412 + $0x48] sm:%s405]
                %425 = vst [vmem:[%s413 + $0x28] sm:%s405] %v424
                %v426 = vld [vmem:[%s412 + $0x60] sm:%s405]
                %427 = vst [vmem:[%s413 + $0x30] sm:%s405] %v426
                %v428 = vld [vmem:[%s412 + $0x68] sm:%s405]
                %429 = vst [vmem:[%s413 + $0x38] sm:%s405] %v428
              $region103: #{hoi_vision_transformer_forward.21} parent=97 // loop_footer
                %s411 = sadd.s32 1, %s407
              $region104: #{hoi_vision_transformer_forward.21} parent=97 // loop_footer_branch
                %406 = sbr.rel target = $region100
              $region105: #{hoi_vision_transformer_forward.21} parent=97 // loop_exit
                _
            $region98: #{hoi_vision_transformer_forward.21} parent=89 // pred_fallthru
              _
          $region90: #{hoi_vision_transformer_forward.21} parent=85 // pred_fallthru
            _
          %458 = vnop
        $region86: #{hoi_vision_transformer_forward.21} parent=39 // pred_fallthru
          _
      $region40: #{hoi_vision_transformer_forward.21} parent=5 // pred_fallthru
        _
      %p459 = scmp.le.s32.totalorder 1, %s17
      %p460 = scmp.lt.s32.totalorder %s17, 3
      %p461 = pnand %p459, %p460
      %p462 = pneg %p461
      // Predicated region
      $region121: #{hoi_vision_transformer_forward.21} parent=5 // pred_check
        _
      $region122: #{hoi_vision_transformer_forward.21} parent=5 // pred_check_branch
        %464 = sbr.rel (%p461) target = $region124
      $region123: #{hoi_vision_transformer_forward.21} parent=5 // pred_region
        %s465 = ssub.s32 %s17, 1
        %s466 = sand.u32 %s56, 1
        %s467 = sand.u32 %s56, 1
        %s468 = smul.addr %s467, 64
        %s469 = scalar_lea.vmem [#allocation2], %s468
        // Predicated region
        $region125: #{hoi_vision_transformer_forward.21} parent=123 // pred_check
          %p470 = pneg %p69
        $region126: #{hoi_vision_transformer_forward.21} parent=123 // pred_check_branch
          %472 = sbr.rel (%p470) target = $region128
        $region127: #{hoi_vision_transformer_forward.21} parent=123 // pred_region
          _
        $region128: #{hoi_vision_transformer_forward.21} parent=123 // pred_fallthru
          _
        %s473 = sand.u32 %s82, 1
        %s474 = sand.u32 %s82, 1
        %s475 = smul.addr %s474, 64
        %s476 = scalar_lea.vmem [#allocation3], %s475
        // Predicated region
        $region129: #{hoi_vision_transformer_forward.21} parent=123 // pred_check
          %p477 = pneg %p95
        $region130: #{hoi_vision_transformer_forward.21} parent=123 // pred_check_branch
          %479 = sbr.rel (%p477) target = $region132
        $region131: #{hoi_vision_transformer_forward.21} parent=123 // pred_region
          _
        $region132: #{hoi_vision_transformer_forward.21} parent=123 // pred_fallthru
          _
        %p480 = scmp.lt.s32.totalorder %s22, 1
        %s481 = scalar_select %p480, %s22, 1
        %s482 = smul.addr %s481, 8
        %s483 = scalar_lea.vmem %s0, %s482
        %p484 = pneg %p43
        %p485 = pneg %p40
        %s486 = sand.u32 %s56, 1
        %s487 = sand.u32 %s56, 1
        %s488 = smul.addr %s487, 64
        %s489 = scalar_lea.vmem [#allocation2], %s488
        %p490 = pneg %p69
        %p491 = pneg %p66
        %s492 = sand.u32 %s82, 1
        %s493 = sand.u32 %s82, 1
        %s494 = smul.addr %s493, 64
        %s495 = scalar_lea.vmem [#allocation3], %s494
        %p496 = pneg %p95
        %p497 = pneg %p92
        %p498 = pneg %p116
        %p499 = pneg %p113
        %p500 = pneg %p137
        %p501 = pneg %p134
        %p502 = pneg %p158
        %p503 = pneg %p155
        %p504 = pneg %p179
        %p505 = pneg %p176
        %p506 = pneg %p200
        %p507 = pneg %p197
        %p508 = pneg %p221
        %p509 = pneg %p218
        %p510 = pneg %p247
        %p511 = pneg %p244
        %p512 = scmp.lt.s32.totalorder %s22, 1
        %s513 = scalar_select %p512, %s22, 1
        %s514 = smul.addr %s513, 8
        %s515 = scalar_lea.vmem %s9, %s514
        %p516 = pneg %p273
        %p517 = pneg %p270
        %p518 = scmp.lt.s32.totalorder %s22, 1
        %s519 = scalar_select %p518, %s22, 1
        %s520 = smul.addr %s519, 8
        %s521 = scalar_lea.vmem %s10, %s520
        %p522 = scmp.lt.s32.totalorder %s22, 1
        %s523 = scalar_select %p522, %s22, 1
        %s524 = smul.addr %s523, 8
        %s525 = scalar_lea.vmem %s0, %s524
        %p526 = scmp.lt.s32.totalorder %s22, 1
        %s527 = scalar_select %p526, %s22, 1
        %s528 = smul.addr %s527, 8
        %s529 = scalar_lea.vmem %s9, %s528
        %p530 = scmp.lt.s32.totalorder %s22, 1
        %s531 = scalar_select %p530, %s22, 1
        %s532 = smul.addr %s531, 8
        %s533 = scalar_lea.vmem %s10, %s532
        %v535 = vld [vmem:[%s525] sm:$0x1f]
        %vm536 = vcmask 258048
        %v537 = vsel %vm536, %v535, 0.0
        %538 = vadd.xlane.f32.xlu0 %v537
        %v539 = vpop.xlane.xlu0 %538
        %v540 = vrcp.pop 32.0
        %v541 = vmul.f32 32.0, %v540
        %v542 = vsub.f32 1.0, %v541
        %v543 = vmul.f32 %v540, %v542
        %v544 = vadd.f32 %v540, %v543
        %vm545 = vweird.f32 %v540
        %v546 = vsel %vm545, %v540, %v544
        %v547 = vmul.f32 %v539, %v546
        %v548 = vsub.f32 %v535, %v547
        %v549 = vmul.f32 %v548, %v548
        %v550 = vsel %vm536, %v549, 0.0
        %551 = vadd.xlane.f32.xlu0 %v550
        %v552 = vpop.xlane.xlu0 %551
        %v553 = vmul.f32 %v552, %v546
        %v554 = vadd.f32 %v553, 1e-05
        %v555 = vrsqrt.pop %v554
        %v556 = vmul.f32 %v555, %v554
        %v557 = vmul.f32 %v556, %v555
        %v558 = vmul.f32 0.5, %v557
        %v559 = vsub.f32 1.5, %v558
        %v560 = vmul.f32 %v555, %v559
        %vm561 = vweird.f32 %v554
        %vm562 = vweird.f32 %v555
        %vm563 = vmor %vm561, %vm562
        %v564 = vsel %vm563, %v555, %v560
        %v565 = vmul.f32 %v548, %v564
        %v566 = vld [vmem:[%s3] sm:$0x1]
        %v568 = vperm.slane %v566, 0
        %v570 = vmul.f32 %v565, %v568
        %v571 = vld [vmem:[%s4] sm:$0x1]
        %v573 = vperm.slane %v571, 0
        %v575 = vadd.f32 %v570, %v573
        %v576 = vpack.c.bf16 %v575, %v575
        %v577 = vld [vmem:[%s5] sm:$0xf]
        %v578 = vld [vmem:[%s5 + $0x4] sm:$0xf]
        %v579 = vld [vmem:[%s5 + $0x8] sm:$0xf]
        %v580 = vld [vmem:[%s5 + $0xc] sm:$0xf]
        %v581 = vld [vmem:[%s6] sm:$0x1]
        %v583 = vperm.slane %v581, 0
        %v589 = vunpack.c.l.b16 %v577
        %v590 = vunpack.c.l.b16 %v578
        %v591 = vunpack.c.l.b16 %v579
        %v592 = vunpack.c.l.b16 %v580
        %v593 = vpack.c.b16 %v590, %v589
        %v594 = vpack.c.b16 %v592, %v591
        %vm597 = vcmask 261120
        %v599 = vsel %vm597, %v576, 0
        %601 = vmatpush.bf16.msra.mxu0 0
        %602 = vmatpush.bf16.msra.mxu0 0
        %603 = vmatpush.bf16.msra.mxu0 0
        %604 = vmatpush.bf16.msra.mxu0 0
        %605 = vmatpush.bf16.msra.mxu0 0
        %606 = vmatpush.bf16.msra.mxu0 0
        %607 = vmatpush.bf16.msra.mxu0 %v594
        %608 = vmatpush.bf16.msra.mxu0 %v593
        %609 = vmatmul.bf16.gmra.mxu0 %v599
        %v610 = vpop.f32.mrf.mxu0
        %v611 = vadd.f32 %v583, %v610
        %v612 = vpop.f32.mrf.mxu0
        %613 = vdwg.mxu0
        %v614 = vmul.f32 %v611, 0.35355338
        %v615 = vld [vmem:[%s469] sm:$0xff]
        %v616 = vld [vmem:[%s469 + $0x8] sm:$0xff]
        %v617 = vpack.c.bf16 %v615, %v615
        %v618 = vpack.c.bf16 %v616, %v616
        %v619 = vld [vmem:[%s476] sm:$0xff]
        %v620 = vld [vmem:[%s476 + $0x8] sm:$0xff]
        %v621 = vpack.c.bf16 %v619, %v619
        %v622 = vpack.c.bf16 %v620, %v620
        %v623 = vpack.c.bf16 %v614, %v614
        %v626 = vunpack.c.l.b16 %v617
        %v627 = vunpack.c.l.b16 %v618
        %v628 = vpack.c.b16 %v627, %v626
        %vm629 = vcmask 64512
        %v631 = vsel %vm629, %v623, 0
        %v634 = vsel %vm629, %v628, 0
        %636 = vmatpush.bf16.xpose.msra.mxu0 0
        %637 = vmatpush.bf16.xpose.msra.mxu0 0
        %638 = vmatpush.bf16.xpose.msra.mxu0 0
        %639 = vmatpush.bf16.xpose.msra.mxu0 0
        %640 = vmatpush.bf16.xpose.msra.mxu0 0
        %641 = vmatpush.bf16.xpose.msra.mxu0 0
        %642 = vmatpush.bf16.xpose.msra.mxu0 0
        %643 = vmatpush.bf16.xpose.msra.mxu0 %v634
        %644 = vmatmul.bf16.gmra.mxu0 %v631
        %v645 = vpop.f32.mrf.mxu0
        %v646 = vadd.f32 0.0, %v645
        %v647 = vpop.f32.mrf.mxu0
        %648 = vdwg.mxu0
        %vm649 = vcmask 126976
        %v650 = vsel %vm649, %v646, -inf
        %651 = vmax.xlane.f32.xlu0 %v650
        %v652 = vpop.xlane.xlu0 %651
        %v653 = vsub.f32 %v646, %v652
        %v654 = vmul.f32 %v653, 1.442695
        %v655 = vpow.pop %v654
        %v656 = vsel %vm649, %v655, 0.0
        %657 = vadd.xlane.f32.xlu0 %v656
        %v658 = vpop.xlane.xlu0 %657
        %v659 = vrcp.pop %v658
        %v660 = vmul.f32 %v655, %v659
        %v661 = vpack.c.bf16 %v660, %v660
        %v664 = vunpack.c.l.b16 %v621
        %v665 = vunpack.c.l.b16 %v622
        %v666 = vpack.c.b16 %v665, %v664
        %vm668 = vcmask 130048
        %v670 = vsel %vm668, %v661, 0
        %672 = vmatpush.bf16.msra.mxu0 0
        %673 = vmatpush.bf16.msra.mxu0 0
        %674 = vmatpush.bf16.msra.mxu0 0
        %675 = vmatpush.bf16.msra.mxu0 0
        %676 = vmatpush.bf16.msra.mxu0 0
        %677 = vmatpush.bf16.msra.mxu0 0
        %678 = vmatpush.bf16.msra.mxu0 0
        %679 = vmatpush.bf16.msra.mxu0 %v666
        %680 = vmatmul.bf16.gmra.mxu0 %v670
        %v681 = vpop.f32.mrf.mxu0
        %v682 = vadd.f32 0.0, %v681
        %v683 = vpop.f32.mrf.mxu0
        %684 = vdwg.mxu0
        %v685 = vpack.c.bf16 %v682, %v682
        %v686 = vld [vmem:[%s7] sm:$0xf]
        %v687 = vadd.f32 %v660, 0.0
        %s688 = scalar_lea.vmem %s469, 16 [#allocation2]
        %v689 = vld [vmem:[%s688] sm:$0xff]
        %v690 = vld [vmem:[%s688 + $0x8] sm:$0xff]
        %v691 = vpack.c.bf16 %v689, %v689
        %v692 = vpack.c.bf16 %v690, %v690
        %s693 = scalar_lea.vmem %s476, 16 [#allocation3]
        %v694 = vld [vmem:[%s693] sm:$0xff]
        %v695 = vld [vmem:[%s693 + $0x8] sm:$0xff]
        %v696 = vpack.c.bf16 %v694, %v694
        %v697 = vpack.c.bf16 %v695, %v695
        %v699 = vunpack.c.l.b16 %v623
        %v700 = vpack.c.b16 %v699, %v699
        %701 = vrot.lane.b32.xlu0 %v700, 120
        %v702 = vpop.permute.xlu0 %701
        %v705 = vunpack.c.l.b16 %v691
        %v706 = vunpack.c.l.b16 %v692
        %v707 = vpack.c.b16 %v706, %v705
        %v709 = vsel %vm629, %v702, 0
        %v712 = vsel %vm629, %v707, 0
        %714 = vmatpush.bf16.xpose.msra.mxu0 0
        %715 = vmatpush.bf16.xpose.msra.mxu0 0
        %716 = vmatpush.bf16.xpose.msra.mxu0 0
        %717 = vmatpush.bf16.xpose.msra.mxu0 0
        %718 = vmatpush.bf16.xpose.msra.mxu0 0
        %719 = vmatpush.bf16.xpose.msra.mxu0 0
        %720 = vmatpush.bf16.xpose.msra.mxu0 0
        %721 = vmatpush.bf16.xpose.msra.mxu0 %v712
        %722 = vmatmul.bf16.gmra.mxu0 %v709
        %v723 = vpop.f32.mrf.mxu0
        %v724 = vadd.f32 0.0, %v723
        %v725 = vpop.f32.mrf.mxu0
        %726 = vdwg.mxu0
        %v727 = vsel %vm649, %v724, -inf
        %728 = vmax.xlane.f32.xlu0 %v727
        %v729 = vpop.xlane.xlu0 %728
        %v730 = vsub.f32 %v724, %v729
        %v731 = vmul.f32 %v730, 1.442695
        %v732 = vpow.pop %v731
        %v733 = vsel %vm649, %v732, 0.0
        %734 = vadd.xlane.f32.xlu0 %v733
        %v735 = vpop.xlane.xlu0 %734
        %v736 = vrcp.pop %v735
        %v737 = vmul.f32 %v732, %v736
        %v738 = vpack.c.bf16 %v737, %v737
        %v741 = vunpack.c.l.b16 %v696
        %v742 = vunpack.c.l.b16 %v697
        %v743 = vpack.c.b16 %v742, %v741
        %v746 = vsel %vm668, %v738, 0
        %748 = vmatpush.bf16.msra.mxu0 0
        %749 = vmatpush.bf16.msra.mxu0 0
        %750 = vmatpush.bf16.msra.mxu0 0
        %751 = vmatpush.bf16.msra.mxu0 0
        %752 = vmatpush.bf16.msra.mxu0 0
        %753 = vmatpush.bf16.msra.mxu0 0
        %754 = vmatpush.bf16.msra.mxu0 0
        %755 = vmatpush.bf16.msra.mxu0 %v743
        %756 = vmatmul.bf16.gmra.mxu0 %v746
        %v757 = vpop.f32.mrf.mxu0
        %v758 = vadd.f32 0.0, %v757
        %v759 = vpop.f32.mrf.mxu0
        %760 = vdwg.mxu0
        %v761 = vpack.c.bf16 %v758, %v758
        %v762 = vld [vmem:[%s7 + $0x4] sm:$0xf]
        %v764 = vsel %vm629, %v761, 0
        %vm766 = vcmask 1043456
        %v768 = vsel %vm766, %v762, 0
        %770 = vmatpush.bf16.msra.mxu0 0
        %771 = vmatpush.bf16.msra.mxu0 0
        %772 = vmatpush.bf16.msra.mxu0 0
        %773 = vmatpush.bf16.msra.mxu0 0
        %774 = vmatpush.bf16.msra.mxu0 0
        %775 = vmatpush.bf16.msra.mxu0 0
        %776 = vmatpush.bf16.msra.mxu0 0
        %777 = vmatpush.bf16.msra.mxu0 %v768
        %778 = vmatmul.bf16.gmra.mxu0 %v764
        %v779 = vpop.f32.mrf.mxu0
        %v780 = vadd.f32 0.0, %v779
        %v781 = vpop.f32.mrf.mxu0
        %782 = vdwg.mxu0
        %v784 = vsel %vm629, %v685, 0
        %v787 = vsel %vm766, %v686, 0
        %789 = vmatpush.bf16.msra.mxu0 0
        %790 = vmatpush.bf16.msra.mxu0 0
        %791 = vmatpush.bf16.msra.mxu0 0
        %792 = vmatpush.bf16.msra.mxu0 0
        %793 = vmatpush.bf16.msra.mxu0 0
        %794 = vmatpush.bf16.msra.mxu0 0
        %795 = vmatpush.bf16.msra.mxu0 0
        %796 = vmatpush.bf16.msra.mxu0 %v787
        %797 = vmatmul.bf16.gmra.mxu0 %v784
        %v798 = vpop.f32.mrf.mxu0
        %v799 = vadd.f32 %v780, %v798
        %v800 = vpop.f32.mrf.mxu0
        %801 = vdwg.mxu0
        %v802 = vadd.f32 %v687, %v737
        %s803 = scalar_lea.vmem %s469, 32 [#allocation2]
        %v804 = vld [vmem:[%s803] sm:$0xff]
        %v805 = vld [vmem:[%s803 + $0x8] sm:$0xff]
        %v806 = vpack.c.bf16 %v804, %v804
        %v807 = vpack.c.bf16 %v805, %v805
        %s808 = scalar_lea.vmem %s476, 32 [#allocation3]
        %v809 = vld [vmem:[%s808] sm:$0xff]
        %v810 = vld [vmem:[%s808 + $0x8] sm:$0xff]
        %v811 = vpack.c.bf16 %v809, %v809
        %v812 = vpack.c.bf16 %v810, %v810
        %813 = vrot.lane.b32.xlu0 %v700, 112
        %v814 = vpop.permute.xlu0 %813
        %v817 = vunpack.c.l.b16 %v806
        %v818 = vunpack.c.l.b16 %v807
        %v819 = vpack.c.b16 %v818, %v817
        %v821 = vsel %vm629, %v814, 0
        %v824 = vsel %vm629, %v819, 0
        %826 = vmatpush.bf16.xpose.msra.mxu0 0
        %827 = vmatpush.bf16.xpose.msra.mxu0 0
        %828 = vmatpush.bf16.xpose.msra.mxu0 0
        %829 = vmatpush.bf16.xpose.msra.mxu0 0
        %830 = vmatpush.bf16.xpose.msra.mxu0 0
        %831 = vmatpush.bf16.xpose.msra.mxu0 0
        %832 = vmatpush.bf16.xpose.msra.mxu0 0
        %833 = vmatpush.bf16.xpose.msra.mxu0 %v824
        %834 = vmatmul.bf16.gmra.mxu0 %v821
        %v835 = vpop.f32.mrf.mxu0
        %v836 = vadd.f32 0.0, %v835
        %v837 = vpop.f32.mrf.mxu0
        %838 = vdwg.mxu0
        %v839 = vsel %vm649, %v836, -inf
        %840 = vmax.xlane.f32.xlu0 %v839
        %v841 = vpop.xlane.xlu0 %840
        %v842 = vsub.f32 %v836, %v841
        %v843 = vmul.f32 %v842, 1.442695
        %v844 = vpow.pop %v843
        %v845 = vsel %vm649, %v844, 0.0
        %846 = vadd.xlane.f32.xlu0 %v845
        %v847 = vpop.xlane.xlu0 %846
        %v848 = vrcp.pop %v847
        %v849 = vmul.f32 %v844, %v848
        %v850 = vpack.c.bf16 %v849, %v849
        %v853 = vunpack.c.l.b16 %v811
        %v854 = vunpack.c.l.b16 %v812
        %v855 = vpack.c.b16 %v854, %v853
        %v858 = vsel %vm668, %v850, 0
        %860 = vmatpush.bf16.msra.mxu0 0
        %861 = vmatpush.bf16.msra.mxu0 0
        %862 = vmatpush.bf16.msra.mxu0 0
        %863 = vmatpush.bf16.msra.mxu0 0
        %864 = vmatpush.bf16.msra.mxu0 0
        %865 = vmatpush.bf16.msra.mxu0 0
        %866 = vmatpush.bf16.msra.mxu0 0
        %867 = vmatpush.bf16.msra.mxu0 %v855
        %868 = vmatmul.bf16.gmra.mxu0 %v858
        %v869 = vpop.f32.mrf.mxu0
        %v870 = vadd.f32 0.0, %v869
        %v871 = vpop.f32.mrf.mxu0
        %872 = vdwg.mxu0
        %v873 = vpack.c.bf16 %v870, %v870
        %v874 = vld [vmem:[%s7 + $0x8] sm:$0xf]
        %v876 = vsel %vm629, %v873, 0
        %v879 = vsel %vm766, %v874, 0
        %881 = vmatpush.bf16.msra.mxu0 0
        %882 = vmatpush.bf16.msra.mxu0 0
        %883 = vmatpush.bf16.msra.mxu0 0
        %884 = vmatpush.bf16.msra.mxu0 0
        %885 = vmatpush.bf16.msra.mxu0 0
        %886 = vmatpush.bf16.msra.mxu0 0
        %887 = vmatpush.bf16.msra.mxu0 0
        %888 = vmatpush.bf16.msra.mxu0 %v879
        %889 = vmatmul.bf16.gmra.mxu0 %v876
        %v890 = vpop.f32.mrf.mxu0
        %v891 = vadd.f32 0.0, %v890
        %v892 = vpop.f32.mrf.mxu0
        %893 = vdwg.mxu0
        %v894 = vadd.f32 %v799, %v891
        %v895 = vadd.f32 %v802, %v849
        %s896 = scalar_lea.vmem %s469, 48 [#allocation2]
        %v897 = vld [vmem:[%s896] sm:$0xff]
        %v898 = vld [vmem:[%s896 + $0x8] sm:$0xff]
        %v899 = vpack.c.bf16 %v897, %v897
        %v900 = vpack.c.bf16 %v898, %v898
        %s901 = scalar_lea.vmem %s476, 48 [#allocation3]
        %v902 = vld [vmem:[%s901] sm:$0xff]
        %v903 = vld [vmem:[%s901 + $0x8] sm:$0xff]
        %v904 = vpack.c.bf16 %v902, %v902
        %v905 = vpack.c.bf16 %v903, %v903
        %906 = vrot.lane.b32.xlu0 %v700, 104
        %v907 = vpop.permute.xlu0 %906
        %v910 = vunpack.c.l.b16 %v899
        %v911 = vunpack.c.l.b16 %v900
        %v912 = vpack.c.b16 %v911, %v910
        %v914 = vsel %vm629, %v907, 0
        %v917 = vsel %vm629, %v912, 0
        %919 = vmatpush.bf16.xpose.msra.mxu0 0
        %920 = vmatpush.bf16.xpose.msra.mxu0 0
        %921 = vmatpush.bf16.xpose.msra.mxu0 0
        %922 = vmatpush.bf16.xpose.msra.mxu0 0
        %923 = vmatpush.bf16.xpose.msra.mxu0 0
        %924 = vmatpush.bf16.xpose.msra.mxu0 0
        %925 = vmatpush.bf16.xpose.msra.mxu0 0
        %926 = vmatpush.bf16.xpose.msra.mxu0 %v917
        %927 = vmatmul.bf16.gmra.mxu0 %v914
        %v928 = vpop.f32.mrf.mxu0
        %v929 = vadd.f32 0.0, %v928
        %v930 = vpop.f32.mrf.mxu0
        %931 = vdwg.mxu0
        %v932 = vsel %vm649, %v929, -inf
        %933 = vmax.xlane.f32.xlu0 %v932
        %v934 = vpop.xlane.xlu0 %933
        %v935 = vsub.f32 %v929, %v934
        %v936 = vmul.f32 %v935, 1.442695
        %v937 = vpow.pop %v936
        %v938 = vsel %vm649, %v937, 0.0
        %939 = vadd.xlane.f32.xlu0 %v938
        %v940 = vpop.xlane.xlu0 %939
        %v941 = vrcp.pop %v940
        %v942 = vmul.f32 %v937, %v941
        %v943 = vpack.c.bf16 %v942, %v942
        %v946 = vunpack.c.l.b16 %v904
        %v947 = vunpack.c.l.b16 %v905
        %v948 = vpack.c.b16 %v947, %v946
        %v951 = vsel %vm668, %v943, 0
        %953 = vmatpush.bf16.msra.mxu0 0
        %954 = vmatpush.bf16.msra.mxu0 0
        %955 = vmatpush.bf16.msra.mxu0 0
        %956 = vmatpush.bf16.msra.mxu0 0
        %957 = vmatpush.bf16.msra.mxu0 0
        %958 = vmatpush.bf16.msra.mxu0 0
        %959 = vmatpush.bf16.msra.mxu0 0
        %960 = vmatpush.bf16.msra.mxu0 %v948
        %961 = vmatmul.bf16.gmra.mxu0 %v951
        %v962 = vpop.f32.mrf.mxu0
        %v963 = vadd.f32 0.0, %v962
        %v964 = vpop.f32.mrf.mxu0
        %965 = vdwg.mxu0
        %v966 = vpack.c.bf16 %v963, %v963
        %v967 = vld [vmem:[%s7 + $0xc] sm:$0xf]
        %v969 = vsel %vm629, %v966, 0
        %v972 = vsel %vm766, %v967, 0
        %974 = vmatpush.bf16.msra.mxu0 0
        %975 = vmatpush.bf16.msra.mxu0 0
        %976 = vmatpush.bf16.msra.mxu0 0
        %977 = vmatpush.bf16.msra.mxu0 0
        %978 = vmatpush.bf16.msra.mxu0 0
        %979 = vmatpush.bf16.msra.mxu0 0
        %980 = vmatpush.bf16.msra.mxu0 0
        %981 = vmatpush.bf16.msra.mxu0 %v972
        %982 = vmatmul.bf16.gmra.mxu0 %v969
        %v983 = vpop.f32.mrf.mxu0
        %v984 = vadd.f32 0.0, %v983
        %v985 = vpop.f32.mrf.mxu0
        %986 = vdwg.mxu0
        %v987 = vadd.f32 %v894, %v984
        %v988 = vadd.f32 %v895, %v942
        %v989 = vld [vmem:[%s8] sm:$0x1]
        %v991 = vperm.slane %v989, 0
        %v993 = vadd.f32 %v987, %v991
        %v994 = vadd.f32 %v993, %v535
        %995 = vst.msk [vmem:[%s529] sm:$0x1f] %vm536, %v994
        %v996 = vmul.f32 %v988, 0.25
        %997 = vst.msk [vmem:[%s533] sm:$0x1f] %vm649, %v996
        %p998 = scmp.lt.s32.totalorder %s22, 1
        %s999 = scalar_select %p998, %s22, 1
        %s1000 = smul.addr %s999, 8
        %s1001 = scalar_lea.vmem %s9, %s1000
        %p1002 = scmp.lt.s32.totalorder %s22, 1
        %s1003 = scalar_select %p1002, %s22, 1
        %s1004 = smul.addr %s1003, 8
        %s1005 = scalar_lea.vmem %s10, %s1004
        // Predicated region
        $region133: #{hoi_vision_transformer_forward.21} parent=123 // pred_check
          %p1006 = pneg %p244
        $region134: #{hoi_vision_transformer_forward.21} parent=123 // pred_check_branch
          %1008 = sbr.rel (%p1006) target = $region136
        $region135: #{hoi_vision_transformer_forward.21} parent=123 // pred_region
          _
        $region136: #{hoi_vision_transformer_forward.21} parent=123 // pred_fallthru
          _
        // Predicated region
        $region137: #{hoi_vision_transformer_forward.21} parent=123 // pred_check
          %p1009 = pneg %p270
        $region138: #{hoi_vision_transformer_forward.21} parent=123 // pred_check_branch
          %1011 = sbr.rel (%p1009) target = $region140
        $region139: #{hoi_vision_transformer_forward.21} parent=123 // pred_region
          _
        $region140: #{hoi_vision_transformer_forward.21} parent=123 // pred_fallthru
          _
      $region124: #{hoi_vision_transformer_forward.21} parent=5 // pred_fallthru
        _
      %p1012 = scmp.le.s32.totalorder 2, %s17
      // Predicated region
      $region141: #{hoi_vision_transformer_forward.21} parent=5 // pred_check
        %p1013 = pneg %p1012
      $region142: #{hoi_vision_transformer_forward.21} parent=5 // pred_check_branch
        %1015 = sbr.rel (%p1013) target = $region144
      $region143: #{hoi_vision_transformer_forward.21} parent=5 // pred_region
        %s1016 = ssub.s32 %s17, 2
        // Predicated region
        $region145: #{hoi_vision_transformer_forward.21} parent=143 // pred_check
          %p1017 = pneg %p250
        $region146: #{hoi_vision_transformer_forward.21} parent=143 // pred_check_branch
          %1019 = sbr.rel (%p1017) target = $region148
        $region147: #{hoi_vision_transformer_forward.21} parent=143 // pred_region
          %p1020 = scmp.lt.s32.totalorder %s23, 1
          %s1021 = scalar_select %p1020, %s23, 1
          %s1022 = smul.addr %s1021, 8
          %s1023 = scalar_lea.vmem %s9, %s1022
        $region148: #{hoi_vision_transformer_forward.21} parent=143 // pred_fallthru
          _
        // Predicated region
        $region149: #{hoi_vision_transformer_forward.21} parent=143 // pred_check
          %p1024 = pneg %p276
        $region150: #{hoi_vision_transformer_forward.21} parent=143 // pred_check_branch
          %1026 = sbr.rel (%p1024) target = $region152
        $region151: #{hoi_vision_transformer_forward.21} parent=143 // pred_region
          %p1027 = scmp.lt.s32.totalorder %s23, 1
          %s1028 = scalar_select %p1027, %s23, 1
          %s1029 = smul.addr %s1028, 8
          %s1030 = scalar_lea.vmem %s10, %s1029
        $region152: #{hoi_vision_transformer_forward.21} parent=143 // pred_fallthru
          _
      $region144: #{hoi_vision_transformer_forward.21} parent=5 // pred_fallthru
        _
    $region6: #{hoi_vision_transformer_forward.21} parent=1 // loop_footer
      %s21 = sadd.s32 1, %s17
    $region7: #{hoi_vision_transformer_forward.21} parent=1 // loop_footer_branch
      %16 = sbr.rel target = $region3
    $region8: #{hoi_vision_transformer_forward.21} parent=1 // loop_exit
      _

</llo_original>
